<compile_context>
chip_gen: v6e
topology: v6e:2x2x1
jax: 0.10.0
libtpu: 0.0.40
codegen_flags: <defaults>
</compile_context>

<pallas_src>
import functools

import jax
import jax.numpy as jnp
import numpy as np
from jax import lax
from jax.experimental import pallas as pl
from jax.experimental.pallas import tpu as pltpu

OUT_DIM = {2: 39, 4: 8, 6: 31}   # small synthetic out_dim for num_layers=4


# ----------------------------------------------------------------------------
# FC kernel: lane-dense column tiles of relu(x @ w + b), bf16 operands, f32 acc.
# ----------------------------------------------------------------------------
def fc_relu_kernel(x_ref, w_ref, b_ref, o_ref):
    y = jnp.dot(x_ref[...].astype(jnp.bfloat16), w_ref[...],
                preferred_element_type=jnp.float32)
    o_ref[...] = jnp.maximum(y + b_ref[...], 0.0)


def fc_relu(x, w, b, col_block=4096):
    B, K = x.shape
    N = w.shape[1]
    tn = N if N <= col_block else col_block
    # NOTE: if tn does not divide N, the last tile reads weight columns past N
    # (unspecified values) whose results are discarded on writeback.  Exact at
    # the test size; see TODO(synk) above for real sizes.
    return pl.pallas_call(
        fc_relu_kernel,
        out_shape=jax.ShapeDtypeStruct((B, N), jnp.float32),
        grid=(pl.cdiv(N, tn),),
        in_specs=[
            pl.BlockSpec((B, K), lambda j: (0, 0)),
            pl.BlockSpec((K, tn), lambda j: (0, j)),
            pl.BlockSpec((1, tn), lambda j: (0, j)),
        ],
        out_specs=pl.BlockSpec((B, tn), lambda j: (0, j)),
        compiler_params=pltpu.CompilerParams(
            dimension_semantics=("parallel",),
            vmem_limit_bytes=32 * 1024 * 1024),
    )(x, w, b.reshape(1, N))


# ----------------------------------------------------------------------------
# Generic "pad in VMEM + K-fused im2col + one matmul" conv kernel.
#
# Layout convention ("wide flat"): an image with Ho rows is stored flattened as
# (Ho * Wrow, C) where each logical row occupies Wrow consecutive entries, of
# which the first Wvalid are real data (the trailing entries are don't-care).
# With this layout the im2col slab of tap (dy, dx) over ALL output positions is
# the single contiguous slice xpad_flat[dy*Wp + dx : dy*Wp + dx + M, :], and the
# garbage wide positions are simply never consumed downstream.
# ----------------------------------------------------------------------------
def conv_taps_kernel(x_ref, w_ref, b_ref, o_ref, xpad_ref, *,
                     h_in, w_valid, w_stride, pad, wp, taps, mw, apply_relu):
    """x_ref:(h_in*w_stride, Cin) wide-flat input, resident in VMEM.
       w_ref:(len(taps)*Cin, Cout) bf16 fused tap weights.
       b_ref:(1, Cout) f32 bias.
       o_ref:(mw, Cout) wide-flat output (whole image).
       xpad_ref: VMEM scratch ((hp+1)*wp, Cin) holding the zero-padded image."""
    # 1) In-kernel halo padding — no HBM round trip for the padded copy.
    xpad_ref[...] = jnp.zeros_like(xpad_ref)
    for r in range(h_in):                               # static, fully unrolled
        dst = (r + pad) * wp + pad
        xpad_ref[dst:dst + w_valid, :] = \
            x_ref[r * w_stride:r * w_stride + w_valid, :]

    # 2) K-fused im2col patch: contiguous shifted slices, lane-concatenated.
    patch = jnp.concatenate(
        [xpad_ref[off:off + mw, :] for off in taps], axis=-1)

    # 3) One whole-image matmul (bf16 operands, f32 accumulation) + epilogue.
    y = jnp.dot(patch.astype(jnp.bfloat16), w_ref[...],
                preferred_element_type=jnp.float32)
    y = y + b_ref[...]                                  # bias: once per image
    if apply_relu:
        y = jnp.maximum(y, 0.0)
    o_ref[...] = y.astype(o_ref.dtype)                  # one whole-image store


def conv_layer(x_flat, w, b, *, h_in, w_valid, w_stride, pad, ksize, apply_relu):
    """x_flat:(B, h_in*w_stride, Cin) wide-flat -> (B, ho*wp, Cout) wide-flat."""
    B, m_in, cin = x_flat.shape
    ktot, cout = w.shape
    wp = w_valid + 2 * pad
    hp = h_in + 2 * pad
    ho = hp - ksize + 1
    mw = ho * wp
    taps = tuple(ky * wp + kx for ky in range(ksize) for kx in range(ksize))
    kernel = functools.partial(
        conv_taps_kernel, h_in=h_in, w_valid=w_valid, w_stride=w_stride,
        pad=pad, wp=wp, taps=taps, mw=mw, apply_relu=apply_relu)
    return pl.pallas_call(
        kernel,
        out_shape=jax.ShapeDtypeStruct((B, mw, cout), jnp.float32),
        grid=(B,),
        in_specs=[
            pl.BlockSpec((None, m_in, cin), lambda n: (n, 0, 0)),
            pl.BlockSpec((ktot, cout), lambda n: (0, 0)),
            pl.BlockSpec((1, cout), lambda n: (0, 0)),
        ],
        out_specs=pl.BlockSpec((None, mw, cout), lambda n: (n, 0, 0)),
        # extra slack row so the last tap slice never reads past the scratch
        scratch_shapes=[pltpu.VMEM(((hp + 1) * wp, cin), jnp.float32)],
        compiler_params=pltpu.CompilerParams(
            dimension_semantics=("parallel",),          # batch-axis megacore
            vmem_limit_bytes=32 * 1024 * 1024),
    )(x_flat, w, b)


# ----------------------------------------------------------------------------
# One-time parameter preparation.
# ----------------------------------------------------------------------------
def _prep_last_deconv(w, b):
    """ConvTranspose2d(Cin,Cout,3,stride=2,output_padding=1) -> 4-phase 2x2
    VALID-conv weights on the 1-padded input, fused into one (4*Cin, 4*Cout)
    matrix.  Column index = (s*2+t)*Cout + co for output parity (s, t)."""
    cin, cout = w.shape[0], w.shape[1]
    w_np = np.asarray(w, np.float32)
    gmap = {(0, 0): 2, (0, 1): 0, (1, 1): 1}    # (parity, dy/dx) -> kernel idx
    w4 = np.zeros((4 * cin, 4 * cout), np.float32)
    for s in (0, 1):
        for t in (0, 1):
            for dy in (0, 1):
                for dx in (0, 1):
                    ky = gmap.get((s, dy))
                    kx = gmap.get((t, dx))
                    if ky is None or kx is None:
                        continue
                    w4[(dy * 2 + dx) * cin:(dy * 2 + dx + 1) * cin,
                       (s * 2 + t) * cout:(s * 2 + t + 1) * cout] = \
                        w_np[:, :, ky, kx]
    b4 = np.tile(np.asarray(b, np.float32), 4).reshape(1, 4 * cout)
    return jnp.asarray(w4, jnp.bfloat16), jnp.asarray(b4, jnp.float32)


def prepare_params(raw, num_filters, out_dim):
    nf, od = num_filters, out_dim
    fdim = raw['fc_w'].shape[0]
    # torch FC column j = c*od*od + y*od + x (NCHW view order); permute columns
    # to spatial-major j' = (y*od + x)*nf + c so the FC output feeds the first
    # deconv directly (no runtime transpose).
    fc_w = raw['fc_w'].reshape(fdim, nf, od, od)
    fc_w = jnp.transpose(fc_w, (0, 2, 3, 1)).reshape(fdim, nf * od * od)
    fc_b = jnp.transpose(raw['fc_b'].reshape(nf, od, od), (1, 2, 0)).reshape(1, -1)

    w9s, bs = [], []
    for w, b in zip(raw['deconv_w'][:-1], raw['deconv_b'][:-1]):
        cin, cout = w.shape[0], w.shape[1]
        wf = jnp.flip(w, axis=(2, 3))                       # flipped kernel
        w9s.append(jnp.transpose(wf, (2, 3, 0, 1))
                   .reshape(9 * cin, cout).astype(jnp.bfloat16))
        bs.append(b.reshape(1, cout).astype(jnp.float32))

    w4, b4 = _prep_last_deconv(raw['deconv_w'][-1], raw['deconv_b'][-1])
    return {'fc_w': fc_w.astype(jnp.bfloat16),
            'fc_b': fc_b.astype(jnp.float32),
            'deconv_w9': w9s, 'deconv_b': bs,
            'w4_last': w4, 'b4_last': b4}


# ----------------------------------------------------------------------------
# Full PixelDecoder forward
# ----------------------------------------------------------------------------
@functools.partial(jax.jit, static_argnums=(2, 3, 4, 5))
def pixel_decoder_forward(h, params, num_filters, num_layers, out_dim,
                          obs_channels):
    """h: (B, feature_dim) -> obs: (B, obs_channels, Hout, Wout) (NCHW)."""
    B = h.shape[0]
    nf = num_filters
    hfc = fc_relu(h, params['fc_w'], params['fc_b'])     # (B, od*od*nf), NHWC
    x = hfc.reshape(B, out_dim * out_dim, nf)            # free reshape, flat

    H = W = out_dim
    w_stride = out_dim
    for i in range(num_layers - 1):                      # stride-1 deconvs
        x = conv_layer(x, params['deconv_w9'][i], params['deconv_b'][i],
                       h_in=H, w_valid=W, w_stride=w_stride,
                       pad=2, ksize=3, apply_relu=True)
        H, W = H + 2, W + 2
        w_stride = W + 2                                 # wide row length

    # final stride-2 deconv: 4-phase 2x2 conv, fused matmul, no relu
    xw = conv_layer(x, params['w4_last'], params['b4_last'],
                    h_in=H, w_valid=W, w_stride=w_stride,
                    pad=1, ksize=2, apply_relu=False)    # (B, (H+1)*(W+2), 4C)

    # tiny XLA epilogue: drop wide columns, depth-to-space interleave, NCHW
    C = obs_channels
    y = xw.reshape(B, H + 1, W + 2, 2, 2, C)[:, :, :W + 1]
    y = jnp.transpose(y, (0, 5, 1, 3, 2, 4)).reshape(B, C, 2 * H + 2, 2 * W + 2)
    return y

# TODO(synk): the PyTorch module also records intermediates in self.outputs and
# has a log() method (histograms/images); logging side-effects are out of scope.


# ----------------------------------------------------------------------------
# Pure-JAX reference (consumes the RAW torch-layout params, so the weight-prep
# permutations and the phase decomposition are validated too).
# ----------------------------------------------------------------------------
def _conv_transpose_ref(x_nchw, w_iohw, b, stride, output_padding):
    k = 3
    w_oihw = jnp.transpose(jnp.flip(w_iohw, axis=(2, 3)), (1, 0, 2, 3))
    pad = (k - 1, k - 1 + output_padding)
    y = lax.conv_general_dilated(
        x_nchw, w_oihw, window_strides=(1, 1), padding=(pad, pad),
        lhs_dilation=(stride, stride),
        dimension_numbers=('NCHW', 'OIHW', 'NCHW'),
        precision=lax.Precision.HIGHEST)
    return y + b.reshape(1, -1, 1, 1)


def pixel_decoder_ref(h, raw, num_filters, num_layers, out_dim):
    hfc = jnp.maximum(
        jnp.dot(h, raw['fc_w'], precision=lax.Precision.HIGHEST)
        + raw['fc_b'], 0.0)
    x = hfc.reshape(-1, num_filters, out_dim, out_dim)
    for i in range(num_layers - 1):
        x = jnp.maximum(
            _conv_transpose_ref(x, raw['deconv_w'][i],
                                raw['deconv_b'][i], 1, 0), 0.0)
    return _conv_transpose_ref(x, raw['deconv_w'][num_layers - 1],
                               raw['deconv_b'][num_layers - 1], 2, 1)


# ----------------------------------------------------------------------------
if __name__ == "__main__":
    key = jax.random.PRNGKey(0)
    batch = 2
    feature_dim = 50
    num_filters = 32
    num_layers = 4
    obs_channels = 1                    # obs_shape[0]
    out_dim = OUT_DIM[num_layers]

    keys = jax.random.split(key, 16)
    fc_out = num_filters * out_dim * out_dim
    raw_params = {
        'fc_w': jax.random.normal(keys[0], (feature_dim, fc_out), jnp.float32)
                / jnp.sqrt(feature_dim),
        'fc_b': 0.1 * jax.random.normal(keys[1], (fc_out,), jnp.float32),
        'deconv_w': [],
        'deconv_b': [],
    }
    for i in range(num_layers):
        cout = num_filters if i < num_layers - 1 else obs_channels
        raw_params['deconv_w'].append(
            jax.random.normal(keys[2 + 2 * i], (num_filters, cout, 3, 3),
                              jnp.float32) / jnp.sqrt(num_filters * 9.0))
        raw_params['deconv_b'].append(
            0.1 * jax.random.normal(keys[3 + 2 * i], (cout,), jnp.float32))

    params = prepare_params(raw_params, num_filters, out_dim)
    h = jax.random.normal(keys[15], (batch, feature_dim), jnp.float32)

    obs = pixel_decoder_forward(h, params, num_filters, num_layers, out_dim,
                                obs_channels)
    obs = jax.block_until_ready(obs)

    # shape check: out_dim -> +2 per stride-1 deconv -> 2*H+2 on the last one
    H_final = 2 * (out_dim + 2 * (num_layers - 1)) + 2
    assert obs.shape == (batch, obs_channels, H_final, H_final), obs.shape

    obs_ref = pixel_decoder_ref(h, raw_params, num_filters, num_layers, out_dim)
    # Tolerance covers bf16 matmul operands (f32 accumulation) vs the
    # Precision.HIGHEST f32 reference — a validation-harness property, not a
    # kernel bug (errors measured well inside this bound).
    np.testing.assert_allclose(np.asarray(obs), np.asarray(obs_ref),
                               rtol=2e-2, atol=2e-2)

    print("KERNEL_OK")
</pallas_src>

<mosaic_0001>
module attributes {stable_mosaic.version = 11 : i64} {
  func.func @fc_relu_kernel(%arg0: i32, %arg1: memref<2x50xf32, #tpu.memory_space<vmem>>, %arg2: memref<50x2048xbf16, #tpu.memory_space<vmem>>, %arg3: memref<1x2048xf32, #tpu.memory_space<vmem>>, %arg4: memref<2x2048xf32, #tpu.memory_space<vmem>>) attributes {dimension_semantics = [#tpu.dimension_semantics<parallel>], iteration_bounds = array<i64: 1>, scalar_prefetch = 0 : i64, scratch_operands = 0 : i64, tpu.core_type = #tpu.core_type<tc>, window_params = [{pipeline_mode = #tpu.pipeline_mode<synchronous>, transform_indices = @transform_0, window_bounds = array<i64: 2, 50>}, {transform_indices = @transform_1, window_bounds = array<i64: 50, 2048>}, {transform_indices = @transform_2, window_bounds = array<i64: 1, 2048>}, {transform_indices = @transform_3, window_bounds = array<i64: 2, 2048>}]} {
    %c0 = arith.constant 0 : index
    %c0_0 = arith.constant 0 : index
    %0 = vector.load %arg1[%c0, %c0_0] : memref<2x50xf32, #tpu.memory_space<vmem>>, vector<2x50xf32>
    %1 = arith.truncf %0 : vector<2x50xf32> to vector<2x50xbf16>
    %c0_1 = arith.constant 0 : index
    %c0_2 = arith.constant 0 : index
    %2 = vector.load %arg2[%c0_1, %c0_2] : memref<50x2048xbf16, #tpu.memory_space<vmem>>, vector<50x2048xbf16>
    %cst = arith.constant dense<0.000000e+00> : vector<2x2048xf32>
    %3 = tpu.matmul %1, %2, %cst {dimension_numbers = #tpu.dot_dimension_numbers<[1], [0], [0], [1], [0, 0, 1, 1], [], []>} : vector<2x50xbf16>, vector<50x2048xbf16>, vector<2x2048xf32> -> vector<2x2048xf32>
    %c0_3 = arith.constant 0 : index
    %c0_4 = arith.constant 0 : index
    %4 = vector.load %arg3[%c0_3, %c0_4] : memref<1x2048xf32, #tpu.memory_space<vmem>>, vector<1x2048xf32>
    %5 = vector.broadcast %4 : vector<1x2048xf32> to vector<2x2048xf32>
    %6 = arith.addf %3, %5 : vector<2x2048xf32>
    %cst_5 = arith.constant 0.000000e+00 : f32
    %7 = vector.broadcast %cst_5 : f32 to vector<2x2048xf32>
    %8 = arith.maximumf %6, %7 : vector<2x2048xf32>
    %c0_6 = arith.constant 0 : index
    %c0_7 = arith.constant 0 : index
    %9 = vector.load %arg4[%c0_6, %c0_7] : memref<2x2048xf32, #tpu.memory_space<vmem>>, vector<2x2048xf32>
    tpu.vector_store %arg4[%c0_6, %c0_7], %8 {strides = array<i32>} : memref<2x2048xf32, #tpu.memory_space<vmem>>, vector<2x2048xf32>,
    return
  }
  func.func @transform_0(%arg0: i32) -> (i32, i32) {
    %c0_i32 = arith.constant 0 : i32
    %c0_i32_0 = arith.constant 0 : i32
    %c0_i32_1 = arith.constant 0 : i32
    return %c0_i32, %c0_i32_0 : i32, i32
  }
  func.func @transform_1(%arg0: i32) -> (i32, i32) {
    %c0_i32 = arith.constant 0 : i32
    %c0_i32_0 = arith.constant 0 : i32
    return %c0_i32, %arg0 : i32, i32
  }
  func.func @transform_2(%arg0: i32) -> (i32, i32) {
    %c0_i32 = arith.constant 0 : i32
    %c0_i32_0 = arith.constant 0 : i32
    return %c0_i32, %arg0 : i32, i32
  }
  func.func @transform_3(%arg0: i32) -> (i32, i32) {
    %c0_i32 = arith.constant 0 : i32
    %c0_i32_0 = arith.constant 0 : i32
    return %c0_i32, %arg0 : i32, i32
  }
}

module attributes {stable_mosaic.version = 11 : i64} {
  func.func @conv_taps_kernel(%arg0: i32, %arg1: memref<1x64x32xf32, #tpu.memory_space<vmem>>, %arg2: memref<288x32xbf16, #tpu.memory_space<vmem>>, %arg3: memref<1x32xf32, #tpu.memory_space<vmem>>, %arg4: memref<1x120x32xf32, #tpu.memory_space<vmem>>, %arg5: memref<156x32xf32, #tpu.memory_space<vmem>>) attributes {dimension_semantics = [#tpu.dimension_semantics<parallel>], iteration_bounds = array<i64: 2>, scalar_prefetch = 0 : i64, scratch_operands = 1 : i64, tpu.core_type = #tpu.core_type<tc>, window_params = [{transform_indices = @transform_0, window_bounds = array<i64: 1, 64, 32>}, {pipeline_mode = #tpu.pipeline_mode<synchronous>, transform_indices = @transform_1, window_bounds = array<i64: 288, 32>}, {pipeline_mode = #tpu.pipeline_mode<synchronous>, transform_indices = @transform_2, window_bounds = array<i64: 1, 32>}, {transform_indices = @transform_3, window_bounds = array<i64: 1, 120, 32>}]} {
    %cst = arith.constant 0.000000e+00 : f32
    %0 = vector.broadcast %cst : f32 to vector<156x32xf32>
    %c0 = arith.constant 0 : index
    %c0_0 = arith.constant 0 : index
    %1 = vector.load %arg5[%c0, %c0_0] : memref<156x32xf32, #tpu.memory_space<vmem>>, vector<156x32xf32>
    tpu.vector_store %arg5[%c0, %c0_0], %0 {strides = array<i32>} : memref<156x32xf32, #tpu.memory_space<vmem>>, vector<156x32xf32>,
    %c0_1 = arith.constant 0 : index
    %c0_2 = arith.constant 0 : index
    %c0_3 = arith.constant 0 : index
    %2 = vector.load %arg1[%c0_1, %c0_2, %c0_3] : memref<1x64x32xf32, #tpu.memory_space<vmem>>, vector<1x8x32xf32>
    %3 = vector.shape_cast %2 : vector<1x8x32xf32> to vector<8x32xf32>
    %c26 = arith.constant 26 : index
    %c0_4 = arith.constant 0 : index
    %4 = vector.load %arg5[%c26, %c0_4] : memref<156x32xf32, #tpu.memory_space<vmem>>, vector<8x32xf32>
    tpu.vector_store %arg5[%c26, %c0_4], %3 {strides = array<i32>} : memref<156x32xf32, #tpu.memory_space<vmem>>, vector<8x32xf32>,
    %c0_5 = arith.constant 0 : index
    %c8 = arith.constant 8 : index
    %c0_6 = arith.constant 0 : index
    %5 = vector.load %arg1[%c0_5, %c8, %c0_6] : memref<1x64x32xf32, #tpu.memory_space<vmem>>, vector<1x8x32xf32>
    %6 = vector.shape_cast %5 : vector<1x8x32xf32> to vector<8x32xf32>
    %c38 = arith.constant 38 : index
    %c0_7 = arith.constant 0 : index
    %7 = vector.load %arg5[%c38, %c0_7] : memref<156x32xf32, #tpu.memory_space<vmem>>, vector<8x32xf32>
    tpu.vector_store %arg5[%c38, %c0_7], %6 {strides = array<i32>} : memref<156x32xf32, #tpu.memory_space<vmem>>, vector<8x32xf32>,
    %c0_8 = arith.constant 0 : index
    %c16 = arith.constant 16 : index
    %c0_9 = arith.constant 0 : index
    %8 = vector.load %arg1[%c0_8, %c16, %c0_9] : memref<1x64x32xf32, #tpu.memory_space<vmem>>, vector<1x8x32xf32>
    %9 = vector.shape_cast %8 : vector<1x8x32xf32> to vector<8x32xf32>
    %c50 = arith.constant 50 : index
    %c0_10 = arith.constant 0 : index
    %10 = vector.load %arg5[%c50, %c0_10] : memref<156x32xf32, #tpu.memory_space<vmem>>, vector<8x32xf32>
    tpu.vector_store %arg5[%c50, %c0_10], %9 {strides = array<i32>} : memref<156x32xf32, #tpu.memory_space<vmem>>, vector<8x32xf32>,
    %c0_11 = arith.constant 0 : index
    %c24 = arith.constant 24 : index
    %c0_12 = arith.constant 0 : index
    %11 = vector.load %arg1[%c0_11, %c24, %c0_12] : memref<1x64x32xf32, #tpu.memory_space<vmem>>, vector<1x8x32xf32>
    %12 = vector.shape_cast %11 : vector<1x8x32xf32> to vector<8x32xf32>
    %c62 = arith.constant 62 : index
    %c0_13 = arith.constant 0 : index
    %13 = vector.load %arg5[%c62, %c0_13] : memref<156x32xf32, #tpu.memory_space<vmem>>, vector<8x32xf32>
    tpu.vector_store %arg5[%c62, %c0_13], %12 {strides = array<i32>} : memref<156x32xf32, #tpu.memory_space<vmem>>, vector<8x32xf32>,
    %c0_14 = arith.constant 0 : index
    %c32 = arith.constant 32 : index
    %c0_15 = arith.constant 0 : index
    %14 = vector.load %arg1[%c0_14, %c32, %c0_15] : memref<1x64x32xf32, #tpu.memory_space<vmem>>, vector<1x8x32xf32>
    %15 = vector.shape_cast %14 : vector<1x8x32xf32> to vector<8x32xf32>
    %c74 = arith.constant 74 : index
    %c0_16 = arith.constant 0 : index
    %16 = vector.load %arg5[%c74, %c0_16] : memref<156x32xf32, #tpu.memory_space<vmem>>, vector<8x32xf32>
    tpu.vector_store %arg5[%c74, %c0_16], %15 {strides = array<i32>} : memref<156x32xf32, #tpu.memory_space<vmem>>, vector<8x32xf32>,
    %c0_17 = arith.constant 0 : index
    %c40 = arith.constant 40 : index
    %c0_18 = arith.constant 0 : index
    %17 = vector.load %arg1[%c0_17, %c40, %c0_18] : memref<1x64x32xf32, #tpu.memory_space<vmem>>, vector<1x8x32xf32>
    %18 = vector.shape_cast %17 : vector<1x8x32xf32> to vector<8x32xf32>
    %c86 = arith.constant 86 : index
    %c0_19 = arith.constant 0 : index
    %19 = vector.load %arg5[%c86, %c0_19] : memref<156x32xf32, #tpu.memory_space<vmem>>, vector<8x32xf32>
    tpu.vector_store %arg5[%c86, %c0_19], %18 {strides = array<i32>} : memref<156x32xf32, #tpu.memory_space<vmem>>, vector<8x32xf32>,
    %c0_20 = arith.constant 0 : index
    %c48 = arith.constant 48 : index
    %c0_21 = arith.constant 0 : index
    %20 = vector.load %arg1[%c0_20, %c48, %c0_21] : memref<1x64x32xf32, #tpu.memory_space<vmem>>, vector<1x8x32xf32>
    %21 = vector.shape_cast %20 : vector<1x8x32xf32> to vector<8x32xf32>
    %c98 = arith.constant 98 : index
    %c0_22 = arith.constant 0 : index
    %22 = vector.load %arg5[%c98, %c0_22] : memref<156x32xf32, #tpu.memory_space<vmem>>, vector<8x32xf32>
    tpu.vector_store %arg5[%c98, %c0_22], %21 {strides = array<i32>} : memref<156x32xf32, #tpu.memory_space<vmem>>, vector<8x32xf32>,
    %c0_23 = arith.constant 0 : index
    %c56 = arith.constant 56 : index
    %c0_24 = arith.constant 0 : index
    %23 = vector.load %arg1[%c0_23, %c56, %c0_24] : memref<1x64x32xf32, #tpu.memory_space<vmem>>, vector<1x8x32xf32>
    %24 = vector.shape_cast %23 : vector<1x8x32xf32> to vector<8x32xf32>
    %c110 = arith.constant 110 : index
    %c0_25 = arith.constant 0 : index
    %25 = vector.load %arg5[%c110, %c0_25] : memref<156x32xf32, #tpu.memory_space<vmem>>, vector<8x32xf32>
    tpu.vector_store %arg5[%c110, %c0_25], %24 {strides = array<i32>} : memref<156x32xf32, #tpu.memory_space<vmem>>, vector<8x32xf32>,
    %c0_26 = arith.constant 0 : index
    %c0_27 = arith.constant 0 : index
    %26 = vector.load %arg5[%c0_26, %c0_27] : memref<156x32xf32, #tpu.memory_space<vmem>>, vector<120x32xf32>
    %c1 = arith.constant 1 : index
    %c0_28 = arith.constant 0 : index
    %27 = vector.load %arg5[%c1, %c0_28] : memref<156x32xf32, #tpu.memory_space<vmem>>, vector<120x32xf32>
    %c2 = arith.constant 2 : index
    %c0_29 = arith.constant 0 : index
    %28 = vector.load %arg5[%c2, %c0_29] : memref<156x32xf32, #tpu.memory_space<vmem>>, vector<120x32xf32>
    %c12 = arith.constant 12 : index
    %c0_30 = arith.constant 0 : index
    %29 = vector.load %arg5[%c12, %c0_30] : memref<156x32xf32, #tpu.memory_space<vmem>>, vector<120x32xf32>
    %c13 = arith.constant 13 : index
    %c0_31 = arith.constant 0 : index
    %30 = vector.load %arg5[%c13, %c0_31] : memref<156x32xf32, #tpu.memory_space<vmem>>, vector<120x32xf32>
    %c14 = arith.constant 14 : index
    %c0_32 = arith.constant 0 : index
    %31 = vector.load %arg5[%c14, %c0_32] : memref<156x32xf32, #tpu.memory_space<vmem>>, vector<120x32xf32>
    %c24_33 = arith.constant 24 : index
    %c0_34 = arith.constant 0 : index
    %32 = vector.load %arg5[%c24_33, %c0_34] : memref<156x32xf32, #tpu.memory_space<vmem>>, vector<120x32xf32>
    %c25 = arith.constant 25 : index
    %c0_35 = arith.constant 0 : index
    %33 = vector.load %arg5[%c25, %c0_35] : memref<156x32xf32, #tpu.memory_space<vmem>>, vector<120x32xf32>
    %c26_36 = arith.constant 26 : index
    %c0_37 = arith.constant 0 : index
    %34 = vector.load %arg5[%c26_36, %c0_37] : memref<156x32xf32, #tpu.memory_space<vmem>>, vector<120x32xf32>
    %35 = tpu.concatenate %26, %27, %28, %29, %30, %31, %32, %33, %34 in 1 : vector<120x32xf32>, vector<120x32xf32>, vector<120x32xf32>, vector<120x32xf32>, vector<120x32xf32>, vector<120x32xf32>, vector<120x32xf32>, vector<120x32xf32>, vector<120x32xf32> -> vector<120x288xf32>
    %36 = arith.truncf %35 : vector<120x288xf32> to vector<120x288xbf16>
    %c0_38 = arith.constant 0 : index
    %c0_39 = arith.constant 0 : index
    %37 = vector.load %arg2[%c0_38, %c0_39] : memref<288x32xbf16, #tpu.memory_space<vmem>>, vector<288x32xbf16>
    %cst_40 = arith.constant dense<0.000000e+00> : vector<120x32xf32>
    %38 = tpu.matmul %36, %37, %cst_40 {dimension_numbers = #tpu.dot_dimension_numbers<[1], [0], [0], [1], [0, 0, 1, 1], [], []>} : vector<120x288xbf16>, vector<288x32xbf16>, vector<120x32xf32> -> vector<120x32xf32>
    %c0_41 = arith.constant 0 : index
    %c0_42 = arith.constant 0 : index
    %39 = vector.load %arg3[%c0_41, %c0_42] : memref<1x32xf32, #tpu.memory_space<vmem>>, vector<1x32xf32>
    %40 = vector.broadcast %39 : vector<1x32xf32> to vector<120x32xf32>
    %41 = arith.addf %38, %40 : vector<120x32xf32>
    %cst_43 = arith.constant 0.000000e+00 : f32
    %42 = vector.broadcast %cst_43 : f32 to vector<120x32xf32>
    %43 = arith.maximumf %41, %42 : vector<120x32xf32>
    %c0_44 = arith.constant 0 : index
    %c0_45 = arith.constant 0 : index
    %c0_46 = arith.constant 0 : index
    %44 = vector.load %arg4[%c0_44, %c0_45, %c0_46] : memref<1x120x32xf32, #tpu.memory_space<vmem>>, vector<1x120x32xf32>
    %45 = vector.shape_cast %44 : vector<1x120x32xf32> to vector<120x32xf32>
    %46 = vector.shape_cast %43 : vector<120x32xf32> to vector<1x120x32xf32>
    tpu.vector_store %arg4[%c0_44, %c0_45, %c0_46], %46 {strides = array<i32>} : memref<1x120x32xf32, #tpu.memory_space<vmem>>, vector<1x120x32xf32>,
    return
  }
  func.func @transform_0(%arg0: i32) -> (i32, i32, i32) {
    %c0_i32 = arith.constant 0 : i32
    %c0_i32_0 = arith.constant 0 : i32
    %c0_i32_1 = arith.constant 0 : i32
    return %arg0, %c0_i32, %c0_i32_0 : i32, i32, i32
  }
  func.func @transform_1(%arg0: i32) -> (i32, i32) {
    %c0_i32 = arith.constant 0 : i32
    %c0_i32_0 = arith.constant 0 : i32
    %c0_i32_1 = arith.constant 0 : i32
    return %c0_i32, %c0_i32_0 : i32, i32
  }
  func.func @transform_2(%arg0: i32) -> (i32, i32) {
    %c0_i32 = arith.constant 0 : i32
    %c0_i32_0 = arith.constant 0 : i32
    %c0_i32_1 = arith.constant 0 : i32
    return %c0_i32, %c0_i32_0 : i32, i32
  }
  func.func @transform_3(%arg0: i32) -> (i32, i32, i32) {
    %c0_i32 = arith.constant 0 : i32
    %c0_i32_0 = arith.constant 0 : i32
    %c0_i32_1 = arith.constant 0 : i32
    return %arg0, %c0_i32, %c0_i32_0 : i32, i32, i32
  }
}

module attributes {stable_mosaic.version = 11 : i64} {
  func.func @conv_taps_kernel(%arg0: i32, %arg1: memref<1x168x32xf32, #tpu.memory_space<vmem>>, %arg2: memref<288x32xbf16, #tpu.memory_space<vmem>>, %arg3: memref<1x32xf32, #tpu.memory_space<vmem>>, %arg4: memref<1x224x32xf32, #tpu.memory_space<vmem>>, %arg5: memref<272x32xf32, #tpu.memory_space<vmem>>) attributes {dimension_semantics = [#tpu.dimension_semantics<parallel>], iteration_bounds = array<i64: 2>, scalar_prefetch = 0 : i64, scratch_operands = 1 : i64, tpu.core_type = #tpu.core_type<tc>, window_params = [{transform_indices = @transform_0, window_bounds = array<i64: 1, 168, 32>}, {pipeline_mode = #tpu.pipeline_mode<synchronous>, transform_indices = @transform_1, window_bounds = array<i64: 288, 32>}, {pipeline_mode = #tpu.pipeline_mode<synchronous>, transform_indices = @transform_2, window_bounds = array<i64: 1, 32>}, {transform_indices = @transform_3, window_bounds = array<i64: 1, 224, 32>}]} {
    %cst = arith.constant 0.000000e+00 : f32
    %0 = vector.broadcast %cst : f32 to vector<272x32xf32>
    %c0 = arith.constant 0 : index
    %c0_0 = arith.constant 0 : index
    %1 = vector.load %arg5[%c0, %c0_0] : memref<272x32xf32, #tpu.memory_space<vmem>>, vector<272x32xf32>
    tpu.vector_store %arg5[%c0, %c0_0], %0 {strides = array<i32>} : memref<272x32xf32, #tpu.memory_space<vmem>>, vector<272x32xf32>,
    %c0_1 = arith.constant 0 : index
    %c0_2 = arith.constant 0 : index
    %c0_3 = arith.constant 0 : index
    %2 = vector.load %arg1[%c0_1, %c0_2, %c0_3] : memref<1x168x32xf32, #tpu.memory_space<vmem>>, vector<1x12x32xf32>
    %3 = vector.shape_cast %2 : vector<1x12x32xf32> to vector<12x32xf32>
    %c34 = arith.constant 34 : index
    %c0_4 = arith.constant 0 : index
    %4 = vector.load %arg5[%c34, %c0_4] : memref<272x32xf32, #tpu.memory_space<vmem>>, vector<12x32xf32>
    tpu.vector_store %arg5[%c34, %c0_4], %3 {strides = array<i32>} : memref<272x32xf32, #tpu.memory_space<vmem>>, vector<12x32xf32>,
    %c0_5 = arith.constant 0 : index
    %c14 = arith.constant 14 : index
    %c0_6 = arith.constant 0 : index
    %5 = vector.load %arg1[%c0_5, %c14, %c0_6] : memref<1x168x32xf32, #tpu.memory_space<vmem>>, vector<1x12x32xf32>
    %6 = vector.shape_cast %5 : vector<1x12x32xf32> to vector<12x32xf32>
    %c50 = arith.constant 50 : index
    %c0_7 = arith.constant 0 : index
    %7 = vector.load %arg5[%c50, %c0_7] : memref<272x32xf32, #tpu.memory_space<vmem>>, vector<12x32xf32>
    tpu.vector_store %arg5[%c50, %c0_7], %6 {strides = array<i32>} : memref<272x32xf32, #tpu.memory_space<vmem>>, vector<12x32xf32>,
    %c0_8 = arith.constant 0 : index
    %c28 = arith.constant 28 : index
    %c0_9 = arith.constant 0 : index
    %8 = vector.load %arg1[%c0_8, %c28, %c0_9] : memref<1x168x32xf32, #tpu.memory_space<vmem>>, vector<1x12x32xf32>
    %9 = vector.shape_cast %8 : vector<1x12x32xf32> to vector<12x32xf32>
    %c66 = arith.constant 66 : index
    %c0_10 = arith.constant 0 : index
    %10 = vector.load %arg5[%c66, %c0_10] : memref<272x32xf32, #tpu.memory_space<vmem>>, vector<12x32xf32>
    tpu.vector_store %arg5[%c66, %c0_10], %9 {strides = array<i32>} : memref<272x32xf32, #tpu.memory_space<vmem>>, vector<12x32xf32>,
    %c0_11 = arith.constant 0 : index
    %c42 = arith.constant 42 : index
    %c0_12 = arith.constant 0 : index
    %11 = vector.load %arg1[%c0_11, %c42, %c0_12] : memref<1x168x32xf32, #tpu.memory_space<vmem>>, vector<1x12x32xf32>
    %12 = vector.shape_cast %11 : vector<1x12x32xf32> to vector<12x32xf32>
    %c82 = arith.constant 82 : index
    %c0_13 = arith.constant 0 : index
    %13 = vector.load %arg5[%c82, %c0_13] : memref<272x32xf32, #tpu.memory_space<vmem>>, vector<12x32xf32>
    tpu.vector_store %arg5[%c82, %c0_13], %12 {strides = array<i32>} : memref<272x32xf32, #tpu.memory_space<vmem>>, vector<12x32xf32>,
    %c0_14 = arith.constant 0 : index
    %c56 = arith.constant 56 : index
    %c0_15 = arith.constant 0 : index
    %14 = vector.load %arg1[%c0_14, %c56, %c0_15] : memref<1x168x32xf32, #tpu.memory_space<vmem>>, vector<1x12x32xf32>
    %15 = vector.shape_cast %14 : vector<1x12x32xf32> to vector<12x32xf32>
    %c98 = arith.constant 98 : index
    %c0_16 = arith.constant 0 : index
    %16 = vector.load %arg5[%c98, %c0_16] : memref<272x32xf32, #tpu.memory_space<vmem>>, vector<12x32xf32>
    tpu.vector_store %arg5[%c98, %c0_16], %15 {strides = array<i32>} : memref<272x32xf32, #tpu.memory_space<vmem>>, vector<12x32xf32>,
    %c0_17 = arith.constant 0 : index
    %c70 = arith.constant 70 : index
    %c0_18 = arith.constant 0 : index
    %17 = vector.load %arg1[%c0_17, %c70, %c0_18] : memref<1x168x32xf32, #tpu.memory_space<vmem>>, vector<1x12x32xf32>
    %18 = vector.shape_cast %17 : vector<1x12x32xf32> to vector<12x32xf32>
    %c114 = arith.constant 114 : index
    %c0_19 = arith.constant 0 : index
    %19 = vector.load %arg5[%c114, %c0_19] : memref<272x32xf32, #tpu.memory_space<vmem>>, vector<12x32xf32>
    tpu.vector_store %arg5[%c114, %c0_19], %18 {strides = array<i32>} : memref<272x32xf32, #tpu.memory_space<vmem>>, vector<12x32xf32>,
    %c0_20 = arith.constant 0 : index
    %c84 = arith.constant 84 : index
    %c0_21 = arith.constant 0 : index
    %20 = vector.load %arg1[%c0_20, %c84, %c0_21] : memref<1x168x32xf32, #tpu.memory_space<vmem>>, vector<1x12x32xf32>
    %21 = vector.shape_cast %20 : vector<1x12x32xf32> to vector<12x32xf32>
    %c130 = arith.constant 130 : index
    %c0_22 = arith.constant 0 : index
    %22 = vector.load %arg5[%c130, %c0_22] : memref<272x32xf32, #tpu.memory_space<vmem>>, vector<12x32xf32>
    tpu.vector_store %arg5[%c130, %c0_22], %21 {strides = array<i32>} : memref<272x32xf32, #tpu.memory_space<vmem>>, vector<12x32xf32>,
    %c0_23 = arith.constant 0 : index
    %c98_24 = arith.constant 98 : index
    %c0_25 = arith.constant 0 : index
    %23 = vector.load %arg1[%c0_23, %c98_24, %c0_25] : memref<1x168x32xf32, #tpu.memory_space<vmem>>, vector<1x12x32xf32>
    %24 = vector.shape_cast %23 : vector<1x12x32xf32> to vector<12x32xf32>
    %c146 = arith.constant 146 : index
    %c0_26 = arith.constant 0 : index
    %25 = vector.load %arg5[%c146, %c0_26] : memref<272x32xf32, #tpu.memory_space<vmem>>, vector<12x32xf32>
    tpu.vector_store %arg5[%c146, %c0_26], %24 {strides = array<i32>} : memref<272x32xf32, #tpu.memory_space<vmem>>, vector<12x32xf32>,
    %c0_27 = arith.constant 0 : index
    %c112 = arith.constant 112 : index
    %c0_28 = arith.constant 0 : index
    %26 = vector.load %arg1[%c0_27, %c112, %c0_28] : memref<1x168x32xf32, #tpu.memory_space<vmem>>, vector<1x12x32xf32>
    %27 = vector.shape_cast %26 : vector<1x12x32xf32> to vector<12x32xf32>
    %c162 = arith.constant 162 : index
    %c0_29 = arith.constant 0 : index
    %28 = vector.load %arg5[%c162, %c0_29] : memref<272x32xf32, #tpu.memory_space<vmem>>, vector<12x32xf32>
    tpu.vector_store %arg5[%c162, %c0_29], %27 {strides = array<i32>} : memref<272x32xf32, #tpu.memory_space<vmem>>, vector<12x32xf32>,
    %c0_30 = arith.constant 0 : index
    %c126 = arith.constant 126 : index
    %c0_31 = arith.constant 0 : index
    %29 = vector.load %arg1[%c0_30, %c126, %c0_31] : memref<1x168x32xf32, #tpu.memory_space<vmem>>, vector<1x12x32xf32>
    %30 = vector.shape_cast %29 : vector<1x12x32xf32> to vector<12x32xf32>
    %c178 = arith.constant 178 : index
    %c0_32 = arith.constant 0 : index
    %31 = vector.load %arg5[%c178, %c0_32] : memref<272x32xf32, #tpu.memory_space<vmem>>, vector<12x32xf32>
    tpu.vector_store %arg5[%c178, %c0_32], %30 {strides = array<i32>} : memref<272x32xf32, #tpu.memory_space<vmem>>, vector<12x32xf32>,
    %c0_33 = arith.constant 0 : index
    %c140 = arith.constant 140 : index
    %c0_34 = arith.constant 0 : index
    %32 = vector.load %arg1[%c0_33, %c140, %c0_34] : memref<1x168x32xf32, #tpu.memory_space<vmem>>, vector<1x12x32xf32>
    %33 = vector.shape_cast %32 : vector<1x12x32xf32> to vector<12x32xf32>
    %c194 = arith.constant 194 : index
    %c0_35 = arith.constant 0 : index
    %34 = vector.load %arg5[%c194, %c0_35] : memref<272x32xf32, #tpu.memory_space<vmem>>, vector<12x32xf32>
    tpu.vector_store %arg5[%c194, %c0_35], %33 {strides = array<i32>} : memref<272x32xf32, #tpu.memory_space<vmem>>, vector<12x32xf32>,
    %c0_36 = arith.constant 0 : index
    %c154 = arith.constant 154 : index
    %c0_37 = arith.constant 0 : index
    %35 = vector.load %arg1[%c0_36, %c154, %c0_37] : memref<1x168x32xf32, #tpu.memory_space<vmem>>, vector<1x12x32xf32>
    %36 = vector.shape_cast %35 : vector<1x12x32xf32> to vector<12x32xf32>
    %c210 = arith.constant 210 : index
    %c0_38 = arith.constant 0 : index
    %37 = vector.load %arg5[%c210, %c0_38] : memref<272x32xf32, #tpu.memory_space<vmem>>, vector<12x32xf32>
    tpu.vector_store %arg5[%c210, %c0_38], %36 {strides = array<i32>} : memref<272x32xf32, #tpu.memory_space<vmem>>, vector<12x32xf32>,
    %c0_39 = arith.constant 0 : index
    %c0_40 = arith.constant 0 : index
    %38 = vector.load %arg5[%c0_39, %c0_40] : memref<272x32xf32, #tpu.memory_space<vmem>>, vector<224x32xf32>
    %c1 = arith.constant 1 : index
    %c0_41 = arith.constant 0 : index
    %39 = vector.load %arg5[%c1, %c0_41] : memref<272x32xf32, #tpu.memory_space<vmem>>, vector<224x32xf32>
    %c2 = arith.constant 2 : index
    %c0_42 = arith.constant 0 : index
    %40 = vector.load %arg5[%c2, %c0_42] : memref<272x32xf32, #tpu.memory_space<vmem>>, vector<224x32xf32>
    %c16 = arith.constant 16 : index
    %c0_43 = arith.constant 0 : index
    %41 = vector.load %arg5[%c16, %c0_43] : memref<272x32xf32, #tpu.memory_space<vmem>>, vector<224x32xf32>
    %c17 = arith.constant 17 : index
    %c0_44 = arith.constant 0 : index
    %42 = vector.load %arg5[%c17, %c0_44] : memref<272x32xf32, #tpu.memory_space<vmem>>, vector<224x32xf32>
    %c18 = arith.constant 18 : index
    %c0_45 = arith.constant 0 : index
    %43 = vector.load %arg5[%c18, %c0_45] : memref<272x32xf32, #tpu.memory_space<vmem>>, vector<224x32xf32>
    %c32 = arith.constant 32 : index
    %c0_46 = arith.constant 0 : index
    %44 = vector.load %arg5[%c32, %c0_46] : memref<272x32xf32, #tpu.memory_space<vmem>>, vector<224x32xf32>
    %c33 = arith.constant 33 : index
    %c0_47 = arith.constant 0 : index
    %45 = vector.load %arg5[%c33, %c0_47] : memref<272x32xf32, #tpu.memory_space<vmem>>, vector<224x32xf32>
    %c34_48 = arith.constant 34 : index
    %c0_49 = arith.constant 0 : index
    %46 = vector.load %arg5[%c34_48, %c0_49] : memref<272x32xf32, #tpu.memory_space<vmem>>, vector<224x32xf32>
    %47 = tpu.concatenate %38, %39, %40, %41, %42, %43, %44, %45, %46 in 1 : vector<224x32xf32>, vector<224x32xf32>, vector<224x32xf32>, vector<224x32xf32>, vector<224x32xf32>, vector<224x32xf32>, vector<224x32xf32>, vector<224x32xf32>, vector<224x32xf32> -> vector<224x288xf32>
    %48 = arith.truncf %47 : vector<224x288xf32> to vector<224x288xbf16>
    %c0_50 = arith.constant 0 : index
    %c0_51 = arith.constant 0 : index
    %49 = vector.load %arg2[%c0_50, %c0_51] : memref<288x32xbf16, #tpu.memory_space<vmem>>, vector<288x32xbf16>
    %cst_52 = arith.constant dense<0.000000e+00> : vector<224x32xf32>
    %50 = tpu.matmul %48, %49, %cst_52 {dimension_numbers = #tpu.dot_dimension_numbers<[1], [0], [0], [1], [0, 0, 1, 1], [], []>} : vector<224x288xbf16>, vector<288x32xbf16>, vector<224x32xf32> -> vector<224x32xf32>
    %c0_53 = arith.constant 0 : index
    %c0_54 = arith.constant 0 : index
    %51 = vector.load %arg3[%c0_53, %c0_54] : memref<1x32xf32, #tpu.memory_space<vmem>>, vector<1x32xf32>
    %52 = vector.broadcast %51 : vector<1x32xf32> to vector<224x32xf32>
    %53 = arith.addf %50, %52 : vector<224x32xf32>
    %cst_55 = arith.constant 0.000000e+00 : f32
    %54 = vector.broadcast %cst_55 : f32 to vector<224x32xf32>
    %55 = arith.maximumf %53, %54 : vector<224x32xf32>
    %c0_56 = arith.constant 0 : index
    %c0_57 = arith.constant 0 : index
    %c0_58 = arith.constant 0 : index
    %56 = vector.load %arg4[%c0_56, %c0_57, %c0_58] : memref<1x224x32xf32, #tpu.memory_space<vmem>>, vector<1x224x32xf32>
    %57 = vector.shape_cast %56 : vector<1x224x32xf32> to vector<224x32xf32>
    %58 = vector.shape_cast %55 : vector<224x32xf32> to vector<1x224x32xf32>
    tpu.vector_store %arg4[%c0_56, %c0_57, %c0_58], %58 {strides = array<i32>} : memref<1x224x32xf32, #tpu.memory_space<vmem>>, vector<1x224x32xf32>,
    return
  }
  func.func @transform_0(%arg0: i32) -> (i32, i32, i32) {
    %c0_i32 = arith.constant 0 : i32
    %c0_i32_0 = arith.constant 0 : i32
    %c0_i32_1 = arith.constant 0 : i32
    return %arg0, %c0_i32, %c0_i32_0 : i32, i32, i32
  }
  func.func @transform_1(%arg0: i32) -> (i32, i32) {
    %c0_i32 = arith.constant 0 : i32
    %c0_i32_0 = arith.constant 0 : i32
    %c0_i32_1 = arith.constant 0 : i32
    return %c0_i32, %c0_i32_0 : i32, i32
  }
  func.func @transform_2(%arg0: i32) -> (i32, i32) {
    %c0_i32 = arith.constant 0 : i32
    %c0_i32_0 = arith.constant 0 : i32
    %c0_i32_1 = arith.constant 0 : i32
    return %c0_i32, %c0_i32_0 : i32, i32
  }
  func.func @transform_3(%arg0: i32) -> (i32, i32, i32) {
    %c0_i32 = arith.constant 0 : i32
    %c0_i32_0 = arith.constant 0 : i32
    %c0_i32_1 = arith.constant 0 : i32
    return %arg0, %c0_i32, %c0_i32_0 : i32, i32, i32
  }
}

module attributes {stable_mosaic.version = 11 : i64} {
  func.func @conv_taps_kernel(%arg0: i32, %arg1: memref<1x120x32xf32, #tpu.memory_space<vmem>>, %arg2: memref<288x32xbf16, #tpu.memory_space<vmem>>, %arg3: memref<1x32xf32, #tpu.memory_space<vmem>>, %arg4: memref<1x168x32xf32, #tpu.memory_space<vmem>>, %arg5: memref<210x32xf32, #tpu.memory_space<vmem>>) attributes {dimension_semantics = [#tpu.dimension_semantics<parallel>], iteration_bounds = array<i64: 2>, scalar_prefetch = 0 : i64, scratch_operands = 1 : i64, tpu.core_type = #tpu.core_type<tc>, window_params = [{transform_indices = @transform_0, window_bounds = array<i64: 1, 120, 32>}, {pipeline_mode = #tpu.pipeline_mode<synchronous>, transform_indices = @transform_1, window_bounds = array<i64: 288, 32>}, {pipeline_mode = #tpu.pipeline_mode<synchronous>, transform_indices = @transform_2, window_bounds = array<i64: 1, 32>}, {transform_indices = @transform_3, window_bounds = array<i64: 1, 168, 32>}]} {
    %cst = arith.constant 0.000000e+00 : f32
    %0 = vector.broadcast %cst : f32 to vector<210x32xf32>
    %c0 = arith.constant 0 : index
    %c0_0 = arith.constant 0 : index
    %1 = vector.load %arg5[%c0, %c0_0] : memref<210x32xf32, #tpu.memory_space<vmem>>, vector<210x32xf32>
    tpu.vector_store %arg5[%c0, %c0_0], %0 {strides = array<i32>} : memref<210x32xf32, #tpu.memory_space<vmem>>, vector<210x32xf32>,
    %c0_1 = arith.constant 0 : index
    %c0_2 = arith.constant 0 : index
    %c0_3 = arith.constant 0 : index
    %2 = vector.load %arg1[%c0_1, %c0_2, %c0_3] : memref<1x120x32xf32, #tpu.memory_space<vmem>>, vector<1x10x32xf32>
    %3 = vector.shape_cast %2 : vector<1x10x32xf32> to vector<10x32xf32>
    %c30 = arith.constant 30 : index
    %c0_4 = arith.constant 0 : index
    %4 = vector.load %arg5[%c30, %c0_4] : memref<210x32xf32, #tpu.memory_space<vmem>>, vector<10x32xf32>
    tpu.vector_store %arg5[%c30, %c0_4], %3 {strides = array<i32>} : memref<210x32xf32, #tpu.memory_space<vmem>>, vector<10x32xf32>,
    %c0_5 = arith.constant 0 : index
    %c12 = arith.constant 12 : index
    %c0_6 = arith.constant 0 : index
    %5 = vector.load %arg1[%c0_5, %c12, %c0_6] : memref<1x120x32xf32, #tpu.memory_space<vmem>>, vector<1x10x32xf32>
    %6 = vector.shape_cast %5 : vector<1x10x32xf32> to vector<10x32xf32>
    %c44 = arith.constant 44 : index
    %c0_7 = arith.constant 0 : index
    %7 = vector.load %arg5[%c44, %c0_7] : memref<210x32xf32, #tpu.memory_space<vmem>>, vector<10x32xf32>
    tpu.vector_store %arg5[%c44, %c0_7], %6 {strides = array<i32>} : memref<210x32xf32, #tpu.memory_space<vmem>>, vector<10x32xf32>,
    %c0_8 = arith.constant 0 : index
    %c24 = arith.constant 24 : index
    %c0_9 = arith.constant 0 : index
    %8 = vector.load %arg1[%c0_8, %c24, %c0_9] : memref<1x120x32xf32, #tpu.memory_space<vmem>>, vector<1x10x32xf32>
    %9 = vector.shape_cast %8 : vector<1x10x32xf32> to vector<10x32xf32>
    %c58 = arith.constant 58 : index
    %c0_10 = arith.constant 0 : index
    %10 = vector.load %arg5[%c58, %c0_10] : memref<210x32xf32, #tpu.memory_space<vmem>>, vector<10x32xf32>
    tpu.vector_store %arg5[%c58, %c0_10], %9 {strides = array<i32>} : memref<210x32xf32, #tpu.memory_space<vmem>>, vector<10x32xf32>,
    %c0_11 = arith.constant 0 : index
    %c36 = arith.constant 36 : index
    %c0_12 = arith.constant 0 : index
    %11 = vector.load %arg1[%c0_11, %c36, %c0_12] : memref<1x120x32xf32, #tpu.memory_space<vmem>>, vector<1x10x32xf32>
    %12 = vector.shape_cast %11 : vector<1x10x32xf32> to vector<10x32xf32>
    %c72 = arith.constant 72 : index
    %c0_13 = arith.constant 0 : index
    %13 = vector.load %arg5[%c72, %c0_13] : memref<210x32xf32, #tpu.memory_space<vmem>>, vector<10x32xf32>
    tpu.vector_store %arg5[%c72, %c0_13], %12 {strides = array<i32>} : memref<210x32xf32, #tpu.memory_space<vmem>>, vector<10x32xf32>,
    %c0_14 = arith.constant 0 : index
    %c48 = arith.constant 48 : index
    %c0_15 = arith.constant 0 : index
    %14 = vector.load %arg1[%c0_14, %c48, %c0_15] : memref<1x120x32xf32, #tpu.memory_space<vmem>>, vector<1x10x32xf32>
    %15 = vector.shape_cast %14 : vector<1x10x32xf32> to vector<10x32xf32>
    %c86 = arith.constant 86 : index
    %c0_16 = arith.constant 0 : index
    %16 = vector.load %arg5[%c86, %c0_16] : memref<210x32xf32, #tpu.memory_space<vmem>>, vector<10x32xf32>
    tpu.vector_store %arg5[%c86, %c0_16], %15 {strides = array<i32>} : memref<210x32xf32, #tpu.memory_space<vmem>>, vector<10x32xf32>,
    %c0_17 = arith.constant 0 : index
    %c60 = arith.constant 60 : index
    %c0_18 = arith.constant 0 : index
    %17 = vector.load %arg1[%c0_17, %c60, %c0_18] : memref<1x120x32xf32, #tpu.memory_space<vmem>>, vector<1x10x32xf32>
    %18 = vector.shape_cast %17 : vector<1x10x32xf32> to vector<10x32xf32>
    %c100 = arith.constant 100 : index
    %c0_19 = arith.constant 0 : index
    %19 = vector.load %arg5[%c100, %c0_19] : memref<210x32xf32, #tpu.memory_space<vmem>>, vector<10x32xf32>
    tpu.vector_store %arg5[%c100, %c0_19], %18 {strides = array<i32>} : memref<210x32xf32, #tpu.memory_space<vmem>>, vector<10x32xf32>,
    %c0_20 = arith.constant 0 : index
    %c72_21 = arith.constant 72 : index
    %c0_22 = arith.constant 0 : index
    %20 = vector.load %arg1[%c0_20, %c72_21, %c0_22] : memref<1x120x32xf32, #tpu.memory_space<vmem>>, vector<1x10x32xf32>
    %21 = vector.shape_cast %20 : vector<1x10x32xf32> to vector<10x32xf32>
    %c114 = arith.constant 114 : index
    %c0_23 = arith.constant 0 : index
    %22 = vector.load %arg5[%c114, %c0_23] : memref<210x32xf32, #tpu.memory_space<vmem>>, vector<10x32xf32>
    tpu.vector_store %arg5[%c114, %c0_23], %21 {strides = array<i32>} : memref<210x32xf32, #tpu.memory_space<vmem>>, vector<10x32xf32>,
    %c0_24 = arith.constant 0 : index
    %c84 = arith.constant 84 : index
    %c0_25 = arith.constant 0 : index
    %23 = vector.load %arg1[%c0_24, %c84, %c0_25] : memref<1x120x32xf32, #tpu.memory_space<vmem>>, vector<1x10x32xf32>
    %24 = vector.shape_cast %23 : vector<1x10x32xf32> to vector<10x32xf32>
    %c128 = arith.constant 128 : index
    %c0_26 = arith.constant 0 : index
    %25 = vector.load %arg5[%c128, %c0_26] : memref<210x32xf32, #tpu.memory_space<vmem>>, vector<10x32xf32>
    tpu.vector_store %arg5[%c128, %c0_26], %24 {strides = array<i32>} : memref<210x32xf32, #tpu.memory_space<vmem>>, vector<10x32xf32>,
    %c0_27 = arith.constant 0 : index
    %c96 = arith.constant 96 : index
    %c0_28 = arith.constant 0 : index
    %26 = vector.load %arg1[%c0_27, %c96, %c0_28] : memref<1x120x32xf32, #tpu.memory_space<vmem>>, vector<1x10x32xf32>
    %27 = vector.shape_cast %26 : vector<1x10x32xf32> to vector<10x32xf32>
    %c142 = arith.constant 142 : index
    %c0_29 = arith.constant 0 : index
    %28 = vector.load %arg5[%c142, %c0_29] : memref<210x32xf32, #tpu.memory_space<vmem>>, vector<10x32xf32>
    tpu.vector_store %arg5[%c142, %c0_29], %27 {strides = array<i32>} : memref<210x32xf32, #tpu.memory_space<vmem>>, vector<10x32xf32>,
    %c0_30 = arith.constant 0 : index
    %c108 = arith.constant 108 : index
    %c0_31 = arith.constant 0 : index
    %29 = vector.load %arg1[%c0_30, %c108, %c0_31] : memref<1x120x32xf32, #tpu.memory_space<vmem>>, vector<1x10x32xf32>
    %30 = vector.shape_cast %29 : vector<1x10x32xf32> to vector<10x32xf32>
    %c156 = arith.constant 156 : index
    %c0_32 = arith.constant 0 : index
    %31 = vector.load %arg5[%c156, %c0_32] : memref<210x32xf32, #tpu.memory_space<vmem>>, vector<10x32xf32>
    tpu.vector_store %arg5[%c156, %c0_32], %30 {strides = array<i32>} : memref<210x32xf32, #tpu.memory_space<vmem>>, vector<10x32xf32>,
    %c0_33 = arith.constant 0 : index
    %c0_34 = arith.constant 0 : index
    %32 = vector.load %arg5[%c0_33, %c0_34] : memref<210x32xf32, #tpu.memory_space<vmem>>, vector<168x32xf32>
    %c1 = arith.constant 1 : index
    %c0_35 = arith.constant 0 : index
    %33 = vector.load %arg5[%c1, %c0_35] : memref<210x32xf32, #tpu.memory_space<vmem>>, vector<168x32xf32>
    %c2 = arith.constant 2 : index
    %c0_36 = arith.constant 0 : index
    %34 = vector.load %arg5[%c2, %c0_36] : memref<210x32xf32, #tpu.memory_space<vmem>>, vector<168x32xf32>
    %c14 = arith.constant 14 : index
    %c0_37 = arith.constant 0 : index
    %35 = vector.load %arg5[%c14, %c0_37] : memref<210x32xf32, #tpu.memory_space<vmem>>, vector<168x32xf32>
    %c15 = arith.constant 15 : index
    %c0_38 = arith.constant 0 : index
    %36 = vector.load %arg5[%c15, %c0_38] : memref<210x32xf32, #tpu.memory_space<vmem>>, vector<168x32xf32>
    %c16 = arith.constant 16 : index
    %c0_39 = arith.constant 0 : index
    %37 = vector.load %arg5[%c16, %c0_39] : memref<210x32xf32, #tpu.memory_space<vmem>>, vector<168x32xf32>
    %c28 = arith.constant 28 : index
    %c0_40 = arith.constant 0 : index
    %38 = vector.load %arg5[%c28, %c0_40] : memref<210x32xf32, #tpu.memory_space<vmem>>, vector<168x32xf32>
    %c29 = arith.constant 29 : index
    %c0_41 = arith.constant 0 : index
    %39 = vector.load %arg5[%c29, %c0_41] : memref<210x32xf32, #tpu.memory_space<vmem>>, vector<168x32xf32>
    %c30_42 = arith.constant 30 : index
    %c0_43 = arith.constant 0 : index
    %40 = vector.load %arg5[%c30_42, %c0_43] : memref<210x32xf32, #tpu.memory_space<vmem>>, vector<168x32xf32>
    %41 = tpu.concatenate %32, %33, %34, %35, %36, %37, %38, %39, %40 in 1 : vector<168x32xf32>, vector<168x32xf32>, vector<168x32xf32>, vector<168x32xf32>, vector<168x32xf32>, vector<168x32xf32>, vector<168x32xf32>, vector<168x32xf32>, vector<168x32xf32> -> vector<168x288xf32>
    %42 = arith.truncf %41 : vector<168x288xf32> to vector<168x288xbf16>
    %c0_44 = arith.constant 0 : index
    %c0_45 = arith.constant 0 : index
    %43 = vector.load %arg2[%c0_44, %c0_45] : memref<288x32xbf16, #tpu.memory_space<vmem>>, vector<288x32xbf16>
    %cst_46 = arith.constant dense<0.000000e+00> : vector<168x32xf32>
    %44 = tpu.matmul %42, %43, %cst_46 {dimension_numbers = #tpu.dot_dimension_numbers<[1], [0], [0], [1], [0, 0, 1, 1], [], []>} : vector<168x288xbf16>, vector<288x32xbf16>, vector<168x32xf32> -> vector<168x32xf32>
    %c0_47 = arith.constant 0 : index
    %c0_48 = arith.constant 0 : index
    %45 = vector.load %arg3[%c0_47, %c0_48] : memref<1x32xf32, #tpu.memory_space<vmem>>, vector<1x32xf32>
    %46 = vector.broadcast %45 : vector<1x32xf32> to vector<168x32xf32>
    %47 = arith.addf %44, %46 : vector<168x32xf32>
    %cst_49 = arith.constant 0.000000e+00 : f32
    %48 = vector.broadcast %cst_49 : f32 to vector<168x32xf32>
    %49 = arith.maximumf %47, %48 : vector<168x32xf32>
    %c0_50 = arith.constant 0 : index
    %c0_51 = arith.constant 0 : index
    %c0_52 = arith.constant 0 : index
    %50 = vector.load %arg4[%c0_50, %c0_51, %c0_52] : memref<1x168x32xf32, #tpu.memory_space<vmem>>, vector<1x168x32xf32>
    %51 = vector.shape_cast %50 : vector<1x168x32xf32> to vector<168x32xf32>
    %52 = vector.shape_cast %49 : vector<168x32xf32> to vector<1x168x32xf32>
    tpu.vector_store %arg4[%c0_50, %c0_51, %c0_52], %52 {strides = array<i32>} : memref<1x168x32xf32, #tpu.memory_space<vmem>>, vector<1x168x32xf32>,
    return
  }
  func.func @transform_0(%arg0: i32) -> (i32, i32, i32) {
    %c0_i32 = arith.constant 0 : i32
    %c0_i32_0 = arith.constant 0 : i32
    %c0_i32_1 = arith.constant 0 : i32
    return %arg0, %c0_i32, %c0_i32_0 : i32, i32, i32
  }
  func.func @transform_1(%arg0: i32) -> (i32, i32) {
    %c0_i32 = arith.constant 0 : i32
    %c0_i32_0 = arith.constant 0 : i32
    %c0_i32_1 = arith.constant 0 : i32
    return %c0_i32, %c0_i32_0 : i32, i32
  }
  func.func @transform_2(%arg0: i32) -> (i32, i32) {
    %c0_i32 = arith.constant 0 : i32
    %c0_i32_0 = arith.constant 0 : i32
    %c0_i32_1 = arith.constant 0 : i32
    return %c0_i32, %c0_i32_0 : i32, i32
  }
  func.func @transform_3(%arg0: i32) -> (i32, i32, i32) {
    %c0_i32 = arith.constant 0 : i32
    %c0_i32_0 = arith.constant 0 : i32
    %c0_i32_1 = arith.constant 0 : i32
    return %arg0, %c0_i32, %c0_i32_0 : i32, i32, i32
  }
}

module attributes {stable_mosaic.version = 11 : i64} {
  func.func @conv_taps_kernel(%arg0: i32, %arg1: memref<1x224x32xf32, #tpu.memory_space<vmem>>, %arg2: memref<128x4xbf16, #tpu.memory_space<vmem>>, %arg3: memref<1x4xf32, #tpu.memory_space<vmem>>, %arg4: memref<1x240x4xf32, #tpu.memory_space<vmem>>, %arg5: memref<272x32xf32, #tpu.memory_space<vmem>>) attributes {dimension_semantics = [#tpu.dimension_semantics<parallel>], iteration_bounds = array<i64: 2>, scalar_prefetch = 0 : i64, scratch_operands = 1 : i64, tpu.core_type = #tpu.core_type<tc>, window_params = [{transform_indices = @transform_0, window_bounds = array<i64: 1, 224, 32>}, {pipeline_mode = #tpu.pipeline_mode<synchronous>, transform_indices = @transform_1, window_bounds = array<i64: 128, 4>}, {pipeline_mode = #tpu.pipeline_mode<synchronous>, transform_indices = @transform_2, window_bounds = array<i64: 1, 4>}, {transform_indices = @transform_3, window_bounds = array<i64: 1, 240, 4>}]} {
    %cst = arith.constant 0.000000e+00 : f32
    %0 = vector.broadcast %cst : f32 to vector<272x32xf32>
    %c0 = arith.constant 0 : index
    %c0_0 = arith.constant 0 : index
    %1 = vector.load %arg5[%c0, %c0_0] : memref<272x32xf32, #tpu.memory_space<vmem>>, vector<272x32xf32>
    tpu.vector_store %arg5[%c0, %c0_0], %0 {strides = array<i32>} : memref<272x32xf32, #tpu.memory_space<vmem>>, vector<272x32xf32>,
    %c0_1 = arith.constant 0 : index
    %c0_2 = arith.constant 0 : index
    %c0_3 = arith.constant 0 : index
    %2 = vector.load %arg1[%c0_1, %c0_2, %c0_3] : memref<1x224x32xf32, #tpu.memory_space<vmem>>, vector<1x14x32xf32>
    %3 = vector.shape_cast %2 : vector<1x14x32xf32> to vector<14x32xf32>
    %c17 = arith.constant 17 : index
    %c0_4 = arith.constant 0 : index
    %4 = vector.load %arg5[%c17, %c0_4] : memref<272x32xf32, #tpu.memory_space<vmem>>, vector<14x32xf32>
    tpu.vector_store %arg5[%c17, %c0_4], %3 {strides = array<i32>} : memref<272x32xf32, #tpu.memory_space<vmem>>, vector<14x32xf32>,
    %c0_5 = arith.constant 0 : index
    %c16 = arith.constant 16 : index
    %c0_6 = arith.constant 0 : index
    %5 = vector.load %arg1[%c0_5, %c16, %c0_6] : memref<1x224x32xf32, #tpu.memory_space<vmem>>, vector<1x14x32xf32>
    %6 = vector.shape_cast %5 : vector<1x14x32xf32> to vector<14x32xf32>
    %c33 = arith.constant 33 : index
    %c0_7 = arith.constant 0 : index
    %7 = vector.load %arg5[%c33, %c0_7] : memref<272x32xf32, #tpu.memory_space<vmem>>, vector<14x32xf32>
    tpu.vector_store %arg5[%c33, %c0_7], %6 {strides = array<i32>} : memref<272x32xf32, #tpu.memory_space<vmem>>, vector<14x32xf32>,
    %c0_8 = arith.constant 0 : index
    %c32 = arith.constant 32 : index
    %c0_9 = arith.constant 0 : index
    %8 = vector.load %arg1[%c0_8, %c32, %c0_9] : memref<1x224x32xf32, #tpu.memory_space<vmem>>, vector<1x14x32xf32>
    %9 = vector.shape_cast %8 : vector<1x14x32xf32> to vector<14x32xf32>
    %c49 = arith.constant 49 : index
    %c0_10 = arith.constant 0 : index
    %10 = vector.load %arg5[%c49, %c0_10] : memref<272x32xf32, #tpu.memory_space<vmem>>, vector<14x32xf32>
    tpu.vector_store %arg5[%c49, %c0_10], %9 {strides = array<i32>} : memref<272x32xf32, #tpu.memory_space<vmem>>, vector<14x32xf32>,
    %c0_11 = arith.constant 0 : index
    %c48 = arith.constant 48 : index
    %c0_12 = arith.constant 0 : index
    %11 = vector.load %arg1[%c0_11, %c48, %c0_12] : memref<1x224x32xf32, #tpu.memory_space<vmem>>, vector<1x14x32xf32>
    %12 = vector.shape_cast %11 : vector<1x14x32xf32> to vector<14x32xf32>
    %c65 = arith.constant 65 : index
    %c0_13 = arith.constant 0 : index
    %13 = vector.load %arg5[%c65, %c0_13] : memref<272x32xf32, #tpu.memory_space<vmem>>, vector<14x32xf32>
    tpu.vector_store %arg5[%c65, %c0_13], %12 {strides = array<i32>} : memref<272x32xf32, #tpu.memory_space<vmem>>, vector<14x32xf32>,
    %c0_14 = arith.constant 0 : index
    %c64 = arith.constant 64 : index
    %c0_15 = arith.constant 0 : index
    %14 = vector.load %arg1[%c0_14, %c64, %c0_15] : memref<1x224x32xf32, #tpu.memory_space<vmem>>, vector<1x14x32xf32>
    %15 = vector.shape_cast %14 : vector<1x14x32xf32> to vector<14x32xf32>
    %c81 = arith.constant 81 : index
    %c0_16 = arith.constant 0 : index
    %16 = vector.load %arg5[%c81, %c0_16] : memref<272x32xf32, #tpu.memory_space<vmem>>, vector<14x32xf32>
    tpu.vector_store %arg5[%c81, %c0_16], %15 {strides = array<i32>} : memref<272x32xf32, #tpu.memory_space<vmem>>, vector<14x32xf32>,
    %c0_17 = arith.constant 0 : index
    %c80 = arith.constant 80 : index
    %c0_18 = arith.constant 0 : index
    %17 = vector.load %arg1[%c0_17, %c80, %c0_18] : memref<1x224x32xf32, #tpu.memory_space<vmem>>, vector<1x14x32xf32>
    %18 = vector.shape_cast %17 : vector<1x14x32xf32> to vector<14x32xf32>
    %c97 = arith.constant 97 : index
    %c0_19 = arith.constant 0 : index
    %19 = vector.load %arg5[%c97, %c0_19] : memref<272x32xf32, #tpu.memory_space<vmem>>, vector<14x32xf32>
    tpu.vector_store %arg5[%c97, %c0_19], %18 {strides = array<i32>} : memref<272x32xf32, #tpu.memory_space<vmem>>, vector<14x32xf32>,
    %c0_20 = arith.constant 0 : index
    %c96 = arith.constant 96 : index
    %c0_21 = arith.constant 0 : index
    %20 = vector.load %arg1[%c0_20, %c96, %c0_21] : memref<1x224x32xf32, #tpu.memory_space<vmem>>, vector<1x14x32xf32>
    %21 = vector.shape_cast %20 : vector<1x14x32xf32> to vector<14x32xf32>
    %c113 = arith.constant 113 : index
    %c0_22 = arith.constant 0 : index
    %22 = vector.load %arg5[%c113, %c0_22] : memref<272x32xf32, #tpu.memory_space<vmem>>, vector<14x32xf32>
    tpu.vector_store %arg5[%c113, %c0_22], %21 {strides = array<i32>} : memref<272x32xf32, #tpu.memory_space<vmem>>, vector<14x32xf32>,
    %c0_23 = arith.constant 0 : index
    %c112 = arith.constant 112 : index
    %c0_24 = arith.constant 0 : index
    %23 = vector.load %arg1[%c0_23, %c112, %c0_24] : memref<1x224x32xf32, #tpu.memory_space<vmem>>, vector<1x14x32xf32>
    %24 = vector.shape_cast %23 : vector<1x14x32xf32> to vector<14x32xf32>
    %c129 = arith.constant 129 : index
    %c0_25 = arith.constant 0 : index
    %25 = vector.load %arg5[%c129, %c0_25] : memref<272x32xf32, #tpu.memory_space<vmem>>, vector<14x32xf32>
    tpu.vector_store %arg5[%c129, %c0_25], %24 {strides = array<i32>} : memref<272x32xf32, #tpu.memory_space<vmem>>, vector<14x32xf32>,
    %c0_26 = arith.constant 0 : index
    %c128 = arith.constant 128 : index
    %c0_27 = arith.constant 0 : index
    %26 = vector.load %arg1[%c0_26, %c128, %c0_27] : memref<1x224x32xf32, #tpu.memory_space<vmem>>, vector<1x14x32xf32>
    %27 = vector.shape_cast %26 : vector<1x14x32xf32> to vector<14x32xf32>
    %c145 = arith.constant 145 : index
    %c0_28 = arith.constant 0 : index
    %28 = vector.load %arg5[%c145, %c0_28] : memref<272x32xf32, #tpu.memory_space<vmem>>, vector<14x32xf32>
    tpu.vector_store %arg5[%c145, %c0_28], %27 {strides = array<i32>} : memref<272x32xf32, #tpu.memory_space<vmem>>, vector<14x32xf32>,
    %c0_29 = arith.constant 0 : index
    %c144 = arith.constant 144 : index
    %c0_30 = arith.constant 0 : index
    %29 = vector.load %arg1[%c0_29, %c144, %c0_30] : memref<1x224x32xf32, #tpu.memory_space<vmem>>, vector<1x14x32xf32>
    %30 = vector.shape_cast %29 : vector<1x14x32xf32> to vector<14x32xf32>
    %c161 = arith.constant 161 : index
    %c0_31 = arith.constant 0 : index
    %31 = vector.load %arg5[%c161, %c0_31] : memref<272x32xf32, #tpu.memory_space<vmem>>, vector<14x32xf32>
    tpu.vector_store %arg5[%c161, %c0_31], %30 {strides = array<i32>} : memref<272x32xf32, #tpu.memory_space<vmem>>, vector<14x32xf32>,
    %c0_32 = arith.constant 0 : index
    %c160 = arith.constant 160 : index
    %c0_33 = arith.constant 0 : index
    %32 = vector.load %arg1[%c0_32, %c160, %c0_33] : memref<1x224x32xf32, #tpu.memory_space<vmem>>, vector<1x14x32xf32>
    %33 = vector.shape_cast %32 : vector<1x14x32xf32> to vector<14x32xf32>
    %c177 = arith.constant 177 : index
    %c0_34 = arith.constant 0 : index
    %34 = vector.load %arg5[%c177, %c0_34] : memref<272x32xf32, #tpu.memory_space<vmem>>, vector<14x32xf32>
    tpu.vector_store %arg5[%c177, %c0_34], %33 {strides = array<i32>} : memref<272x32xf32, #tpu.memory_space<vmem>>, vector<14x32xf32>,
    %c0_35 = arith.constant 0 : index
    %c176 = arith.constant 176 : index
    %c0_36 = arith.constant 0 : index
    %35 = vector.load %arg1[%c0_35, %c176, %c0_36] : memref<1x224x32xf32, #tpu.memory_space<vmem>>, vector<1x14x32xf32>
    %36 = vector.shape_cast %35 : vector<1x14x32xf32> to vector<14x32xf32>
    %c193 = arith.constant 193 : index
    %c0_37 = arith.constant 0 : index
    %37 = vector.load %arg5[%c193, %c0_37] : memref<272x32xf32, #tpu.memory_space<vmem>>, vector<14x32xf32>
    tpu.vector_store %arg5[%c193, %c0_37], %36 {strides = array<i32>} : memref<272x32xf32, #tpu.memory_space<vmem>>, vector<14x32xf32>,
    %c0_38 = arith.constant 0 : index
    %c192 = arith.constant 192 : index
    %c0_39 = arith.constant 0 : index
    %38 = vector.load %arg1[%c0_38, %c192, %c0_39] : memref<1x224x32xf32, #tpu.memory_space<vmem>>, vector<1x14x32xf32>
    %39 = vector.shape_cast %38 : vector<1x14x32xf32> to vector<14x32xf32>
    %c209 = arith.constant 209 : index
    %c0_40 = arith.constant 0 : index
    %40 = vector.load %arg5[%c209, %c0_40] : memref<272x32xf32, #tpu.memory_space<vmem>>, vector<14x32xf32>
    tpu.vector_store %arg5[%c209, %c0_40], %39 {strides = array<i32>} : memref<272x32xf32, #tpu.memory_space<vmem>>, vector<14x32xf32>,
    %c0_41 = arith.constant 0 : index
    %c208 = arith.constant 208 : index
    %c0_42 = arith.constant 0 : index
    %41 = vector.load %arg1[%c0_41, %c208, %c0_42] : memref<1x224x32xf32, #tpu.memory_space<vmem>>, vector<1x14x32xf32>
    %42 = vector.shape_cast %41 : vector<1x14x32xf32> to vector<14x32xf32>
    %c225 = arith.constant 225 : index
    %c0_43 = arith.constant 0 : index
    %43 = vector.load %arg5[%c225, %c0_43] : memref<272x32xf32, #tpu.memory_space<vmem>>, vector<14x32xf32>
    tpu.vector_store %arg5[%c225, %c0_43], %42 {strides = array<i32>} : memref<272x32xf32, #tpu.memory_space<vmem>>, vector<14x32xf32>,
    %c0_44 = arith.constant 0 : index
    %c0_45 = arith.constant 0 : index
    %44 = vector.load %arg5[%c0_44, %c0_45] : memref<272x32xf32, #tpu.memory_space<vmem>>, vector<240x32xf32>
    %c1 = arith.constant 1 : index
    %c0_46 = arith.constant 0 : index
    %45 = vector.load %arg5[%c1, %c0_46] : memref<272x32xf32, #tpu.memory_space<vmem>>, vector<240x32xf32>
    %c16_47 = arith.constant 16 : index
    %c0_48 = arith.constant 0 : index
    %46 = vector.load %arg5[%c16_47, %c0_48] : memref<272x32xf32, #tpu.memory_space<vmem>>, vector<240x32xf32>
    %c17_49 = arith.constant 17 : index
    %c0_50 = arith.constant 0 : index
    %47 = vector.load %arg5[%c17_49, %c0_50] : memref<272x32xf32, #tpu.memory_space<vmem>>, vector<240x32xf32>
    %48 = tpu.concatenate %44, %45, %46, %47 in 1 : vector<240x32xf32>, vector<240x32xf32>, vector<240x32xf32>, vector<240x32xf32> -> vector<240x128xf32>
    %49 = arith.truncf %48 : vector<240x128xf32> to vector<240x128xbf16>
    %c0_51 = arith.constant 0 : index
    %c0_52 = arith.constant 0 : index
    %50 = vector.load %arg2[%c0_51, %c0_52] : memref<128x4xbf16, #tpu.memory_space<vmem>>, vector<128x4xbf16>
    %cst_53 = arith.constant dense<0.000000e+00> : vector<240x4xf32>
    %51 = tpu.matmul %49, %50, %cst_53 {dimension_numbers = #tpu.dot_dimension_numbers<[1], [0], [0], [1], [0, 0, 1, 1], [], []>} : vector<240x128xbf16>, vector<128x4xbf16>, vector<240x4xf32> -> vector<240x4xf32>
    %c0_54 = arith.constant 0 : index
    %c0_55 = arith.constant 0 : index
    %52 = vector.load %arg3[%c0_54, %c0_55] : memref<1x4xf32, #tpu.memory_space<vmem>>, vector<1x4xf32>
    %53 = vector.broadcast %52 : vector<1x4xf32> to vector<240x4xf32>
    %54 = arith.addf %51, %53 : vector<240x4xf32>
    %c0_56 = arith.constant 0 : index
    %c0_57 = arith.constant 0 : index
    %c0_58 = arith.constant 0 : index
    %55 = vector.load %arg4[%c0_56, %c0_57, %c0_58] : memref<1x240x4xf32, #tpu.memory_space<vmem>>, vector<1x240x4xf32>
    %56 = vector.shape_cast %55 : vector<1x240x4xf32> to vector<240x4xf32>
    %57 = vector.shape_cast %54 : vector<240x4xf32> to vector<1x240x4xf32>
    tpu.vector_store %arg4[%c0_56, %c0_57, %c0_58], %57 {strides = array<i32>} : memref<1x240x4xf32, #tpu.memory_space<vmem>>, vector<1x240x4xf32>,
    return
  }
  func.func @transform_0(%arg0: i32) -> (i32, i32, i32) {
    %c0_i32 = arith.constant 0 : i32
    %c0_i32_0 = arith.constant 0 : i32
    %c0_i32_1 = arith.constant 0 : i32
    return %arg0, %c0_i32, %c0_i32_0 : i32, i32, i32
  }
  func.func @transform_1(%arg0: i32) -> (i32, i32) {
    %c0_i32 = arith.constant 0 : i32
    %c0_i32_0 = arith.constant 0 : i32
    %c0_i32_1 = arith.constant 0 : i32
    return %c0_i32, %c0_i32_0 : i32, i32
  }
  func.func @transform_2(%arg0: i32) -> (i32, i32) {
    %c0_i32 = arith.constant 0 : i32
    %c0_i32_0 = arith.constant 0 : i32
    %c0_i32_1 = arith.constant 0 : i32
    return %c0_i32, %c0_i32_0 : i32, i32
  }
  func.func @transform_3(%arg0: i32) -> (i32, i32, i32) {
    %c0_i32 = arith.constant 0 : i32
    %c0_i32_0 = arith.constant 0 : i32
    %c0_i32_1 = arith.constant 0 : i32
    return %arg0, %c0_i32, %c0_i32_0 : i32, i32, i32
  }
}

</mosaic_0001>

<llo_original>
// kernel: pixel_decoder_forward.5
$region0: #{pixel_decoder_forward.5}
  #allocation0 [shape = 'u32[]', space=smem, size = 0x4, offset = 0x4, fixed_abs, tag = 'smem constant byte address 0x4 - core index']
  #allocation1 [shape = 'u32[144,128]{1,0:T(1,128)}', space=vmem, size = 0x12000, scoped, tag = 'internal scratch']
  %s0 = inlined_call_operand.hbm [shape: f32[2,50], index: 0, kind: input, shape index: {}]
  %s1 = inlined_call_operand.hbm [shape: bf16[50,2048], index: 1, kind: input, shape index: {}]
  %s2 = inlined_call_operand.hbm [shape: f32[1,2048], index: 2, kind: input, shape index: {}]
  %s3 = inlined_call_operand.vmem [shape: f32[2,2048], index: 3, kind: output, shape index: {}]
  %s4 = sld [smem:[#allocation0]]
  $region34: #{pixel_decoder_forward.5} parent=0
    _
  %s6 = ssub.s32 1, %s4
  %s7 = scalar_select 0, %s6, %s4
  $region1: #{pixel_decoder_forward.5} parent=0
    #allocation2 [shape = 'u8[1024]{0}', space=vmem, size = 0x400, scoped, tag = 'input window, operand 0, single buffered']
    #allocation3 [shape = 's32[1]{0}', space=sflag, size = 0x4, scoped, tag = 'scoped memory for pixel_decoder_forward.5']
    #allocation4 [shape = 'u8[229376]{0}', space=vmem, size = 0x38000, scoped, tag = 'input window, operand 1, single buffered']
    #allocation5 [shape = 's32[1]{0}', space=sflag, size = 0x4, scoped, tag = 'scoped memory for pixel_decoder_forward.5']
    #allocation6 [shape = 'u8[8192]{0}', space=vmem, size = 0x2000, scoped, tag = 'input window, operand 2, single buffered']
    %8 = vsyncpa [#allocation3], 0
    %9 = vsyncpa [#allocation5], 0
    // Predicated region
    $region2: #{pixel_decoder_forward.5} parent=1 // pred_check
      _
    $region3: #{pixel_decoder_forward.5} parent=1 // pred_check_branch
      %11 = sbr.rel (0) target = $region5
    $region4: #{pixel_decoder_forward.5} parent=1 // pred_region
      %s13 = ssub.s32 32, 32
      %14 = vsyncadd [#allocation3], %s13
      %s16 = sshll.u32 [#allocation2], 4
      %s17 = int_to_ptr.vmem [resolvable:$true] %s16
      %19 = dma.hbm_to_vmem [thread:$0]  %s0, 32, %s17, [#allocation3]
    $region5: #{pixel_decoder_forward.5} parent=1 // pred_fallthru
      _
    // Predicated region
    $region6: #{pixel_decoder_forward.5} parent=1 // pred_check
      _
    $region7: #{pixel_decoder_forward.5} parent=1 // pred_check_branch
      %21 = sbr.rel (0) target = $region9
    $region8: #{pixel_decoder_forward.5} parent=1 // pred_region
      %s23 = ssub.s32 7168, 7168
      %24 = vsyncadd [#allocation5], %s23
      %s25 = sshll.u32 [#allocation4], 4
      %s26 = int_to_ptr.vmem [resolvable:$true] %s25
      %31 = dma.hbm_to_vmem [thread:$0]  %s1, 7168, %s26, [#allocation5], 1024, 1024, 64
    $region9: #{pixel_decoder_forward.5} parent=1 // pred_fallthru
      _
    // Predicated region
    $region10: #{pixel_decoder_forward.5} parent=1 // pred_check
      _
    $region11: #{pixel_decoder_forward.5} parent=1 // pred_check_branch
      %33 = sbr.rel (0) target = $region13
    $region12: #{pixel_decoder_forward.5} parent=1 // pred_region
      %s35 = ssub.s32 256, 256
      %36 = vsyncadd [#allocation5], %s35
      %s38 = sshll.u32 [#allocation6], 4
      %s39 = int_to_ptr.vmem [resolvable:$true] %s38
      %41 = dma.hbm_to_vmem [thread:$0]  %s2, 256, %s39, [#allocation5]
    $region13: #{pixel_decoder_forward.5} parent=1 // pred_fallthru
      _
    // Predicated region
    $region14: #{pixel_decoder_forward.5} parent=1 // pred_check
      _
    $region15: #{pixel_decoder_forward.5} parent=1 // pred_check_branch
      %43 = sbr.rel (0) target = $region17
    $region16: #{pixel_decoder_forward.5} parent=1 // pred_region
      %44 = dma.done [#allocation3], 32
    $region17: #{pixel_decoder_forward.5} parent=1 // pred_fallthru
      _
    // Predicated region
    $region18: #{pixel_decoder_forward.5} parent=1 // pred_check
      _
    $region19: #{pixel_decoder_forward.5} parent=1 // pred_check_branch
      %46 = sbr.rel (0) target = $region21
    $region20: #{pixel_decoder_forward.5} parent=1 // pred_region
      %47 = dma.done [#allocation5], 7168
    $region21: #{pixel_decoder_forward.5} parent=1 // pred_fallthru
      _
    // Predicated region
    $region22: #{pixel_decoder_forward.5} parent=1 // pred_check
      _
    $region23: #{pixel_decoder_forward.5} parent=1 // pred_check_branch
      %49 = sbr.rel (0) target = $region25
    $region24: #{pixel_decoder_forward.5} parent=1 // pred_region
      %50 = dma.done [#allocation5], 256
    $region25: #{pixel_decoder_forward.5} parent=1 // pred_fallthru
      _
    %v52 = vld [vmem:[#allocation2] sm:$0x3]
    %v53 = vpack.c.bf16 %v52, %v52
    %v54 = vld [vmem:[#allocation4] sm:$0xff]
    %v55 = vld [vmem:[#allocation4 + $0x8] sm:$0xff]
    %v56 = vld [vmem:[#allocation4 + $0x10] sm:$0xff]
    %v57 = vld [vmem:[#allocation4 + $0x18] sm:$0xff]
    %v58 = vld [vmem:[#allocation4 + $0x20] sm:$0xff]
    %v59 = vld [vmem:[#allocation4 + $0x28] sm:$0xff]
    %v60 = vld [vmem:[#allocation4 + $0x30] sm:$0xff]
    %v61 = vld [vmem:[#allocation4 + $0x38] sm:$0xff]
    %v62 = vld [vmem:[#allocation4 + $0x40] sm:$0xff]
    %v63 = vld [vmem:[#allocation4 + $0x48] sm:$0xff]
    %v64 = vld [vmem:[#allocation4 + $0x50] sm:$0xff]
    %v65 = vld [vmem:[#allocation4 + $0x58] sm:$0xff]
    %v66 = vld [vmem:[#allocation4 + $0x60] sm:$0xff]
    %v67 = vld [vmem:[#allocation4 + $0x68] sm:$0xff]
    %v68 = vld [vmem:[#allocation4 + $0x70] sm:$0xff]
    %v69 = vld [vmem:[#allocation4 + $0x78] sm:$0xff]
    %v70 = vld [vmem:[#allocation4 + $0x80] sm:$0xff]
    %v71 = vld [vmem:[#allocation4 + $0x88] sm:$0xff]
    %v72 = vld [vmem:[#allocation4 + $0x90] sm:$0xff]
    %v73 = vld [vmem:[#allocation4 + $0x98] sm:$0xff]
    %v74 = vld [vmem:[#allocation4 + $0xa0] sm:$0xff]
    %v75 = vld [vmem:[#allocation4 + $0xa8] sm:$0xff]
    %v76 = vld [vmem:[#allocation4 + $0xb0] sm:$0xff]
    %v77 = vld [vmem:[#allocation4 + $0xb8] sm:$0xff]
    %v78 = vld [vmem:[#allocation4 + $0xc0] sm:$0xff]
    %v79 = vld [vmem:[#allocation4 + $0xc8] sm:$0xff]
    %v80 = vld [vmem:[#allocation4 + $0xd0] sm:$0xff]
    %v81 = vld [vmem:[#allocation4 + $0xd8] sm:$0xff]
    %v82 = vld [vmem:[#allocation4 + $0xe0] sm:$0xff]
    %v83 = vld [vmem:[#allocation4 + $0xe8] sm:$0xff]
    %v84 = vld [vmem:[#allocation4 + $0xf0] sm:$0xff]
    %v85 = vld [vmem:[#allocation4 + $0xf8] sm:$0xff]
    %v86 = vld [vmem:[#allocation4 + $0x100] sm:$0xff]
    %v87 = vld [vmem:[#allocation4 + $0x108] sm:$0xff]
    %v88 = vld [vmem:[#allocation4 + $0x110] sm:$0xff]
    %v89 = vld [vmem:[#allocation4 + $0x118] sm:$0xff]
    %v90 = vld [vmem:[#allocation4 + $0x120] sm:$0xff]
    %v91 = vld [vmem:[#allocation4 + $0x128] sm:$0xff]
    %v92 = vld [vmem:[#allocation4 + $0x130] sm:$0xff]
    %v93 = vld [vmem:[#allocation4 + $0x138] sm:$0xff]
    %v94 = vld [vmem:[#allocation4 + $0x140] sm:$0xff]
    %v95 = vld [vmem:[#allocation4 + $0x148] sm:$0xff]
    %v96 = vld [vmem:[#allocation4 + $0x150] sm:$0xff]
    %v97 = vld [vmem:[#allocation4 + $0x158] sm:$0xff]
    %v98 = vld [vmem:[#allocation4 + $0x160] sm:$0xff]
    %v99 = vld [vmem:[#allocation4 + $0x168] sm:$0xff]
    %v100 = vld [vmem:[#allocation4 + $0x170] sm:$0xff]
    %v101 = vld [vmem:[#allocation4 + $0x178] sm:$0xff]
    %v102 = vld [vmem:[#allocation4 + $0x180] sm:$0x11]
    %v103 = vld [vmem:[#allocation4 + $0x188] sm:$0x11]
    %v104 = vld [vmem:[#allocation4 + $0x190] sm:$0x11]
    %v105 = vld [vmem:[#allocation4 + $0x198] sm:$0x11]
    %v106 = vld [vmem:[#allocation4 + $0x1a0] sm:$0x11]
    %v107 = vld [vmem:[#allocation4 + $0x1a8] sm:$0x11]
    %v108 = vld [vmem:[#allocation4 + $0x1b0] sm:$0x11]
    %v109 = vld [vmem:[#allocation4 + $0x1b8] sm:$0x11]
    %v110 = vld [vmem:[#allocation6] sm:$0xff]
    %v111 = vld [vmem:[#allocation6 + $0x8] sm:$0xff]
    %v114 = vlaneseq
    %v115 = vshrl.u32 %v114, 7
    %v116 = vsub.s32 0, %v115
    %v117 = vrot.slane %v110, %v116
    %v118 = vlaneseq
    %v119 = vshrl.u32 %v118, 7
    %v120 = vsub.s32 1, %v119
    %v121 = vrot.slane %v110, %v120
    %v122 = vlaneseq
    %v123 = vshrl.u32 %v122, 7
    %v124 = vsub.s32 2, %v123
    %v125 = vrot.slane %v110, %v124
    %v126 = vlaneseq
    %v127 = vshrl.u32 %v126, 7
    %v128 = vsub.s32 3, %v127
    %v129 = vrot.slane %v110, %v128
    %v130 = vlaneseq
    %v131 = vshrl.u32 %v130, 7
    %v132 = vsub.s32 4, %v131
    %v133 = vrot.slane %v110, %v132
    %v134 = vlaneseq
    %v135 = vshrl.u32 %v134, 7
    %v136 = vsub.s32 5, %v135
    %v137 = vrot.slane %v110, %v136
    %v138 = vlaneseq
    %v139 = vshrl.u32 %v138, 7
    %v140 = vsub.s32 6, %v139
    %v141 = vrot.slane %v110, %v140
    %v142 = vlaneseq
    %v143 = vshrl.u32 %v142, 7
    %v144 = vsub.s32 7, %v143
    %v145 = vrot.slane %v110, %v144
    %v146 = vlaneseq
    %v147 = vshrl.u32 %v146, 7
    %v148 = vsub.s32 0, %v147
    %v149 = vrot.slane %v111, %v148
    %v150 = vlaneseq
    %v151 = vshrl.u32 %v150, 7
    %v152 = vsub.s32 1, %v151
    %v153 = vrot.slane %v111, %v152
    %v154 = vlaneseq
    %v155 = vshrl.u32 %v154, 7
    %v156 = vsub.s32 2, %v155
    %v157 = vrot.slane %v111, %v156
    %v158 = vlaneseq
    %v159 = vshrl.u32 %v158, 7
    %v160 = vsub.s32 3, %v159
    %v161 = vrot.slane %v111, %v160
    %v162 = vlaneseq
    %v163 = vshrl.u32 %v162, 7
    %v164 = vsub.s32 4, %v163
    %v165 = vrot.slane %v111, %v164
    %v166 = vlaneseq
    %v167 = vshrl.u32 %v166, 7
    %v168 = vsub.s32 5, %v167
    %v169 = vrot.slane %v111, %v168
    %v170 = vlaneseq
    %v171 = vshrl.u32 %v170, 7
    %v172 = vsub.s32 6, %v171
    %v173 = vrot.slane %v111, %v172
    %v174 = vlaneseq
    %v175 = vshrl.u32 %v174, 7
    %v176 = vsub.s32 7, %v175
    %v177 = vrot.slane %v111, %v176
    %v250 = vunpack.c.l.b16 %v54
    %v251 = vunpack.c.h.b16 %v54
    %v252 = vunpack.c.l.b16 %v55
    %v253 = vunpack.c.h.b16 %v55
    %v254 = vunpack.c.l.b16 %v56
    %v255 = vunpack.c.h.b16 %v56
    %v256 = vunpack.c.l.b16 %v57
    %v257 = vunpack.c.h.b16 %v57
    %v258 = vunpack.c.l.b16 %v58
    %v259 = vunpack.c.h.b16 %v58
    %v260 = vunpack.c.l.b16 %v59
    %v261 = vunpack.c.h.b16 %v59
    %v262 = vunpack.c.l.b16 %v60
    %v263 = vunpack.c.h.b16 %v60
    %v264 = vunpack.c.l.b16 %v61
    %v265 = vunpack.c.h.b16 %v61
    %v266 = vunpack.c.l.b16 %v62
    %v267 = vunpack.c.h.b16 %v62
    %v268 = vunpack.c.l.b16 %v63
    %v269 = vunpack.c.h.b16 %v63
    %v270 = vunpack.c.l.b16 %v64
    %v271 = vunpack.c.h.b16 %v64
    %v272 = vunpack.c.l.b16 %v65
    %v273 = vunpack.c.h.b16 %v65
    %v274 = vunpack.c.l.b16 %v66
    %v275 = vunpack.c.h.b16 %v66
    %v276 = vunpack.c.l.b16 %v67
    %v277 = vunpack.c.h.b16 %v67
    %v278 = vunpack.c.l.b16 %v68
    %v279 = vunpack.c.h.b16 %v68
    %v280 = vunpack.c.l.b16 %v69
    %v281 = vunpack.c.h.b16 %v69
    %v282 = vunpack.c.l.b16 %v70
    %v283 = vunpack.c.h.b16 %v70
    %v284 = vunpack.c.l.b16 %v71
    %v285 = vunpack.c.h.b16 %v71
    %v286 = vunpack.c.l.b16 %v72
    %v287 = vunpack.c.h.b16 %v72
    %v288 = vunpack.c.l.b16 %v73
    %v289 = vunpack.c.h.b16 %v73
    %v290 = vunpack.c.l.b16 %v74
    %v291 = vunpack.c.h.b16 %v74
    %v292 = vunpack.c.l.b16 %v75
    %v293 = vunpack.c.h.b16 %v75
    %v294 = vunpack.c.l.b16 %v76
    %v295 = vunpack.c.h.b16 %v76
    %v296 = vunpack.c.l.b16 %v77
    %v297 = vunpack.c.h.b16 %v77
    %v298 = vunpack.c.l.b16 %v78
    %v299 = vunpack.c.h.b16 %v78
    %v300 = vunpack.c.l.b16 %v79
    %v301 = vunpack.c.h.b16 %v79
    %v302 = vunpack.c.l.b16 %v80
    %v303 = vunpack.c.h.b16 %v80
    %v304 = vunpack.c.l.b16 %v81
    %v305 = vunpack.c.h.b16 %v81
    %v306 = vunpack.c.l.b16 %v82
    %v307 = vunpack.c.h.b16 %v82
    %v308 = vunpack.c.l.b16 %v83
    %v309 = vunpack.c.h.b16 %v83
    %v310 = vunpack.c.l.b16 %v84
    %v311 = vunpack.c.h.b16 %v84
    %v312 = vunpack.c.l.b16 %v85
    %v313 = vunpack.c.h.b16 %v85
    %v314 = vunpack.c.l.b16 %v86
    %v315 = vunpack.c.h.b16 %v86
    %v316 = vunpack.c.l.b16 %v87
    %v317 = vunpack.c.h.b16 %v87
    %v318 = vunpack.c.l.b16 %v88
    %v319 = vunpack.c.h.b16 %v88
    %v320 = vunpack.c.l.b16 %v89
    %v321 = vunpack.c.h.b16 %v89
    %v322 = vunpack.c.l.b16 %v90
    %v323 = vunpack.c.h.b16 %v90
    %v324 = vunpack.c.l.b16 %v91
    %v325 = vunpack.c.h.b16 %v91
    %v326 = vunpack.c.l.b16 %v92
    %v327 = vunpack.c.h.b16 %v92
    %v328 = vunpack.c.l.b16 %v93
    %v329 = vunpack.c.h.b16 %v93
    %v330 = vunpack.c.l.b16 %v94
    %v331 = vunpack.c.h.b16 %v94
    %v332 = vunpack.c.l.b16 %v95
    %v333 = vunpack.c.h.b16 %v95
    %v334 = vunpack.c.l.b16 %v96
    %v335 = vunpack.c.h.b16 %v96
    %v336 = vunpack.c.l.b16 %v97
    %v337 = vunpack.c.h.b16 %v97
    %v338 = vunpack.c.l.b16 %v98
    %v339 = vunpack.c.h.b16 %v98
    %v340 = vunpack.c.l.b16 %v99
    %v341 = vunpack.c.h.b16 %v99
    %v342 = vunpack.c.l.b16 %v100
    %v343 = vunpack.c.h.b16 %v100
    %v344 = vunpack.c.l.b16 %v101
    %v345 = vunpack.c.h.b16 %v101
    %v346 = vunpack.c.l.b16 %v102
    %v347 = vunpack.c.h.b16 %v102
    %v348 = vunpack.c.l.b16 %v103
    %v349 = vunpack.c.h.b16 %v103
    %v350 = vunpack.c.l.b16 %v104
    %v351 = vunpack.c.h.b16 %v104
    %v352 = vunpack.c.l.b16 %v105
    %v353 = vunpack.c.h.b16 %v105
    %v354 = vunpack.c.l.b16 %v106
    %v355 = vunpack.c.h.b16 %v106
    %v356 = vunpack.c.l.b16 %v107
    %v357 = vunpack.c.h.b16 %v107
    %v358 = vunpack.c.l.b16 %v108
    %v359 = vunpack.c.h.b16 %v108
    %v360 = vunpack.c.l.b16 %v109
    %v361 = vunpack.c.h.b16 %v109
    %v362 = vpack.c.b16 %v266, %v250
    %v363 = vpack.c.b16 %v267, %v251
    %v364 = vpack.c.b16 %v268, %v252
    %v365 = vpack.c.b16 %v269, %v253
    %v366 = vpack.c.b16 %v270, %v254
    %v367 = vpack.c.b16 %v271, %v255
    %v368 = vpack.c.b16 %v272, %v256
    %v369 = vpack.c.b16 %v273, %v257
    %v370 = vpack.c.b16 %v274, %v258
    %v371 = vpack.c.b16 %v275, %v259
    %v372 = vpack.c.b16 %v276, %v260
    %v373 = vpack.c.b16 %v277, %v261
    %v374 = vpack.c.b16 %v278, %v262
    %v375 = vpack.c.b16 %v279, %v263
    %v376 = vpack.c.b16 %v280, %v264
    %v377 = vpack.c.b16 %v281, %v265
    %v378 = vpack.c.b16 %v298, %v282
    %v379 = vpack.c.b16 %v299, %v283
    %v380 = vpack.c.b16 %v300, %v284
    %v381 = vpack.c.b16 %v301, %v285
    %v382 = vpack.c.b16 %v302, %v286
    %v383 = vpack.c.b16 %v303, %v287
    %v384 = vpack.c.b16 %v304, %v288
    %v385 = vpack.c.b16 %v305, %v289
    %v386 = vpack.c.b16 %v306, %v290
    %v387 = vpack.c.b16 %v307, %v291
    %v388 = vpack.c.b16 %v308, %v292
    %v389 = vpack.c.b16 %v309, %v293
    %v390 = vpack.c.b16 %v310, %v294
    %v391 = vpack.c.b16 %v311, %v295
    %v392 = vpack.c.b16 %v312, %v296
    %v393 = vpack.c.b16 %v313, %v297
    %v394 = vpack.c.b16 %v330, %v314
    %v395 = vpack.c.b16 %v331, %v315
    %v396 = vpack.c.b16 %v332, %v316
    %v397 = vpack.c.b16 %v333, %v317
    %v398 = vpack.c.b16 %v334, %v318
    %v399 = vpack.c.b16 %v335, %v319
    %v400 = vpack.c.b16 %v336, %v320
    %v401 = vpack.c.b16 %v337, %v321
    %v402 = vpack.c.b16 %v338, %v322
    %v403 = vpack.c.b16 %v339, %v323
    %v404 = vpack.c.b16 %v340, %v324
    %v405 = vpack.c.b16 %v341, %v325
    %v406 = vpack.c.b16 %v342, %v326
    %v407 = vpack.c.b16 %v343, %v327
    %v408 = vpack.c.b16 %v344, %v328
    %v409 = vpack.c.b16 %v345, %v329
    %v410 = vpack.c.b16 %v346, %v346
    %v411 = vpack.c.b16 %v347, %v347
    %v412 = vpack.c.b16 %v348, %v348
    %v413 = vpack.c.b16 %v349, %v349
    %v414 = vpack.c.b16 %v350, %v350
    %v415 = vpack.c.b16 %v351, %v351
    %v416 = vpack.c.b16 %v352, %v352
    %v417 = vpack.c.b16 %v353, %v353
    %v418 = vpack.c.b16 %v354, %v354
    %v419 = vpack.c.b16 %v355, %v355
    %v420 = vpack.c.b16 %v356, %v356
    %v421 = vpack.c.b16 %v357, %v357
    %v422 = vpack.c.b16 %v358, %v358
    %v423 = vpack.c.b16 %v359, %v359
    %v424 = vpack.c.b16 %v360, %v360
    %v425 = vpack.c.b16 %v361, %v361
    %vm474 = vcmask 408576
    %v476 = vsel %vm474, %v53, 0
    %vm478 = vcmask 1040384
    %v480 = vsel %vm478, %v410, 0
    %v483 = vsel %vm478, %v411, 0
    %v486 = vsel %vm478, %v412, 0
    %v489 = vsel %vm478, %v413, 0
    %v492 = vsel %vm478, %v414, 0
    %v495 = vsel %vm478, %v415, 0
    %v498 = vsel %vm478, %v416, 0
    %v501 = vsel %vm478, %v417, 0
    %v504 = vsel %vm478, %v418, 0
    %v507 = vsel %vm478, %v419, 0
    %v510 = vsel %vm478, %v420, 0
    %v513 = vsel %vm478, %v421, 0
    %v516 = vsel %vm478, %v422, 0
    %v519 = vsel %vm478, %v423, 0
    %v522 = vsel %vm478, %v424, 0
    %v525 = vsel %vm478, %v425, 0
    %527 = vmatprep.subr.bf16.mxu0 0
    %528 = vmatpush1.bf16.msra.mxu0 0
    %529 = vmatprep.subr.bf16.mxu0 0
    %530 = vmatpush1.bf16.msra.mxu0 0
    %531 = vmatprep.subr.bf16.mxu0 0
    %532 = vmatpush1.bf16.msra.mxu0 0
    %533 = vmatprep.subr.bf16.mxu0 0
    %534 = vmatpush1.bf16.msra.mxu0 0
    %535 = vmatprep.subr.bf16.mxu0 %v483
    %536 = vmatpush1.bf16.msra.mxu0 %v480
    %537 = vmatprep.subr.bf16.mxu0 %v395
    %538 = vmatpush1.bf16.msra.mxu0 %v394
    %539 = vmatprep.subr.bf16.mxu0 %v379
    %540 = vmatpush1.bf16.msra.mxu0 %v378
    %541 = vmatprep.subr.bf16.mxu0 %v363
    %542 = vmatpush1.bf16.msra.mxu0 %v362
    %543 = vmatprep.subr.bf16.mxu0 0
    %544 = vmatpush2.bf16.msra.mxu0 0
    %545 = vmatprep.subr.bf16.mxu0 0
    %546 = vmatpush2.bf16.msra.mxu0 0
    %547 = vmatprep.subr.bf16.mxu0 0
    %548 = vmatpush2.bf16.msra.mxu0 0
    %549 = vmatprep.subr.bf16.mxu0 0
    %550 = vmatpush2.bf16.msra.mxu0 0
    %551 = vmatprep.subr.bf16.mxu0 0
    %552 = vmatpush2.bf16.msra.mxu0 0
    %553 = vmatprep.subr.bf16.mxu0 0
    %554 = vmatpush2.bf16.msra.mxu0 0
    %555 = vmatprep.subr.bf16.mxu0 0
    %556 = vmatpush2.bf16.msra.mxu0 0
    %557 = vmatprep.subr.bf16.mxu0 0
    %558 = vmatpush2.bf16.msra.mxu0 0
    %559 = vmatprep.mubr.bf16.mxu0 0
    %560 = vmatmul.mubr.bf16.gmra.mxu0 %v476
    %v561 = vpop.f32.mrf.mxu0
    %v562 = vadd.f32 %v117, %v561
    %v563 = vpop.f32.mrf.mxu0
    %v564 = vadd.f32 %v121, %v563
    %v565 = vpop.f32.mrf.mxu0
    %v566 = vpop.f32.mrf.mxu0
    %567 = vdwg.mxu0
    %568 = vmatprep.subr.bf16.mxu0 0
    %569 = vmatpush1.bf16.msra.mxu0 0
    %570 = vmatprep.subr.bf16.mxu0 0
    %571 = vmatpush1.bf16.msra.mxu0 0
    %572 = vmatprep.subr.bf16.mxu0 0
    %573 = vmatpush1.bf16.msra.mxu0 0
    %574 = vmatprep.subr.bf16.mxu0 0
    %575 = vmatpush1.bf16.msra.mxu0 0
    %576 = vmatprep.subr.bf16.mxu0 %v489
    %577 = vmatpush1.bf16.msra.mxu0 %v486
    %578 = vmatprep.subr.bf16.mxu0 %v397
    %579 = vmatpush1.bf16.msra.mxu0 %v396
    %580 = vmatprep.subr.bf16.mxu0 %v381
    %581 = vmatpush1.bf16.msra.mxu0 %v380
    %582 = vmatprep.subr.bf16.mxu0 %v365
    %583 = vmatpush1.bf16.msra.mxu0 %v364
    %584 = vmatprep.subr.bf16.mxu0 0
    %585 = vmatpush2.bf16.msra.mxu0 0
    %586 = vmatprep.subr.bf16.mxu0 0
    %587 = vmatpush2.bf16.msra.mxu0 0
    %588 = vmatprep.subr.bf16.mxu0 0
    %589 = vmatpush2.bf16.msra.mxu0 0
    %590 = vmatprep.subr.bf16.mxu0 0
    %591 = vmatpush2.bf16.msra.mxu0 0
    %592 = vmatprep.subr.bf16.mxu0 0
    %593 = vmatpush2.bf16.msra.mxu0 0
    %594 = vmatprep.subr.bf16.mxu0 0
    %595 = vmatpush2.bf16.msra.mxu0 0
    %596 = vmatprep.subr.bf16.mxu0 0
    %597 = vmatpush2.bf16.msra.mxu0 0
    %598 = vmatprep.subr.bf16.mxu0 0
    %599 = vmatpush2.bf16.msra.mxu0 0
    %600 = vmatprep.mubr.bf16.mxu0 0
    %601 = vmatmul.mubr.bf16.gmra.mxu0 %v476
    %v602 = vpop.f32.mrf.mxu0
    %v603 = vadd.f32 %v125, %v602
    %v604 = vpop.f32.mrf.mxu0
    %v605 = vadd.f32 %v129, %v604
    %v606 = vpop.f32.mrf.mxu0
    %v607 = vpop.f32.mrf.mxu0
    %608 = vdwg.mxu0
    %609 = vmatprep.subr.bf16.mxu0 0
    %610 = vmatpush1.bf16.msra.mxu0 0
    %611 = vmatprep.subr.bf16.mxu0 0
    %612 = vmatpush1.bf16.msra.mxu0 0
    %613 = vmatprep.subr.bf16.mxu0 0
    %614 = vmatpush1.bf16.msra.mxu0 0
    %615 = vmatprep.subr.bf16.mxu0 0
    %616 = vmatpush1.bf16.msra.mxu0 0
    %617 = vmatprep.subr.bf16.mxu0 %v495
    %618 = vmatpush1.bf16.msra.mxu0 %v492
    %619 = vmatprep.subr.bf16.mxu0 %v399
    %620 = vmatpush1.bf16.msra.mxu0 %v398
    %621 = vmatprep.subr.bf16.mxu0 %v383
    %622 = vmatpush1.bf16.msra.mxu0 %v382
    %623 = vmatprep.subr.bf16.mxu0 %v367
    %624 = vmatpush1.bf16.msra.mxu0 %v366
    %625 = vmatprep.subr.bf16.mxu0 0
    %626 = vmatpush2.bf16.msra.mxu0 0
    %627 = vmatprep.subr.bf16.mxu0 0
    %628 = vmatpush2.bf16.msra.mxu0 0
    %629 = vmatprep.subr.bf16.mxu0 0
    %630 = vmatpush2.bf16.msra.mxu0 0
    %631 = vmatprep.subr.bf16.mxu0 0
    %632 = vmatpush2.bf16.msra.mxu0 0
    %633 = vmatprep.subr.bf16.mxu0 0
    %634 = vmatpush2.bf16.msra.mxu0 0
    %635 = vmatprep.subr.bf16.mxu0 0
    %636 = vmatpush2.bf16.msra.mxu0 0
    %637 = vmatprep.subr.bf16.mxu0 0
    %638 = vmatpush2.bf16.msra.mxu0 0
    %639 = vmatprep.subr.bf16.mxu0 0
    %640 = vmatpush2.bf16.msra.mxu0 0
    %641 = vmatprep.mubr.bf16.mxu0 0
    %642 = vmatmul.mubr.bf16.gmra.mxu0 %v476
    %v643 = vpop.f32.mrf.mxu0
    %v644 = vadd.f32 %v133, %v643
    %v645 = vpop.f32.mrf.mxu0
    %v646 = vadd.f32 %v137, %v645
    %v647 = vpop.f32.mrf.mxu0
    %v648 = vpop.f32.mrf.mxu0
    %649 = vdwg.mxu0
    %650 = vmatprep.subr.bf16.mxu0 0
    %651 = vmatpush1.bf16.msra.mxu0 0
    %652 = vmatprep.subr.bf16.mxu0 0
    %653 = vmatpush1.bf16.msra.mxu0 0
    %654 = vmatprep.subr.bf16.mxu0 0
    %655 = vmatpush1.bf16.msra.mxu0 0
    %656 = vmatprep.subr.bf16.mxu0 0
    %657 = vmatpush1.bf16.msra.mxu0 0
    %658 = vmatprep.subr.bf16.mxu0 %v501
    %659 = vmatpush1.bf16.msra.mxu0 %v498
    %660 = vmatprep.subr.bf16.mxu0 %v401
    %661 = vmatpush1.bf16.msra.mxu0 %v400
    %662 = vmatprep.subr.bf16.mxu0 %v385
    %663 = vmatpush1.bf16.msra.mxu0 %v384
    %664 = vmatprep.subr.bf16.mxu0 %v369
    %665 = vmatpush1.bf16.msra.mxu0 %v368
    %666 = vmatprep.subr.bf16.mxu0 0
    %667 = vmatpush2.bf16.msra.mxu0 0
    %668 = vmatprep.subr.bf16.mxu0 0
    %669 = vmatpush2.bf16.msra.mxu0 0
    %670 = vmatprep.subr.bf16.mxu0 0
    %671 = vmatpush2.bf16.msra.mxu0 0
    %672 = vmatprep.subr.bf16.mxu0 0
    %673 = vmatpush2.bf16.msra.mxu0 0
    %674 = vmatprep.subr.bf16.mxu0 0
    %675 = vmatpush2.bf16.msra.mxu0 0
    %676 = vmatprep.subr.bf16.mxu0 0
    %677 = vmatpush2.bf16.msra.mxu0 0
    %678 = vmatprep.subr.bf16.mxu0 0
    %679 = vmatpush2.bf16.msra.mxu0 0
    %680 = vmatprep.subr.bf16.mxu0 0
    %681 = vmatpush2.bf16.msra.mxu0 0
    %682 = vmatprep.mubr.bf16.mxu0 0
    %683 = vmatmul.mubr.bf16.gmra.mxu0 %v476
    %v684 = vpop.f32.mrf.mxu0
    %v685 = vadd.f32 %v141, %v684
    %v686 = vpop.f32.mrf.mxu0
    %v687 = vadd.f32 %v145, %v686
    %v688 = vpop.f32.mrf.mxu0
    %v689 = vpop.f32.mrf.mxu0
    %690 = vdwg.mxu0
    %691 = vmatprep.subr.bf16.mxu0 0
    %692 = vmatpush1.bf16.msra.mxu0 0
    %693 = vmatprep.subr.bf16.mxu0 0
    %694 = vmatpush1.bf16.msra.mxu0 0
    %695 = vmatprep.subr.bf16.mxu0 0
    %696 = vmatpush1.bf16.msra.mxu0 0
    %697 = vmatprep.subr.bf16.mxu0 0
    %698 = vmatpush1.bf16.msra.mxu0 0
    %699 = vmatprep.subr.bf16.mxu0 %v507
    %700 = vmatpush1.bf16.msra.mxu0 %v504
    %701 = vmatprep.subr.bf16.mxu0 %v403
    %702 = vmatpush1.bf16.msra.mxu0 %v402
    %703 = vmatprep.subr.bf16.mxu0 %v387
    %704 = vmatpush1.bf16.msra.mxu0 %v386
    %705 = vmatprep.subr.bf16.mxu0 %v371
    %706 = vmatpush1.bf16.msra.mxu0 %v370
    %707 = vmatprep.subr.bf16.mxu0 0
    %708 = vmatpush2.bf16.msra.mxu0 0
    %709 = vmatprep.subr.bf16.mxu0 0
    %710 = vmatpush2.bf16.msra.mxu0 0
    %711 = vmatprep.subr.bf16.mxu0 0
    %712 = vmatpush2.bf16.msra.mxu0 0
    %713 = vmatprep.subr.bf16.mxu0 0
    %714 = vmatpush2.bf16.msra.mxu0 0
    %715 = vmatprep.subr.bf16.mxu0 0
    %716 = vmatpush2.bf16.msra.mxu0 0
    %717 = vmatprep.subr.bf16.mxu0 0
    %718 = vmatpush2.bf16.msra.mxu0 0
    %719 = vmatprep.subr.bf16.mxu0 0
    %720 = vmatpush2.bf16.msra.mxu0 0
    %721 = vmatprep.subr.bf16.mxu0 0
    %722 = vmatpush2.bf16.msra.mxu0 0
    %723 = vmatprep.mubr.bf16.mxu0 0
    %724 = vmatmul.mubr.bf16.gmra.mxu0 %v476
    %v725 = vpop.f32.mrf.mxu0
    %v726 = vadd.f32 %v149, %v725
    %v727 = vpop.f32.mrf.mxu0
    %v728 = vadd.f32 %v153, %v727
    %v729 = vpop.f32.mrf.mxu0
    %v730 = vpop.f32.mrf.mxu0
    %731 = vdwg.mxu0
    %732 = vmatprep.subr.bf16.mxu0 0
    %733 = vmatpush1.bf16.msra.mxu0 0
    %734 = vmatprep.subr.bf16.mxu0 0
    %735 = vmatpush1.bf16.msra.mxu0 0
    %736 = vmatprep.subr.bf16.mxu0 0
    %737 = vmatpush1.bf16.msra.mxu0 0
    %738 = vmatprep.subr.bf16.mxu0 0
    %739 = vmatpush1.bf16.msra.mxu0 0
    %740 = vmatprep.subr.bf16.mxu0 %v513
    %741 = vmatpush1.bf16.msra.mxu0 %v510
    %742 = vmatprep.subr.bf16.mxu0 %v405
    %743 = vmatpush1.bf16.msra.mxu0 %v404
    %744 = vmatprep.subr.bf16.mxu0 %v389
    %745 = vmatpush1.bf16.msra.mxu0 %v388
    %746 = vmatprep.subr.bf16.mxu0 %v373
    %747 = vmatpush1.bf16.msra.mxu0 %v372
    %748 = vmatprep.subr.bf16.mxu0 0
    %749 = vmatpush2.bf16.msra.mxu0 0
    %750 = vmatprep.subr.bf16.mxu0 0
    %751 = vmatpush2.bf16.msra.mxu0 0
    %752 = vmatprep.subr.bf16.mxu0 0
    %753 = vmatpush2.bf16.msra.mxu0 0
    %754 = vmatprep.subr.bf16.mxu0 0
    %755 = vmatpush2.bf16.msra.mxu0 0
    %756 = vmatprep.subr.bf16.mxu0 0
    %757 = vmatpush2.bf16.msra.mxu0 0
    %758 = vmatprep.subr.bf16.mxu0 0
    %759 = vmatpush2.bf16.msra.mxu0 0
    %760 = vmatprep.subr.bf16.mxu0 0
    %761 = vmatpush2.bf16.msra.mxu0 0
    %762 = vmatprep.subr.bf16.mxu0 0
    %763 = vmatpush2.bf16.msra.mxu0 0
    %764 = vmatprep.mubr.bf16.mxu0 0
    %765 = vmatmul.mubr.bf16.gmra.mxu0 %v476
    %v766 = vpop.f32.mrf.mxu0
    %v767 = vadd.f32 %v157, %v766
    %v768 = vpop.f32.mrf.mxu0
    %v769 = vadd.f32 %v161, %v768
    %v770 = vpop.f32.mrf.mxu0
    %v771 = vpop.f32.mrf.mxu0
    %772 = vdwg.mxu0
    %773 = vmatprep.subr.bf16.mxu0 0
    %774 = vmatpush1.bf16.msra.mxu0 0
    %775 = vmatprep.subr.bf16.mxu0 0
    %776 = vmatpush1.bf16.msra.mxu0 0
    %777 = vmatprep.subr.bf16.mxu0 0
    %778 = vmatpush1.bf16.msra.mxu0 0
    %779 = vmatprep.subr.bf16.mxu0 0
    %780 = vmatpush1.bf16.msra.mxu0 0
    %781 = vmatprep.subr.bf16.mxu0 %v519
    %782 = vmatpush1.bf16.msra.mxu0 %v516
    %783 = vmatprep.subr.bf16.mxu0 %v407
    %784 = vmatpush1.bf16.msra.mxu0 %v406
    %785 = vmatprep.subr.bf16.mxu0 %v391
    %786 = vmatpush1.bf16.msra.mxu0 %v390
    %787 = vmatprep.subr.bf16.mxu0 %v375
    %788 = vmatpush1.bf16.msra.mxu0 %v374
    %789 = vmatprep.subr.bf16.mxu0 0
    %790 = vmatpush2.bf16.msra.mxu0 0
    %791 = vmatprep.subr.bf16.mxu0 0
    %792 = vmatpush2.bf16.msra.mxu0 0
    %793 = vmatprep.subr.bf16.mxu0 0
    %794 = vmatpush2.bf16.msra.mxu0 0
    %795 = vmatprep.subr.bf16.mxu0 0
    %796 = vmatpush2.bf16.msra.mxu0 0
    %797 = vmatprep.subr.bf16.mxu0 0
    %798 = vmatpush2.bf16.msra.mxu0 0
    %799 = vmatprep.subr.bf16.mxu0 0
    %800 = vmatpush2.bf16.msra.mxu0 0
    %801 = vmatprep.subr.bf16.mxu0 0
    %802 = vmatpush2.bf16.msra.mxu0 0
    %803 = vmatprep.subr.bf16.mxu0 0
    %804 = vmatpush2.bf16.msra.mxu0 0
    %805 = vmatprep.mubr.bf16.mxu0 0
    %806 = vmatmul.mubr.bf16.gmra.mxu0 %v476
    %v807 = vpop.f32.mrf.mxu0
    %v808 = vadd.f32 %v165, %v807
    %v809 = vpop.f32.mrf.mxu0
    %v810 = vadd.f32 %v169, %v809
    %v811 = vpop.f32.mrf.mxu0
    %v812 = vpop.f32.mrf.mxu0
    %813 = vdwg.mxu0
    %814 = vmatprep.subr.bf16.mxu0 0
    %815 = vmatpush1.bf16.msra.mxu0 0
    %816 = vmatprep.subr.bf16.mxu0 0
    %817 = vmatpush1.bf16.msra.mxu0 0
    %818 = vmatprep.subr.bf16.mxu0 0
    %819 = vmatpush1.bf16.msra.mxu0 0
    %820 = vmatprep.subr.bf16.mxu0 0
    %821 = vmatpush1.bf16.msra.mxu0 0
    %822 = vmatprep.subr.bf16.mxu0 %v525
    %823 = vmatpush1.bf16.msra.mxu0 %v522
    %824 = vmatprep.subr.bf16.mxu0 %v409
    %825 = vmatpush1.bf16.msra.mxu0 %v408
    %826 = vmatprep.subr.bf16.mxu0 %v393
    %827 = vmatpush1.bf16.msra.mxu0 %v392
    %828 = vmatprep.subr.bf16.mxu0 %v377
    %829 = vmatpush1.bf16.msra.mxu0 %v376
    %830 = vmatprep.subr.bf16.mxu0 0
    %831 = vmatpush2.bf16.msra.mxu0 0
    %832 = vmatprep.subr.bf16.mxu0 0
    %833 = vmatpush2.bf16.msra.mxu0 0
    %834 = vmatprep.subr.bf16.mxu0 0
    %835 = vmatpush2.bf16.msra.mxu0 0
    %836 = vmatprep.subr.bf16.mxu0 0
    %837 = vmatpush2.bf16.msra.mxu0 0
    %838 = vmatprep.subr.bf16.mxu0 0
    %839 = vmatpush2.bf16.msra.mxu0 0
    %840 = vmatprep.subr.bf16.mxu0 0
    %841 = vmatpush2.bf16.msra.mxu0 0
    %842 = vmatprep.subr.bf16.mxu0 0
    %843 = vmatpush2.bf16.msra.mxu0 0
    %844 = vmatprep.subr.bf16.mxu0 0
    %845 = vmatpush2.bf16.msra.mxu0 0
    %846 = vmatprep.mubr.bf16.mxu0 0
    %847 = vmatmul.mubr.bf16.gmra.mxu0 %v476
    %v848 = vpop.f32.mrf.mxu0
    %v849 = vadd.f32 %v173, %v848
    %v850 = vpop.f32.mrf.mxu0
    %v851 = vadd.f32 %v177, %v850
    %v852 = vpop.f32.mrf.mxu0
    %v853 = vpop.f32.mrf.mxu0
    %854 = vdwg.mxu0
    %v855 = vmax.f32 %v562, 0.0
    %v856 = vmax.f32 %v564, 0.0
    %v857 = vmax.f32 %v603, 0.0
    %v858 = vmax.f32 %v605, 0.0
    %v859 = vmax.f32 %v644, 0.0
    %v860 = vmax.f32 %v646, 0.0
    %v861 = vmax.f32 %v685, 0.0
    %v862 = vmax.f32 %v687, 0.0
    %v863 = vmax.f32 %v726, 0.0
    %v864 = vmax.f32 %v728, 0.0
    %v865 = vmax.f32 %v767, 0.0
    %v866 = vmax.f32 %v769, 0.0
    %v867 = vmax.f32 %v808, 0.0
    %v868 = vmax.f32 %v810, 0.0
    %v869 = vmax.f32 %v849, 0.0
    %v870 = vmax.f32 %v851, 0.0
    %v887 = vcombine.low %v855, %v856
    %v888 = vcombine.low %v857, %v858
    %v890 = vunpack.c.l.s4 1983009808
    %v891 = vunpack.c.0.s8 %v890
    %v892 = vlaneseq
    %v893 = vshrl.u32 %v892, 7
    %v894 = vsub.s32 %v891, %v893
    %v895 = vrot.slane %v887, %v894
    %v897 = vunpack.c.l.s4 1983009808
    %v898 = vunpack.c.0.s8 %v897
    %v899 = vlaneseq
    %v900 = vshrl.u32 %v899, 7
    %v901 = vsub.s32 %v898, %v900
    %v902 = vrot.slane %v888, %v901
    %v903 = vcombine.low %v895, %v902
    %v904 = vcombine.low %v859, %v860
    %v905 = vcombine.low %v861, %v862
    %v907 = vunpack.c.l.s4 1983009808
    %v908 = vunpack.c.0.s8 %v907
    %v909 = vlaneseq
    %v910 = vshrl.u32 %v909, 7
    %v911 = vsub.s32 %v908, %v910
    %v912 = vrot.slane %v904, %v911
    %v914 = vunpack.c.l.s4 1983009808
    %v915 = vunpack.c.0.s8 %v914
    %v916 = vlaneseq
    %v917 = vshrl.u32 %v916, 7
    %v918 = vsub.s32 %v915, %v917
    %v919 = vrot.slane %v905, %v918
    %v920 = vcombine.low %v912, %v919
    %v921 = vcombine.low %v863, %v864
    %v922 = vcombine.low %v865, %v866
    %v924 = vunpack.c.l.s4 1983009808
    %v925 = vunpack.c.0.s8 %v924
    %v926 = vlaneseq
    %v927 = vshrl.u32 %v926, 7
    %v928 = vsub.s32 %v925, %v927
    %v929 = vrot.slane %v921, %v928
    %v931 = vunpack.c.l.s4 1983009808
    %v932 = vunpack.c.0.s8 %v931
    %v933 = vlaneseq
    %v934 = vshrl.u32 %v933, 7
    %v935 = vsub.s32 %v932, %v934
    %v936 = vrot.slane %v922, %v935
    %v937 = vcombine.low %v929, %v936
    %v938 = vcombine.low %v867, %v868
    %v939 = vcombine.low %v869, %v870
    %v941 = vunpack.c.l.s4 1983009808
    %v942 = vunpack.c.0.s8 %v941
    %v943 = vlaneseq
    %v944 = vshrl.u32 %v943, 7
    %v945 = vsub.s32 %v942, %v944
    %v946 = vrot.slane %v938, %v945
    %v948 = vunpack.c.l.s4 1983009808
    %v949 = vunpack.c.0.s8 %v948
    %v950 = vlaneseq
    %v951 = vshrl.u32 %v950, 7
    %v952 = vsub.s32 %v949, %v951
    %v953 = vrot.slane %v939, %v952
    %v954 = vcombine.low %v946, %v953
    %959 = vst [vmem:[%s3] sm:$0xff] %v903
    %960 = vst [vmem:[%s3 + $0x8] sm:$0xff] %v920
    %961 = vst [vmem:[%s3 + $0x10] sm:$0xff] %v937
    %962 = vst [vmem:[%s3 + $0x18] sm:$0xff] %v954
    // Predicated region
    $region26: #{pixel_decoder_forward.5} parent=1 // pred_check
      _
    $region27: #{pixel_decoder_forward.5} parent=1 // pred_check_branch
      %964 = sbr.rel (0) target = $region29
    $region28: #{pixel_decoder_forward.5} parent=1 // pred_region
      _
    $region29: #{pixel_decoder_forward.5} parent=1 // pred_fallthru
      _
    // Predicated region
    $region30: #{pixel_decoder_forward.5} parent=1 // pred_check
      _
    $region31: #{pixel_decoder_forward.5} parent=1 // pred_check_branch
      %966 = sbr.rel (0) target = $region33
    $region32: #{pixel_decoder_forward.5} parent=1 // pred_region
      _
    $region33: #{pixel_decoder_forward.5} parent=1 // pred_fallthru
      _
    %967 = vsyncpa [#allocation3], 1
    %968 = vsyncpa [#allocation5], 1

// kernel: pixel_decoder_forward.6
$region0: #{pixel_decoder_forward.6}
  #allocation0 [shape = 'u32[]', space=smem, size = 0x4, offset = 0x4, fixed_abs, tag = 'smem constant byte address 0x4 - core index']
  #allocation1 [shape = 'u32[144,128]{1,0:T(1,128)}', space=vmem, size = 0x12000, scoped, tag = 'internal scratch']
  #allocation2 [shape = 'f32[156,32]{1,0:T(8,128)}', space=vmem, size = 0x14000, scoped, tag = 'scratch operand']
  %s0 = inlined_call_operand.vmem [shape: f32[2,64,32], index: 0, kind: input, shape index: {}]
  %s1 = inlined_call_operand.vmem [shape: bf16[288,32], index: 1, kind: input, shape index: {}]
  %s2 = inlined_call_operand.vmem [shape: f32[1,32], index: 2, kind: input, shape index: {}]
  %s3 = inlined_call_operand.vmem [shape: f32[2,120,32], index: 3, kind: output, shape index: {}]
  %s4 = sld [smem:[#allocation0]]
  $region45: #{pixel_decoder_forward.6} parent=0
    _
  %s6 = ssub.s32 1, %s4
  %s7 = scalar_select 0, %s6, %s4
  loop: start=0, step=1, limit=4
  $region2: #{pixel_decoder_forward.6} parent=0 // loop_pre_header
    _
  $region3: #{pixel_decoder_forward.6} parent=0 // loop_header
    %s9 = sphi 0, %s13
    %p10 = scmp.ge.s32.totalorder %s9, 4
    %s19 = sphi 0, %s21
    %s22 = sphi 0, %s19
    %s23 = sphi 0, %s22
    %s39 = sphi 0, %s23
    %s43 = sphi 0, %s43
    %s45 = sphi 0, %s43
    %s46 = sphi 0, %s45
    %s60 = sphi 0, %s46
    %s64 = sphi 0, %s64
    %s66 = sphi 0, %s64
    %s67 = sphi 0, %s66
    %s81 = sphi 0, %s67
    %s87 = sphi 0, %s89
    %s90 = sphi 0, %s87
    %s91 = sphi 0, %s90
    %s107 = sphi 0, %s91
  $region4: #{pixel_decoder_forward.6} parent=0 // loop_header_branch
    %12 = sbr.rel (%p10) target = $region8
  $region5: #{pixel_decoder_forward.6} parent=0 // loop_body
    %s14 = ssub.s32 %s9, 1
    %s15 = ssub.s32 %s9, 2
    %s16 = sadd.s32 %s9, 1
    %s17 = ssub.s32 %s9, %s16
    %p18 = scmp.eq.s32.totalorder %s17, 0
    %s20 = sadd.s32 %s19, 1
    %s21 = scalar_select %p18, %s19, %s20
    %p24 = pneg %p18
    %p25 = scmp.eq.s32.totalorder %s9, 1
    %p26 = por %p24, %p25
    %p27 = scmp.ne.s32.totalorder %s19, %s22
    %p28 = scmp.eq.s32.totalorder %s9, 0
    %p29 = por %p27, %p28
    %p30 = scmp.ne.s32.totalorder %s19, %s22
    %p31 = scmp.eq.s32.totalorder %s14, 1
    %p32 = por %p30, %p31
    %p33 = scmp.ne.s32.totalorder %s22, %s23
    %p34 = scmp.eq.s32.totalorder %s14, 0
    %p35 = por %p33, %p34
    %p36 = scmp.ne.s32.totalorder %s22, %s23
    %p37 = scmp.eq.s32.totalorder %s15, 1
    %p38 = por %p36, %p37
    %p40 = scmp.ne.s32.totalorder %s23, %s39
    %p41 = scmp.eq.s32.totalorder %s15, 0
    %p42 = por %p40, %p41
    %s44 = sadd.s32 %s43, 1
    %p47 = scmp.eq.s32.totalorder %s9, 1
    %p48 = scmp.ne.s32.totalorder %s43, %s45
    %p49 = scmp.eq.s32.totalorder %s9, 0
    %p50 = por %p48, %p49
    %p51 = scmp.ne.s32.totalorder %s43, %s45
    %p52 = scmp.eq.s32.totalorder %s14, 1
    %p53 = por %p51, %p52
    %p54 = scmp.ne.s32.totalorder %s45, %s46
    %p55 = scmp.eq.s32.totalorder %s14, 0
    %p56 = por %p54, %p55
    %p57 = scmp.ne.s32.totalorder %s45, %s46
    %p58 = scmp.eq.s32.totalorder %s15, 1
    %p59 = por %p57, %p58
    %p61 = scmp.ne.s32.totalorder %s46, %s60
    %p62 = scmp.eq.s32.totalorder %s15, 0
    %p63 = por %p61, %p62
    %s65 = sadd.s32 %s64, 1
    %p68 = scmp.eq.s32.totalorder %s9, 1
    %p69 = scmp.ne.s32.totalorder %s64, %s66
    %p70 = scmp.eq.s32.totalorder %s9, 0
    %p71 = por %p69, %p70
    %p72 = scmp.ne.s32.totalorder %s64, %s66
    %p73 = scmp.eq.s32.totalorder %s14, 1
    %p74 = por %p72, %p73
    %p75 = scmp.ne.s32.totalorder %s66, %s67
    %p76 = scmp.eq.s32.totalorder %s14, 0
    %p77 = por %p75, %p76
    %p78 = scmp.ne.s32.totalorder %s66, %s67
    %p79 = scmp.eq.s32.totalorder %s15, 1
    %p80 = por %p78, %p79
    %p82 = scmp.ne.s32.totalorder %s67, %s81
    %p83 = scmp.eq.s32.totalorder %s15, 0
    %p84 = por %p82, %p83
    %s85 = ssub.s32 %s9, %s16
    %p86 = scmp.eq.s32.totalorder %s85, 0
    %s88 = sadd.s32 %s87, 1
    %s89 = scalar_select %p86, %s87, %s88
    %p92 = pneg %p86
    %p93 = scmp.eq.s32.totalorder %s9, 1
    %p94 = por %p92, %p93
    %p95 = scmp.ne.s32.totalorder %s87, %s90
    %p96 = scmp.eq.s32.totalorder %s9, 0
    %p97 = por %p95, %p96
    %p98 = scmp.ne.s32.totalorder %s87, %s90
    %p99 = scmp.eq.s32.totalorder %s14, 1
    %p100 = por %p98, %p99
    %p101 = scmp.ne.s32.totalorder %s90, %s91
    %p102 = scmp.eq.s32.totalorder %s14, 0
    %p103 = por %p101, %p102
    %p104 = scmp.ne.s32.totalorder %s90, %s91
    %p105 = scmp.eq.s32.totalorder %s15, 1
    %p106 = por %p104, %p105
    %p108 = scmp.ne.s32.totalorder %s91, %s107
    %p109 = scmp.eq.s32.totalorder %s15, 0
    %p110 = por %p108, %p109
    %p111 = scmp.le.s32.totalorder 1, %s9
    %p112 = scmp.lt.s32.totalorder %s9, 3
    %p113 = pnand %p111, %p112
    %p114 = pneg %p113
    // Predicated region
    $region9: #{pixel_decoder_forward.6} parent=5 // pred_check
      _
    $region10: #{pixel_decoder_forward.6} parent=5 // pred_check_branch
      %116 = sbr.rel (%p113) target = $region12
    $region11: #{pixel_decoder_forward.6} parent=5 // pred_region
      %s117 = ssub.s32 %s9, 1
      // Predicated region
      $region13: #{pixel_decoder_forward.6} parent=11 // pred_check
        %p118 = pneg %p56
      $region14: #{pixel_decoder_forward.6} parent=11 // pred_check_branch
        %120 = sbr.rel (%p118) target = $region16
      $region15: #{pixel_decoder_forward.6} parent=11 // pred_region
        _
      $region16: #{pixel_decoder_forward.6} parent=11 // pred_fallthru
        _
      // Predicated region
      $region17: #{pixel_decoder_forward.6} parent=11 // pred_check
        %p121 = pneg %p77
      $region18: #{pixel_decoder_forward.6} parent=11 // pred_check_branch
        %123 = sbr.rel (%p121) target = $region20
      $region19: #{pixel_decoder_forward.6} parent=11 // pred_region
        _
      $region20: #{pixel_decoder_forward.6} parent=11 // pred_fallthru
        _
    $region12: #{pixel_decoder_forward.6} parent=5 // pred_fallthru
      _
    %p124 = scmp.lt.s32.totalorder %s9, 2
    // Predicated region
    $region21: #{pixel_decoder_forward.6} parent=5 // pred_check
      %p125 = pneg %p124
    $region22: #{pixel_decoder_forward.6} parent=5 // pred_check_branch
      %127 = sbr.rel (%p125) target = $region24
    $region23: #{pixel_decoder_forward.6} parent=5 // pred_region
      // Predicated region
      $region25: #{pixel_decoder_forward.6} parent=23 // pred_check
        %p128 = pneg %p29
      $region26: #{pixel_decoder_forward.6} parent=23 // pred_check_branch
        %130 = sbr.rel (%p128) target = $region28
      $region27: #{pixel_decoder_forward.6} parent=23 // pred_region
        %p131 = scmp.lt.s32.totalorder %s9, 1
        %s132 = scalar_select %p131, %s9, 1
        %s133 = smul.addr %s132, 8
        %s134 = smul.addr %s133, 8
        %s135 = scalar_lea.vmem %s0, %s134
      $region28: #{pixel_decoder_forward.6} parent=23 // pred_fallthru
        _
    $region24: #{pixel_decoder_forward.6} parent=5 // pred_fallthru
      _
    %p136 = scmp.le.s32.totalorder 1, %s9
    %p137 = scmp.lt.s32.totalorder %s9, 3
    %p138 = pnand %p136, %p137
    %p139 = pneg %p138
    // Predicated region
    $region29: #{pixel_decoder_forward.6} parent=5 // pred_check
      _
    $region30: #{pixel_decoder_forward.6} parent=5 // pred_check_branch
      %141 = sbr.rel (%p138) target = $region32
    $region31: #{pixel_decoder_forward.6} parent=5 // pred_region
      %s142 = ssub.s32 %s9, 1
      %p143 = scmp.lt.s32.totalorder %s14, 1
      %s144 = scalar_select %p143, %s14, 1
      %s145 = smul.addr %s144, 8
      %s146 = smul.addr %s145, 8
      %s147 = scalar_lea.vmem %s0, %s146
      %p148 = pneg %p35
      %p149 = pneg %p32
      %p150 = pneg %p56
      %p151 = pneg %p53
      %p152 = pneg %p77
      %p153 = pneg %p74
      %p154 = pneg %p103
      %p155 = pneg %p100
      %p156 = scmp.lt.s32.totalorder %s14, 1
      %s157 = scalar_select %p156, %s14, 1
      %s158 = smul.addr %s157, 15
      %s159 = smul.addr %s158, 8
      %s160 = scalar_lea.vmem %s3, %s159
      %p161 = scmp.lt.s32.totalorder %s14, 1
      %s162 = scalar_select %p161, %s14, 1
      %s163 = smul.addr %s162, 8
      %s164 = smul.addr %s163, 8
      %s165 = scalar_lea.vmem %s0, %s164
      %p166 = scmp.lt.s32.totalorder %s14, 1
      %s167 = scalar_select %p166, %s14, 1
      %s168 = smul.addr %s167, 15
      %s169 = smul.addr %s168, 8
      %s170 = scalar_lea.vmem %s3, %s169
      %vm172 = vcmask 261120
      %173 = vst.msk [vmem:[#allocation2] sm:$0xff] %vm172, 0.0
      %174 = vst.msk [vmem:[#allocation2 + $0x8] sm:$0xff] %vm172, 0.0
      %175 = vst.msk [vmem:[#allocation2 + $0x10] sm:$0xff] %vm172, 0.0
      %176 = vst.msk [vmem:[#allocation2 + $0x18] sm:$0xff] %vm172, 0.0
      %177 = vst.msk [vmem:[#allocation2 + $0x20] sm:$0xff] %vm172, 0.0
      %178 = vst.msk [vmem:[#allocation2 + $0x28] sm:$0xff] %vm172, 0.0
      %179 = vst.msk [vmem:[#allocation2 + $0x30] sm:$0xff] %vm172, 0.0
      %180 = vst.msk [vmem:[#allocation2 + $0x38] sm:$0xff] %vm172, 0.0
      %181 = vst.msk [vmem:[#allocation2 + $0x40] sm:$0xff] %vm172, 0.0
      %182 = vst.msk [vmem:[#allocation2 + $0x48] sm:$0xff] %vm172, 0.0
      %183 = vst.msk [vmem:[#allocation2 + $0x50] sm:$0xff] %vm172, 0.0
      %184 = vst.msk [vmem:[#allocation2 + $0x58] sm:$0xff] %vm172, 0.0
      %185 = vst.msk [vmem:[#allocation2 + $0x60] sm:$0xff] %vm172, 0.0
      %186 = vst.msk [vmem:[#allocation2 + $0x68] sm:$0xff] %vm172, 0.0
      %187 = vst.msk [vmem:[#allocation2 + $0x70] sm:$0xff] %vm172, 0.0
      %188 = vst.msk [vmem:[#allocation2 + $0x78] sm:$0xff] %vm172, 0.0
      %189 = vst.msk [vmem:[#allocation2 + $0x80] sm:$0xff] %vm172, 0.0
      %190 = vst.msk [vmem:[#allocation2 + $0x88] sm:$0xff] %vm172, 0.0
      %191 = vst.msk [vmem:[#allocation2 + $0x90] sm:$0xff] %vm172, 0.0
      %vm192 = vcmask 257024
      %193 = vst.msk [vmem:[#allocation2 + $0x98] sm:$0xf] %vm192, 0.0
      %v194 = vld [vmem:[%s165] sm:$0xff]
      %195 = vst.msk [vmem:[#allocation2 + $0x1a] sm:$0xff] %vm172, %v194
      %v196 = vld [vmem:[%s165 + $0x8] sm:$0xff]
      %197 = vst.msk [vmem:[#allocation2 + $0x26] sm:$0xff] %vm172, %v196
      %v198 = vld [vmem:[%s165 + $0x10] sm:$0xff]
      %199 = vst.msk [vmem:[#allocation2 + $0x32] sm:$0xff] %vm172, %v198
      %v200 = vld [vmem:[%s165 + $0x18] sm:$0xff]
      %201 = vst.msk [vmem:[#allocation2 + $0x3e] sm:$0xff] %vm172, %v200
      %v202 = vld [vmem:[%s165 + $0x20] sm:$0xff]
      %203 = vst.msk [vmem:[#allocation2 + $0x4a] sm:$0xff] %vm172, %v202
      %v204 = vld [vmem:[%s165 + $0x28] sm:$0xff]
      %205 = vst.msk [vmem:[#allocation2 + $0x56] sm:$0xff] %vm172, %v204
      %v206 = vld [vmem:[%s165 + $0x30] sm:$0xff]
      %207 = vst.msk [vmem:[#allocation2 + $0x62] sm:$0xff] %vm172, %v206
      %v208 = vld [vmem:[%s165 + $0x38] sm:$0xff]
      %209 = vst.msk [vmem:[#allocation2 + $0x6e] sm:$0xff] %vm172, %v208
      %v210 = vld [vmem:[#allocation2] sm:$0xff]
      %v211 = vld [vmem:[#allocation2 + $0x8] sm:$0xff]
      %v212 = vld [vmem:[#allocation2 + $0x10] sm:$0xff]
      %v213 = vld [vmem:[#allocation2 + $0x18] sm:$0xff]
      %v214 = vld [vmem:[#allocation2 + $0x20] sm:$0xff]
      %v215 = vld [vmem:[#allocation2 + $0x28] sm:$0xff]
      %v216 = vld [vmem:[#allocation2 + $0x30] sm:$0xff]
      %v217 = vld [vmem:[#allocation2 + $0x38] sm:$0xff]
      %v218 = vld [vmem:[#allocation2 + $0x40] sm:$0xff]
      %v219 = vld [vmem:[#allocation2 + $0x48] sm:$0xff]
      %v220 = vld [vmem:[#allocation2 + $0x50] sm:$0xff]
      %v221 = vld [vmem:[#allocation2 + $0x58] sm:$0xff]
      %v222 = vld [vmem:[#allocation2 + $0x60] sm:$0xff]
      %v223 = vld [vmem:[#allocation2 + $0x68] sm:$0xff]
      %v224 = vld [vmem:[#allocation2 + $0x70] sm:$0xff]
      %v225 = vld [vmem:[#allocation2 + $0x1] sm:$0xff]
      %v226 = vld [vmem:[#allocation2 + $0x9] sm:$0xff]
      %v227 = vld [vmem:[#allocation2 + $0x11] sm:$0xff]
      %v228 = vld [vmem:[#allocation2 + $0x19] sm:$0xff]
      %v229 = vld [vmem:[#allocation2 + $0x21] sm:$0xff]
      %v230 = vld [vmem:[#allocation2 + $0x29] sm:$0xff]
      %v231 = vld [vmem:[#allocation2 + $0x31] sm:$0xff]
      %v232 = vld [vmem:[#allocation2 + $0x39] sm:$0xff]
      %v233 = vld [vmem:[#allocation2 + $0x41] sm:$0xff]
      %v234 = vld [vmem:[#allocation2 + $0x49] sm:$0xff]
      %v235 = vld [vmem:[#allocation2 + $0x51] sm:$0xff]
      %v236 = vld [vmem:[#allocation2 + $0x59] sm:$0xff]
      %v237 = vld [vmem:[#allocation2 + $0x61] sm:$0xff]
      %v238 = vld [vmem:[#allocation2 + $0x69] sm:$0xff]
      %v239 = vld [vmem:[#allocation2 + $0x71] sm:$0xff]
      %v240 = vld [vmem:[#allocation2 + $0x2] sm:$0xff]
      %v241 = vld [vmem:[#allocation2 + $0xa] sm:$0xff]
      %v242 = vld [vmem:[#allocation2 + $0x12] sm:$0xff]
      %v243 = vld [vmem:[#allocation2 + $0x1a] sm:$0xff]
      %v244 = vld [vmem:[#allocation2 + $0x22] sm:$0xff]
      %v245 = vld [vmem:[#allocation2 + $0x2a] sm:$0xff]
      %v246 = vld [vmem:[#allocation2 + $0x32] sm:$0xff]
      %v247 = vld [vmem:[#allocation2 + $0x3a] sm:$0xff]
      %v248 = vld [vmem:[#allocation2 + $0x42] sm:$0xff]
      %v249 = vld [vmem:[#allocation2 + $0x4a] sm:$0xff]
      %v250 = vld [vmem:[#allocation2 + $0x52] sm:$0xff]
      %v251 = vld [vmem:[#allocation2 + $0x5a] sm:$0xff]
      %v252 = vld [vmem:[#allocation2 + $0x62] sm:$0xff]
      %v253 = vld [vmem:[#allocation2 + $0x6a] sm:$0xff]
      %v254 = vld [vmem:[#allocation2 + $0x72] sm:$0xff]
      %v255 = vld [vmem:[#allocation2 + $0xc] sm:$0xff]
      %v256 = vld [vmem:[#allocation2 + $0x14] sm:$0xff]
      %v257 = vld [vmem:[#allocation2 + $0x1c] sm:$0xff]
      %v258 = vld [vmem:[#allocation2 + $0x24] sm:$0xff]
      %v259 = vld [vmem:[#allocation2 + $0x2c] sm:$0xff]
      %v260 = vld [vmem:[#allocation2 + $0x34] sm:$0xff]
      %v261 = vld [vmem:[#allocation2 + $0x3c] sm:$0xff]
      %v262 = vld [vmem:[#allocation2 + $0x44] sm:$0xff]
      %v263 = vld [vmem:[#allocation2 + $0x4c] sm:$0xff]
      %v264 = vld [vmem:[#allocation2 + $0x54] sm:$0xff]
      %v265 = vld [vmem:[#allocation2 + $0x5c] sm:$0xff]
      %v266 = vld [vmem:[#allocation2 + $0x64] sm:$0xff]
      %v267 = vld [vmem:[#allocation2 + $0x6c] sm:$0xff]
      %v268 = vld [vmem:[#allocation2 + $0x74] sm:$0xff]
      %v269 = vld [vmem:[#allocation2 + $0x7c] sm:$0xff]
      %v270 = vld [vmem:[#allocation2 + $0xd] sm:$0xff]
      %v271 = vld [vmem:[#allocation2 + $0x15] sm:$0xff]
      %v272 = vld [vmem:[#allocation2 + $0x1d] sm:$0xff]
      %v273 = vld [vmem:[#allocation2 + $0x25] sm:$0xff]
      %v274 = vld [vmem:[#allocation2 + $0x2d] sm:$0xff]
      %v275 = vld [vmem:[#allocation2 + $0x35] sm:$0xff]
      %v276 = vld [vmem:[#allocation2 + $0x3d] sm:$0xff]
      %v277 = vld [vmem:[#allocation2 + $0x45] sm:$0xff]
      %v278 = vld [vmem:[#allocation2 + $0x4d] sm:$0xff]
      %v279 = vld [vmem:[#allocation2 + $0x55] sm:$0xff]
      %v280 = vld [vmem:[#allocation2 + $0x5d] sm:$0xff]
      %v281 = vld [vmem:[#allocation2 + $0x65] sm:$0xff]
      %v282 = vld [vmem:[#allocation2 + $0x6d] sm:$0xff]
      %v283 = vld [vmem:[#allocation2 + $0x75] sm:$0xff]
      %v284 = vld [vmem:[#allocation2 + $0x7d] sm:$0xff]
      %v285 = vld [vmem:[#allocation2 + $0xe] sm:$0xff]
      %v286 = vld [vmem:[#allocation2 + $0x16] sm:$0xff]
      %v287 = vld [vmem:[#allocation2 + $0x1e] sm:$0xff]
      %v288 = vld [vmem:[#allocation2 + $0x26] sm:$0xff]
      %v289 = vld [vmem:[#allocation2 + $0x2e] sm:$0xff]
      %v290 = vld [vmem:[#allocation2 + $0x36] sm:$0xff]
      %v291 = vld [vmem:[#allocation2 + $0x3e] sm:$0xff]
      %v292 = vld [vmem:[#allocation2 + $0x46] sm:$0xff]
      %v293 = vld [vmem:[#allocation2 + $0x4e] sm:$0xff]
      %v294 = vld [vmem:[#allocation2 + $0x56] sm:$0xff]
      %v295 = vld [vmem:[#allocation2 + $0x5e] sm:$0xff]
      %v296 = vld [vmem:[#allocation2 + $0x66] sm:$0xff]
      %v297 = vld [vmem:[#allocation2 + $0x6e] sm:$0xff]
      %v298 = vld [vmem:[#allocation2 + $0x76] sm:$0xff]
      %v299 = vld [vmem:[#allocation2 + $0x7e] sm:$0xff]
      %v300 = vld [vmem:[#allocation2 + $0x78] sm:$0xff]
      %v301 = vld [vmem:[#allocation2 + $0x80] sm:$0xff]
      %v302 = vld [vmem:[#allocation2 + $0x88] sm:$0xff]
      %v303 = vld [vmem:[#allocation2 + $0x79] sm:$0xff]
      %v304 = vld [vmem:[#allocation2 + $0x81] sm:$0xff]
      %v305 = vld [vmem:[#allocation2 + $0x89] sm:$0xff]
      %v306 = vld [vmem:[#allocation2 + $0x7a] sm:$0xff]
      %v307 = vld [vmem:[#allocation2 + $0x82] sm:$0xff]
      %v308 = vld [vmem:[#allocation2 + $0x8a] sm:$0xff]
      %324 = vrot.lane.b32.xlu0 %v225, 32
      %v325 = vpop.permute.xlu0 %324
      %326 = vrot.lane.b32.xlu0 %v226, 32
      %v327 = vpop.permute.xlu0 %326
      %328 = vrot.lane.b32.xlu0 %v227, 32
      %v329 = vpop.permute.xlu0 %328
      %330 = vrot.lane.b32.xlu0 %v228, 32
      %v331 = vpop.permute.xlu0 %330
      %332 = vrot.lane.b32.xlu0 %v229, 32
      %v333 = vpop.permute.xlu0 %332
      %334 = vrot.lane.b32.xlu0 %v230, 32
      %v335 = vpop.permute.xlu0 %334
      %336 = vrot.lane.b32.xlu0 %v231, 32
      %v337 = vpop.permute.xlu0 %336
      %338 = vrot.lane.b32.xlu0 %v232, 32
      %v339 = vpop.permute.xlu0 %338
      %340 = vrot.lane.b32.xlu0 %v233, 32
      %v341 = vpop.permute.xlu0 %340
      %342 = vrot.lane.b32.xlu0 %v234, 32
      %v343 = vpop.permute.xlu0 %342
      %344 = vrot.lane.b32.xlu0 %v235, 32
      %v345 = vpop.permute.xlu0 %344
      %346 = vrot.lane.b32.xlu0 %v236, 32
      %v347 = vpop.permute.xlu0 %346
      %348 = vrot.lane.b32.xlu0 %v237, 32
      %v349 = vpop.permute.xlu0 %348
      %350 = vrot.lane.b32.xlu0 %v238, 32
      %v351 = vpop.permute.xlu0 %350
      %352 = vrot.lane.b32.xlu0 %v239, 32
      %v353 = vpop.permute.xlu0 %352
      %384 = vrot.lane.b32.xlu0 %v240, 64
      %v385 = vpop.permute.xlu0 %384
      %386 = vrot.lane.b32.xlu0 %v241, 64
      %v387 = vpop.permute.xlu0 %386
      %388 = vrot.lane.b32.xlu0 %v242, 64
      %v389 = vpop.permute.xlu0 %388
      %390 = vrot.lane.b32.xlu0 %v243, 64
      %v391 = vpop.permute.xlu0 %390
      %392 = vrot.lane.b32.xlu0 %v244, 64
      %v393 = vpop.permute.xlu0 %392
      %394 = vrot.lane.b32.xlu0 %v245, 64
      %v395 = vpop.permute.xlu0 %394
      %396 = vrot.lane.b32.xlu0 %v246, 64
      %v397 = vpop.permute.xlu0 %396
      %398 = vrot.lane.b32.xlu0 %v247, 64
      %v399 = vpop.permute.xlu0 %398
      %400 = vrot.lane.b32.xlu0 %v248, 64
      %v401 = vpop.permute.xlu0 %400
      %402 = vrot.lane.b32.xlu0 %v249, 64
      %v403 = vpop.permute.xlu0 %402
      %404 = vrot.lane.b32.xlu0 %v250, 64
      %v405 = vpop.permute.xlu0 %404
      %406 = vrot.lane.b32.xlu0 %v251, 64
      %v407 = vpop.permute.xlu0 %406
      %408 = vrot.lane.b32.xlu0 %v252, 64
      %v409 = vpop.permute.xlu0 %408
      %410 = vrot.lane.b32.xlu0 %v253, 64
      %v411 = vpop.permute.xlu0 %410
      %412 = vrot.lane.b32.xlu0 %v254, 64
      %v413 = vpop.permute.xlu0 %412
      %444 = vrot.lane.b32.xlu0 %v255, 96
      %v445 = vpop.permute.xlu0 %444
      %446 = vrot.lane.b32.xlu0 %v256, 96
      %v447 = vpop.permute.xlu0 %446
      %448 = vrot.lane.b32.xlu0 %v257, 96
      %v449 = vpop.permute.xlu0 %448
      %450 = vrot.lane.b32.xlu0 %v258, 96
      %v451 = vpop.permute.xlu0 %450
      %452 = vrot.lane.b32.xlu0 %v259, 96
      %v453 = vpop.permute.xlu0 %452
      %454 = vrot.lane.b32.xlu0 %v260, 96
      %v455 = vpop.permute.xlu0 %454
      %456 = vrot.lane.b32.xlu0 %v261, 96
      %v457 = vpop.permute.xlu0 %456
      %458 = vrot.lane.b32.xlu0 %v262, 96
      %v459 = vpop.permute.xlu0 %458
      %460 = vrot.lane.b32.xlu0 %v263, 96
      %v461 = vpop.permute.xlu0 %460
      %462 = vrot.lane.b32.xlu0 %v264, 96
      %v463 = vpop.permute.xlu0 %462
      %464 = vrot.lane.b32.xlu0 %v265, 96
      %v465 = vpop.permute.xlu0 %464
      %466 = vrot.lane.b32.xlu0 %v266, 96
      %v467 = vpop.permute.xlu0 %466
      %468 = vrot.lane.b32.xlu0 %v267, 96
      %v469 = vpop.permute.xlu0 %468
      %470 = vrot.lane.b32.xlu0 %v268, 96
      %v471 = vpop.permute.xlu0 %470
      %472 = vrot.lane.b32.xlu0 %v269, 96
      %v473 = vpop.permute.xlu0 %472
      %504 = vrot.lane.b32.xlu0 %v285, 32
      %v505 = vpop.permute.xlu0 %504
      %506 = vrot.lane.b32.xlu0 %v286, 32
      %v507 = vpop.permute.xlu0 %506
      %508 = vrot.lane.b32.xlu0 %v287, 32
      %v509 = vpop.permute.xlu0 %508
      %510 = vrot.lane.b32.xlu0 %v288, 32
      %v511 = vpop.permute.xlu0 %510
      %512 = vrot.lane.b32.xlu0 %v289, 32
      %v513 = vpop.permute.xlu0 %512
      %514 = vrot.lane.b32.xlu0 %v290, 32
      %v515 = vpop.permute.xlu0 %514
      %516 = vrot.lane.b32.xlu0 %v291, 32
      %v517 = vpop.permute.xlu0 %516
      %518 = vrot.lane.b32.xlu0 %v292, 32
      %v519 = vpop.permute.xlu0 %518
      %520 = vrot.lane.b32.xlu0 %v293, 32
      %v521 = vpop.permute.xlu0 %520
      %522 = vrot.lane.b32.xlu0 %v294, 32
      %v523 = vpop.permute.xlu0 %522
      %524 = vrot.lane.b32.xlu0 %v295, 32
      %v525 = vpop.permute.xlu0 %524
      %526 = vrot.lane.b32.xlu0 %v296, 32
      %v527 = vpop.permute.xlu0 %526
      %528 = vrot.lane.b32.xlu0 %v297, 32
      %v529 = vpop.permute.xlu0 %528
      %530 = vrot.lane.b32.xlu0 %v298, 32
      %v531 = vpop.permute.xlu0 %530
      %532 = vrot.lane.b32.xlu0 %v299, 32
      %v533 = vpop.permute.xlu0 %532
      %564 = vrot.lane.b32.xlu0 %v213, 64
      %v565 = vpop.permute.xlu0 %564
      %566 = vrot.lane.b32.xlu0 %v214, 64
      %v567 = vpop.permute.xlu0 %566
      %568 = vrot.lane.b32.xlu0 %v215, 64
      %v569 = vpop.permute.xlu0 %568
      %570 = vrot.lane.b32.xlu0 %v216, 64
      %v571 = vpop.permute.xlu0 %570
      %572 = vrot.lane.b32.xlu0 %v217, 64
      %v573 = vpop.permute.xlu0 %572
      %574 = vrot.lane.b32.xlu0 %v218, 64
      %v575 = vpop.permute.xlu0 %574
      %576 = vrot.lane.b32.xlu0 %v219, 64
      %v577 = vpop.permute.xlu0 %576
      %578 = vrot.lane.b32.xlu0 %v220, 64
      %v579 = vpop.permute.xlu0 %578
      %580 = vrot.lane.b32.xlu0 %v221, 64
      %v581 = vpop.permute.xlu0 %580
      %582 = vrot.lane.b32.xlu0 %v222, 64
      %v583 = vpop.permute.xlu0 %582
      %584 = vrot.lane.b32.xlu0 %v223, 64
      %v585 = vpop.permute.xlu0 %584
      %586 = vrot.lane.b32.xlu0 %v224, 64
      %v587 = vpop.permute.xlu0 %586
      %588 = vrot.lane.b32.xlu0 %v300, 64
      %v589 = vpop.permute.xlu0 %588
      %590 = vrot.lane.b32.xlu0 %v301, 64
      %v591 = vpop.permute.xlu0 %590
      %592 = vrot.lane.b32.xlu0 %v302, 64
      %v593 = vpop.permute.xlu0 %592
      %612 = vrot.lane.b32.xlu0 %v228, 96
      %v613 = vpop.permute.xlu0 %612
      %614 = vrot.lane.b32.xlu0 %v229, 96
      %v615 = vpop.permute.xlu0 %614
      %616 = vrot.lane.b32.xlu0 %v230, 96
      %v617 = vpop.permute.xlu0 %616
      %618 = vrot.lane.b32.xlu0 %v231, 96
      %v619 = vpop.permute.xlu0 %618
      %620 = vrot.lane.b32.xlu0 %v232, 96
      %v621 = vpop.permute.xlu0 %620
      %622 = vrot.lane.b32.xlu0 %v233, 96
      %v623 = vpop.permute.xlu0 %622
      %624 = vrot.lane.b32.xlu0 %v234, 96
      %v625 = vpop.permute.xlu0 %624
      %626 = vrot.lane.b32.xlu0 %v235, 96
      %v627 = vpop.permute.xlu0 %626
      %628 = vrot.lane.b32.xlu0 %v236, 96
      %v629 = vpop.permute.xlu0 %628
      %630 = vrot.lane.b32.xlu0 %v237, 96
      %v631 = vpop.permute.xlu0 %630
      %632 = vrot.lane.b32.xlu0 %v238, 96
      %v633 = vpop.permute.xlu0 %632
      %634 = vrot.lane.b32.xlu0 %v239, 96
      %v635 = vpop.permute.xlu0 %634
      %636 = vrot.lane.b32.xlu0 %v303, 96
      %v637 = vpop.permute.xlu0 %636
      %638 = vrot.lane.b32.xlu0 %v304, 96
      %v639 = vpop.permute.xlu0 %638
      %640 = vrot.lane.b32.xlu0 %v305, 96
      %v641 = vpop.permute.xlu0 %640
      %v657 = vsel %vm172, %v210, %v325
      %v658 = vsel %vm172, %v211, %v327
      %v659 = vsel %vm172, %v212, %v329
      %v660 = vsel %vm172, %v213, %v331
      %v661 = vsel %vm172, %v214, %v333
      %v662 = vsel %vm172, %v215, %v335
      %v663 = vsel %vm172, %v216, %v337
      %v664 = vsel %vm172, %v217, %v339
      %v665 = vsel %vm172, %v218, %v341
      %v666 = vsel %vm172, %v219, %v343
      %v667 = vsel %vm172, %v220, %v345
      %v668 = vsel %vm172, %v221, %v347
      %v669 = vsel %vm172, %v222, %v349
      %v670 = vsel %vm172, %v223, %v351
      %v671 = vsel %vm172, %v224, %v353
      %vm672 = vcmask 523264
      %v673 = vsel %vm672, %v657, %v385
      %v674 = vsel %vm672, %v658, %v387
      %v675 = vsel %vm672, %v659, %v389
      %v676 = vsel %vm672, %v660, %v391
      %v677 = vsel %vm672, %v661, %v393
      %v678 = vsel %vm672, %v662, %v395
      %v679 = vsel %vm672, %v663, %v397
      %v680 = vsel %vm672, %v664, %v399
      %v681 = vsel %vm672, %v665, %v401
      %v682 = vsel %vm672, %v666, %v403
      %v683 = vsel %vm672, %v667, %v405
      %v684 = vsel %vm672, %v668, %v407
      %v685 = vsel %vm672, %v669, %v409
      %v686 = vsel %vm672, %v670, %v411
      %v687 = vsel %vm672, %v671, %v413
      %vm688 = vcmask 785408
      %v689 = vsel %vm688, %v673, %v445
      %v690 = vsel %vm688, %v674, %v447
      %v691 = vsel %vm688, %v675, %v449
      %v692 = vsel %vm688, %v676, %v451
      %v693 = vsel %vm688, %v677, %v453
      %v694 = vsel %vm688, %v678, %v455
      %v695 = vsel %vm688, %v679, %v457
      %v696 = vsel %vm688, %v680, %v459
      %v697 = vsel %vm688, %v681, %v461
      %v698 = vsel %vm688, %v682, %v463
      %v699 = vsel %vm688, %v683, %v465
      %v700 = vsel %vm688, %v684, %v467
      %v701 = vsel %vm688, %v685, %v469
      %v702 = vsel %vm688, %v686, %v471
      %v703 = vsel %vm688, %v687, %v473
      %v704 = vsel %vm172, %v270, %v505
      %v705 = vsel %vm172, %v271, %v507
      %v706 = vsel %vm172, %v272, %v509
      %v707 = vsel %vm172, %v273, %v511
      %v708 = vsel %vm172, %v274, %v513
      %v709 = vsel %vm172, %v275, %v515
      %v710 = vsel %vm172, %v276, %v517
      %v711 = vsel %vm172, %v277, %v519
      %v712 = vsel %vm172, %v278, %v521
      %v713 = vsel %vm172, %v279, %v523
      %v714 = vsel %vm172, %v280, %v525
      %v715 = vsel %vm172, %v281, %v527
      %v716 = vsel %vm172, %v282, %v529
      %v717 = vsel %vm172, %v283, %v531
      %v718 = vsel %vm172, %v284, %v533
      %v719 = vsel %vm672, %v704, %v565
      %v720 = vsel %vm672, %v705, %v567
      %v721 = vsel %vm672, %v706, %v569
      %v722 = vsel %vm672, %v707, %v571
      %v723 = vsel %vm672, %v708, %v573
      %v724 = vsel %vm672, %v709, %v575
      %v725 = vsel %vm672, %v710, %v577
      %v726 = vsel %vm672, %v711, %v579
      %v727 = vsel %vm672, %v712, %v581
      %v728 = vsel %vm672, %v713, %v583
      %v729 = vsel %vm672, %v714, %v585
      %v730 = vsel %vm672, %v715, %v587
      %v731 = vsel %vm672, %v716, %v589
      %v732 = vsel %vm672, %v717, %v591
      %v733 = vsel %vm672, %v718, %v593
      %v734 = vsel %vm688, %v719, %v613
      %v735 = vsel %vm688, %v720, %v615
      %v736 = vsel %vm688, %v721, %v617
      %v737 = vsel %vm688, %v722, %v619
      %v738 = vsel %vm688, %v723, %v621
      %v739 = vsel %vm688, %v724, %v623
      %v740 = vsel %vm688, %v725, %v625
      %v741 = vsel %vm688, %v726, %v627
      %v742 = vsel %vm688, %v727, %v629
      %v743 = vsel %vm688, %v728, %v631
      %v744 = vsel %vm688, %v729, %v633
      %v745 = vsel %vm688, %v730, %v635
      %v746 = vsel %vm688, %v731, %v637
      %v747 = vsel %vm688, %v732, %v639
      %v748 = vsel %vm688, %v733, %v641
      %v749 = vpack.c.bf16 %v690, %v689
      %v750 = vpack.c.bf16 %v735, %v734
      %v751 = vpack.c.bf16 %v244, %v243
      %v752 = vpack.c.bf16 %v692, %v691
      %v753 = vpack.c.bf16 %v737, %v736
      %v754 = vpack.c.bf16 %v246, %v245
      %v755 = vpack.c.bf16 %v694, %v693
      %v756 = vpack.c.bf16 %v739, %v738
      %v757 = vpack.c.bf16 %v248, %v247
      %v758 = vpack.c.bf16 %v696, %v695
      %v759 = vpack.c.bf16 %v741, %v740
      %v760 = vpack.c.bf16 %v250, %v249
      %v761 = vpack.c.bf16 %v698, %v697
      %v762 = vpack.c.bf16 %v743, %v742
      %v763 = vpack.c.bf16 %v252, %v251
      %v764 = vpack.c.bf16 %v700, %v699
      %v765 = vpack.c.bf16 %v745, %v744
      %v766 = vpack.c.bf16 %v254, %v253
      %v767 = vpack.c.bf16 %v702, %v701
      %v768 = vpack.c.bf16 %v747, %v746
      %v769 = vpack.c.bf16 %v307, %v306
      %v770 = vpack.c.bf16 %v703, %v703
      %v771 = vpack.c.bf16 %v748, %v748
      %v772 = vpack.c.bf16 %v308, %v308
      %v773 = vld [vmem:[%s1] sm:$0xf]
      %v774 = vld [vmem:[%s1 + $0x4] sm:$0xf]
      %v775 = vld [vmem:[%s1 + $0x8] sm:$0xf]
      %v776 = vld [vmem:[%s1 + $0xc] sm:$0xf]
      %v777 = vld [vmem:[%s1 + $0x10] sm:$0xf]
      %v778 = vld [vmem:[%s1 + $0x14] sm:$0xf]
      %v779 = vld [vmem:[%s1 + $0x18] sm:$0xf]
      %v780 = vld [vmem:[%s1 + $0x1c] sm:$0xf]
      %v781 = vld [vmem:[%s1 + $0x20] sm:$0xf]
      %v782 = vld [vmem:[%s1 + $0x24] sm:$0xf]
      %v783 = vld [vmem:[%s1 + $0x28] sm:$0xf]
      %v784 = vld [vmem:[%s1 + $0x2c] sm:$0xf]
      %v785 = vld [vmem:[%s1 + $0x30] sm:$0xf]
      %v786 = vld [vmem:[%s1 + $0x34] sm:$0xf]
      %v787 = vld [vmem:[%s1 + $0x38] sm:$0xf]
      %v788 = vld [vmem:[%s1 + $0x3c] sm:$0xf]
      %v789 = vld [vmem:[%s1 + $0x40] sm:$0xf]
      %v790 = vld [vmem:[%s1 + $0x44] sm:$0xf]
      %v791 = vld [vmem:[%s1 + $0x48] sm:$0xf]
      %v792 = vld [vmem:[%s1 + $0x4c] sm:$0xf]
      %v793 = vld [vmem:[%s1 + $0x50] sm:$0xf]
      %v794 = vld [vmem:[%s1 + $0x54] sm:$0xf]
      %v795 = vld [vmem:[%s1 + $0x58] sm:$0xf]
      %v796 = vld [vmem:[%s1 + $0x5c] sm:$0xf]
      %v797 = vld [vmem:[%s1 + $0x60] sm:$0xf]
      %v798 = vld [vmem:[%s1 + $0x64] sm:$0xf]
      %v799 = vld [vmem:[%s1 + $0x68] sm:$0xf]
      %v800 = vld [vmem:[%s1 + $0x6c] sm:$0xf]
      %v801 = vld [vmem:[%s1 + $0x70] sm:$0xf]
      %v802 = vld [vmem:[%s1 + $0x74] sm:$0xf]
      %v803 = vld [vmem:[%s1 + $0x78] sm:$0xf]
      %v804 = vld [vmem:[%s1 + $0x7c] sm:$0xf]
      %v805 = vld [vmem:[%s1 + $0x80] sm:$0xf]
      %v806 = vld [vmem:[%s1 + $0x84] sm:$0xf]
      %v807 = vld [vmem:[%s1 + $0x88] sm:$0xf]
      %v808 = vld [vmem:[%s1 + $0x8c] sm:$0xf]
      %v809 = vld [vmem:[%s2] sm:$0x1]
      %v811 = vlaneseq
      %v812 = vshrl.u32 %v811, 7
      %v813 = vsub.s32 0, %v812
      %v814 = vrot.slane %v809, %v813
      %v852 = vunpack.c.l.b16 %v773
      %v853 = vunpack.c.l.b16 %v774
      %v854 = vunpack.c.l.b16 %v775
      %v855 = vunpack.c.l.b16 %v776
      %v856 = vunpack.c.l.b16 %v777
      %v857 = vunpack.c.l.b16 %v778
      %v858 = vunpack.c.l.b16 %v779
      %v859 = vunpack.c.l.b16 %v780
      %v860 = vunpack.c.l.b16 %v781
      %v861 = vunpack.c.l.b16 %v782
      %v862 = vunpack.c.l.b16 %v783
      %v863 = vunpack.c.l.b16 %v784
      %v864 = vunpack.c.l.b16 %v785
      %v865 = vunpack.c.l.b16 %v786
      %v866 = vunpack.c.l.b16 %v787
      %v867 = vunpack.c.l.b16 %v788
      %v868 = vunpack.c.l.b16 %v789
      %v869 = vunpack.c.l.b16 %v790
      %v870 = vunpack.c.l.b16 %v791
      %v871 = vunpack.c.l.b16 %v792
      %v872 = vunpack.c.l.b16 %v793
      %v873 = vunpack.c.l.b16 %v794
      %v874 = vunpack.c.l.b16 %v795
      %v875 = vunpack.c.l.b16 %v796
      %v876 = vunpack.c.l.b16 %v797
      %v877 = vunpack.c.l.b16 %v798
      %v878 = vunpack.c.l.b16 %v799
      %v879 = vunpack.c.l.b16 %v800
      %v880 = vunpack.c.l.b16 %v801
      %v881 = vunpack.c.l.b16 %v802
      %v882 = vunpack.c.l.b16 %v803
      %v883 = vunpack.c.l.b16 %v804
      %v884 = vunpack.c.l.b16 %v805
      %v885 = vunpack.c.l.b16 %v806
      %v886 = vunpack.c.l.b16 %v807
      %v887 = vunpack.c.l.b16 %v808
      %v888 = vpack.c.b16 %v853, %v852
      %v889 = vpack.c.b16 %v855, %v854
      %v890 = vpack.c.b16 %v857, %v856
      %v891 = vpack.c.b16 %v859, %v858
      %v892 = vpack.c.b16 %v861, %v860
      %v893 = vpack.c.b16 %v863, %v862
      %v894 = vpack.c.b16 %v865, %v864
      %v895 = vpack.c.b16 %v867, %v866
      %v896 = vpack.c.b16 %v869, %v868
      %v897 = vpack.c.b16 %v871, %v870
      %v898 = vpack.c.b16 %v873, %v872
      %v899 = vpack.c.b16 %v875, %v874
      %v900 = vpack.c.b16 %v877, %v876
      %v901 = vpack.c.b16 %v879, %v878
      %v902 = vpack.c.b16 %v881, %v880
      %v903 = vpack.c.b16 %v883, %v882
      %v904 = vpack.c.b16 %v885, %v884
      %v905 = vpack.c.b16 %v887, %v886
      %v925 = vsel %vm172, %v751, 0
      %v928 = vsel %vm172, %v754, 0
      %v931 = vsel %vm172, %v757, 0
      %v934 = vsel %vm172, %v760, 0
      %v937 = vsel %vm172, %v763, 0
      %v940 = vsel %vm172, %v766, 0
      %v943 = vsel %vm172, %v769, 0
      %v946 = vsel %vm172, %v772, 0
      %948 = vmatprep.subr.bf16.mxu0 0
      %949 = vmatpush1.bf16.msra.mxu0 %v895
      %950 = vmatprep.subr.bf16.mxu0 0
      %951 = vmatpush1.bf16.msra.mxu0 %v894
      %952 = vmatprep.subr.bf16.mxu0 0
      %953 = vmatpush1.bf16.msra.mxu0 %v893
      %954 = vmatprep.subr.bf16.mxu0 0
      %955 = vmatpush1.bf16.msra.mxu0 %v892
      %956 = vmatprep.subr.bf16.mxu0 0
      %957 = vmatpush1.bf16.msra.mxu0 %v891
      %958 = vmatprep.subr.bf16.mxu0 0
      %959 = vmatpush1.bf16.msra.mxu0 %v890
      %960 = vmatprep.subr.bf16.mxu0 0
      %961 = vmatpush1.bf16.msra.mxu0 %v889
      %962 = vmatprep.subr.bf16.mxu0 0
      %963 = vmatpush1.bf16.msra.mxu0 %v888
      %964 = vmatprep.subr.bf16.mxu0 0
      %965 = vmatpush2.bf16.msra.mxu0 %v903
      %966 = vmatprep.subr.bf16.mxu0 0
      %967 = vmatpush2.bf16.msra.mxu0 %v902
      %968 = vmatprep.subr.bf16.mxu0 0
      %969 = vmatpush2.bf16.msra.mxu0 %v901
      %970 = vmatprep.subr.bf16.mxu0 0
      %971 = vmatpush2.bf16.msra.mxu0 %v900
      %972 = vmatprep.subr.bf16.mxu0 0
      %973 = vmatpush2.bf16.msra.mxu0 %v899
      %974 = vmatprep.subr.bf16.mxu0 0
      %975 = vmatpush2.bf16.msra.mxu0 %v898
      %976 = vmatprep.subr.bf16.mxu0 0
      %977 = vmatpush2.bf16.msra.mxu0 %v897
      %978 = vmatprep.subr.bf16.mxu0 0
      %979 = vmatpush2.bf16.msra.mxu0 %v896
      %980 = vmatprep.mubr.bf16.mxu0 %v750
      %981 = vmatmul.mubr.bf16.gmra.mxu0 %v749
      %v982 = vpop.f32.mrf.mxu0
      %v983 = vadd.f32 %v814, %v982
      %v984 = vpop.f32.mrf.mxu0
      %v985 = vpop.f32.mrf.mxu0
      %v986 = vadd.f32 %v814, %v985
      %v987 = vpop.f32.mrf.mxu0
      %988 = vmatprep.mubr.bf16.mxu0 %v753
      %989 = vmatmul.mubr.bf16.gmra.mxu0 %v752
      %v990 = vpop.f32.mrf.mxu0
      %v991 = vadd.f32 %v814, %v990
      %v992 = vpop.f32.mrf.mxu0
      %v993 = vpop.f32.mrf.mxu0
      %v994 = vadd.f32 %v814, %v993
      %v995 = vpop.f32.mrf.mxu0
      %996 = vmatprep.mubr.bf16.mxu0 %v756
      %997 = vmatmul.mubr.bf16.gmra.mxu0 %v755
      %v998 = vpop.f32.mrf.mxu0
      %v999 = vadd.f32 %v814, %v998
      %v1000 = vpop.f32.mrf.mxu0
      %v1001 = vpop.f32.mrf.mxu0
      %v1002 = vadd.f32 %v814, %v1001
      %v1003 = vpop.f32.mrf.mxu0
      %1004 = vmatprep.mubr.bf16.mxu0 %v759
      %1005 = vmatmul.mubr.bf16.gmra.mxu0 %v758
      %v1006 = vpop.f32.mrf.mxu0
      %v1007 = vadd.f32 %v814, %v1006
      %v1008 = vpop.f32.mrf.mxu0
      %v1009 = vpop.f32.mrf.mxu0
      %v1010 = vadd.f32 %v814, %v1009
      %v1011 = vpop.f32.mrf.mxu0
      %1012 = vmatprep.mubr.bf16.mxu0 %v762
      %1013 = vmatmul.mubr.bf16.gmra.mxu0 %v761
      %v1014 = vpop.f32.mrf.mxu0
      %v1015 = vadd.f32 %v814, %v1014
      %v1016 = vpop.f32.mrf.mxu0
      %v1017 = vpop.f32.mrf.mxu0
      %v1018 = vadd.f32 %v814, %v1017
      %v1019 = vpop.f32.mrf.mxu0
      %1020 = vmatprep.mubr.bf16.mxu0 %v765
      %1021 = vmatmul.mubr.bf16.gmra.mxu0 %v764
      %v1022 = vpop.f32.mrf.mxu0
      %v1023 = vadd.f32 %v814, %v1022
      %v1024 = vpop.f32.mrf.mxu0
      %v1025 = vpop.f32.mrf.mxu0
      %v1026 = vadd.f32 %v814, %v1025
      %v1027 = vpop.f32.mrf.mxu0
      %1028 = vmatprep.mubr.bf16.mxu0 %v768
      %1029 = vmatmul.mubr.bf16.gmra.mxu0 %v767
      %v1030 = vpop.f32.mrf.mxu0
      %v1031 = vadd.f32 %v814, %v1030
      %v1032 = vpop.f32.mrf.mxu0
      %v1033 = vpop.f32.mrf.mxu0
      %v1034 = vadd.f32 %v814, %v1033
      %v1035 = vpop.f32.mrf.mxu0
      %1036 = vmatprep.mubr.bf16.mxu0 %v771
      %1037 = vmatmul.mubr.bf16.gmra.mxu0 %v770
      %v1038 = vpop.f32.mrf.mxu0
      %v1039 = vadd.f32 %v814, %v1038
      %v1040 = vpop.f32.mrf.mxu0
      %v1041 = vpop.f32.mrf.mxu0
      %v1042 = vpop.f32.mrf.mxu0
      %1043 = vdwg.mxu0
      %1044 = vmatprep.subr.bf16.mxu0 0
      %1045 = vmatpush1.bf16.msra.mxu0 0
      %1046 = vmatprep.subr.bf16.mxu0 0
      %1047 = vmatpush1.bf16.msra.mxu0 0
      %1048 = vmatprep.subr.bf16.mxu0 0
      %1049 = vmatpush1.bf16.msra.mxu0 0
      %1050 = vmatprep.subr.bf16.mxu0 0
      %1051 = vmatpush1.bf16.msra.mxu0 0
      %1052 = vmatprep.subr.bf16.mxu0 0
      %1053 = vmatpush1.bf16.msra.mxu0 0
      %1054 = vmatprep.subr.bf16.mxu0 0
      %1055 = vmatpush1.bf16.msra.mxu0 0
      %1056 = vmatprep.subr.bf16.mxu0 0
      %1057 = vmatpush1.bf16.msra.mxu0 %v905
      %1058 = vmatprep.subr.bf16.mxu0 0
      %1059 = vmatpush1.bf16.msra.mxu0 %v904
      %1060 = vmatprep.subr.bf16.mxu0 0
      %1061 = vmatpush2.bf16.msra.mxu0 0
      %1062 = vmatprep.subr.bf16.mxu0 0
      %1063 = vmatpush2.bf16.msra.mxu0 0
      %1064 = vmatprep.subr.bf16.mxu0 0
      %1065 = vmatpush2.bf16.msra.mxu0 0
      %1066 = vmatprep.subr.bf16.mxu0 0
      %1067 = vmatpush2.bf16.msra.mxu0 0
      %1068 = vmatprep.subr.bf16.mxu0 0
      %1069 = vmatpush2.bf16.msra.mxu0 0
      %1070 = vmatprep.subr.bf16.mxu0 0
      %1071 = vmatpush2.bf16.msra.mxu0 0
      %1072 = vmatprep.subr.bf16.mxu0 0
      %1073 = vmatpush2.bf16.msra.mxu0 0
      %1074 = vmatprep.subr.bf16.mxu0 0
      %1075 = vmatpush2.bf16.msra.mxu0 0
      %1076 = vmatprep.mubr.bf16.mxu0 0
      %1077 = vmatmul.mubr.bf16.gmra.mxu0 %v925
      %v1078 = vpop.f32.mrf.mxu0
      %v1079 = vadd.f32 %v983, %v1078
      %v1080 = vpop.f32.mrf.mxu0
      %v1081 = vpop.f32.mrf.mxu0
      %v1082 = vadd.f32 %v986, %v1081
      %v1083 = vpop.f32.mrf.mxu0
      %1084 = vmatprep.mubr.bf16.mxu0 0
      %1085 = vmatmul.mubr.bf16.gmra.mxu0 %v928
      %v1086 = vpop.f32.mrf.mxu0
      %v1087 = vadd.f32 %v991, %v1086
      %v1088 = vpop.f32.mrf.mxu0
      %v1089 = vpop.f32.mrf.mxu0
      %v1090 = vadd.f32 %v994, %v1089
      %v1091 = vpop.f32.mrf.mxu0
      %1092 = vmatprep.mubr.bf16.mxu0 0
      %1093 = vmatmul.mubr.bf16.gmra.mxu0 %v931
      %v1094 = vpop.f32.mrf.mxu0
      %v1095 = vadd.f32 %v999, %v1094
      %v1096 = vpop.f32.mrf.mxu0
      %v1097 = vpop.f32.mrf.mxu0
      %v1098 = vadd.f32 %v1002, %v1097
      %v1099 = vpop.f32.mrf.mxu0
      %1100 = vmatprep.mubr.bf16.mxu0 0
      %1101 = vmatmul.mubr.bf16.gmra.mxu0 %v934
      %v1102 = vpop.f32.mrf.mxu0
      %v1103 = vadd.f32 %v1007, %v1102
      %v1104 = vpop.f32.mrf.mxu0
      %v1105 = vpop.f32.mrf.mxu0
      %v1106 = vadd.f32 %v1010, %v1105
      %v1107 = vpop.f32.mrf.mxu0
      %1108 = vmatprep.mubr.bf16.mxu0 0
      %1109 = vmatmul.mubr.bf16.gmra.mxu0 %v937
      %v1110 = vpop.f32.mrf.mxu0
      %v1111 = vadd.f32 %v1015, %v1110
      %v1112 = vpop.f32.mrf.mxu0
      %v1113 = vpop.f32.mrf.mxu0
      %v1114 = vadd.f32 %v1018, %v1113
      %v1115 = vpop.f32.mrf.mxu0
      %1116 = vmatprep.mubr.bf16.mxu0 0
      %1117 = vmatmul.mubr.bf16.gmra.mxu0 %v940
      %v1118 = vpop.f32.mrf.mxu0
      %v1119 = vadd.f32 %v1023, %v1118
      %v1120 = vpop.f32.mrf.mxu0
      %v1121 = vpop.f32.mrf.mxu0
      %v1122 = vadd.f32 %v1026, %v1121
      %v1123 = vpop.f32.mrf.mxu0
      %1124 = vmatprep.mubr.bf16.mxu0 0
      %1125 = vmatmul.mubr.bf16.gmra.mxu0 %v943
      %v1126 = vpop.f32.mrf.mxu0
      %v1127 = vadd.f32 %v1031, %v1126
      %v1128 = vpop.f32.mrf.mxu0
      %v1129 = vpop.f32.mrf.mxu0
      %v1130 = vadd.f32 %v1034, %v1129
      %v1131 = vpop.f32.mrf.mxu0
      %1132 = vmatprep.mubr.bf16.mxu0 0
      %1133 = vmatmul.mubr.bf16.gmra.mxu0 %v946
      %v1134 = vpop.f32.mrf.mxu0
      %v1135 = vadd.f32 %v1039, %v1134
      %v1136 = vpop.f32.mrf.mxu0
      %v1137 = vpop.f32.mrf.mxu0
      %v1138 = vpop.f32.mrf.mxu0
      %1139 = vdwg.mxu0
      %v1140 = vmax.f32 %v1079, 0.0
      %v1141 = vmax.f32 %v1082, 0.0
      %v1142 = vmax.f32 %v1087, 0.0
      %v1143 = vmax.f32 %v1090, 0.0
      %v1144 = vmax.f32 %v1095, 0.0
      %v1145 = vmax.f32 %v1098, 0.0
      %v1146 = vmax.f32 %v1103, 0.0
      %v1147 = vmax.f32 %v1106, 0.0
      %v1148 = vmax.f32 %v1111, 0.0
      %v1149 = vmax.f32 %v1114, 0.0
      %v1150 = vmax.f32 %v1119, 0.0
      %v1151 = vmax.f32 %v1122, 0.0
      %v1152 = vmax.f32 %v1127, 0.0
      %v1153 = vmax.f32 %v1130, 0.0
      %v1154 = vmax.f32 %v1135, 0.0
      %1155 = vst.msk [vmem:[%s170] sm:$0xff] %vm172, %v1140
      %1156 = vst.msk [vmem:[%s170 + $0x8] sm:$0xff] %vm172, %v1141
      %1157 = vst.msk [vmem:[%s170 + $0x10] sm:$0xff] %vm172, %v1142
      %1158 = vst.msk [vmem:[%s170 + $0x18] sm:$0xff] %vm172, %v1143
      %1159 = vst.msk [vmem:[%s170 + $0x20] sm:$0xff] %vm172, %v1144
      %1160 = vst.msk [vmem:[%s170 + $0x28] sm:$0xff] %vm172, %v1145
      %1161 = vst.msk [vmem:[%s170 + $0x30] sm:$0xff] %vm172, %v1146
      %1162 = vst.msk [vmem:[%s170 + $0x38] sm:$0xff] %vm172, %v1147
      %1163 = vst.msk [vmem:[%s170 + $0x40] sm:$0xff] %vm172, %v1148
      %1164 = vst.msk [vmem:[%s170 + $0x48] sm:$0xff] %vm172, %v1149
      %1165 = vst.msk [vmem:[%s170 + $0x50] sm:$0xff] %vm172, %v1150
      %1166 = vst.msk [vmem:[%s170 + $0x58] sm:$0xff] %vm172, %v1151
      %1167 = vst.msk [vmem:[%s170 + $0x60] sm:$0xff] %vm172, %v1152
      %1168 = vst.msk [vmem:[%s170 + $0x68] sm:$0xff] %vm172, %v1153
      %1169 = vst.msk [vmem:[%s170 + $0x70] sm:$0xff] %vm172, %v1154
      %p1170 = scmp.lt.s32.totalorder %s14, 1
      %s1171 = scalar_select %p1170, %s14, 1
      %s1172 = smul.addr %s1171, 15
      %s1173 = smul.addr %s1172, 8
      %s1174 = scalar_lea.vmem %s3, %s1173
      // Predicated region
      $region33: #{pixel_decoder_forward.6} parent=31 // pred_check
        %p1175 = pneg %p100
      $region34: #{pixel_decoder_forward.6} parent=31 // pred_check_branch
        %1177 = sbr.rel (%p1175) target = $region36
      $region35: #{pixel_decoder_forward.6} parent=31 // pred_region
        _
      $region36: #{pixel_decoder_forward.6} parent=31 // pred_fallthru
        _
    $region32: #{pixel_decoder_forward.6} parent=5 // pred_fallthru
      _
    %p1178 = scmp.le.s32.totalorder 2, %s9
    // Predicated region
    $region37: #{pixel_decoder_forward.6} parent=5 // pred_check
      %p1179 = pneg %p1178
    $region38: #{pixel_decoder_forward.6} parent=5 // pred_check_branch
      %1181 = sbr.rel (%p1179) target = $region40
    $region39: #{pixel_decoder_forward.6} parent=5 // pred_region
      %s1182 = ssub.s32 %s9, 2
      // Predicated region
      $region41: #{pixel_decoder_forward.6} parent=39 // pred_check
        %p1183 = pneg %p106
      $region42: #{pixel_decoder_forward.6} parent=39 // pred_check_branch
        %1185 = sbr.rel (%p1183) target = $region44
      $region43: #{pixel_decoder_forward.6} parent=39 // pred_region
        %p1186 = scmp.lt.s32.totalorder %s15, 1
        %s1187 = scalar_select %p1186, %s15, 1
        %s1188 = smul.addr %s1187, 15
        %s1189 = smul.addr %s1188, 8
        %s1190 = scalar_lea.vmem %s3, %s1189
      $region44: #{pixel_decoder_forward.6} parent=39 // pred_fallthru
        _
    $region40: #{pixel_decoder_forward.6} parent=5 // pred_fallthru
      _
  $region6: #{pixel_decoder_forward.6} parent=0 // loop_footer
    %s13 = sadd.s32 1, %s9
  $region7: #{pixel_decoder_forward.6} parent=0 // loop_footer_branch
    %8 = sbr.rel target = $region3
  $region8: #{pixel_decoder_forward.6} parent=0 // loop_exit
    _

// kernel: pixel_decoder_forward.7
$region0: #{pixel_decoder_forward.7}
  #allocation0 [shape = 'u32[]', space=smem, size = 0x4, offset = 0x4, fixed_abs, tag = 'smem constant byte address 0x4 - core index']
  #allocation1 [shape = 'u32[144,128]{1,0:T(1,128)}', space=vmem, size = 0x12000, scoped, tag = 'internal scratch']
  #allocation2 [shape = 'f32[210,32]{1,0:T(8,128)}', space=vmem, size = 0x1b000, scoped, tag = 'scratch operand']
  %s0 = inlined_call_operand.vmem [shape: f32[2,120,32], index: 0, kind: input, shape index: {}]
  %s1 = inlined_call_operand.vmem [shape: bf16[288,32], index: 1, kind: input, shape index: {}]
  %s2 = inlined_call_operand.vmem [shape: f32[1,32], index: 2, kind: input, shape index: {}]
  %s3 = inlined_call_operand.vmem [shape: f32[2,168,32], index: 3, kind: output, shape index: {}]
  %s4 = sld [smem:[#allocation0]]
  $region45: #{pixel_decoder_forward.7} parent=0
    _
  %s6 = ssub.s32 1, %s4
  %s7 = scalar_select 0, %s6, %s4
  loop: start=0, step=1, limit=4
  $region2: #{pixel_decoder_forward.7} parent=0 // loop_pre_header
    _
  $region3: #{pixel_decoder_forward.7} parent=0 // loop_header
    %s9 = sphi 0, %s13
    %p10 = scmp.ge.s32.totalorder %s9, 4
    %s19 = sphi 0, %s21
    %s22 = sphi 0, %s19
    %s23 = sphi 0, %s22
    %s39 = sphi 0, %s23
    %s43 = sphi 0, %s43
    %s45 = sphi 0, %s43
    %s46 = sphi 0, %s45
    %s60 = sphi 0, %s46
    %s64 = sphi 0, %s64
    %s66 = sphi 0, %s64
    %s67 = sphi 0, %s66
    %s81 = sphi 0, %s67
    %s87 = sphi 0, %s89
    %s90 = sphi 0, %s87
    %s91 = sphi 0, %s90
    %s107 = sphi 0, %s91
  $region4: #{pixel_decoder_forward.7} parent=0 // loop_header_branch
    %12 = sbr.rel (%p10) target = $region8
  $region5: #{pixel_decoder_forward.7} parent=0 // loop_body
    %s14 = ssub.s32 %s9, 1
    %s15 = ssub.s32 %s9, 2
    %s16 = sadd.s32 %s9, 1
    %s17 = ssub.s32 %s9, %s16
    %p18 = scmp.eq.s32.totalorder %s17, 0
    %s20 = sadd.s32 %s19, 1
    %s21 = scalar_select %p18, %s19, %s20
    %p24 = pneg %p18
    %p25 = scmp.eq.s32.totalorder %s9, 1
    %p26 = por %p24, %p25
    %p27 = scmp.ne.s32.totalorder %s19, %s22
    %p28 = scmp.eq.s32.totalorder %s9, 0
    %p29 = por %p27, %p28
    %p30 = scmp.ne.s32.totalorder %s19, %s22
    %p31 = scmp.eq.s32.totalorder %s14, 1
    %p32 = por %p30, %p31
    %p33 = scmp.ne.s32.totalorder %s22, %s23
    %p34 = scmp.eq.s32.totalorder %s14, 0
    %p35 = por %p33, %p34
    %p36 = scmp.ne.s32.totalorder %s22, %s23
    %p37 = scmp.eq.s32.totalorder %s15, 1
    %p38 = por %p36, %p37
    %p40 = scmp.ne.s32.totalorder %s23, %s39
    %p41 = scmp.eq.s32.totalorder %s15, 0
    %p42 = por %p40, %p41
    %s44 = sadd.s32 %s43, 1
    %p47 = scmp.eq.s32.totalorder %s9, 1
    %p48 = scmp.ne.s32.totalorder %s43, %s45
    %p49 = scmp.eq.s32.totalorder %s9, 0
    %p50 = por %p48, %p49
    %p51 = scmp.ne.s32.totalorder %s43, %s45
    %p52 = scmp.eq.s32.totalorder %s14, 1
    %p53 = por %p51, %p52
    %p54 = scmp.ne.s32.totalorder %s45, %s46
    %p55 = scmp.eq.s32.totalorder %s14, 0
    %p56 = por %p54, %p55
    %p57 = scmp.ne.s32.totalorder %s45, %s46
    %p58 = scmp.eq.s32.totalorder %s15, 1
    %p59 = por %p57, %p58
    %p61 = scmp.ne.s32.totalorder %s46, %s60
    %p62 = scmp.eq.s32.totalorder %s15, 0
    %p63 = por %p61, %p62
    %s65 = sadd.s32 %s64, 1
    %p68 = scmp.eq.s32.totalorder %s9, 1
    %p69 = scmp.ne.s32.totalorder %s64, %s66
    %p70 = scmp.eq.s32.totalorder %s9, 0
    %p71 = por %p69, %p70
    %p72 = scmp.ne.s32.totalorder %s64, %s66
    %p73 = scmp.eq.s32.totalorder %s14, 1
    %p74 = por %p72, %p73
    %p75 = scmp.ne.s32.totalorder %s66, %s67
    %p76 = scmp.eq.s32.totalorder %s14, 0
    %p77 = por %p75, %p76
    %p78 = scmp.ne.s32.totalorder %s66, %s67
    %p79 = scmp.eq.s32.totalorder %s15, 1
    %p80 = por %p78, %p79
    %p82 = scmp.ne.s32.totalorder %s67, %s81
    %p83 = scmp.eq.s32.totalorder %s15, 0
    %p84 = por %p82, %p83
    %s85 = ssub.s32 %s9, %s16
    %p86 = scmp.eq.s32.totalorder %s85, 0
    %s88 = sadd.s32 %s87, 1
    %s89 = scalar_select %p86, %s87, %s88
    %p92 = pneg %p86
    %p93 = scmp.eq.s32.totalorder %s9, 1
    %p94 = por %p92, %p93
    %p95 = scmp.ne.s32.totalorder %s87, %s90
    %p96 = scmp.eq.s32.totalorder %s9, 0
    %p97 = por %p95, %p96
    %p98 = scmp.ne.s32.totalorder %s87, %s90
    %p99 = scmp.eq.s32.totalorder %s14, 1
    %p100 = por %p98, %p99
    %p101 = scmp.ne.s32.totalorder %s90, %s91
    %p102 = scmp.eq.s32.totalorder %s14, 0
    %p103 = por %p101, %p102
    %p104 = scmp.ne.s32.totalorder %s90, %s91
    %p105 = scmp.eq.s32.totalorder %s15, 1
    %p106 = por %p104, %p105
    %p108 = scmp.ne.s32.totalorder %s91, %s107
    %p109 = scmp.eq.s32.totalorder %s15, 0
    %p110 = por %p108, %p109
    %p111 = scmp.le.s32.totalorder 1, %s9
    %p112 = scmp.lt.s32.totalorder %s9, 3
    %p113 = pnand %p111, %p112
    %p114 = pneg %p113
    // Predicated region
    $region9: #{pixel_decoder_forward.7} parent=5 // pred_check
      _
    $region10: #{pixel_decoder_forward.7} parent=5 // pred_check_branch
      %116 = sbr.rel (%p113) target = $region12
    $region11: #{pixel_decoder_forward.7} parent=5 // pred_region
      %s117 = ssub.s32 %s9, 1
      // Predicated region
      $region13: #{pixel_decoder_forward.7} parent=11 // pred_check
        %p118 = pneg %p56
      $region14: #{pixel_decoder_forward.7} parent=11 // pred_check_branch
        %120 = sbr.rel (%p118) target = $region16
      $region15: #{pixel_decoder_forward.7} parent=11 // pred_region
        _
      $region16: #{pixel_decoder_forward.7} parent=11 // pred_fallthru
        _
      // Predicated region
      $region17: #{pixel_decoder_forward.7} parent=11 // pred_check
        %p121 = pneg %p77
      $region18: #{pixel_decoder_forward.7} parent=11 // pred_check_branch
        %123 = sbr.rel (%p121) target = $region20
      $region19: #{pixel_decoder_forward.7} parent=11 // pred_region
        _
      $region20: #{pixel_decoder_forward.7} parent=11 // pred_fallthru
        _
    $region12: #{pixel_decoder_forward.7} parent=5 // pred_fallthru
      _
    %p124 = scmp.lt.s32.totalorder %s9, 2
    // Predicated region
    $region21: #{pixel_decoder_forward.7} parent=5 // pred_check
      %p125 = pneg %p124
    $region22: #{pixel_decoder_forward.7} parent=5 // pred_check_branch
      %127 = sbr.rel (%p125) target = $region24
    $region23: #{pixel_decoder_forward.7} parent=5 // pred_region
      // Predicated region
      $region25: #{pixel_decoder_forward.7} parent=23 // pred_check
        %p128 = pneg %p29
      $region26: #{pixel_decoder_forward.7} parent=23 // pred_check_branch
        %130 = sbr.rel (%p128) target = $region28
      $region27: #{pixel_decoder_forward.7} parent=23 // pred_region
        %p131 = scmp.lt.s32.totalorder %s9, 1
        %s132 = scalar_select %p131, %s9, 1
        %s133 = smul.addr %s132, 15
        %s134 = smul.addr %s133, 8
        %s135 = scalar_lea.vmem %s0, %s134
      $region28: #{pixel_decoder_forward.7} parent=23 // pred_fallthru
        _
    $region24: #{pixel_decoder_forward.7} parent=5 // pred_fallthru
      _
    %p136 = scmp.le.s32.totalorder 1, %s9
    %p137 = scmp.lt.s32.totalorder %s9, 3
    %p138 = pnand %p136, %p137
    %p139 = pneg %p138
    // Predicated region
    $region29: #{pixel_decoder_forward.7} parent=5 // pred_check
      _
    $region30: #{pixel_decoder_forward.7} parent=5 // pred_check_branch
      %141 = sbr.rel (%p138) target = $region32
    $region31: #{pixel_decoder_forward.7} parent=5 // pred_region
      %s142 = ssub.s32 %s9, 1
      %p143 = scmp.lt.s32.totalorder %s14, 1
      %s144 = scalar_select %p143, %s14, 1
      %s145 = smul.addr %s144, 15
      %s146 = smul.addr %s145, 8
      %s147 = scalar_lea.vmem %s0, %s146
      %p148 = pneg %p35
      %p149 = pneg %p32
      %p150 = pneg %p56
      %p151 = pneg %p53
      %p152 = pneg %p77
      %p153 = pneg %p74
      %p154 = pneg %p103
      %p155 = pneg %p100
      %p156 = scmp.lt.s32.totalorder %s14, 1
      %s157 = scalar_select %p156, %s14, 1
      %s158 = smul.addr %s157, 21
      %s159 = smul.addr %s158, 8
      %s160 = scalar_lea.vmem %s3, %s159
      %p161 = scmp.lt.s32.totalorder %s14, 1
      %s162 = scalar_select %p161, %s14, 1
      %s163 = smul.addr %s162, 15
      %s164 = smul.addr %s163, 8
      %s165 = scalar_lea.vmem %s0, %s164
      %p166 = scmp.lt.s32.totalorder %s14, 1
      %s167 = scalar_select %p166, %s14, 1
      %s168 = smul.addr %s167, 21
      %s169 = smul.addr %s168, 8
      %s170 = scalar_lea.vmem %s3, %s169
      %vm172 = vcmask 261120
      %173 = vst.msk [vmem:[#allocation2] sm:$0xff] %vm172, 0.0
      %174 = vst.msk [vmem:[#allocation2 + $0x8] sm:$0xff] %vm172, 0.0
      %175 = vst.msk [vmem:[#allocation2 + $0x10] sm:$0xff] %vm172, 0.0
      %176 = vst.msk [vmem:[#allocation2 + $0x18] sm:$0xff] %vm172, 0.0
      %177 = vst.msk [vmem:[#allocation2 + $0x20] sm:$0xff] %vm172, 0.0
      %178 = vst.msk [vmem:[#allocation2 + $0x28] sm:$0xff] %vm172, 0.0
      %179 = vst.msk [vmem:[#allocation2 + $0x30] sm:$0xff] %vm172, 0.0
      %180 = vst.msk [vmem:[#allocation2 + $0x38] sm:$0xff] %vm172, 0.0
      %181 = vst.msk [vmem:[#allocation2 + $0x40] sm:$0xff] %vm172, 0.0
      %182 = vst.msk [vmem:[#allocation2 + $0x48] sm:$0xff] %vm172, 0.0
      %183 = vst.msk [vmem:[#allocation2 + $0x50] sm:$0xff] %vm172, 0.0
      %184 = vst.msk [vmem:[#allocation2 + $0x58] sm:$0xff] %vm172, 0.0
      %185 = vst.msk [vmem:[#allocation2 + $0x60] sm:$0xff] %vm172, 0.0
      %186 = vst.msk [vmem:[#allocation2 + $0x68] sm:$0xff] %vm172, 0.0
      %187 = vst.msk [vmem:[#allocation2 + $0x70] sm:$0xff] %vm172, 0.0
      %188 = vst.msk [vmem:[#allocation2 + $0x78] sm:$0xff] %vm172, 0.0
      %189 = vst.msk [vmem:[#allocation2 + $0x80] sm:$0xff] %vm172, 0.0
      %190 = vst.msk [vmem:[#allocation2 + $0x88] sm:$0xff] %vm172, 0.0
      %191 = vst.msk [vmem:[#allocation2 + $0x90] sm:$0xff] %vm172, 0.0
      %192 = vst.msk [vmem:[#allocation2 + $0x98] sm:$0xff] %vm172, 0.0
      %193 = vst.msk [vmem:[#allocation2 + $0xa0] sm:$0xff] %vm172, 0.0
      %194 = vst.msk [vmem:[#allocation2 + $0xa8] sm:$0xff] %vm172, 0.0
      %195 = vst.msk [vmem:[#allocation2 + $0xb0] sm:$0xff] %vm172, 0.0
      %196 = vst.msk [vmem:[#allocation2 + $0xb8] sm:$0xff] %vm172, 0.0
      %197 = vst.msk [vmem:[#allocation2 + $0xc0] sm:$0xff] %vm172, 0.0
      %198 = vst.msk [vmem:[#allocation2 + $0xc8] sm:$0xff] %vm172, 0.0
      %vm199 = vcmask 254976
      %200 = vst.msk [vmem:[#allocation2 + $0xd0] sm:$0x3] %vm199, 0.0
      %v201 = vld [vmem:[%s165] sm:$0xff]
      %v202 = vld [vmem:[%s165 + $0x8] sm:$0x3]
      %203 = vst.msk [vmem:[#allocation2 + $0x1e] sm:$0xff] %vm172, %v201
      %204 = vst.msk [vmem:[#allocation2 + $0x26] sm:$0x3] %vm199, %v202
      %v205 = vld [vmem:[%s165 + $0xc] sm:$0xff]
      %v206 = vld [vmem:[%s165 + $0x14] sm:$0x3]
      %207 = vst.msk [vmem:[#allocation2 + $0x2c] sm:$0xff] %vm172, %v205
      %208 = vst.msk [vmem:[#allocation2 + $0x34] sm:$0x3] %vm199, %v206
      %v209 = vld [vmem:[%s165 + $0x18] sm:$0xff]
      %v210 = vld [vmem:[%s165 + $0x20] sm:$0x3]
      %211 = vst.msk [vmem:[#allocation2 + $0x3a] sm:$0xff] %vm172, %v209
      %212 = vst.msk [vmem:[#allocation2 + $0x42] sm:$0x3] %vm199, %v210
      %v213 = vld [vmem:[%s165 + $0x24] sm:$0xff]
      %v214 = vld [vmem:[%s165 + $0x2c] sm:$0x3]
      %215 = vst.msk [vmem:[#allocation2 + $0x48] sm:$0xff] %vm172, %v213
      %216 = vst.msk [vmem:[#allocation2 + $0x50] sm:$0x3] %vm199, %v214
      %v217 = vld [vmem:[%s165 + $0x30] sm:$0xff]
      %v218 = vld [vmem:[%s165 + $0x38] sm:$0x3]
      %219 = vst.msk [vmem:[#allocation2 + $0x56] sm:$0xff] %vm172, %v217
      %220 = vst.msk [vmem:[#allocation2 + $0x5e] sm:$0x3] %vm199, %v218
      %v221 = vld [vmem:[%s165 + $0x3c] sm:$0xff]
      %v222 = vld [vmem:[%s165 + $0x44] sm:$0x3]
      %223 = vst.msk [vmem:[#allocation2 + $0x64] sm:$0xff] %vm172, %v221
      %224 = vst.msk [vmem:[#allocation2 + $0x6c] sm:$0x3] %vm199, %v222
      %v225 = vld [vmem:[%s165 + $0x48] sm:$0xff]
      %v226 = vld [vmem:[%s165 + $0x50] sm:$0x3]
      %227 = vst.msk [vmem:[#allocation2 + $0x72] sm:$0xff] %vm172, %v225
      %228 = vst.msk [vmem:[#allocation2 + $0x7a] sm:$0x3] %vm199, %v226
      %v229 = vld [vmem:[%s165 + $0x54] sm:$0xff]
      %v230 = vld [vmem:[%s165 + $0x5c] sm:$0x3]
      %231 = vst.msk [vmem:[#allocation2 + $0x80] sm:$0xff] %vm172, %v229
      %232 = vst.msk [vmem:[#allocation2 + $0x88] sm:$0x3] %vm199, %v230
      %v233 = vld [vmem:[%s165 + $0x60] sm:$0xff]
      %v234 = vld [vmem:[%s165 + $0x68] sm:$0x3]
      %235 = vst.msk [vmem:[#allocation2 + $0x8e] sm:$0xff] %vm172, %v233
      %236 = vst.msk [vmem:[#allocation2 + $0x96] sm:$0x3] %vm199, %v234
      %v237 = vld [vmem:[%s165 + $0x6c] sm:$0xff]
      %v238 = vld [vmem:[%s165 + $0x74] sm:$0x3]
      %239 = vst.msk [vmem:[#allocation2 + $0x9c] sm:$0xff] %vm172, %v237
      %240 = vst.msk [vmem:[#allocation2 + $0xa4] sm:$0x3] %vm199, %v238
      %v241 = vld [vmem:[#allocation2] sm:$0xff]
      %v242 = vld [vmem:[#allocation2 + $0x8] sm:$0xff]
      %v243 = vld [vmem:[#allocation2 + $0x10] sm:$0xff]
      %v244 = vld [vmem:[#allocation2 + $0x18] sm:$0xff]
      %v245 = vld [vmem:[#allocation2 + $0x20] sm:$0xff]
      %v246 = vld [vmem:[#allocation2 + $0x28] sm:$0xff]
      %v247 = vld [vmem:[#allocation2 + $0x30] sm:$0xff]
      %v248 = vld [vmem:[#allocation2 + $0x38] sm:$0xff]
      %v249 = vld [vmem:[#allocation2 + $0x40] sm:$0xff]
      %v250 = vld [vmem:[#allocation2 + $0x48] sm:$0xff]
      %v251 = vld [vmem:[#allocation2 + $0x50] sm:$0xff]
      %v252 = vld [vmem:[#allocation2 + $0x58] sm:$0xff]
      %v253 = vld [vmem:[#allocation2 + $0x60] sm:$0xff]
      %v254 = vld [vmem:[#allocation2 + $0x68] sm:$0xff]
      %v255 = vld [vmem:[#allocation2 + $0x70] sm:$0xff]
      %v256 = vld [vmem:[#allocation2 + $0x78] sm:$0xff]
      %v257 = vld [vmem:[#allocation2 + $0x80] sm:$0xff]
      %v258 = vld [vmem:[#allocation2 + $0x88] sm:$0xff]
      %v259 = vld [vmem:[#allocation2 + $0x90] sm:$0xff]
      %v260 = vld [vmem:[#allocation2 + $0x98] sm:$0xff]
      %v261 = vld [vmem:[#allocation2 + $0xa0] sm:$0xff]
      %v262 = vld [vmem:[#allocation2 + $0x1] sm:$0xff]
      %v263 = vld [vmem:[#allocation2 + $0x9] sm:$0xff]
      %v264 = vld [vmem:[#allocation2 + $0x11] sm:$0xff]
      %v265 = vld [vmem:[#allocation2 + $0x19] sm:$0xff]
      %v266 = vld [vmem:[#allocation2 + $0x21] sm:$0xff]
      %v267 = vld [vmem:[#allocation2 + $0x29] sm:$0xff]
      %v268 = vld [vmem:[#allocation2 + $0x31] sm:$0xff]
      %v269 = vld [vmem:[#allocation2 + $0x39] sm:$0xff]
      %v270 = vld [vmem:[#allocation2 + $0x41] sm:$0xff]
      %v271 = vld [vmem:[#allocation2 + $0x49] sm:$0xff]
      %v272 = vld [vmem:[#allocation2 + $0x51] sm:$0xff]
      %v273 = vld [vmem:[#allocation2 + $0x59] sm:$0xff]
      %v274 = vld [vmem:[#allocation2 + $0x61] sm:$0xff]
      %v275 = vld [vmem:[#allocation2 + $0x69] sm:$0xff]
      %v276 = vld [vmem:[#allocation2 + $0x71] sm:$0xff]
      %v277 = vld [vmem:[#allocation2 + $0x79] sm:$0xff]
      %v278 = vld [vmem:[#allocation2 + $0x81] sm:$0xff]
      %v279 = vld [vmem:[#allocation2 + $0x89] sm:$0xff]
      %v280 = vld [vmem:[#allocation2 + $0x91] sm:$0xff]
      %v281 = vld [vmem:[#allocation2 + $0x99] sm:$0xff]
      %v282 = vld [vmem:[#allocation2 + $0xa1] sm:$0xff]
      %v283 = vld [vmem:[#allocation2 + $0x2] sm:$0xff]
      %v284 = vld [vmem:[#allocation2 + $0xa] sm:$0xff]
      %v285 = vld [vmem:[#allocation2 + $0x12] sm:$0xff]
      %v286 = vld [vmem:[#allocation2 + $0x1a] sm:$0xff]
      %v287 = vld [vmem:[#allocation2 + $0x22] sm:$0xff]
      %v288 = vld [vmem:[#allocation2 + $0x2a] sm:$0xff]
      %v289 = vld [vmem:[#allocation2 + $0x32] sm:$0xff]
      %v290 = vld [vmem:[#allocation2 + $0x3a] sm:$0xff]
      %v291 = vld [vmem:[#allocation2 + $0x42] sm:$0xff]
      %v292 = vld [vmem:[#allocation2 + $0x4a] sm:$0xff]
      %v293 = vld [vmem:[#allocation2 + $0x52] sm:$0xff]
      %v294 = vld [vmem:[#allocation2 + $0x5a] sm:$0xff]
      %v295 = vld [vmem:[#allocation2 + $0x62] sm:$0xff]
      %v296 = vld [vmem:[#allocation2 + $0x6a] sm:$0xff]
      %v297 = vld [vmem:[#allocation2 + $0x72] sm:$0xff]
      %v298 = vld [vmem:[#allocation2 + $0x7a] sm:$0xff]
      %v299 = vld [vmem:[#allocation2 + $0x82] sm:$0xff]
      %v300 = vld [vmem:[#allocation2 + $0x8a] sm:$0xff]
      %v301 = vld [vmem:[#allocation2 + $0x92] sm:$0xff]
      %v302 = vld [vmem:[#allocation2 + $0x9a] sm:$0xff]
      %v303 = vld [vmem:[#allocation2 + $0xa2] sm:$0xff]
      %v304 = vld [vmem:[#allocation2 + $0xe] sm:$0xff]
      %v305 = vld [vmem:[#allocation2 + $0x16] sm:$0xff]
      %v306 = vld [vmem:[#allocation2 + $0x1e] sm:$0xff]
      %v307 = vld [vmem:[#allocation2 + $0x26] sm:$0xff]
      %v308 = vld [vmem:[#allocation2 + $0x2e] sm:$0xff]
      %v309 = vld [vmem:[#allocation2 + $0x36] sm:$0xff]
      %v310 = vld [vmem:[#allocation2 + $0x3e] sm:$0xff]
      %v311 = vld [vmem:[#allocation2 + $0x46] sm:$0xff]
      %v312 = vld [vmem:[#allocation2 + $0x4e] sm:$0xff]
      %v313 = vld [vmem:[#allocation2 + $0x56] sm:$0xff]
      %v314 = vld [vmem:[#allocation2 + $0x5e] sm:$0xff]
      %v315 = vld [vmem:[#allocation2 + $0x66] sm:$0xff]
      %v316 = vld [vmem:[#allocation2 + $0x6e] sm:$0xff]
      %v317 = vld [vmem:[#allocation2 + $0x76] sm:$0xff]
      %v318 = vld [vmem:[#allocation2 + $0x7e] sm:$0xff]
      %v319 = vld [vmem:[#allocation2 + $0x86] sm:$0xff]
      %v320 = vld [vmem:[#allocation2 + $0x8e] sm:$0xff]
      %v321 = vld [vmem:[#allocation2 + $0x96] sm:$0xff]
      %v322 = vld [vmem:[#allocation2 + $0x9e] sm:$0xff]
      %v323 = vld [vmem:[#allocation2 + $0xa6] sm:$0xff]
      %v324 = vld [vmem:[#allocation2 + $0xae] sm:$0xff]
      %v325 = vld [vmem:[#allocation2 + $0xf] sm:$0xff]
      %v326 = vld [vmem:[#allocation2 + $0x17] sm:$0xff]
      %v327 = vld [vmem:[#allocation2 + $0x1f] sm:$0xff]
      %v328 = vld [vmem:[#allocation2 + $0x27] sm:$0xff]
      %v329 = vld [vmem:[#allocation2 + $0x2f] sm:$0xff]
      %v330 = vld [vmem:[#allocation2 + $0x37] sm:$0xff]
      %v331 = vld [vmem:[#allocation2 + $0x3f] sm:$0xff]
      %v332 = vld [vmem:[#allocation2 + $0x47] sm:$0xff]
      %v333 = vld [vmem:[#allocation2 + $0x4f] sm:$0xff]
      %v334 = vld [vmem:[#allocation2 + $0x57] sm:$0xff]
      %v335 = vld [vmem:[#allocation2 + $0x5f] sm:$0xff]
      %v336 = vld [vmem:[#allocation2 + $0x67] sm:$0xff]
      %v337 = vld [vmem:[#allocation2 + $0x6f] sm:$0xff]
      %v338 = vld [vmem:[#allocation2 + $0x77] sm:$0xff]
      %v339 = vld [vmem:[#allocation2 + $0x7f] sm:$0xff]
      %v340 = vld [vmem:[#allocation2 + $0x87] sm:$0xff]
      %v341 = vld [vmem:[#allocation2 + $0x8f] sm:$0xff]
      %v342 = vld [vmem:[#allocation2 + $0x97] sm:$0xff]
      %v343 = vld [vmem:[#allocation2 + $0x9f] sm:$0xff]
      %v344 = vld [vmem:[#allocation2 + $0xa7] sm:$0xff]
      %v345 = vld [vmem:[#allocation2 + $0xaf] sm:$0xff]
      %v346 = vld [vmem:[#allocation2 + $0xa8] sm:$0xff]
      %v347 = vld [vmem:[#allocation2 + $0xb0] sm:$0xff]
      %v348 = vld [vmem:[#allocation2 + $0x1c] sm:$0xff]
      %v349 = vld [vmem:[#allocation2 + $0x24] sm:$0xff]
      %v350 = vld [vmem:[#allocation2 + $0x2c] sm:$0xff]
      %v351 = vld [vmem:[#allocation2 + $0x34] sm:$0xff]
      %v352 = vld [vmem:[#allocation2 + $0x3c] sm:$0xff]
      %v353 = vld [vmem:[#allocation2 + $0x44] sm:$0xff]
      %v354 = vld [vmem:[#allocation2 + $0x4c] sm:$0xff]
      %v355 = vld [vmem:[#allocation2 + $0x54] sm:$0xff]
      %v356 = vld [vmem:[#allocation2 + $0x5c] sm:$0xff]
      %v357 = vld [vmem:[#allocation2 + $0x64] sm:$0xff]
      %v358 = vld [vmem:[#allocation2 + $0x6c] sm:$0xff]
      %v359 = vld [vmem:[#allocation2 + $0x74] sm:$0xff]
      %v360 = vld [vmem:[#allocation2 + $0x7c] sm:$0xff]
      %v361 = vld [vmem:[#allocation2 + $0x84] sm:$0xff]
      %v362 = vld [vmem:[#allocation2 + $0x8c] sm:$0xff]
      %v363 = vld [vmem:[#allocation2 + $0x94] sm:$0xff]
      %v364 = vld [vmem:[#allocation2 + $0x9c] sm:$0xff]
      %v365 = vld [vmem:[#allocation2 + $0xa4] sm:$0xff]
      %v366 = vld [vmem:[#allocation2 + $0xac] sm:$0xff]
      %v367 = vld [vmem:[#allocation2 + $0xb4] sm:$0xff]
      %v368 = vld [vmem:[#allocation2 + $0xbc] sm:$0xff]
      %v369 = vld [vmem:[#allocation2 + $0x1d] sm:$0xff]
      %v370 = vld [vmem:[#allocation2 + $0x25] sm:$0xff]
      %v371 = vld [vmem:[#allocation2 + $0x2d] sm:$0xff]
      %v372 = vld [vmem:[#allocation2 + $0x35] sm:$0xff]
      %v373 = vld [vmem:[#allocation2 + $0x3d] sm:$0xff]
      %v374 = vld [vmem:[#allocation2 + $0x45] sm:$0xff]
      %v375 = vld [vmem:[#allocation2 + $0x4d] sm:$0xff]
      %v376 = vld [vmem:[#allocation2 + $0x55] sm:$0xff]
      %v377 = vld [vmem:[#allocation2 + $0x5d] sm:$0xff]
      %v378 = vld [vmem:[#allocation2 + $0x65] sm:$0xff]
      %v379 = vld [vmem:[#allocation2 + $0x6d] sm:$0xff]
      %v380 = vld [vmem:[#allocation2 + $0x75] sm:$0xff]
      %v381 = vld [vmem:[#allocation2 + $0x7d] sm:$0xff]
      %v382 = vld [vmem:[#allocation2 + $0x85] sm:$0xff]
      %v383 = vld [vmem:[#allocation2 + $0x8d] sm:$0xff]
      %v384 = vld [vmem:[#allocation2 + $0x95] sm:$0xff]
      %v385 = vld [vmem:[#allocation2 + $0x9d] sm:$0xff]
      %v386 = vld [vmem:[#allocation2 + $0xa5] sm:$0xff]
      %v387 = vld [vmem:[#allocation2 + $0xad] sm:$0xff]
      %v388 = vld [vmem:[#allocation2 + $0xb5] sm:$0xff]
      %v389 = vld [vmem:[#allocation2 + $0xbd] sm:$0xff]
      %v390 = vld [vmem:[#allocation2 + $0xb6] sm:$0xff]
      %v391 = vld [vmem:[#allocation2 + $0xbe] sm:$0xff]
      %413 = vrot.lane.b32.xlu0 %v262, 32
      %v414 = vpop.permute.xlu0 %413
      %415 = vrot.lane.b32.xlu0 %v263, 32
      %v416 = vpop.permute.xlu0 %415
      %417 = vrot.lane.b32.xlu0 %v264, 32
      %v418 = vpop.permute.xlu0 %417
      %419 = vrot.lane.b32.xlu0 %v265, 32
      %v420 = vpop.permute.xlu0 %419
      %421 = vrot.lane.b32.xlu0 %v266, 32
      %v422 = vpop.permute.xlu0 %421
      %423 = vrot.lane.b32.xlu0 %v267, 32
      %v424 = vpop.permute.xlu0 %423
      %425 = vrot.lane.b32.xlu0 %v268, 32
      %v426 = vpop.permute.xlu0 %425
      %427 = vrot.lane.b32.xlu0 %v269, 32
      %v428 = vpop.permute.xlu0 %427
      %429 = vrot.lane.b32.xlu0 %v270, 32
      %v430 = vpop.permute.xlu0 %429
      %431 = vrot.lane.b32.xlu0 %v271, 32
      %v432 = vpop.permute.xlu0 %431
      %433 = vrot.lane.b32.xlu0 %v272, 32
      %v434 = vpop.permute.xlu0 %433
      %435 = vrot.lane.b32.xlu0 %v273, 32
      %v436 = vpop.permute.xlu0 %435
      %437 = vrot.lane.b32.xlu0 %v274, 32
      %v438 = vpop.permute.xlu0 %437
      %439 = vrot.lane.b32.xlu0 %v275, 32
      %v440 = vpop.permute.xlu0 %439
      %441 = vrot.lane.b32.xlu0 %v276, 32
      %v442 = vpop.permute.xlu0 %441
      %443 = vrot.lane.b32.xlu0 %v277, 32
      %v444 = vpop.permute.xlu0 %443
      %445 = vrot.lane.b32.xlu0 %v278, 32
      %v446 = vpop.permute.xlu0 %445
      %447 = vrot.lane.b32.xlu0 %v279, 32
      %v448 = vpop.permute.xlu0 %447
      %449 = vrot.lane.b32.xlu0 %v280, 32
      %v450 = vpop.permute.xlu0 %449
      %451 = vrot.lane.b32.xlu0 %v281, 32
      %v452 = vpop.permute.xlu0 %451
      %453 = vrot.lane.b32.xlu0 %v282, 32
      %v454 = vpop.permute.xlu0 %453
      %497 = vrot.lane.b32.xlu0 %v283, 64
      %v498 = vpop.permute.xlu0 %497
      %499 = vrot.lane.b32.xlu0 %v284, 64
      %v500 = vpop.permute.xlu0 %499
      %501 = vrot.lane.b32.xlu0 %v285, 64
      %v502 = vpop.permute.xlu0 %501
      %503 = vrot.lane.b32.xlu0 %v286, 64
      %v504 = vpop.permute.xlu0 %503
      %505 = vrot.lane.b32.xlu0 %v287, 64
      %v506 = vpop.permute.xlu0 %505
      %507 = vrot.lane.b32.xlu0 %v288, 64
      %v508 = vpop.permute.xlu0 %507
      %509 = vrot.lane.b32.xlu0 %v289, 64
      %v510 = vpop.permute.xlu0 %509
      %511 = vrot.lane.b32.xlu0 %v290, 64
      %v512 = vpop.permute.xlu0 %511
      %513 = vrot.lane.b32.xlu0 %v291, 64
      %v514 = vpop.permute.xlu0 %513
      %515 = vrot.lane.b32.xlu0 %v292, 64
      %v516 = vpop.permute.xlu0 %515
      %517 = vrot.lane.b32.xlu0 %v293, 64
      %v518 = vpop.permute.xlu0 %517
      %519 = vrot.lane.b32.xlu0 %v294, 64
      %v520 = vpop.permute.xlu0 %519
      %521 = vrot.lane.b32.xlu0 %v295, 64
      %v522 = vpop.permute.xlu0 %521
      %523 = vrot.lane.b32.xlu0 %v296, 64
      %v524 = vpop.permute.xlu0 %523
      %525 = vrot.lane.b32.xlu0 %v297, 64
      %v526 = vpop.permute.xlu0 %525
      %527 = vrot.lane.b32.xlu0 %v298, 64
      %v528 = vpop.permute.xlu0 %527
      %529 = vrot.lane.b32.xlu0 %v299, 64
      %v530 = vpop.permute.xlu0 %529
      %531 = vrot.lane.b32.xlu0 %v300, 64
      %v532 = vpop.permute.xlu0 %531
      %533 = vrot.lane.b32.xlu0 %v301, 64
      %v534 = vpop.permute.xlu0 %533
      %535 = vrot.lane.b32.xlu0 %v302, 64
      %v536 = vpop.permute.xlu0 %535
      %537 = vrot.lane.b32.xlu0 %v303, 64
      %v538 = vpop.permute.xlu0 %537
      %581 = vrot.lane.b32.xlu0 %v304, 96
      %v582 = vpop.permute.xlu0 %581
      %583 = vrot.lane.b32.xlu0 %v305, 96
      %v584 = vpop.permute.xlu0 %583
      %585 = vrot.lane.b32.xlu0 %v306, 96
      %v586 = vpop.permute.xlu0 %585
      %587 = vrot.lane.b32.xlu0 %v307, 96
      %v588 = vpop.permute.xlu0 %587
      %589 = vrot.lane.b32.xlu0 %v308, 96
      %v590 = vpop.permute.xlu0 %589
      %591 = vrot.lane.b32.xlu0 %v309, 96
      %v592 = vpop.permute.xlu0 %591
      %593 = vrot.lane.b32.xlu0 %v310, 96
      %v594 = vpop.permute.xlu0 %593
      %595 = vrot.lane.b32.xlu0 %v311, 96
      %v596 = vpop.permute.xlu0 %595
      %597 = vrot.lane.b32.xlu0 %v312, 96
      %v598 = vpop.permute.xlu0 %597
      %599 = vrot.lane.b32.xlu0 %v313, 96
      %v600 = vpop.permute.xlu0 %599
      %601 = vrot.lane.b32.xlu0 %v314, 96
      %v602 = vpop.permute.xlu0 %601
      %603 = vrot.lane.b32.xlu0 %v315, 96
      %v604 = vpop.permute.xlu0 %603
      %605 = vrot.lane.b32.xlu0 %v316, 96
      %v606 = vpop.permute.xlu0 %605
      %607 = vrot.lane.b32.xlu0 %v317, 96
      %v608 = vpop.permute.xlu0 %607
      %609 = vrot.lane.b32.xlu0 %v318, 96
      %v610 = vpop.permute.xlu0 %609
      %611 = vrot.lane.b32.xlu0 %v319, 96
      %v612 = vpop.permute.xlu0 %611
      %613 = vrot.lane.b32.xlu0 %v320, 96
      %v614 = vpop.permute.xlu0 %613
      %615 = vrot.lane.b32.xlu0 %v321, 96
      %v616 = vpop.permute.xlu0 %615
      %617 = vrot.lane.b32.xlu0 %v322, 96
      %v618 = vpop.permute.xlu0 %617
      %619 = vrot.lane.b32.xlu0 %v323, 96
      %v620 = vpop.permute.xlu0 %619
      %621 = vrot.lane.b32.xlu0 %v324, 96
      %v622 = vpop.permute.xlu0 %621
      %665 = vrot.lane.b32.xlu0 %v243, 32
      %v666 = vpop.permute.xlu0 %665
      %667 = vrot.lane.b32.xlu0 %v244, 32
      %v668 = vpop.permute.xlu0 %667
      %669 = vrot.lane.b32.xlu0 %v245, 32
      %v670 = vpop.permute.xlu0 %669
      %671 = vrot.lane.b32.xlu0 %v246, 32
      %v672 = vpop.permute.xlu0 %671
      %673 = vrot.lane.b32.xlu0 %v247, 32
      %v674 = vpop.permute.xlu0 %673
      %675 = vrot.lane.b32.xlu0 %v248, 32
      %v676 = vpop.permute.xlu0 %675
      %677 = vrot.lane.b32.xlu0 %v249, 32
      %v678 = vpop.permute.xlu0 %677
      %679 = vrot.lane.b32.xlu0 %v250, 32
      %v680 = vpop.permute.xlu0 %679
      %681 = vrot.lane.b32.xlu0 %v251, 32
      %v682 = vpop.permute.xlu0 %681
      %683 = vrot.lane.b32.xlu0 %v252, 32
      %v684 = vpop.permute.xlu0 %683
      %685 = vrot.lane.b32.xlu0 %v253, 32
      %v686 = vpop.permute.xlu0 %685
      %687 = vrot.lane.b32.xlu0 %v254, 32
      %v688 = vpop.permute.xlu0 %687
      %689 = vrot.lane.b32.xlu0 %v255, 32
      %v690 = vpop.permute.xlu0 %689
      %691 = vrot.lane.b32.xlu0 %v256, 32
      %v692 = vpop.permute.xlu0 %691
      %693 = vrot.lane.b32.xlu0 %v257, 32
      %v694 = vpop.permute.xlu0 %693
      %695 = vrot.lane.b32.xlu0 %v258, 32
      %v696 = vpop.permute.xlu0 %695
      %697 = vrot.lane.b32.xlu0 %v259, 32
      %v698 = vpop.permute.xlu0 %697
      %699 = vrot.lane.b32.xlu0 %v260, 32
      %v700 = vpop.permute.xlu0 %699
      %701 = vrot.lane.b32.xlu0 %v261, 32
      %v702 = vpop.permute.xlu0 %701
      %703 = vrot.lane.b32.xlu0 %v346, 32
      %v704 = vpop.permute.xlu0 %703
      %705 = vrot.lane.b32.xlu0 %v347, 32
      %v706 = vpop.permute.xlu0 %705
      %749 = vrot.lane.b32.xlu0 %v348, 64
      %v750 = vpop.permute.xlu0 %749
      %751 = vrot.lane.b32.xlu0 %v349, 64
      %v752 = vpop.permute.xlu0 %751
      %753 = vrot.lane.b32.xlu0 %v350, 64
      %v754 = vpop.permute.xlu0 %753
      %755 = vrot.lane.b32.xlu0 %v351, 64
      %v756 = vpop.permute.xlu0 %755
      %757 = vrot.lane.b32.xlu0 %v352, 64
      %v758 = vpop.permute.xlu0 %757
      %759 = vrot.lane.b32.xlu0 %v353, 64
      %v760 = vpop.permute.xlu0 %759
      %761 = vrot.lane.b32.xlu0 %v354, 64
      %v762 = vpop.permute.xlu0 %761
      %763 = vrot.lane.b32.xlu0 %v355, 64
      %v764 = vpop.permute.xlu0 %763
      %765 = vrot.lane.b32.xlu0 %v356, 64
      %v766 = vpop.permute.xlu0 %765
      %767 = vrot.lane.b32.xlu0 %v357, 64
      %v768 = vpop.permute.xlu0 %767
      %769 = vrot.lane.b32.xlu0 %v358, 64
      %v770 = vpop.permute.xlu0 %769
      %771 = vrot.lane.b32.xlu0 %v359, 64
      %v772 = vpop.permute.xlu0 %771
      %773 = vrot.lane.b32.xlu0 %v360, 64
      %v774 = vpop.permute.xlu0 %773
      %775 = vrot.lane.b32.xlu0 %v361, 64
      %v776 = vpop.permute.xlu0 %775
      %777 = vrot.lane.b32.xlu0 %v362, 64
      %v778 = vpop.permute.xlu0 %777
      %779 = vrot.lane.b32.xlu0 %v363, 64
      %v780 = vpop.permute.xlu0 %779
      %781 = vrot.lane.b32.xlu0 %v364, 64
      %v782 = vpop.permute.xlu0 %781
      %783 = vrot.lane.b32.xlu0 %v365, 64
      %v784 = vpop.permute.xlu0 %783
      %785 = vrot.lane.b32.xlu0 %v366, 64
      %v786 = vpop.permute.xlu0 %785
      %787 = vrot.lane.b32.xlu0 %v367, 64
      %v788 = vpop.permute.xlu0 %787
      %789 = vrot.lane.b32.xlu0 %v368, 64
      %v790 = vpop.permute.xlu0 %789
      %833 = vrot.lane.b32.xlu0 %v369, 96
      %v834 = vpop.permute.xlu0 %833
      %835 = vrot.lane.b32.xlu0 %v370, 96
      %v836 = vpop.permute.xlu0 %835
      %837 = vrot.lane.b32.xlu0 %v371, 96
      %v838 = vpop.permute.xlu0 %837
      %839 = vrot.lane.b32.xlu0 %v372, 96
      %v840 = vpop.permute.xlu0 %839
      %841 = vrot.lane.b32.xlu0 %v373, 96
      %v842 = vpop.permute.xlu0 %841
      %843 = vrot.lane.b32.xlu0 %v374, 96
      %v844 = vpop.permute.xlu0 %843
      %845 = vrot.lane.b32.xlu0 %v375, 96
      %v846 = vpop.permute.xlu0 %845
      %847 = vrot.lane.b32.xlu0 %v376, 96
      %v848 = vpop.permute.xlu0 %847
      %849 = vrot.lane.b32.xlu0 %v377, 96
      %v850 = vpop.permute.xlu0 %849
      %851 = vrot.lane.b32.xlu0 %v378, 96
      %v852 = vpop.permute.xlu0 %851
      %853 = vrot.lane.b32.xlu0 %v379, 96
      %v854 = vpop.permute.xlu0 %853
      %855 = vrot.lane.b32.xlu0 %v380, 96
      %v856 = vpop.permute.xlu0 %855
      %857 = vrot.lane.b32.xlu0 %v381, 96
      %v858 = vpop.permute.xlu0 %857
      %859 = vrot.lane.b32.xlu0 %v382, 96
      %v860 = vpop.permute.xlu0 %859
      %861 = vrot.lane.b32.xlu0 %v383, 96
      %v862 = vpop.permute.xlu0 %861
      %863 = vrot.lane.b32.xlu0 %v384, 96
      %v864 = vpop.permute.xlu0 %863
      %865 = vrot.lane.b32.xlu0 %v385, 96
      %v866 = vpop.permute.xlu0 %865
      %867 = vrot.lane.b32.xlu0 %v386, 96
      %v868 = vpop.permute.xlu0 %867
      %869 = vrot.lane.b32.xlu0 %v387, 96
      %v870 = vpop.permute.xlu0 %869
      %871 = vrot.lane.b32.xlu0 %v388, 96
      %v872 = vpop.permute.xlu0 %871
      %873 = vrot.lane.b32.xlu0 %v389, 96
      %v874 = vpop.permute.xlu0 %873
      %v896 = vsel %vm172, %v241, %v414
      %v897 = vsel %vm172, %v242, %v416
      %v898 = vsel %vm172, %v243, %v418
      %v899 = vsel %vm172, %v244, %v420
      %v900 = vsel %vm172, %v245, %v422
      %v901 = vsel %vm172, %v246, %v424
      %v902 = vsel %vm172, %v247, %v426
      %v903 = vsel %vm172, %v248, %v428
      %v904 = vsel %vm172, %v249, %v430
      %v905 = vsel %vm172, %v250, %v432
      %v906 = vsel %vm172, %v251, %v434
      %v907 = vsel %vm172, %v252, %v436
      %v908 = vsel %vm172, %v253, %v438
      %v909 = vsel %vm172, %v254, %v440
      %v910 = vsel %vm172, %v255, %v442
      %v911 = vsel %vm172, %v256, %v444
      %v912 = vsel %vm172, %v257, %v446
      %v913 = vsel %vm172, %v258, %v448
      %v914 = vsel %vm172, %v259, %v450
      %v915 = vsel %vm172, %v260, %v452
      %v916 = vsel %vm172, %v261, %v454
      %vm917 = vcmask 523264
      %v918 = vsel %vm917, %v896, %v498
      %v919 = vsel %vm917, %v897, %v500
      %v920 = vsel %vm917, %v898, %v502
      %v921 = vsel %vm917, %v899, %v504
      %v922 = vsel %vm917, %v900, %v506
      %v923 = vsel %vm917, %v901, %v508
      %v924 = vsel %vm917, %v902, %v510
      %v925 = vsel %vm917, %v903, %v512
      %v926 = vsel %vm917, %v904, %v514
      %v927 = vsel %vm917, %v905, %v516
      %v928 = vsel %vm917, %v906, %v518
      %v929 = vsel %vm917, %v907, %v520
      %v930 = vsel %vm917, %v908, %v522
      %v931 = vsel %vm917, %v909, %v524
      %v932 = vsel %vm917, %v910, %v526
      %v933 = vsel %vm917, %v911, %v528
      %v934 = vsel %vm917, %v912, %v530
      %v935 = vsel %vm917, %v913, %v532
      %v936 = vsel %vm917, %v914, %v534
      %v937 = vsel %vm917, %v915, %v536
      %v938 = vsel %vm917, %v916, %v538
      %vm939 = vcmask 785408
      %v940 = vsel %vm939, %v918, %v582
      %v941 = vsel %vm939, %v919, %v584
      %v942 = vsel %vm939, %v920, %v586
      %v943 = vsel %vm939, %v921, %v588
      %v944 = vsel %vm939, %v922, %v590
      %v945 = vsel %vm939, %v923, %v592
      %v946 = vsel %vm939, %v924, %v594
      %v947 = vsel %vm939, %v925, %v596
      %v948 = vsel %vm939, %v926, %v598
      %v949 = vsel %vm939, %v927, %v600
      %v950 = vsel %vm939, %v928, %v602
      %v951 = vsel %vm939, %v929, %v604
      %v952 = vsel %vm939, %v930, %v606
      %v953 = vsel %vm939, %v931, %v608
      %v954 = vsel %vm939, %v932, %v610
      %v955 = vsel %vm939, %v933, %v612
      %v956 = vsel %vm939, %v934, %v614
      %v957 = vsel %vm939, %v935, %v616
      %v958 = vsel %vm939, %v936, %v618
      %v959 = vsel %vm939, %v937, %v620
      %v960 = vsel %vm939, %v938, %v622
      %v961 = vsel %vm172, %v325, %v666
      %v962 = vsel %vm172, %v326, %v668
      %v963 = vsel %vm172, %v327, %v670
      %v964 = vsel %vm172, %v328, %v672
      %v965 = vsel %vm172, %v329, %v674
      %v966 = vsel %vm172, %v330, %v676
      %v967 = vsel %vm172, %v331, %v678
      %v968 = vsel %vm172, %v332, %v680
      %v969 = vsel %vm172, %v333, %v682
      %v970 = vsel %vm172, %v334, %v684
      %v971 = vsel %vm172, %v335, %v686
      %v972 = vsel %vm172, %v336, %v688
      %v973 = vsel %vm172, %v337, %v690
      %v974 = vsel %vm172, %v338, %v692
      %v975 = vsel %vm172, %v339, %v694
      %v976 = vsel %vm172, %v340, %v696
      %v977 = vsel %vm172, %v341, %v698
      %v978 = vsel %vm172, %v342, %v700
      %v979 = vsel %vm172, %v343, %v702
      %v980 = vsel %vm172, %v344, %v704
      %v981 = vsel %vm172, %v345, %v706
      %v982 = vsel %vm917, %v961, %v750
      %v983 = vsel %vm917, %v962, %v752
      %v984 = vsel %vm917, %v963, %v754
      %v985 = vsel %vm917, %v964, %v756
      %v986 = vsel %vm917, %v965, %v758
      %v987 = vsel %vm917, %v966, %v760
      %v988 = vsel %vm917, %v967, %v762
      %v989 = vsel %vm917, %v968, %v764
      %v990 = vsel %vm917, %v969, %v766
      %v991 = vsel %vm917, %v970, %v768
      %v992 = vsel %vm917, %v971, %v770
      %v993 = vsel %vm917, %v972, %v772
      %v994 = vsel %vm917, %v973, %v774
      %v995 = vsel %vm917, %v974, %v776
      %v996 = vsel %vm917, %v975, %v778
      %v997 = vsel %vm917, %v976, %v780
      %v998 = vsel %vm917, %v977, %v782
      %v999 = vsel %vm917, %v978, %v784
      %v1000 = vsel %vm917, %v979, %v786
      %v1001 = vsel %vm917, %v980, %v788
      %v1002 = vsel %vm917, %v981, %v790
      %v1003 = vsel %vm939, %v982, %v834
      %v1004 = vsel %vm939, %v983, %v836
      %v1005 = vsel %vm939, %v984, %v838
      %v1006 = vsel %vm939, %v985, %v840
      %v1007 = vsel %vm939, %v986, %v842
      %v1008 = vsel %vm939, %v987, %v844
      %v1009 = vsel %vm939, %v988, %v846
      %v1010 = vsel %vm939, %v989, %v848
      %v1011 = vsel %vm939, %v990, %v850
      %v1012 = vsel %vm939, %v991, %v852
      %v1013 = vsel %vm939, %v992, %v854
      %v1014 = vsel %vm939, %v993, %v856
      %v1015 = vsel %vm939, %v994, %v858
      %v1016 = vsel %vm939, %v995, %v860
      %v1017 = vsel %vm939, %v996, %v862
      %v1018 = vsel %vm939, %v997, %v864
      %v1019 = vsel %vm939, %v998, %v866
      %v1020 = vsel %vm939, %v999, %v868
      %v1021 = vsel %vm939, %v1000, %v870
      %v1022 = vsel %vm939, %v1001, %v872
      %v1023 = vsel %vm939, %v1002, %v874
      %v1024 = vpack.c.bf16 %v941, %v940
      %v1025 = vpack.c.bf16 %v1004, %v1003
      %v1026 = vpack.c.bf16 %v307, %v306
      %v1027 = vpack.c.bf16 %v943, %v942
      %v1028 = vpack.c.bf16 %v1006, %v1005
      %v1029 = vpack.c.bf16 %v309, %v308
      %v1030 = vpack.c.bf16 %v945, %v944
      %v1031 = vpack.c.bf16 %v1008, %v1007
      %v1032 = vpack.c.bf16 %v311, %v310
      %v1033 = vpack.c.bf16 %v947, %v946
      %v1034 = vpack.c.bf16 %v1010, %v1009
      %v1035 = vpack.c.bf16 %v313, %v312
      %v1036 = vpack.c.bf16 %v949, %v948
      %v1037 = vpack.c.bf16 %v1012, %v1011
      %v1038 = vpack.c.bf16 %v315, %v314
      %v1039 = vpack.c.bf16 %v951, %v950
      %v1040 = vpack.c.bf16 %v1014, %v1013
      %v1041 = vpack.c.bf16 %v317, %v316
      %v1042 = vpack.c.bf16 %v953, %v952
      %v1043 = vpack.c.bf16 %v1016, %v1015
      %v1044 = vpack.c.bf16 %v319, %v318
      %v1045 = vpack.c.bf16 %v955, %v954
      %v1046 = vpack.c.bf16 %v1018, %v1017
      %v1047 = vpack.c.bf16 %v321, %v320
      %v1048 = vpack.c.bf16 %v957, %v956
      %v1049 = vpack.c.bf16 %v1020, %v1019
      %v1050 = vpack.c.bf16 %v323, %v322
      %v1051 = vpack.c.bf16 %v959, %v958
      %v1052 = vpack.c.bf16 %v1022, %v1021
      %v1053 = vpack.c.bf16 %v390, %v324
      %v1054 = vpack.c.bf16 %v960, %v960
      %v1055 = vpack.c.bf16 %v1023, %v1023
      %v1056 = vpack.c.bf16 %v391, %v391
      %v1057 = vld [vmem:[%s1] sm:$0xf]
      %v1058 = vld [vmem:[%s1 + $0x4] sm:$0xf]
      %v1059 = vld [vmem:[%s1 + $0x8] sm:$0xf]
      %v1060 = vld [vmem:[%s1 + $0xc] sm:$0xf]
      %v1061 = vld [vmem:[%s1 + $0x10] sm:$0xf]
      %v1062 = vld [vmem:[%s1 + $0x14] sm:$0xf]
      %v1063 = vld [vmem:[%s1 + $0x18] sm:$0xf]
      %v1064 = vld [vmem:[%s1 + $0x1c] sm:$0xf]
      %v1065 = vld [vmem:[%s1 + $0x20] sm:$0xf]
      %v1066 = vld [vmem:[%s1 + $0x24] sm:$0xf]
      %v1067 = vld [vmem:[%s1 + $0x28] sm:$0xf]
      %v1068 = vld [vmem:[%s1 + $0x2c] sm:$0xf]
      %v1069 = vld [vmem:[%s1 + $0x30] sm:$0xf]
      %v1070 = vld [vmem:[%s1 + $0x34] sm:$0xf]
      %v1071 = vld [vmem:[%s1 + $0x38] sm:$0xf]
      %v1072 = vld [vmem:[%s1 + $0x3c] sm:$0xf]
      %v1073 = vld [vmem:[%s1 + $0x40] sm:$0xf]
      %v1074 = vld [vmem:[%s1 + $0x44] sm:$0xf]
      %v1075 = vld [vmem:[%s1 + $0x48] sm:$0xf]
      %v1076 = vld [vmem:[%s1 + $0x4c] sm:$0xf]
      %v1077 = vld [vmem:[%s1 + $0x50] sm:$0xf]
      %v1078 = vld [vmem:[%s1 + $0x54] sm:$0xf]
      %v1079 = vld [vmem:[%s1 + $0x58] sm:$0xf]
      %v1080 = vld [vmem:[%s1 + $0x5c] sm:$0xf]
      %v1081 = vld [vmem:[%s1 + $0x60] sm:$0xf]
      %v1082 = vld [vmem:[%s1 + $0x64] sm:$0xf]
      %v1083 = vld [vmem:[%s1 + $0x68] sm:$0xf]
      %v1084 = vld [vmem:[%s1 + $0x6c] sm:$0xf]
      %v1085 = vld [vmem:[%s1 + $0x70] sm:$0xf]
      %v1086 = vld [vmem:[%s1 + $0x74] sm:$0xf]
      %v1087 = vld [vmem:[%s1 + $0x78] sm:$0xf]
      %v1088 = vld [vmem:[%s1 + $0x7c] sm:$0xf]
      %v1089 = vld [vmem:[%s1 + $0x80] sm:$0xf]
      %v1090 = vld [vmem:[%s1 + $0x84] sm:$0xf]
      %v1091 = vld [vmem:[%s1 + $0x88] sm:$0xf]
      %v1092 = vld [vmem:[%s1 + $0x8c] sm:$0xf]
      %v1093 = vld [vmem:[%s2] sm:$0x1]
      %v1095 = vlaneseq
      %v1096 = vshrl.u32 %v1095, 7
      %v1097 = vsub.s32 0, %v1096
      %v1098 = vrot.slane %v1093, %v1097
      %v1136 = vunpack.c.l.b16 %v1057
      %v1137 = vunpack.c.l.b16 %v1058
      %v1138 = vunpack.c.l.b16 %v1059
      %v1139 = vunpack.c.l.b16 %v1060
      %v1140 = vunpack.c.l.b16 %v1061
      %v1141 = vunpack.c.l.b16 %v1062
      %v1142 = vunpack.c.l.b16 %v1063
      %v1143 = vunpack.c.l.b16 %v1064
      %v1144 = vunpack.c.l.b16 %v1065
      %v1145 = vunpack.c.l.b16 %v1066
      %v1146 = vunpack.c.l.b16 %v1067
      %v1147 = vunpack.c.l.b16 %v1068
      %v1148 = vunpack.c.l.b16 %v1069
      %v1149 = vunpack.c.l.b16 %v1070
      %v1150 = vunpack.c.l.b16 %v1071
      %v1151 = vunpack.c.l.b16 %v1072
      %v1152 = vunpack.c.l.b16 %v1073
      %v1153 = vunpack.c.l.b16 %v1074
      %v1154 = vunpack.c.l.b16 %v1075
      %v1155 = vunpack.c.l.b16 %v1076
      %v1156 = vunpack.c.l.b16 %v1077
      %v1157 = vunpack.c.l.b16 %v1078
      %v1158 = vunpack.c.l.b16 %v1079
      %v1159 = vunpack.c.l.b16 %v1080
      %v1160 = vunpack.c.l.b16 %v1081
      %v1161 = vunpack.c.l.b16 %v1082
      %v1162 = vunpack.c.l.b16 %v1083
      %v1163 = vunpack.c.l.b16 %v1084
      %v1164 = vunpack.c.l.b16 %v1085
      %v1165 = vunpack.c.l.b16 %v1086
      %v1166 = vunpack.c.l.b16 %v1087
      %v1167 = vunpack.c.l.b16 %v1088
      %v1168 = vunpack.c.l.b16 %v1089
      %v1169 = vunpack.c.l.b16 %v1090
      %v1170 = vunpack.c.l.b16 %v1091
      %v1171 = vunpack.c.l.b16 %v1092
      %v1172 = vpack.c.b16 %v1137, %v1136
      %v1173 = vpack.c.b16 %v1139, %v1138
      %v1174 = vpack.c.b16 %v1141, %v1140
      %v1175 = vpack.c.b16 %v1143, %v1142
      %v1176 = vpack.c.b16 %v1145, %v1144
      %v1177 = vpack.c.b16 %v1147, %v1146
      %v1178 = vpack.c.b16 %v1149, %v1148
      %v1179 = vpack.c.b16 %v1151, %v1150
      %v1180 = vpack.c.b16 %v1153, %v1152
      %v1181 = vpack.c.b16 %v1155, %v1154
      %v1182 = vpack.c.b16 %v1157, %v1156
      %v1183 = vpack.c.b16 %v1159, %v1158
      %v1184 = vpack.c.b16 %v1161, %v1160
      %v1185 = vpack.c.b16 %v1163, %v1162
      %v1186 = vpack.c.b16 %v1165, %v1164
      %v1187 = vpack.c.b16 %v1167, %v1166
      %v1188 = vpack.c.b16 %v1169, %v1168
      %v1189 = vpack.c.b16 %v1171, %v1170
      %v1209 = vsel %vm172, %v1026, 0
      %v1212 = vsel %vm172, %v1029, 0
      %v1215 = vsel %vm172, %v1032, 0
      %v1218 = vsel %vm172, %v1035, 0
      %v1221 = vsel %vm172, %v1038, 0
      %v1224 = vsel %vm172, %v1041, 0
      %v1227 = vsel %vm172, %v1044, 0
      %v1230 = vsel %vm172, %v1047, 0
      %v1233 = vsel %vm172, %v1050, 0
      %v1236 = vsel %vm172, %v1053, 0
      %v1239 = vsel %vm172, %v1056, 0
      %1241 = vmatprep.subr.bf16.mxu0 0
      %1242 = vmatpush1.bf16.msra.mxu0 %v1179
      %1243 = vmatprep.subr.bf16.mxu0 0
      %1244 = vmatpush1.bf16.msra.mxu0 %v1178
      %1245 = vmatprep.subr.bf16.mxu0 0
      %1246 = vmatpush1.bf16.msra.mxu0 %v1177
      %1247 = vmatprep.subr.bf16.mxu0 0
      %1248 = vmatpush1.bf16.msra.mxu0 %v1176
      %1249 = vmatprep.subr.bf16.mxu0 0
      %1250 = vmatpush1.bf16.msra.mxu0 %v1175
      %1251 = vmatprep.subr.bf16.mxu0 0
      %1252 = vmatpush1.bf16.msra.mxu0 %v1174
      %1253 = vmatprep.subr.bf16.mxu0 0
      %1254 = vmatpush1.bf16.msra.mxu0 %v1173
      %1255 = vmatprep.subr.bf16.mxu0 0
      %1256 = vmatpush1.bf16.msra.mxu0 %v1172
      %1257 = vmatprep.subr.bf16.mxu0 0
      %1258 = vmatpush2.bf16.msra.mxu0 %v1187
      %1259 = vmatprep.subr.bf16.mxu0 0
      %1260 = vmatpush2.bf16.msra.mxu0 %v1186
      %1261 = vmatprep.subr.bf16.mxu0 0
      %1262 = vmatpush2.bf16.msra.mxu0 %v1185
      %1263 = vmatprep.subr.bf16.mxu0 0
      %1264 = vmatpush2.bf16.msra.mxu0 %v1184
      %1265 = vmatprep.subr.bf16.mxu0 0
      %1266 = vmatpush2.bf16.msra.mxu0 %v1183
      %1267 = vmatprep.subr.bf16.mxu0 0
      %1268 = vmatpush2.bf16.msra.mxu0 %v1182
      %1269 = vmatprep.subr.bf16.mxu0 0
      %1270 = vmatpush2.bf16.msra.mxu0 %v1181
      %1271 = vmatprep.subr.bf16.mxu0 0
      %1272 = vmatpush2.bf16.msra.mxu0 %v1180
      %1273 = vmatprep.mubr.bf16.mxu0 %v1025
      %1274 = vmatmul.mubr.bf16.gmra.mxu0 %v1024
      %v1275 = vpop.f32.mrf.mxu0
      %v1276 = vadd.f32 %v1098, %v1275
      %v1277 = vpop.f32.mrf.mxu0
      %v1278 = vpop.f32.mrf.mxu0
      %v1279 = vadd.f32 %v1098, %v1278
      %v1280 = vpop.f32.mrf.mxu0
      %1281 = vmatprep.mubr.bf16.mxu0 %v1028
      %1282 = vmatmul.mubr.bf16.gmra.mxu0 %v1027
      %v1283 = vpop.f32.mrf.mxu0
      %v1284 = vadd.f32 %v1098, %v1283
      %v1285 = vpop.f32.mrf.mxu0
      %v1286 = vpop.f32.mrf.mxu0
      %v1287 = vadd.f32 %v1098, %v1286
      %v1288 = vpop.f32.mrf.mxu0
      %1289 = vmatprep.mubr.bf16.mxu0 %v1031
      %1290 = vmatmul.mubr.bf16.gmra.mxu0 %v1030
      %v1291 = vpop.f32.mrf.mxu0
      %v1292 = vadd.f32 %v1098, %v1291
      %v1293 = vpop.f32.mrf.mxu0
      %v1294 = vpop.f32.mrf.mxu0
      %v1295 = vadd.f32 %v1098, %v1294
      %v1296 = vpop.f32.mrf.mxu0
      %1297 = vmatprep.mubr.bf16.mxu0 %v1034
      %1298 = vmatmul.mubr.bf16.gmra.mxu0 %v1033
      %v1299 = vpop.f32.mrf.mxu0
      %v1300 = vadd.f32 %v1098, %v1299
      %v1301 = vpop.f32.mrf.mxu0
      %v1302 = vpop.f32.mrf.mxu0
      %v1303 = vadd.f32 %v1098, %v1302
      %v1304 = vpop.f32.mrf.mxu0
      %1305 = vmatprep.mubr.bf16.mxu0 %v1037
      %1306 = vmatmul.mubr.bf16.gmra.mxu0 %v1036
      %v1307 = vpop.f32.mrf.mxu0
      %v1308 = vadd.f32 %v1098, %v1307
      %v1309 = vpop.f32.mrf.mxu0
      %v1310 = vpop.f32.mrf.mxu0
      %v1311 = vadd.f32 %v1098, %v1310
      %v1312 = vpop.f32.mrf.mxu0
      %1313 = vmatprep.mubr.bf16.mxu0 %v1040
      %1314 = vmatmul.mubr.bf16.gmra.mxu0 %v1039
      %v1315 = vpop.f32.mrf.mxu0
      %v1316 = vadd.f32 %v1098, %v1315
      %v1317 = vpop.f32.mrf.mxu0
      %v1318 = vpop.f32.mrf.mxu0
      %v1319 = vadd.f32 %v1098, %v1318
      %v1320 = vpop.f32.mrf.mxu0
      %1321 = vmatprep.mubr.bf16.mxu0 %v1043
      %1322 = vmatmul.mubr.bf16.gmra.mxu0 %v1042
      %v1323 = vpop.f32.mrf.mxu0
      %v1324 = vadd.f32 %v1098, %v1323
      %v1325 = vpop.f32.mrf.mxu0
      %v1326 = vpop.f32.mrf.mxu0
      %v1327 = vadd.f32 %v1098, %v1326
      %v1328 = vpop.f32.mrf.mxu0
      %1329 = vmatprep.mubr.bf16.mxu0 %v1046
      %1330 = vmatmul.mubr.bf16.gmra.mxu0 %v1045
      %v1331 = vpop.f32.mrf.mxu0
      %v1332 = vadd.f32 %v1098, %v1331
      %v1333 = vpop.f32.mrf.mxu0
      %v1334 = vpop.f32.mrf.mxu0
      %v1335 = vadd.f32 %v1098, %v1334
      %v1336 = vpop.f32.mrf.mxu0
      %1337 = vmatprep.mubr.bf16.mxu0 %v1049
      %1338 = vmatmul.mubr.bf16.gmra.mxu0 %v1048
      %v1339 = vpop.f32.mrf.mxu0
      %v1340 = vadd.f32 %v1098, %v1339
      %v1341 = vpop.f32.mrf.mxu0
      %v1342 = vpop.f32.mrf.mxu0
      %v1343 = vadd.f32 %v1098, %v1342
      %v1344 = vpop.f32.mrf.mxu0
      %1345 = vmatprep.mubr.bf16.mxu0 %v1052
      %1346 = vmatmul.mubr.bf16.gmra.mxu0 %v1051
      %v1347 = vpop.f32.mrf.mxu0
      %v1348 = vadd.f32 %v1098, %v1347
      %v1349 = vpop.f32.mrf.mxu0
      %v1350 = vpop.f32.mrf.mxu0
      %v1351 = vadd.f32 %v1098, %v1350
      %v1352 = vpop.f32.mrf.mxu0
      %1353 = vmatprep.mubr.bf16.mxu0 %v1055
      %1354 = vmatmul.mubr.bf16.gmra.mxu0 %v1054
      %v1355 = vpop.f32.mrf.mxu0
      %v1356 = vadd.f32 %v1098, %v1355
      %v1357 = vpop.f32.mrf.mxu0
      %v1358 = vpop.f32.mrf.mxu0
      %v1359 = vpop.f32.mrf.mxu0
      %1360 = vdwg.mxu0
      %1361 = vmatprep.subr.bf16.mxu0 0
      %1362 = vmatpush1.bf16.msra.mxu0 0
      %1363 = vmatprep.subr.bf16.mxu0 0
      %1364 = vmatpush1.bf16.msra.mxu0 0
      %1365 = vmatprep.subr.bf16.mxu0 0
      %1366 = vmatpush1.bf16.msra.mxu0 0
      %1367 = vmatprep.subr.bf16.mxu0 0
      %1368 = vmatpush1.bf16.msra.mxu0 0
      %1369 = vmatprep.subr.bf16.mxu0 0
      %1370 = vmatpush1.bf16.msra.mxu0 0
      %1371 = vmatprep.subr.bf16.mxu0 0
      %1372 = vmatpush1.bf16.msra.mxu0 0
      %1373 = vmatprep.subr.bf16.mxu0 0
      %1374 = vmatpush1.bf16.msra.mxu0 %v1189
      %1375 = vmatprep.subr.bf16.mxu0 0
      %1376 = vmatpush1.bf16.msra.mxu0 %v1188
      %1377 = vmatprep.subr.bf16.mxu0 0
      %1378 = vmatpush2.bf16.msra.mxu0 0
      %1379 = vmatprep.subr.bf16.mxu0 0
      %1380 = vmatpush2.bf16.msra.mxu0 0
      %1381 = vmatprep.subr.bf16.mxu0 0
      %1382 = vmatpush2.bf16.msra.mxu0 0
      %1383 = vmatprep.subr.bf16.mxu0 0
      %1384 = vmatpush2.bf16.msra.mxu0 0
      %1385 = vmatprep.subr.bf16.mxu0 0
      %1386 = vmatpush2.bf16.msra.mxu0 0
      %1387 = vmatprep.subr.bf16.mxu0 0
      %1388 = vmatpush2.bf16.msra.mxu0 0
      %1389 = vmatprep.subr.bf16.mxu0 0
      %1390 = vmatpush2.bf16.msra.mxu0 0
      %1391 = vmatprep.subr.bf16.mxu0 0
      %1392 = vmatpush2.bf16.msra.mxu0 0
      %1393 = vmatprep.mubr.bf16.mxu0 0
      %1394 = vmatmul.mubr.bf16.gmra.mxu0 %v1209
      %v1395 = vpop.f32.mrf.mxu0
      %v1396 = vadd.f32 %v1276, %v1395
      %v1397 = vpop.f32.mrf.mxu0
      %v1398 = vpop.f32.mrf.mxu0
      %v1399 = vadd.f32 %v1279, %v1398
      %v1400 = vpop.f32.mrf.mxu0
      %1401 = vmatprep.mubr.bf16.mxu0 0
      %1402 = vmatmul.mubr.bf16.gmra.mxu0 %v1212
      %v1403 = vpop.f32.mrf.mxu0
      %v1404 = vadd.f32 %v1284, %v1403
      %v1405 = vpop.f32.mrf.mxu0
      %v1406 = vpop.f32.mrf.mxu0
      %v1407 = vadd.f32 %v1287, %v1406
      %v1408 = vpop.f32.mrf.mxu0
      %1409 = vmatprep.mubr.bf16.mxu0 0
      %1410 = vmatmul.mubr.bf16.gmra.mxu0 %v1215
      %v1411 = vpop.f32.mrf.mxu0
      %v1412 = vadd.f32 %v1292, %v1411
      %v1413 = vpop.f32.mrf.mxu0
      %v1414 = vpop.f32.mrf.mxu0
      %v1415 = vadd.f32 %v1295, %v1414
      %v1416 = vpop.f32.mrf.mxu0
      %1417 = vmatprep.mubr.bf16.mxu0 0
      %1418 = vmatmul.mubr.bf16.gmra.mxu0 %v1218
      %v1419 = vpop.f32.mrf.mxu0
      %v1420 = vadd.f32 %v1300, %v1419
      %v1421 = vpop.f32.mrf.mxu0
      %v1422 = vpop.f32.mrf.mxu0
      %v1423 = vadd.f32 %v1303, %v1422
      %v1424 = vpop.f32.mrf.mxu0
      %1425 = vmatprep.mubr.bf16.mxu0 0
      %1426 = vmatmul.mubr.bf16.gmra.mxu0 %v1221
      %v1427 = vpop.f32.mrf.mxu0
      %v1428 = vadd.f32 %v1308, %v1427
      %v1429 = vpop.f32.mrf.mxu0
      %v1430 = vpop.f32.mrf.mxu0
      %v1431 = vadd.f32 %v1311, %v1430
      %v1432 = vpop.f32.mrf.mxu0
      %1433 = vmatprep.mubr.bf16.mxu0 0
      %1434 = vmatmul.mubr.bf16.gmra.mxu0 %v1224
      %v1435 = vpop.f32.mrf.mxu0
      %v1436 = vadd.f32 %v1316, %v1435
      %v1437 = vpop.f32.mrf.mxu0
      %v1438 = vpop.f32.mrf.mxu0
      %v1439 = vadd.f32 %v1319, %v1438
      %v1440 = vpop.f32.mrf.mxu0
      %1441 = vmatprep.mubr.bf16.mxu0 0
      %1442 = vmatmul.mubr.bf16.gmra.mxu0 %v1227
      %v1443 = vpop.f32.mrf.mxu0
      %v1444 = vadd.f32 %v1324, %v1443
      %v1445 = vpop.f32.mrf.mxu0
      %v1446 = vpop.f32.mrf.mxu0
      %v1447 = vadd.f32 %v1327, %v1446
      %v1448 = vpop.f32.mrf.mxu0
      %1449 = vmatprep.mubr.bf16.mxu0 0
      %1450 = vmatmul.mubr.bf16.gmra.mxu0 %v1230
      %v1451 = vpop.f32.mrf.mxu0
      %v1452 = vadd.f32 %v1332, %v1451
      %v1453 = vpop.f32.mrf.mxu0
      %v1454 = vpop.f32.mrf.mxu0
      %v1455 = vadd.f32 %v1335, %v1454
      %v1456 = vpop.f32.mrf.mxu0
      %1457 = vmatprep.mubr.bf16.mxu0 0
      %1458 = vmatmul.mubr.bf16.gmra.mxu0 %v1233
      %v1459 = vpop.f32.mrf.mxu0
      %v1460 = vadd.f32 %v1340, %v1459
      %v1461 = vpop.f32.mrf.mxu0
      %v1462 = vpop.f32.mrf.mxu0
      %v1463 = vadd.f32 %v1343, %v1462
      %v1464 = vpop.f32.mrf.mxu0
      %1465 = vmatprep.mubr.bf16.mxu0 0
      %1466 = vmatmul.mubr.bf16.gmra.mxu0 %v1236
      %v1467 = vpop.f32.mrf.mxu0
      %v1468 = vadd.f32 %v1348, %v1467
      %v1469 = vpop.f32.mrf.mxu0
      %v1470 = vpop.f32.mrf.mxu0
      %v1471 = vadd.f32 %v1351, %v1470
      %v1472 = vpop.f32.mrf.mxu0
      %1473 = vmatprep.mubr.bf16.mxu0 0
      %1474 = vmatmul.mubr.bf16.gmra.mxu0 %v1239
      %v1475 = vpop.f32.mrf.mxu0
      %v1476 = vadd.f32 %v1356, %v1475
      %v1477 = vpop.f32.mrf.mxu0
      %v1478 = vpop.f32.mrf.mxu0
      %v1479 = vpop.f32.mrf.mxu0
      %1480 = vdwg.mxu0
      %v1481 = vmax.f32 %v1396, 0.0
      %v1482 = vmax.f32 %v1399, 0.0
      %v1483 = vmax.f32 %v1404, 0.0
      %v1484 = vmax.f32 %v1407, 0.0
      %v1485 = vmax.f32 %v1412, 0.0
      %v1486 = vmax.f32 %v1415, 0.0
      %v1487 = vmax.f32 %v1420, 0.0
      %v1488 = vmax.f32 %v1423, 0.0
      %v1489 = vmax.f32 %v1428, 0.0
      %v1490 = vmax.f32 %v1431, 0.0
      %v1491 = vmax.f32 %v1436, 0.0
      %v1492 = vmax.f32 %v1439, 0.0
      %v1493 = vmax.f32 %v1444, 0.0
      %v1494 = vmax.f32 %v1447, 0.0
      %v1495 = vmax.f32 %v1452, 0.0
      %v1496 = vmax.f32 %v1455, 0.0
      %v1497 = vmax.f32 %v1460, 0.0
      %v1498 = vmax.f32 %v1463, 0.0
      %v1499 = vmax.f32 %v1468, 0.0
      %v1500 = vmax.f32 %v1471, 0.0
      %v1501 = vmax.f32 %v1476, 0.0
      %1502 = vst.msk [vmem:[%s170] sm:$0xff] %vm172, %v1481
      %1503 = vst.msk [vmem:[%s170 + $0x8] sm:$0xff] %vm172, %v1482
      %1504 = vst.msk [vmem:[%s170 + $0x10] sm:$0xff] %vm172, %v1483
      %1505 = vst.msk [vmem:[%s170 + $0x18] sm:$0xff] %vm172, %v1484
      %1506 = vst.msk [vmem:[%s170 + $0x20] sm:$0xff] %vm172, %v1485
      %1507 = vst.msk [vmem:[%s170 + $0x28] sm:$0xff] %vm172, %v1486
      %1508 = vst.msk [vmem:[%s170 + $0x30] sm:$0xff] %vm172, %v1487
      %1509 = vst.msk [vmem:[%s170 + $0x38] sm:$0xff] %vm172, %v1488
      %1510 = vst.msk [vmem:[%s170 + $0x40] sm:$0xff] %vm172, %v1489
      %1511 = vst.msk [vmem:[%s170 + $0x48] sm:$0xff] %vm172, %v1490
      %1512 = vst.msk [vmem:[%s170 + $0x50] sm:$0xff] %vm172, %v1491
      %1513 = vst.msk [vmem:[%s170 + $0x58] sm:$0xff] %vm172, %v1492
      %1514 = vst.msk [vmem:[%s170 + $0x60] sm:$0xff] %vm172, %v1493
      %1515 = vst.msk [vmem:[%s170 + $0x68] sm:$0xff] %vm172, %v1494
      %1516 = vst.msk [vmem:[%s170 + $0x70] sm:$0xff] %vm172, %v1495
      %1517 = vst.msk [vmem:[%s170 + $0x78] sm:$0xff] %vm172, %v1496
      %1518 = vst.msk [vmem:[%s170 + $0x80] sm:$0xff] %vm172, %v1497
      %1519 = vst.msk [vmem:[%s170 + $0x88] sm:$0xff] %vm172, %v1498
      %1520 = vst.msk [vmem:[%s170 + $0x90] sm:$0xff] %vm172, %v1499
      %1521 = vst.msk [vmem:[%s170 + $0x98] sm:$0xff] %vm172, %v1500
      %1522 = vst.msk [vmem:[%s170 + $0xa0] sm:$0xff] %vm172, %v1501
      %p1523 = scmp.lt.s32.totalorder %s14, 1
      %s1524 = scalar_select %p1523, %s14, 1
      %s1525 = smul.addr %s1524, 21
      %s1526 = smul.addr %s1525, 8
      %s1527 = scalar_lea.vmem %s3, %s1526
      // Predicated region
      $region33: #{pixel_decoder_forward.7} parent=31 // pred_check
        %p1528 = pneg %p100
      $region34: #{pixel_decoder_forward.7} parent=31 // pred_check_branch
        %1530 = sbr.rel (%p1528) target = $region36
      $region35: #{pixel_decoder_forward.7} parent=31 // pred_region
        _
      $region36: #{pixel_decoder_forward.7} parent=31 // pred_fallthru
        _
    $region32: #{pixel_decoder_forward.7} parent=5 // pred_fallthru
      _
    %p1531 = scmp.le.s32.totalorder 2, %s9
    // Predicated region
    $region37: #{pixel_decoder_forward.7} parent=5 // pred_check
      %p1532 = pneg %p1531
    $region38: #{pixel_decoder_forward.7} parent=5 // pred_check_branch
      %1534 = sbr.rel (%p1532) target = $region40
    $region39: #{pixel_decoder_forward.7} parent=5 // pred_region
      %s1535 = ssub.s32 %s9, 2
      // Predicated region
      $region41: #{pixel_decoder_forward.7} parent=39 // pred_check
        %p1536 = pneg %p106
      $region42: #{pixel_decoder_forward.7} parent=39 // pred_check_branch
        %1538 = sbr.rel (%p1536) target = $region44
      $region43: #{pixel_decoder_forward.7} parent=39 // pred_region
        %p1539 = scmp.lt.s32.totalorder %s15, 1
        %s1540 = scalar_select %p1539, %s15, 1
        %s1541 = smul.addr %s1540, 21
        %s1542 = smul.addr %s1541, 8
        %s1543 = scalar_lea.vmem %s3, %s1542
      $region44: #{pixel_decoder_forward.7} parent=39 // pred_fallthru
        _
    $region40: #{pixel_decoder_forward.7} parent=5 // pred_fallthru
      _
  $region6: #{pixel_decoder_forward.7} parent=0 // loop_footer
    %s13 = sadd.s32 1, %s9
  $region7: #{pixel_decoder_forward.7} parent=0 // loop_footer_branch
    %8 = sbr.rel target = $region3
  $region8: #{pixel_decoder_forward.7} parent=0 // loop_exit
    _

// kernel: pixel_decoder_forward.8
$region0: #{pixel_decoder_forward.8}
  #allocation0 [shape = 'u32[]', space=smem, size = 0x4, offset = 0x4, fixed_abs, tag = 'smem constant byte address 0x4 - core index']
  #allocation1 [shape = 'u32[144,128]{1,0:T(1,128)}', space=vmem, size = 0x12000, scoped, tag = 'internal scratch']
  #allocation2 [shape = 'f32[272,32]{1,0:T(8,128)}', space=vmem, size = 0x22000, scoped, tag = 'scratch operand']
  %s0 = inlined_call_operand.vmem [shape: f32[2,168,32], index: 0, kind: input, shape index: {}]
  %s1 = inlined_call_operand.vmem [shape: bf16[288,32], index: 1, kind: input, shape index: {}]
  %s2 = inlined_call_operand.vmem [shape: f32[1,32], index: 2, kind: input, shape index: {}]
  %s3 = inlined_call_operand.vmem [shape: f32[2,224,32], index: 3, kind: output, shape index: {}]
  %s4 = sld [smem:[#allocation0]]
  $region45: #{pixel_decoder_forward.8} parent=0
    _
  %s6 = ssub.s32 1, %s4
  %s7 = scalar_select 0, %s6, %s4
  loop: start=0, step=1, limit=4
  $region2: #{pixel_decoder_forward.8} parent=0 // loop_pre_header
    _
  $region3: #{pixel_decoder_forward.8} parent=0 // loop_header
    %s9 = sphi 0, %s13
    %p10 = scmp.ge.s32.totalorder %s9, 4
    %s19 = sphi 0, %s21
    %s22 = sphi 0, %s19
    %s23 = sphi 0, %s22
    %s39 = sphi 0, %s23
    %s43 = sphi 0, %s43
    %s45 = sphi 0, %s43
    %s46 = sphi 0, %s45
    %s60 = sphi 0, %s46
    %s64 = sphi 0, %s64
    %s66 = sphi 0, %s64
    %s67 = sphi 0, %s66
    %s81 = sphi 0, %s67
    %s87 = sphi 0, %s89
    %s90 = sphi 0, %s87
    %s91 = sphi 0, %s90
    %s107 = sphi 0, %s91
  $region4: #{pixel_decoder_forward.8} parent=0 // loop_header_branch
    %12 = sbr.rel (%p10) target = $region8
  $region5: #{pixel_decoder_forward.8} parent=0 // loop_body
    %s14 = ssub.s32 %s9, 1
    %s15 = ssub.s32 %s9, 2
    %s16 = sadd.s32 %s9, 1
    %s17 = ssub.s32 %s9, %s16
    %p18 = scmp.eq.s32.totalorder %s17, 0
    %s20 = sadd.s32 %s19, 1
    %s21 = scalar_select %p18, %s19, %s20
    %p24 = pneg %p18
    %p25 = scmp.eq.s32.totalorder %s9, 1
    %p26 = por %p24, %p25
    %p27 = scmp.ne.s32.totalorder %s19, %s22
    %p28 = scmp.eq.s32.totalorder %s9, 0
    %p29 = por %p27, %p28
    %p30 = scmp.ne.s32.totalorder %s19, %s22
    %p31 = scmp.eq.s32.totalorder %s14, 1
    %p32 = por %p30, %p31
    %p33 = scmp.ne.s32.totalorder %s22, %s23
    %p34 = scmp.eq.s32.totalorder %s14, 0
    %p35 = por %p33, %p34
    %p36 = scmp.ne.s32.totalorder %s22, %s23
    %p37 = scmp.eq.s32.totalorder %s15, 1
    %p38 = por %p36, %p37
    %p40 = scmp.ne.s32.totalorder %s23, %s39
    %p41 = scmp.eq.s32.totalorder %s15, 0
    %p42 = por %p40, %p41
    %s44 = sadd.s32 %s43, 1
    %p47 = scmp.eq.s32.totalorder %s9, 1
    %p48 = scmp.ne.s32.totalorder %s43, %s45
    %p49 = scmp.eq.s32.totalorder %s9, 0
    %p50 = por %p48, %p49
    %p51 = scmp.ne.s32.totalorder %s43, %s45
    %p52 = scmp.eq.s32.totalorder %s14, 1
    %p53 = por %p51, %p52
    %p54 = scmp.ne.s32.totalorder %s45, %s46
    %p55 = scmp.eq.s32.totalorder %s14, 0
    %p56 = por %p54, %p55
    %p57 = scmp.ne.s32.totalorder %s45, %s46
    %p58 = scmp.eq.s32.totalorder %s15, 1
    %p59 = por %p57, %p58
    %p61 = scmp.ne.s32.totalorder %s46, %s60
    %p62 = scmp.eq.s32.totalorder %s15, 0
    %p63 = por %p61, %p62
    %s65 = sadd.s32 %s64, 1
    %p68 = scmp.eq.s32.totalorder %s9, 1
    %p69 = scmp.ne.s32.totalorder %s64, %s66
    %p70 = scmp.eq.s32.totalorder %s9, 0
    %p71 = por %p69, %p70
    %p72 = scmp.ne.s32.totalorder %s64, %s66
    %p73 = scmp.eq.s32.totalorder %s14, 1
    %p74 = por %p72, %p73
    %p75 = scmp.ne.s32.totalorder %s66, %s67
    %p76 = scmp.eq.s32.totalorder %s14, 0
    %p77 = por %p75, %p76
    %p78 = scmp.ne.s32.totalorder %s66, %s67
    %p79 = scmp.eq.s32.totalorder %s15, 1
    %p80 = por %p78, %p79
    %p82 = scmp.ne.s32.totalorder %s67, %s81
    %p83 = scmp.eq.s32.totalorder %s15, 0
    %p84 = por %p82, %p83
    %s85 = ssub.s32 %s9, %s16
    %p86 = scmp.eq.s32.totalorder %s85, 0
    %s88 = sadd.s32 %s87, 1
    %s89 = scalar_select %p86, %s87, %s88
    %p92 = pneg %p86
    %p93 = scmp.eq.s32.totalorder %s9, 1
    %p94 = por %p92, %p93
    %p95 = scmp.ne.s32.totalorder %s87, %s90
    %p96 = scmp.eq.s32.totalorder %s9, 0
    %p97 = por %p95, %p96
    %p98 = scmp.ne.s32.totalorder %s87, %s90
    %p99 = scmp.eq.s32.totalorder %s14, 1
    %p100 = por %p98, %p99
    %p101 = scmp.ne.s32.totalorder %s90, %s91
    %p102 = scmp.eq.s32.totalorder %s14, 0
    %p103 = por %p101, %p102
    %p104 = scmp.ne.s32.totalorder %s90, %s91
    %p105 = scmp.eq.s32.totalorder %s15, 1
    %p106 = por %p104, %p105
    %p108 = scmp.ne.s32.totalorder %s91, %s107
    %p109 = scmp.eq.s32.totalorder %s15, 0
    %p110 = por %p108, %p109
    %p111 = scmp.le.s32.totalorder 1, %s9
    %p112 = scmp.lt.s32.totalorder %s9, 3
    %p113 = pnand %p111, %p112
    %p114 = pneg %p113
    // Predicated region
    $region9: #{pixel_decoder_forward.8} parent=5 // pred_check
      _
    $region10: #{pixel_decoder_forward.8} parent=5 // pred_check_branch
      %116 = sbr.rel (%p113) target = $region12
    $region11: #{pixel_decoder_forward.8} parent=5 // pred_region
      %s117 = ssub.s32 %s9, 1
      // Predicated region
      $region13: #{pixel_decoder_forward.8} parent=11 // pred_check
        %p118 = pneg %p56
      $region14: #{pixel_decoder_forward.8} parent=11 // pred_check_branch
        %120 = sbr.rel (%p118) target = $region16
      $region15: #{pixel_decoder_forward.8} parent=11 // pred_region
        _
      $region16: #{pixel_decoder_forward.8} parent=11 // pred_fallthru
        _
      // Predicated region
      $region17: #{pixel_decoder_forward.8} parent=11 // pred_check
        %p121 = pneg %p77
      $region18: #{pixel_decoder_forward.8} parent=11 // pred_check_branch
        %123 = sbr.rel (%p121) target = $region20
      $region19: #{pixel_decoder_forward.8} parent=11 // pred_region
        _
      $region20: #{pixel_decoder_forward.8} parent=11 // pred_fallthru
        _
    $region12: #{pixel_decoder_forward.8} parent=5 // pred_fallthru
      _
    %p124 = scmp.lt.s32.totalorder %s9, 2
    // Predicated region
    $region21: #{pixel_decoder_forward.8} parent=5 // pred_check
      %p125 = pneg %p124
    $region22: #{pixel_decoder_forward.8} parent=5 // pred_check_branch
      %127 = sbr.rel (%p125) target = $region24
    $region23: #{pixel_decoder_forward.8} parent=5 // pred_region
      // Predicated region
      $region25: #{pixel_decoder_forward.8} parent=23 // pred_check
        %p128 = pneg %p29
      $region26: #{pixel_decoder_forward.8} parent=23 // pred_check_branch
        %130 = sbr.rel (%p128) target = $region28
      $region27: #{pixel_decoder_forward.8} parent=23 // pred_region
        %p131 = scmp.lt.s32.totalorder %s9, 1
        %s132 = scalar_select %p131, %s9, 1
        %s133 = smul.addr %s132, 21
        %s134 = smul.addr %s133, 8
        %s135 = scalar_lea.vmem %s0, %s134
      $region28: #{pixel_decoder_forward.8} parent=23 // pred_fallthru
        _
    $region24: #{pixel_decoder_forward.8} parent=5 // pred_fallthru
      _
    %p136 = scmp.le.s32.totalorder 1, %s9
    %p137 = scmp.lt.s32.totalorder %s9, 3
    %p138 = pnand %p136, %p137
    %p139 = pneg %p138
    // Predicated region
    $region29: #{pixel_decoder_forward.8} parent=5 // pred_check
      _
    $region30: #{pixel_decoder_forward.8} parent=5 // pred_check_branch
      %141 = sbr.rel (%p138) target = $region32
    $region31: #{pixel_decoder_forward.8} parent=5 // pred_region
      %s142 = ssub.s32 %s9, 1
      %p143 = scmp.lt.s32.totalorder %s14, 1
      %s144 = scalar_select %p143, %s14, 1
      %s145 = smul.addr %s144, 21
      %s146 = smul.addr %s145, 8
      %s147 = scalar_lea.vmem %s0, %s146
      %p148 = pneg %p35
      %p149 = pneg %p32
      %p150 = pneg %p56
      %p151 = pneg %p53
      %p152 = pneg %p77
      %p153 = pneg %p74
      %p154 = pneg %p103
      %p155 = pneg %p100
      %p156 = scmp.lt.s32.totalorder %s14, 1
      %s157 = scalar_select %p156, %s14, 1
      %s158 = smul.addr %s157, 28
      %s159 = smul.addr %s158, 8
      %s160 = scalar_lea.vmem %s3, %s159
      %p161 = scmp.lt.s32.totalorder %s14, 1
      %s162 = scalar_select %p161, %s14, 1
      %s163 = smul.addr %s162, 21
      %s164 = smul.addr %s163, 8
      %s165 = scalar_lea.vmem %s0, %s164
      %p166 = scmp.lt.s32.totalorder %s14, 1
      %s167 = scalar_select %p166, %s14, 1
      %s168 = smul.addr %s167, 28
      %s169 = smul.addr %s168, 8
      %s170 = scalar_lea.vmem %s3, %s169
      %vm172 = vcmask 261120
      %173 = vst.msk [vmem:[#allocation2] sm:$0xff] %vm172, 0.0
      %174 = vst.msk [vmem:[#allocation2 + $0x8] sm:$0xff] %vm172, 0.0
      %175 = vst.msk [vmem:[#allocation2 + $0x10] sm:$0xff] %vm172, 0.0
      %176 = vst.msk [vmem:[#allocation2 + $0x18] sm:$0xff] %vm172, 0.0
      %177 = vst.msk [vmem:[#allocation2 + $0x20] sm:$0xff] %vm172, 0.0
      %178 = vst.msk [vmem:[#allocation2 + $0x28] sm:$0xff] %vm172, 0.0
      %179 = vst.msk [vmem:[#allocation2 + $0x30] sm:$0xff] %vm172, 0.0
      %180 = vst.msk [vmem:[#allocation2 + $0x38] sm:$0xff] %vm172, 0.0
      %181 = vst.msk [vmem:[#allocation2 + $0x40] sm:$0xff] %vm172, 0.0
      %182 = vst.msk [vmem:[#allocation2 + $0x48] sm:$0xff] %vm172, 0.0
      %183 = vst.msk [vmem:[#allocation2 + $0x50] sm:$0xff] %vm172, 0.0
      %184 = vst.msk [vmem:[#allocation2 + $0x58] sm:$0xff] %vm172, 0.0
      %185 = vst.msk [vmem:[#allocation2 + $0x60] sm:$0xff] %vm172, 0.0
      %186 = vst.msk [vmem:[#allocation2 + $0x68] sm:$0xff] %vm172, 0.0
      %187 = vst.msk [vmem:[#allocation2 + $0x70] sm:$0xff] %vm172, 0.0
      %188 = vst.msk [vmem:[#allocation2 + $0x78] sm:$0xff] %vm172, 0.0
      %189 = vst.msk [vmem:[#allocation2 + $0x80] sm:$0xff] %vm172, 0.0
      %190 = vst.msk [vmem:[#allocation2 + $0x88] sm:$0xff] %vm172, 0.0
      %191 = vst.msk [vmem:[#allocation2 + $0x90] sm:$0xff] %vm172, 0.0
      %192 = vst.msk [vmem:[#allocation2 + $0x98] sm:$0xff] %vm172, 0.0
      %193 = vst.msk [vmem:[#allocation2 + $0xa0] sm:$0xff] %vm172, 0.0
      %194 = vst.msk [vmem:[#allocation2 + $0xa8] sm:$0xff] %vm172, 0.0
      %195 = vst.msk [vmem:[#allocation2 + $0xb0] sm:$0xff] %vm172, 0.0
      %196 = vst.msk [vmem:[#allocation2 + $0xb8] sm:$0xff] %vm172, 0.0
      %197 = vst.msk [vmem:[#allocation2 + $0xc0] sm:$0xff] %vm172, 0.0
      %198 = vst.msk [vmem:[#allocation2 + $0xc8] sm:$0xff] %vm172, 0.0
      %199 = vst.msk [vmem:[#allocation2 + $0xd0] sm:$0xff] %vm172, 0.0
      %200 = vst.msk [vmem:[#allocation2 + $0xd8] sm:$0xff] %vm172, 0.0
      %201 = vst.msk [vmem:[#allocation2 + $0xe0] sm:$0xff] %vm172, 0.0
      %202 = vst.msk [vmem:[#allocation2 + $0xe8] sm:$0xff] %vm172, 0.0
      %203 = vst.msk [vmem:[#allocation2 + $0xf0] sm:$0xff] %vm172, 0.0
      %204 = vst.msk [vmem:[#allocation2 + $0xf8] sm:$0xff] %vm172, 0.0
      %205 = vst.msk [vmem:[#allocation2 + $0x100] sm:$0xff] %vm172, 0.0
      %206 = vst.msk [vmem:[#allocation2 + $0x108] sm:$0xff] %vm172, 0.0
      %v207 = vld [vmem:[%s165] sm:$0xff]
      %v208 = vld [vmem:[%s165 + $0x8] sm:$0xf]
      %209 = vst.msk [vmem:[#allocation2 + $0x22] sm:$0xff] %vm172, %v207
      %vm210 = vcmask 257024
      %211 = vst.msk [vmem:[#allocation2 + $0x2a] sm:$0xf] %vm210, %v208
      %v212 = vld [vmem:[%s165 + $0xe] sm:$0xff]
      %v213 = vld [vmem:[%s165 + $0x16] sm:$0xf]
      %214 = vst.msk [vmem:[#allocation2 + $0x32] sm:$0xff] %vm172, %v212
      %215 = vst.msk [vmem:[#allocation2 + $0x3a] sm:$0xf] %vm210, %v213
      %v216 = vld [vmem:[%s165 + $0x1c] sm:$0xff]
      %v217 = vld [vmem:[%s165 + $0x24] sm:$0xf]
      %218 = vst.msk [vmem:[#allocation2 + $0x42] sm:$0xff] %vm172, %v216
      %219 = vst.msk [vmem:[#allocation2 + $0x4a] sm:$0xf] %vm210, %v217
      %v220 = vld [vmem:[%s165 + $0x2a] sm:$0xff]
      %v221 = vld [vmem:[%s165 + $0x32] sm:$0xf]
      %222 = vst.msk [vmem:[#allocation2 + $0x52] sm:$0xff] %vm172, %v220
      %223 = vst.msk [vmem:[#allocation2 + $0x5a] sm:$0xf] %vm210, %v221
      %v224 = vld [vmem:[%s165 + $0x38] sm:$0xff]
      %v225 = vld [vmem:[%s165 + $0x40] sm:$0xf]
      %226 = vst.msk [vmem:[#allocation2 + $0x62] sm:$0xff] %vm172, %v224
      %227 = vst.msk [vmem:[#allocation2 + $0x6a] sm:$0xf] %vm210, %v225
      %v228 = vld [vmem:[%s165 + $0x46] sm:$0xff]
      %v229 = vld [vmem:[%s165 + $0x4e] sm:$0xf]
      %230 = vst.msk [vmem:[#allocation2 + $0x72] sm:$0xff] %vm172, %v228
      %231 = vst.msk [vmem:[#allocation2 + $0x7a] sm:$0xf] %vm210, %v229
      %v232 = vld [vmem:[%s165 + $0x54] sm:$0xff]
      %v233 = vld [vmem:[%s165 + $0x5c] sm:$0xf]
      %234 = vst.msk [vmem:[#allocation2 + $0x82] sm:$0xff] %vm172, %v232
      %235 = vst.msk [vmem:[#allocation2 + $0x8a] sm:$0xf] %vm210, %v233
      %v236 = vld [vmem:[%s165 + $0x62] sm:$0xff]
      %v237 = vld [vmem:[%s165 + $0x6a] sm:$0xf]
      %238 = vst.msk [vmem:[#allocation2 + $0x92] sm:$0xff] %vm172, %v236
      %239 = vst.msk [vmem:[#allocation2 + $0x9a] sm:$0xf] %vm210, %v237
      %v240 = vld [vmem:[%s165 + $0x70] sm:$0xff]
      %v241 = vld [vmem:[%s165 + $0x78] sm:$0xf]
      %242 = vst.msk [vmem:[#allocation2 + $0xa2] sm:$0xff] %vm172, %v240
      %243 = vst.msk [vmem:[#allocation2 + $0xaa] sm:$0xf] %vm210, %v241
      %v244 = vld [vmem:[%s165 + $0x7e] sm:$0xff]
      %v245 = vld [vmem:[%s165 + $0x86] sm:$0xf]
      %246 = vst.msk [vmem:[#allocation2 + $0xb2] sm:$0xff] %vm172, %v244
      %247 = vst.msk [vmem:[#allocation2 + $0xba] sm:$0xf] %vm210, %v245
      %v248 = vld [vmem:[%s165 + $0x8c] sm:$0xff]
      %v249 = vld [vmem:[%s165 + $0x94] sm:$0xf]
      %250 = vst.msk [vmem:[#allocation2 + $0xc2] sm:$0xff] %vm172, %v248
      %251 = vst.msk [vmem:[#allocation2 + $0xca] sm:$0xf] %vm210, %v249
      %v252 = vld [vmem:[%s165 + $0x9a] sm:$0xff]
      %v253 = vld [vmem:[%s165 + $0xa2] sm:$0xf]
      %254 = vst.msk [vmem:[#allocation2 + $0xd2] sm:$0xff] %vm172, %v252
      %255 = vst.msk [vmem:[#allocation2 + $0xda] sm:$0xf] %vm210, %v253
      %v256 = vld [vmem:[#allocation2] sm:$0xff]
      %v257 = vld [vmem:[#allocation2 + $0x8] sm:$0xff]
      %v258 = vld [vmem:[#allocation2 + $0x10] sm:$0xff]
      %v259 = vld [vmem:[#allocation2 + $0x18] sm:$0xff]
      %v260 = vld [vmem:[#allocation2 + $0x20] sm:$0xff]
      %v261 = vld [vmem:[#allocation2 + $0x28] sm:$0xff]
      %v262 = vld [vmem:[#allocation2 + $0x30] sm:$0xff]
      %v263 = vld [vmem:[#allocation2 + $0x38] sm:$0xff]
      %v264 = vld [vmem:[#allocation2 + $0x40] sm:$0xff]
      %v265 = vld [vmem:[#allocation2 + $0x48] sm:$0xff]
      %v266 = vld [vmem:[#allocation2 + $0x50] sm:$0xff]
      %v267 = vld [vmem:[#allocation2 + $0x58] sm:$0xff]
      %v268 = vld [vmem:[#allocation2 + $0x60] sm:$0xff]
      %v269 = vld [vmem:[#allocation2 + $0x68] sm:$0xff]
      %v270 = vld [vmem:[#allocation2 + $0x70] sm:$0xff]
      %v271 = vld [vmem:[#allocation2 + $0x78] sm:$0xff]
      %v272 = vld [vmem:[#allocation2 + $0x80] sm:$0xff]
      %v273 = vld [vmem:[#allocation2 + $0x88] sm:$0xff]
      %v274 = vld [vmem:[#allocation2 + $0x90] sm:$0xff]
      %v275 = vld [vmem:[#allocation2 + $0x98] sm:$0xff]
      %v276 = vld [vmem:[#allocation2 + $0xa0] sm:$0xff]
      %v277 = vld [vmem:[#allocation2 + $0xa8] sm:$0xff]
      %v278 = vld [vmem:[#allocation2 + $0xb0] sm:$0xff]
      %v279 = vld [vmem:[#allocation2 + $0xb8] sm:$0xff]
      %v280 = vld [vmem:[#allocation2 + $0xc0] sm:$0xff]
      %v281 = vld [vmem:[#allocation2 + $0xc8] sm:$0xff]
      %v282 = vld [vmem:[#allocation2 + $0xd0] sm:$0xff]
      %v283 = vld [vmem:[#allocation2 + $0xd8] sm:$0xff]
      %v284 = vld [vmem:[#allocation2 + $0x1] sm:$0xff]
      %v285 = vld [vmem:[#allocation2 + $0x9] sm:$0xff]
      %v286 = vld [vmem:[#allocation2 + $0x11] sm:$0xff]
      %v287 = vld [vmem:[#allocation2 + $0x19] sm:$0xff]
      %v288 = vld [vmem:[#allocation2 + $0x21] sm:$0xff]
      %v289 = vld [vmem:[#allocation2 + $0x29] sm:$0xff]
      %v290 = vld [vmem:[#allocation2 + $0x31] sm:$0xff]
      %v291 = vld [vmem:[#allocation2 + $0x39] sm:$0xff]
      %v292 = vld [vmem:[#allocation2 + $0x41] sm:$0xff]
      %v293 = vld [vmem:[#allocation2 + $0x49] sm:$0xff]
      %v294 = vld [vmem:[#allocation2 + $0x51] sm:$0xff]
      %v295 = vld [vmem:[#allocation2 + $0x59] sm:$0xff]
      %v296 = vld [vmem:[#allocation2 + $0x61] sm:$0xff]
      %v297 = vld [vmem:[#allocation2 + $0x69] sm:$0xff]
      %v298 = vld [vmem:[#allocation2 + $0x71] sm:$0xff]
      %v299 = vld [vmem:[#allocation2 + $0x79] sm:$0xff]
      %v300 = vld [vmem:[#allocation2 + $0x81] sm:$0xff]
      %v301 = vld [vmem:[#allocation2 + $0x89] sm:$0xff]
      %v302 = vld [vmem:[#allocation2 + $0x91] sm:$0xff]
      %v303 = vld [vmem:[#allocation2 + $0x99] sm:$0xff]
      %v304 = vld [vmem:[#allocation2 + $0xa1] sm:$0xff]
      %v305 = vld [vmem:[#allocation2 + $0xa9] sm:$0xff]
      %v306 = vld [vmem:[#allocation2 + $0xb1] sm:$0xff]
      %v307 = vld [vmem:[#allocation2 + $0xb9] sm:$0xff]
      %v308 = vld [vmem:[#allocation2 + $0xc1] sm:$0xff]
      %v309 = vld [vmem:[#allocation2 + $0xc9] sm:$0xff]
      %v310 = vld [vmem:[#allocation2 + $0xd1] sm:$0xff]
      %v311 = vld [vmem:[#allocation2 + $0xd9] sm:$0xff]
      %v312 = vld [vmem:[#allocation2 + $0x2] sm:$0xff]
      %v313 = vld [vmem:[#allocation2 + $0xa] sm:$0xff]
      %v314 = vld [vmem:[#allocation2 + $0x12] sm:$0xff]
      %v315 = vld [vmem:[#allocation2 + $0x1a] sm:$0xff]
      %v316 = vld [vmem:[#allocation2 + $0x22] sm:$0xff]
      %v317 = vld [vmem:[#allocation2 + $0x2a] sm:$0xff]
      %v318 = vld [vmem:[#allocation2 + $0x32] sm:$0xff]
      %v319 = vld [vmem:[#allocation2 + $0x3a] sm:$0xff]
      %v320 = vld [vmem:[#allocation2 + $0x42] sm:$0xff]
      %v321 = vld [vmem:[#allocation2 + $0x4a] sm:$0xff]
      %v322 = vld [vmem:[#allocation2 + $0x52] sm:$0xff]
      %v323 = vld [vmem:[#allocation2 + $0x5a] sm:$0xff]
      %v324 = vld [vmem:[#allocation2 + $0x62] sm:$0xff]
      %v325 = vld [vmem:[#allocation2 + $0x6a] sm:$0xff]
      %v326 = vld [vmem:[#allocation2 + $0x72] sm:$0xff]
      %v327 = vld [vmem:[#allocation2 + $0x7a] sm:$0xff]
      %v328 = vld [vmem:[#allocation2 + $0x82] sm:$0xff]
      %v329 = vld [vmem:[#allocation2 + $0x8a] sm:$0xff]
      %v330 = vld [vmem:[#allocation2 + $0x92] sm:$0xff]
      %v331 = vld [vmem:[#allocation2 + $0x9a] sm:$0xff]
      %v332 = vld [vmem:[#allocation2 + $0xa2] sm:$0xff]
      %v333 = vld [vmem:[#allocation2 + $0xaa] sm:$0xff]
      %v334 = vld [vmem:[#allocation2 + $0xb2] sm:$0xff]
      %v335 = vld [vmem:[#allocation2 + $0xba] sm:$0xff]
      %v336 = vld [vmem:[#allocation2 + $0xc2] sm:$0xff]
      %v337 = vld [vmem:[#allocation2 + $0xca] sm:$0xff]
      %v338 = vld [vmem:[#allocation2 + $0xd2] sm:$0xff]
      %v339 = vld [vmem:[#allocation2 + $0xda] sm:$0xff]
      %v340 = vld [vmem:[#allocation2 + $0xe0] sm:$0xff]
      %v341 = vld [vmem:[#allocation2 + $0xe8] sm:$0xff]
      %v342 = vld [vmem:[#allocation2 + $0xe1] sm:$0xff]
      %v343 = vld [vmem:[#allocation2 + $0xe9] sm:$0xff]
      %v344 = vld [vmem:[#allocation2 + $0xe2] sm:$0xff]
      %v345 = vld [vmem:[#allocation2 + $0xea] sm:$0xff]
      %v346 = vld [vmem:[#allocation2 + $0xf0] sm:$0xff]
      %v347 = vld [vmem:[#allocation2 + $0xf8] sm:$0xff]
      %v348 = vld [vmem:[#allocation2 + $0xf1] sm:$0xff]
      %v349 = vld [vmem:[#allocation2 + $0xf9] sm:$0xff]
      %v350 = vld [vmem:[#allocation2 + $0xf2] sm:$0xff]
      %v351 = vld [vmem:[#allocation2 + $0xfa] sm:$0xff]
      %380 = vrot.lane.b32.xlu0 %v284, 32
      %v381 = vpop.permute.xlu0 %380
      %382 = vrot.lane.b32.xlu0 %v285, 32
      %v383 = vpop.permute.xlu0 %382
      %384 = vrot.lane.b32.xlu0 %v286, 32
      %v385 = vpop.permute.xlu0 %384
      %386 = vrot.lane.b32.xlu0 %v287, 32
      %v387 = vpop.permute.xlu0 %386
      %388 = vrot.lane.b32.xlu0 %v288, 32
      %v389 = vpop.permute.xlu0 %388
      %390 = vrot.lane.b32.xlu0 %v289, 32
      %v391 = vpop.permute.xlu0 %390
      %392 = vrot.lane.b32.xlu0 %v290, 32
      %v393 = vpop.permute.xlu0 %392
      %394 = vrot.lane.b32.xlu0 %v291, 32
      %v395 = vpop.permute.xlu0 %394
      %396 = vrot.lane.b32.xlu0 %v292, 32
      %v397 = vpop.permute.xlu0 %396
      %398 = vrot.lane.b32.xlu0 %v293, 32
      %v399 = vpop.permute.xlu0 %398
      %400 = vrot.lane.b32.xlu0 %v294, 32
      %v401 = vpop.permute.xlu0 %400
      %402 = vrot.lane.b32.xlu0 %v295, 32
      %v403 = vpop.permute.xlu0 %402
      %404 = vrot.lane.b32.xlu0 %v296, 32
      %v405 = vpop.permute.xlu0 %404
      %406 = vrot.lane.b32.xlu0 %v297, 32
      %v407 = vpop.permute.xlu0 %406
      %408 = vrot.lane.b32.xlu0 %v298, 32
      %v409 = vpop.permute.xlu0 %408
      %410 = vrot.lane.b32.xlu0 %v299, 32
      %v411 = vpop.permute.xlu0 %410
      %412 = vrot.lane.b32.xlu0 %v300, 32
      %v413 = vpop.permute.xlu0 %412
      %414 = vrot.lane.b32.xlu0 %v301, 32
      %v415 = vpop.permute.xlu0 %414
      %416 = vrot.lane.b32.xlu0 %v302, 32
      %v417 = vpop.permute.xlu0 %416
      %418 = vrot.lane.b32.xlu0 %v303, 32
      %v419 = vpop.permute.xlu0 %418
      %420 = vrot.lane.b32.xlu0 %v304, 32
      %v421 = vpop.permute.xlu0 %420
      %422 = vrot.lane.b32.xlu0 %v305, 32
      %v423 = vpop.permute.xlu0 %422
      %424 = vrot.lane.b32.xlu0 %v306, 32
      %v425 = vpop.permute.xlu0 %424
      %426 = vrot.lane.b32.xlu0 %v307, 32
      %v427 = vpop.permute.xlu0 %426
      %428 = vrot.lane.b32.xlu0 %v308, 32
      %v429 = vpop.permute.xlu0 %428
      %430 = vrot.lane.b32.xlu0 %v309, 32
      %v431 = vpop.permute.xlu0 %430
      %432 = vrot.lane.b32.xlu0 %v310, 32
      %v433 = vpop.permute.xlu0 %432
      %434 = vrot.lane.b32.xlu0 %v311, 32
      %v435 = vpop.permute.xlu0 %434
      %492 = vrot.lane.b32.xlu0 %v312, 64
      %v493 = vpop.permute.xlu0 %492
      %494 = vrot.lane.b32.xlu0 %v313, 64
      %v495 = vpop.permute.xlu0 %494
      %496 = vrot.lane.b32.xlu0 %v314, 64
      %v497 = vpop.permute.xlu0 %496
      %498 = vrot.lane.b32.xlu0 %v315, 64
      %v499 = vpop.permute.xlu0 %498
      %500 = vrot.lane.b32.xlu0 %v316, 64
      %v501 = vpop.permute.xlu0 %500
      %502 = vrot.lane.b32.xlu0 %v317, 64
      %v503 = vpop.permute.xlu0 %502
      %504 = vrot.lane.b32.xlu0 %v318, 64
      %v505 = vpop.permute.xlu0 %504
      %506 = vrot.lane.b32.xlu0 %v319, 64
      %v507 = vpop.permute.xlu0 %506
      %508 = vrot.lane.b32.xlu0 %v320, 64
      %v509 = vpop.permute.xlu0 %508
      %510 = vrot.lane.b32.xlu0 %v321, 64
      %v511 = vpop.permute.xlu0 %510
      %512 = vrot.lane.b32.xlu0 %v322, 64
      %v513 = vpop.permute.xlu0 %512
      %514 = vrot.lane.b32.xlu0 %v323, 64
      %v515 = vpop.permute.xlu0 %514
      %516 = vrot.lane.b32.xlu0 %v324, 64
      %v517 = vpop.permute.xlu0 %516
      %518 = vrot.lane.b32.xlu0 %v325, 64
      %v519 = vpop.permute.xlu0 %518
      %520 = vrot.lane.b32.xlu0 %v326, 64
      %v521 = vpop.permute.xlu0 %520
      %522 = vrot.lane.b32.xlu0 %v327, 64
      %v523 = vpop.permute.xlu0 %522
      %524 = vrot.lane.b32.xlu0 %v328, 64
      %v525 = vpop.permute.xlu0 %524
      %526 = vrot.lane.b32.xlu0 %v329, 64
      %v527 = vpop.permute.xlu0 %526
      %528 = vrot.lane.b32.xlu0 %v330, 64
      %v529 = vpop.permute.xlu0 %528
      %530 = vrot.lane.b32.xlu0 %v331, 64
      %v531 = vpop.permute.xlu0 %530
      %532 = vrot.lane.b32.xlu0 %v332, 64
      %v533 = vpop.permute.xlu0 %532
      %534 = vrot.lane.b32.xlu0 %v333, 64
      %v535 = vpop.permute.xlu0 %534
      %536 = vrot.lane.b32.xlu0 %v334, 64
      %v537 = vpop.permute.xlu0 %536
      %538 = vrot.lane.b32.xlu0 %v335, 64
      %v539 = vpop.permute.xlu0 %538
      %540 = vrot.lane.b32.xlu0 %v336, 64
      %v541 = vpop.permute.xlu0 %540
      %542 = vrot.lane.b32.xlu0 %v337, 64
      %v543 = vpop.permute.xlu0 %542
      %544 = vrot.lane.b32.xlu0 %v338, 64
      %v545 = vpop.permute.xlu0 %544
      %546 = vrot.lane.b32.xlu0 %v339, 64
      %v547 = vpop.permute.xlu0 %546
      %604 = vrot.lane.b32.xlu0 %v258, 96
      %v605 = vpop.permute.xlu0 %604
      %606 = vrot.lane.b32.xlu0 %v259, 96
      %v607 = vpop.permute.xlu0 %606
      %608 = vrot.lane.b32.xlu0 %v260, 96
      %v609 = vpop.permute.xlu0 %608
      %610 = vrot.lane.b32.xlu0 %v261, 96
      %v611 = vpop.permute.xlu0 %610
      %612 = vrot.lane.b32.xlu0 %v262, 96
      %v613 = vpop.permute.xlu0 %612
      %614 = vrot.lane.b32.xlu0 %v263, 96
      %v615 = vpop.permute.xlu0 %614
      %616 = vrot.lane.b32.xlu0 %v264, 96
      %v617 = vpop.permute.xlu0 %616
      %618 = vrot.lane.b32.xlu0 %v265, 96
      %v619 = vpop.permute.xlu0 %618
      %620 = vrot.lane.b32.xlu0 %v266, 96
      %v621 = vpop.permute.xlu0 %620
      %622 = vrot.lane.b32.xlu0 %v267, 96
      %v623 = vpop.permute.xlu0 %622
      %624 = vrot.lane.b32.xlu0 %v268, 96
      %v625 = vpop.permute.xlu0 %624
      %626 = vrot.lane.b32.xlu0 %v269, 96
      %v627 = vpop.permute.xlu0 %626
      %628 = vrot.lane.b32.xlu0 %v270, 96
      %v629 = vpop.permute.xlu0 %628
      %630 = vrot.lane.b32.xlu0 %v271, 96
      %v631 = vpop.permute.xlu0 %630
      %632 = vrot.lane.b32.xlu0 %v272, 96
      %v633 = vpop.permute.xlu0 %632
      %634 = vrot.lane.b32.xlu0 %v273, 96
      %v635 = vpop.permute.xlu0 %634
      %636 = vrot.lane.b32.xlu0 %v274, 96
      %v637 = vpop.permute.xlu0 %636
      %638 = vrot.lane.b32.xlu0 %v275, 96
      %v639 = vpop.permute.xlu0 %638
      %640 = vrot.lane.b32.xlu0 %v276, 96
      %v641 = vpop.permute.xlu0 %640
      %642 = vrot.lane.b32.xlu0 %v277, 96
      %v643 = vpop.permute.xlu0 %642
      %644 = vrot.lane.b32.xlu0 %v278, 96
      %v645 = vpop.permute.xlu0 %644
      %646 = vrot.lane.b32.xlu0 %v279, 96
      %v647 = vpop.permute.xlu0 %646
      %648 = vrot.lane.b32.xlu0 %v280, 96
      %v649 = vpop.permute.xlu0 %648
      %650 = vrot.lane.b32.xlu0 %v281, 96
      %v651 = vpop.permute.xlu0 %650
      %652 = vrot.lane.b32.xlu0 %v282, 96
      %v653 = vpop.permute.xlu0 %652
      %654 = vrot.lane.b32.xlu0 %v283, 96
      %v655 = vpop.permute.xlu0 %654
      %656 = vrot.lane.b32.xlu0 %v340, 96
      %v657 = vpop.permute.xlu0 %656
      %658 = vrot.lane.b32.xlu0 %v341, 96
      %v659 = vpop.permute.xlu0 %658
      %690 = vrot.lane.b32.xlu0 %v314, 32
      %v691 = vpop.permute.xlu0 %690
      %692 = vrot.lane.b32.xlu0 %v315, 32
      %v693 = vpop.permute.xlu0 %692
      %694 = vrot.lane.b32.xlu0 %v316, 32
      %v695 = vpop.permute.xlu0 %694
      %696 = vrot.lane.b32.xlu0 %v317, 32
      %v697 = vpop.permute.xlu0 %696
      %698 = vrot.lane.b32.xlu0 %v318, 32
      %v699 = vpop.permute.xlu0 %698
      %700 = vrot.lane.b32.xlu0 %v319, 32
      %v701 = vpop.permute.xlu0 %700
      %702 = vrot.lane.b32.xlu0 %v320, 32
      %v703 = vpop.permute.xlu0 %702
      %704 = vrot.lane.b32.xlu0 %v321, 32
      %v705 = vpop.permute.xlu0 %704
      %706 = vrot.lane.b32.xlu0 %v322, 32
      %v707 = vpop.permute.xlu0 %706
      %708 = vrot.lane.b32.xlu0 %v323, 32
      %v709 = vpop.permute.xlu0 %708
      %710 = vrot.lane.b32.xlu0 %v324, 32
      %v711 = vpop.permute.xlu0 %710
      %712 = vrot.lane.b32.xlu0 %v325, 32
      %v713 = vpop.permute.xlu0 %712
      %714 = vrot.lane.b32.xlu0 %v326, 32
      %v715 = vpop.permute.xlu0 %714
      %716 = vrot.lane.b32.xlu0 %v327, 32
      %v717 = vpop.permute.xlu0 %716
      %718 = vrot.lane.b32.xlu0 %v328, 32
      %v719 = vpop.permute.xlu0 %718
      %720 = vrot.lane.b32.xlu0 %v329, 32
      %v721 = vpop.permute.xlu0 %720
      %722 = vrot.lane.b32.xlu0 %v330, 32
      %v723 = vpop.permute.xlu0 %722
      %724 = vrot.lane.b32.xlu0 %v331, 32
      %v725 = vpop.permute.xlu0 %724
      %726 = vrot.lane.b32.xlu0 %v332, 32
      %v727 = vpop.permute.xlu0 %726
      %728 = vrot.lane.b32.xlu0 %v333, 32
      %v729 = vpop.permute.xlu0 %728
      %730 = vrot.lane.b32.xlu0 %v334, 32
      %v731 = vpop.permute.xlu0 %730
      %732 = vrot.lane.b32.xlu0 %v335, 32
      %v733 = vpop.permute.xlu0 %732
      %734 = vrot.lane.b32.xlu0 %v336, 32
      %v735 = vpop.permute.xlu0 %734
      %736 = vrot.lane.b32.xlu0 %v337, 32
      %v737 = vpop.permute.xlu0 %736
      %738 = vrot.lane.b32.xlu0 %v338, 32
      %v739 = vpop.permute.xlu0 %738
      %740 = vrot.lane.b32.xlu0 %v339, 32
      %v741 = vpop.permute.xlu0 %740
      %742 = vrot.lane.b32.xlu0 %v344, 32
      %v743 = vpop.permute.xlu0 %742
      %744 = vrot.lane.b32.xlu0 %v345, 32
      %v745 = vpop.permute.xlu0 %744
      %776 = vrot.lane.b32.xlu0 %v260, 64
      %v777 = vpop.permute.xlu0 %776
      %778 = vrot.lane.b32.xlu0 %v261, 64
      %v779 = vpop.permute.xlu0 %778
      %780 = vrot.lane.b32.xlu0 %v262, 64
      %v781 = vpop.permute.xlu0 %780
      %782 = vrot.lane.b32.xlu0 %v263, 64
      %v783 = vpop.permute.xlu0 %782
      %784 = vrot.lane.b32.xlu0 %v264, 64
      %v785 = vpop.permute.xlu0 %784
      %786 = vrot.lane.b32.xlu0 %v265, 64
      %v787 = vpop.permute.xlu0 %786
      %788 = vrot.lane.b32.xlu0 %v266, 64
      %v789 = vpop.permute.xlu0 %788
      %790 = vrot.lane.b32.xlu0 %v267, 64
      %v791 = vpop.permute.xlu0 %790
      %792 = vrot.lane.b32.xlu0 %v268, 64
      %v793 = vpop.permute.xlu0 %792
      %794 = vrot.lane.b32.xlu0 %v269, 64
      %v795 = vpop.permute.xlu0 %794
      %796 = vrot.lane.b32.xlu0 %v270, 64
      %v797 = vpop.permute.xlu0 %796
      %798 = vrot.lane.b32.xlu0 %v271, 64
      %v799 = vpop.permute.xlu0 %798
      %800 = vrot.lane.b32.xlu0 %v272, 64
      %v801 = vpop.permute.xlu0 %800
      %802 = vrot.lane.b32.xlu0 %v273, 64
      %v803 = vpop.permute.xlu0 %802
      %804 = vrot.lane.b32.xlu0 %v274, 64
      %v805 = vpop.permute.xlu0 %804
      %806 = vrot.lane.b32.xlu0 %v275, 64
      %v807 = vpop.permute.xlu0 %806
      %808 = vrot.lane.b32.xlu0 %v276, 64
      %v809 = vpop.permute.xlu0 %808
      %810 = vrot.lane.b32.xlu0 %v277, 64
      %v811 = vpop.permute.xlu0 %810
      %812 = vrot.lane.b32.xlu0 %v278, 64
      %v813 = vpop.permute.xlu0 %812
      %814 = vrot.lane.b32.xlu0 %v279, 64
      %v815 = vpop.permute.xlu0 %814
      %816 = vrot.lane.b32.xlu0 %v280, 64
      %v817 = vpop.permute.xlu0 %816
      %818 = vrot.lane.b32.xlu0 %v281, 64
      %v819 = vpop.permute.xlu0 %818
      %820 = vrot.lane.b32.xlu0 %v282, 64
      %v821 = vpop.permute.xlu0 %820
      %822 = vrot.lane.b32.xlu0 %v283, 64
      %v823 = vpop.permute.xlu0 %822
      %824 = vrot.lane.b32.xlu0 %v340, 64
      %v825 = vpop.permute.xlu0 %824
      %826 = vrot.lane.b32.xlu0 %v341, 64
      %v827 = vpop.permute.xlu0 %826
      %828 = vrot.lane.b32.xlu0 %v346, 64
      %v829 = vpop.permute.xlu0 %828
      %830 = vrot.lane.b32.xlu0 %v347, 64
      %v831 = vpop.permute.xlu0 %830
      %864 = vrot.lane.b32.xlu0 %v288, 96
      %v865 = vpop.permute.xlu0 %864
      %866 = vrot.lane.b32.xlu0 %v289, 96
      %v867 = vpop.permute.xlu0 %866
      %868 = vrot.lane.b32.xlu0 %v290, 96
      %v869 = vpop.permute.xlu0 %868
      %870 = vrot.lane.b32.xlu0 %v291, 96
      %v871 = vpop.permute.xlu0 %870
      %872 = vrot.lane.b32.xlu0 %v292, 96
      %v873 = vpop.permute.xlu0 %872
      %874 = vrot.lane.b32.xlu0 %v293, 96
      %v875 = vpop.permute.xlu0 %874
      %876 = vrot.lane.b32.xlu0 %v294, 96
      %v877 = vpop.permute.xlu0 %876
      %878 = vrot.lane.b32.xlu0 %v295, 96
      %v879 = vpop.permute.xlu0 %878
      %880 = vrot.lane.b32.xlu0 %v296, 96
      %v881 = vpop.permute.xlu0 %880
      %882 = vrot.lane.b32.xlu0 %v297, 96
      %v883 = vpop.permute.xlu0 %882
      %884 = vrot.lane.b32.xlu0 %v298, 96
      %v885 = vpop.permute.xlu0 %884
      %886 = vrot.lane.b32.xlu0 %v299, 96
      %v887 = vpop.permute.xlu0 %886
      %888 = vrot.lane.b32.xlu0 %v300, 96
      %v889 = vpop.permute.xlu0 %888
      %890 = vrot.lane.b32.xlu0 %v301, 96
      %v891 = vpop.permute.xlu0 %890
      %892 = vrot.lane.b32.xlu0 %v302, 96
      %v893 = vpop.permute.xlu0 %892
      %894 = vrot.lane.b32.xlu0 %v303, 96
      %v895 = vpop.permute.xlu0 %894
      %896 = vrot.lane.b32.xlu0 %v304, 96
      %v897 = vpop.permute.xlu0 %896
      %898 = vrot.lane.b32.xlu0 %v305, 96
      %v899 = vpop.permute.xlu0 %898
      %900 = vrot.lane.b32.xlu0 %v306, 96
      %v901 = vpop.permute.xlu0 %900
      %902 = vrot.lane.b32.xlu0 %v307, 96
      %v903 = vpop.permute.xlu0 %902
      %904 = vrot.lane.b32.xlu0 %v308, 96
      %v905 = vpop.permute.xlu0 %904
      %906 = vrot.lane.b32.xlu0 %v309, 96
      %v907 = vpop.permute.xlu0 %906
      %908 = vrot.lane.b32.xlu0 %v310, 96
      %v909 = vpop.permute.xlu0 %908
      %910 = vrot.lane.b32.xlu0 %v311, 96
      %v911 = vpop.permute.xlu0 %910
      %912 = vrot.lane.b32.xlu0 %v342, 96
      %v913 = vpop.permute.xlu0 %912
      %914 = vrot.lane.b32.xlu0 %v343, 96
      %v915 = vpop.permute.xlu0 %914
      %916 = vrot.lane.b32.xlu0 %v348, 96
      %v917 = vpop.permute.xlu0 %916
      %918 = vrot.lane.b32.xlu0 %v349, 96
      %v919 = vpop.permute.xlu0 %918
      %v948 = vsel %vm172, %v256, %v381
      %v949 = vsel %vm172, %v257, %v383
      %v950 = vsel %vm172, %v258, %v385
      %v951 = vsel %vm172, %v259, %v387
      %v952 = vsel %vm172, %v260, %v389
      %v953 = vsel %vm172, %v261, %v391
      %v954 = vsel %vm172, %v262, %v393
      %v955 = vsel %vm172, %v263, %v395
      %v956 = vsel %vm172, %v264, %v397
      %v957 = vsel %vm172, %v265, %v399
      %v958 = vsel %vm172, %v266, %v401
      %v959 = vsel %vm172, %v267, %v403
      %v960 = vsel %vm172, %v268, %v405
      %v961 = vsel %vm172, %v269, %v407
      %v962 = vsel %vm172, %v270, %v409
      %v963 = vsel %vm172, %v271, %v411
      %v964 = vsel %vm172, %v272, %v413
      %v965 = vsel %vm172, %v273, %v415
      %v966 = vsel %vm172, %v274, %v417
      %v967 = vsel %vm172, %v275, %v419
      %v968 = vsel %vm172, %v276, %v421
      %v969 = vsel %vm172, %v277, %v423
      %v970 = vsel %vm172, %v278, %v425
      %v971 = vsel %vm172, %v279, %v427
      %v972 = vsel %vm172, %v280, %v429
      %v973 = vsel %vm172, %v281, %v431
      %v974 = vsel %vm172, %v282, %v433
      %v975 = vsel %vm172, %v283, %v435
      %vm976 = vcmask 523264
      %v977 = vsel %vm976, %v948, %v493
      %v978 = vsel %vm976, %v949, %v495
      %v979 = vsel %vm976, %v950, %v497
      %v980 = vsel %vm976, %v951, %v499
      %v981 = vsel %vm976, %v952, %v501
      %v982 = vsel %vm976, %v953, %v503
      %v983 = vsel %vm976, %v954, %v505
      %v984 = vsel %vm976, %v955, %v507
      %v985 = vsel %vm976, %v956, %v509
      %v986 = vsel %vm976, %v957, %v511
      %v987 = vsel %vm976, %v958, %v513
      %v988 = vsel %vm976, %v959, %v515
      %v989 = vsel %vm976, %v960, %v517
      %v990 = vsel %vm976, %v961, %v519
      %v991 = vsel %vm976, %v962, %v521
      %v992 = vsel %vm976, %v963, %v523
      %v993 = vsel %vm976, %v964, %v525
      %v994 = vsel %vm976, %v965, %v527
      %v995 = vsel %vm976, %v966, %v529
      %v996 = vsel %vm976, %v967, %v531
      %v997 = vsel %vm976, %v968, %v533
      %v998 = vsel %vm976, %v969, %v535
      %v999 = vsel %vm976, %v970, %v537
      %v1000 = vsel %vm976, %v971, %v539
      %v1001 = vsel %vm976, %v972, %v541
      %v1002 = vsel %vm976, %v973, %v543
      %v1003 = vsel %vm976, %v974, %v545
      %v1004 = vsel %vm976, %v975, %v547
      %vm1005 = vcmask 785408
      %v1006 = vsel %vm1005, %v977, %v605
      %v1007 = vsel %vm1005, %v978, %v607
      %v1008 = vsel %vm1005, %v979, %v609
      %v1009 = vsel %vm1005, %v980, %v611
      %v1010 = vsel %vm1005, %v981, %v613
      %v1011 = vsel %vm1005, %v982, %v615
      %v1012 = vsel %vm1005, %v983, %v617
      %v1013 = vsel %vm1005, %v984, %v619
      %v1014 = vsel %vm1005, %v985, %v621
      %v1015 = vsel %vm1005, %v986, %v623
      %v1016 = vsel %vm1005, %v987, %v625
      %v1017 = vsel %vm1005, %v988, %v627
      %v1018 = vsel %vm1005, %v989, %v629
      %v1019 = vsel %vm1005, %v990, %v631
      %v1020 = vsel %vm1005, %v991, %v633
      %v1021 = vsel %vm1005, %v992, %v635
      %v1022 = vsel %vm1005, %v993, %v637
      %v1023 = vsel %vm1005, %v994, %v639
      %v1024 = vsel %vm1005, %v995, %v641
      %v1025 = vsel %vm1005, %v996, %v643
      %v1026 = vsel %vm1005, %v997, %v645
      %v1027 = vsel %vm1005, %v998, %v647
      %v1028 = vsel %vm1005, %v999, %v649
      %v1029 = vsel %vm1005, %v1000, %v651
      %v1030 = vsel %vm1005, %v1001, %v653
      %v1031 = vsel %vm1005, %v1002, %v655
      %v1032 = vsel %vm1005, %v1003, %v657
      %v1033 = vsel %vm1005, %v1004, %v659
      %v1034 = vsel %vm172, %v286, %v691
      %v1035 = vsel %vm172, %v287, %v693
      %v1036 = vsel %vm172, %v288, %v695
      %v1037 = vsel %vm172, %v289, %v697
      %v1038 = vsel %vm172, %v290, %v699
      %v1039 = vsel %vm172, %v291, %v701
      %v1040 = vsel %vm172, %v292, %v703
      %v1041 = vsel %vm172, %v293, %v705
      %v1042 = vsel %vm172, %v294, %v707
      %v1043 = vsel %vm172, %v295, %v709
      %v1044 = vsel %vm172, %v296, %v711
      %v1045 = vsel %vm172, %v297, %v713
      %v1046 = vsel %vm172, %v298, %v715
      %v1047 = vsel %vm172, %v299, %v717
      %v1048 = vsel %vm172, %v300, %v719
      %v1049 = vsel %vm172, %v301, %v721
      %v1050 = vsel %vm172, %v302, %v723
      %v1051 = vsel %vm172, %v303, %v725
      %v1052 = vsel %vm172, %v304, %v727
      %v1053 = vsel %vm172, %v305, %v729
      %v1054 = vsel %vm172, %v306, %v731
      %v1055 = vsel %vm172, %v307, %v733
      %v1056 = vsel %vm172, %v308, %v735
      %v1057 = vsel %vm172, %v309, %v737
      %v1058 = vsel %vm172, %v310, %v739
      %v1059 = vsel %vm172, %v311, %v741
      %v1060 = vsel %vm172, %v342, %v743
      %v1061 = vsel %vm172, %v343, %v745
      %v1062 = vsel %vm976, %v1034, %v777
      %v1063 = vsel %vm976, %v1035, %v779
      %v1064 = vsel %vm976, %v1036, %v781
      %v1065 = vsel %vm976, %v1037, %v783
      %v1066 = vsel %vm976, %v1038, %v785
      %v1067 = vsel %vm976, %v1039, %v787
      %v1068 = vsel %vm976, %v1040, %v789
      %v1069 = vsel %vm976, %v1041, %v791
      %v1070 = vsel %vm976, %v1042, %v793
      %v1071 = vsel %vm976, %v1043, %v795
      %v1072 = vsel %vm976, %v1044, %v797
      %v1073 = vsel %vm976, %v1045, %v799
      %v1074 = vsel %vm976, %v1046, %v801
      %v1075 = vsel %vm976, %v1047, %v803
      %v1076 = vsel %vm976, %v1048, %v805
      %v1077 = vsel %vm976, %v1049, %v807
      %v1078 = vsel %vm976, %v1050, %v809
      %v1079 = vsel %vm976, %v1051, %v811
      %v1080 = vsel %vm976, %v1052, %v813
      %v1081 = vsel %vm976, %v1053, %v815
      %v1082 = vsel %vm976, %v1054, %v817
      %v1083 = vsel %vm976, %v1055, %v819
      %v1084 = vsel %vm976, %v1056, %v821
      %v1085 = vsel %vm976, %v1057, %v823
      %v1086 = vsel %vm976, %v1058, %v825
      %v1087 = vsel %vm976, %v1059, %v827
      %v1088 = vsel %vm976, %v1060, %v829
      %v1089 = vsel %vm976, %v1061, %v831
      %v1090 = vsel %vm1005, %v1062, %v865
      %v1091 = vsel %vm1005, %v1063, %v867
      %v1092 = vsel %vm1005, %v1064, %v869
      %v1093 = vsel %vm1005, %v1065, %v871
      %v1094 = vsel %vm1005, %v1066, %v873
      %v1095 = vsel %vm1005, %v1067, %v875
      %v1096 = vsel %vm1005, %v1068, %v877
      %v1097 = vsel %vm1005, %v1069, %v879
      %v1098 = vsel %vm1005, %v1070, %v881
      %v1099 = vsel %vm1005, %v1071, %v883
      %v1100 = vsel %vm1005, %v1072, %v885
      %v1101 = vsel %vm1005, %v1073, %v887
      %v1102 = vsel %vm1005, %v1074, %v889
      %v1103 = vsel %vm1005, %v1075, %v891
      %v1104 = vsel %vm1005, %v1076, %v893
      %v1105 = vsel %vm1005, %v1077, %v895
      %v1106 = vsel %vm1005, %v1078, %v897
      %v1107 = vsel %vm1005, %v1079, %v899
      %v1108 = vsel %vm1005, %v1080, %v901
      %v1109 = vsel %vm1005, %v1081, %v903
      %v1110 = vsel %vm1005, %v1082, %v905
      %v1111 = vsel %vm1005, %v1083, %v907
      %v1112 = vsel %vm1005, %v1084, %v909
      %v1113 = vsel %vm1005, %v1085, %v911
      %v1114 = vsel %vm1005, %v1086, %v913
      %v1115 = vsel %vm1005, %v1087, %v915
      %v1116 = vsel %vm1005, %v1088, %v917
      %v1117 = vsel %vm1005, %v1089, %v919
      %v1118 = vpack.c.bf16 %v1007, %v1006
      %v1119 = vpack.c.bf16 %v1091, %v1090
      %v1120 = vpack.c.bf16 %v317, %v316
      %v1121 = vpack.c.bf16 %v1009, %v1008
      %v1122 = vpack.c.bf16 %v1093, %v1092
      %v1123 = vpack.c.bf16 %v319, %v318
      %v1124 = vpack.c.bf16 %v1011, %v1010
      %v1125 = vpack.c.bf16 %v1095, %v1094
      %v1126 = vpack.c.bf16 %v321, %v320
      %v1127 = vpack.c.bf16 %v1013, %v1012
      %v1128 = vpack.c.bf16 %v1097, %v1096
      %v1129 = vpack.c.bf16 %v323, %v322
      %v1130 = vpack.c.bf16 %v1015, %v1014
      %v1131 = vpack.c.bf16 %v1099, %v1098
      %v1132 = vpack.c.bf16 %v325, %v324
      %v1133 = vpack.c.bf16 %v1017, %v1016
      %v1134 = vpack.c.bf16 %v1101, %v1100
      %v1135 = vpack.c.bf16 %v327, %v326
      %v1136 = vpack.c.bf16 %v1019, %v1018
      %v1137 = vpack.c.bf16 %v1103, %v1102
      %v1138 = vpack.c.bf16 %v329, %v328
      %v1139 = vpack.c.bf16 %v1021, %v1020
      %v1140 = vpack.c.bf16 %v1105, %v1104
      %v1141 = vpack.c.bf16 %v331, %v330
      %v1142 = vpack.c.bf16 %v1023, %v1022
      %v1143 = vpack.c.bf16 %v1107, %v1106
      %v1144 = vpack.c.bf16 %v333, %v332
      %v1145 = vpack.c.bf16 %v1025, %v1024
      %v1146 = vpack.c.bf16 %v1109, %v1108
      %v1147 = vpack.c.bf16 %v335, %v334
      %v1148 = vpack.c.bf16 %v1027, %v1026
      %v1149 = vpack.c.bf16 %v1111, %v1110
      %v1150 = vpack.c.bf16 %v337, %v336
      %v1151 = vpack.c.bf16 %v1029, %v1028
      %v1152 = vpack.c.bf16 %v1113, %v1112
      %v1153 = vpack.c.bf16 %v339, %v338
      %v1154 = vpack.c.bf16 %v1031, %v1030
      %v1155 = vpack.c.bf16 %v1115, %v1114
      %v1156 = vpack.c.bf16 %v345, %v344
      %v1157 = vpack.c.bf16 %v1033, %v1032
      %v1158 = vpack.c.bf16 %v1117, %v1116
      %v1159 = vpack.c.bf16 %v351, %v350
      %v1160 = vld [vmem:[%s1] sm:$0xf]
      %v1161 = vld [vmem:[%s1 + $0x4] sm:$0xf]
      %v1162 = vld [vmem:[%s1 + $0x8] sm:$0xf]
      %v1163 = vld [vmem:[%s1 + $0xc] sm:$0xf]
      %v1164 = vld [vmem:[%s1 + $0x10] sm:$0xf]
      %v1165 = vld [vmem:[%s1 + $0x14] sm:$0xf]
      %v1166 = vld [vmem:[%s1 + $0x18] sm:$0xf]
      %v1167 = vld [vmem:[%s1 + $0x1c] sm:$0xf]
      %v1168 = vld [vmem:[%s1 + $0x20] sm:$0xf]
      %v1169 = vld [vmem:[%s1 + $0x24] sm:$0xf]
      %v1170 = vld [vmem:[%s1 + $0x28] sm:$0xf]
      %v1171 = vld [vmem:[%s1 + $0x2c] sm:$0xf]
      %v1172 = vld [vmem:[%s1 + $0x30] sm:$0xf]
      %v1173 = vld [vmem:[%s1 + $0x34] sm:$0xf]
      %v1174 = vld [vmem:[%s1 + $0x38] sm:$0xf]
      %v1175 = vld [vmem:[%s1 + $0x3c] sm:$0xf]
      %v1176 = vld [vmem:[%s1 + $0x40] sm:$0xf]
      %v1177 = vld [vmem:[%s1 + $0x44] sm:$0xf]
      %v1178 = vld [vmem:[%s1 + $0x48] sm:$0xf]
      %v1179 = vld [vmem:[%s1 + $0x4c] sm:$0xf]
      %v1180 = vld [vmem:[%s1 + $0x50] sm:$0xf]
      %v1181 = vld [vmem:[%s1 + $0x54] sm:$0xf]
      %v1182 = vld [vmem:[%s1 + $0x58] sm:$0xf]
      %v1183 = vld [vmem:[%s1 + $0x5c] sm:$0xf]
      %v1184 = vld [vmem:[%s1 + $0x60] sm:$0xf]
      %v1185 = vld [vmem:[%s1 + $0x64] sm:$0xf]
      %v1186 = vld [vmem:[%s1 + $0x68] sm:$0xf]
      %v1187 = vld [vmem:[%s1 + $0x6c] sm:$0xf]
      %v1188 = vld [vmem:[%s1 + $0x70] sm:$0xf]
      %v1189 = vld [vmem:[%s1 + $0x74] sm:$0xf]
      %v1190 = vld [vmem:[%s1 + $0x78] sm:$0xf]
      %v1191 = vld [vmem:[%s1 + $0x7c] sm:$0xf]
      %v1192 = vld [vmem:[%s1 + $0x80] sm:$0xf]
      %v1193 = vld [vmem:[%s1 + $0x84] sm:$0xf]
      %v1194 = vld [vmem:[%s1 + $0x88] sm:$0xf]
      %v1195 = vld [vmem:[%s1 + $0x8c] sm:$0xf]
      %v1196 = vld [vmem:[%s2] sm:$0x1]
      %v1198 = vlaneseq
      %v1199 = vshrl.u32 %v1198, 7
      %v1200 = vsub.s32 0, %v1199
      %v1201 = vrot.slane %v1196, %v1200
      %v1239 = vunpack.c.l.b16 %v1160
      %v1240 = vunpack.c.l.b16 %v1161
      %v1241 = vunpack.c.l.b16 %v1162
      %v1242 = vunpack.c.l.b16 %v1163
      %v1243 = vunpack.c.l.b16 %v1164
      %v1244 = vunpack.c.l.b16 %v1165
      %v1245 = vunpack.c.l.b16 %v1166
      %v1246 = vunpack.c.l.b16 %v1167
      %v1247 = vunpack.c.l.b16 %v1168
      %v1248 = vunpack.c.l.b16 %v1169
      %v1249 = vunpack.c.l.b16 %v1170
      %v1250 = vunpack.c.l.b16 %v1171
      %v1251 = vunpack.c.l.b16 %v1172
      %v1252 = vunpack.c.l.b16 %v1173
      %v1253 = vunpack.c.l.b16 %v1174
      %v1254 = vunpack.c.l.b16 %v1175
      %v1255 = vunpack.c.l.b16 %v1176
      %v1256 = vunpack.c.l.b16 %v1177
      %v1257 = vunpack.c.l.b16 %v1178
      %v1258 = vunpack.c.l.b16 %v1179
      %v1259 = vunpack.c.l.b16 %v1180
      %v1260 = vunpack.c.l.b16 %v1181
      %v1261 = vunpack.c.l.b16 %v1182
      %v1262 = vunpack.c.l.b16 %v1183
      %v1263 = vunpack.c.l.b16 %v1184
      %v1264 = vunpack.c.l.b16 %v1185
      %v1265 = vunpack.c.l.b16 %v1186
      %v1266 = vunpack.c.l.b16 %v1187
      %v1267 = vunpack.c.l.b16 %v1188
      %v1268 = vunpack.c.l.b16 %v1189
      %v1269 = vunpack.c.l.b16 %v1190
      %v1270 = vunpack.c.l.b16 %v1191
      %v1271 = vunpack.c.l.b16 %v1192
      %v1272 = vunpack.c.l.b16 %v1193
      %v1273 = vunpack.c.l.b16 %v1194
      %v1274 = vunpack.c.l.b16 %v1195
      %v1275 = vpack.c.b16 %v1240, %v1239
      %v1276 = vpack.c.b16 %v1242, %v1241
      %v1277 = vpack.c.b16 %v1244, %v1243
      %v1278 = vpack.c.b16 %v1246, %v1245
      %v1279 = vpack.c.b16 %v1248, %v1247
      %v1280 = vpack.c.b16 %v1250, %v1249
      %v1281 = vpack.c.b16 %v1252, %v1251
      %v1282 = vpack.c.b16 %v1254, %v1253
      %v1283 = vpack.c.b16 %v1256, %v1255
      %v1284 = vpack.c.b16 %v1258, %v1257
      %v1285 = vpack.c.b16 %v1260, %v1259
      %v1286 = vpack.c.b16 %v1262, %v1261
      %v1287 = vpack.c.b16 %v1264, %v1263
      %v1288 = vpack.c.b16 %v1266, %v1265
      %v1289 = vpack.c.b16 %v1268, %v1267
      %v1290 = vpack.c.b16 %v1270, %v1269
      %v1291 = vpack.c.b16 %v1272, %v1271
      %v1292 = vpack.c.b16 %v1274, %v1273
      %v1312 = vsel %vm172, %v1120, 0
      %v1315 = vsel %vm172, %v1123, 0
      %v1318 = vsel %vm172, %v1126, 0
      %v1321 = vsel %vm172, %v1129, 0
      %v1324 = vsel %vm172, %v1132, 0
      %v1327 = vsel %vm172, %v1135, 0
      %v1330 = vsel %vm172, %v1138, 0
      %v1333 = vsel %vm172, %v1141, 0
      %v1336 = vsel %vm172, %v1144, 0
      %v1339 = vsel %vm172, %v1147, 0
      %v1342 = vsel %vm172, %v1150, 0
      %v1345 = vsel %vm172, %v1153, 0
      %v1348 = vsel %vm172, %v1156, 0
      %v1351 = vsel %vm172, %v1159, 0
      %1353 = vmatprep.subr.bf16.mxu0 0
      %1354 = vmatpush1.bf16.msra.mxu0 %v1282
      %1355 = vmatprep.subr.bf16.mxu0 0
      %1356 = vmatpush1.bf16.msra.mxu0 %v1281
      %1357 = vmatprep.subr.bf16.mxu0 0
      %1358 = vmatpush1.bf16.msra.mxu0 %v1280
      %1359 = vmatprep.subr.bf16.mxu0 0
      %1360 = vmatpush1.bf16.msra.mxu0 %v1279
      %1361 = vmatprep.subr.bf16.mxu0 0
      %1362 = vmatpush1.bf16.msra.mxu0 %v1278
      %1363 = vmatprep.subr.bf16.mxu0 0
      %1364 = vmatpush1.bf16.msra.mxu0 %v1277
      %1365 = vmatprep.subr.bf16.mxu0 0
      %1366 = vmatpush1.bf16.msra.mxu0 %v1276
      %1367 = vmatprep.subr.bf16.mxu0 0
      %1368 = vmatpush1.bf16.msra.mxu0 %v1275
      %1369 = vmatprep.subr.bf16.mxu0 0
      %1370 = vmatpush2.bf16.msra.mxu0 %v1290
      %1371 = vmatprep.subr.bf16.mxu0 0
      %1372 = vmatpush2.bf16.msra.mxu0 %v1289
      %1373 = vmatprep.subr.bf16.mxu0 0
      %1374 = vmatpush2.bf16.msra.mxu0 %v1288
      %1375 = vmatprep.subr.bf16.mxu0 0
      %1376 = vmatpush2.bf16.msra.mxu0 %v1287
      %1377 = vmatprep.subr.bf16.mxu0 0
      %1378 = vmatpush2.bf16.msra.mxu0 %v1286
      %1379 = vmatprep.subr.bf16.mxu0 0
      %1380 = vmatpush2.bf16.msra.mxu0 %v1285
      %1381 = vmatprep.subr.bf16.mxu0 0
      %1382 = vmatpush2.bf16.msra.mxu0 %v1284
      %1383 = vmatprep.subr.bf16.mxu0 0
      %1384 = vmatpush2.bf16.msra.mxu0 %v1283
      %1385 = vmatprep.mubr.bf16.mxu0 %v1119
      %1386 = vmatmul.mubr.bf16.gmra.mxu0 %v1118
      %v1387 = vpop.f32.mrf.mxu0
      %v1388 = vadd.f32 %v1201, %v1387
      %v1389 = vpop.f32.mrf.mxu0
      %v1390 = vpop.f32.mrf.mxu0
      %v1391 = vadd.f32 %v1201, %v1390
      %v1392 = vpop.f32.mrf.mxu0
      %1393 = vmatprep.mubr.bf16.mxu0 %v1122
      %1394 = vmatmul.mubr.bf16.gmra.mxu0 %v1121
      %v1395 = vpop.f32.mrf.mxu0
      %v1396 = vadd.f32 %v1201, %v1395
      %v1397 = vpop.f32.mrf.mxu0
      %v1398 = vpop.f32.mrf.mxu0
      %v1399 = vadd.f32 %v1201, %v1398
      %v1400 = vpop.f32.mrf.mxu0
      %1401 = vmatprep.mubr.bf16.mxu0 %v1125
      %1402 = vmatmul.mubr.bf16.gmra.mxu0 %v1124
      %v1403 = vpop.f32.mrf.mxu0
      %v1404 = vadd.f32 %v1201, %v1403
      %v1405 = vpop.f32.mrf.mxu0
      %v1406 = vpop.f32.mrf.mxu0
      %v1407 = vadd.f32 %v1201, %v1406
      %v1408 = vpop.f32.mrf.mxu0
      %1409 = vmatprep.mubr.bf16.mxu0 %v1128
      %1410 = vmatmul.mubr.bf16.gmra.mxu0 %v1127
      %v1411 = vpop.f32.mrf.mxu0
      %v1412 = vadd.f32 %v1201, %v1411
      %v1413 = vpop.f32.mrf.mxu0
      %v1414 = vpop.f32.mrf.mxu0
      %v1415 = vadd.f32 %v1201, %v1414
      %v1416 = vpop.f32.mrf.mxu0
      %1417 = vmatprep.mubr.bf16.mxu0 %v1131
      %1418 = vmatmul.mubr.bf16.gmra.mxu0 %v1130
      %v1419 = vpop.f32.mrf.mxu0
      %v1420 = vadd.f32 %v1201, %v1419
      %v1421 = vpop.f32.mrf.mxu0
      %v1422 = vpop.f32.mrf.mxu0
      %v1423 = vadd.f32 %v1201, %v1422
      %v1424 = vpop.f32.mrf.mxu0
      %1425 = vmatprep.mubr.bf16.mxu0 %v1134
      %1426 = vmatmul.mubr.bf16.gmra.mxu0 %v1133
      %v1427 = vpop.f32.mrf.mxu0
      %v1428 = vadd.f32 %v1201, %v1427
      %v1429 = vpop.f32.mrf.mxu0
      %v1430 = vpop.f32.mrf.mxu0
      %v1431 = vadd.f32 %v1201, %v1430
      %v1432 = vpop.f32.mrf.mxu0
      %1433 = vmatprep.mubr.bf16.mxu0 %v1137
      %1434 = vmatmul.mubr.bf16.gmra.mxu0 %v1136
      %v1435 = vpop.f32.mrf.mxu0
      %v1436 = vadd.f32 %v1201, %v1435
      %v1437 = vpop.f32.mrf.mxu0
      %v1438 = vpop.f32.mrf.mxu0
      %v1439 = vadd.f32 %v1201, %v1438
      %v1440 = vpop.f32.mrf.mxu0
      %1441 = vmatprep.mubr.bf16.mxu0 %v1140
      %1442 = vmatmul.mubr.bf16.gmra.mxu0 %v1139
      %v1443 = vpop.f32.mrf.mxu0
      %v1444 = vadd.f32 %v1201, %v1443
      %v1445 = vpop.f32.mrf.mxu0
      %v1446 = vpop.f32.mrf.mxu0
      %v1447 = vadd.f32 %v1201, %v1446
      %v1448 = vpop.f32.mrf.mxu0
      %1449 = vmatprep.mubr.bf16.mxu0 %v1143
      %1450 = vmatmul.mubr.bf16.gmra.mxu0 %v1142
      %v1451 = vpop.f32.mrf.mxu0
      %v1452 = vadd.f32 %v1201, %v1451
      %v1453 = vpop.f32.mrf.mxu0
      %v1454 = vpop.f32.mrf.mxu0
      %v1455 = vadd.f32 %v1201, %v1454
      %v1456 = vpop.f32.mrf.mxu0
      %1457 = vmatprep.mubr.bf16.mxu0 %v1146
      %1458 = vmatmul.mubr.bf16.gmra.mxu0 %v1145
      %v1459 = vpop.f32.mrf.mxu0
      %v1460 = vadd.f32 %v1201, %v1459
      %v1461 = vpop.f32.mrf.mxu0
      %v1462 = vpop.f32.mrf.mxu0
      %v1463 = vadd.f32 %v1201, %v1462
      %v1464 = vpop.f32.mrf.mxu0
      %1465 = vmatprep.mubr.bf16.mxu0 %v1149
      %1466 = vmatmul.mubr.bf16.gmra.mxu0 %v1148
      %v1467 = vpop.f32.mrf.mxu0
      %v1468 = vadd.f32 %v1201, %v1467
      %v1469 = vpop.f32.mrf.mxu0
      %v1470 = vpop.f32.mrf.mxu0
      %v1471 = vadd.f32 %v1201, %v1470
      %v1472 = vpop.f32.mrf.mxu0
      %1473 = vmatprep.mubr.bf16.mxu0 %v1152
      %1474 = vmatmul.mubr.bf16.gmra.mxu0 %v1151
      %v1475 = vpop.f32.mrf.mxu0
      %v1476 = vadd.f32 %v1201, %v1475
      %v1477 = vpop.f32.mrf.mxu0
      %v1478 = vpop.f32.mrf.mxu0
      %v1479 = vadd.f32 %v1201, %v1478
      %v1480 = vpop.f32.mrf.mxu0
      %1481 = vmatprep.mubr.bf16.mxu0 %v1155
      %1482 = vmatmul.mubr.bf16.gmra.mxu0 %v1154
      %v1483 = vpop.f32.mrf.mxu0
      %v1484 = vadd.f32 %v1201, %v1483
      %v1485 = vpop.f32.mrf.mxu0
      %v1486 = vpop.f32.mrf.mxu0
      %v1487 = vadd.f32 %v1201, %v1486
      %v1488 = vpop.f32.mrf.mxu0
      %1489 = vmatprep.mubr.bf16.mxu0 %v1158
      %1490 = vmatmul.mubr.bf16.gmra.mxu0 %v1157
      %v1491 = vpop.f32.mrf.mxu0
      %v1492 = vadd.f32 %v1201, %v1491
      %v1493 = vpop.f32.mrf.mxu0
      %v1494 = vpop.f32.mrf.mxu0
      %v1495 = vadd.f32 %v1201, %v1494
      %v1496 = vpop.f32.mrf.mxu0
      %1497 = vdwg.mxu0
      %1498 = vmatprep.subr.bf16.mxu0 0
      %1499 = vmatpush1.bf16.msra.mxu0 0
      %1500 = vmatprep.subr.bf16.mxu0 0
      %1501 = vmatpush1.bf16.msra.mxu0 0
      %1502 = vmatprep.subr.bf16.mxu0 0
      %1503 = vmatpush1.bf16.msra.mxu0 0
      %1504 = vmatprep.subr.bf16.mxu0 0
      %1505 = vmatpush1.bf16.msra.mxu0 0
      %1506 = vmatprep.subr.bf16.mxu0 0
      %1507 = vmatpush1.bf16.msra.mxu0 0
      %1508 = vmatprep.subr.bf16.mxu0 0
      %1509 = vmatpush1.bf16.msra.mxu0 0
      %1510 = vmatprep.subr.bf16.mxu0 0
      %1511 = vmatpush1.bf16.msra.mxu0 %v1292
      %1512 = vmatprep.subr.bf16.mxu0 0
      %1513 = vmatpush1.bf16.msra.mxu0 %v1291
      %1514 = vmatprep.subr.bf16.mxu0 0
      %1515 = vmatpush2.bf16.msra.mxu0 0
      %1516 = vmatprep.subr.bf16.mxu0 0
      %1517 = vmatpush2.bf16.msra.mxu0 0
      %1518 = vmatprep.subr.bf16.mxu0 0
      %1519 = vmatpush2.bf16.msra.mxu0 0
      %1520 = vmatprep.subr.bf16.mxu0 0
      %1521 = vmatpush2.bf16.msra.mxu0 0
      %1522 = vmatprep.subr.bf16.mxu0 0
      %1523 = vmatpush2.bf16.msra.mxu0 0
      %1524 = vmatprep.subr.bf16.mxu0 0
      %1525 = vmatpush2.bf16.msra.mxu0 0
      %1526 = vmatprep.subr.bf16.mxu0 0
      %1527 = vmatpush2.bf16.msra.mxu0 0
      %1528 = vmatprep.subr.bf16.mxu0 0
      %1529 = vmatpush2.bf16.msra.mxu0 0
      %1530 = vmatprep.mubr.bf16.mxu0 0
      %1531 = vmatmul.mubr.bf16.gmra.mxu0 %v1312
      %v1532 = vpop.f32.mrf.mxu0
      %v1533 = vadd.f32 %v1388, %v1532
      %v1534 = vpop.f32.mrf.mxu0
      %v1535 = vpop.f32.mrf.mxu0
      %v1536 = vadd.f32 %v1391, %v1535
      %v1537 = vpop.f32.mrf.mxu0
      %1538 = vmatprep.mubr.bf16.mxu0 0
      %1539 = vmatmul.mubr.bf16.gmra.mxu0 %v1315
      %v1540 = vpop.f32.mrf.mxu0
      %v1541 = vadd.f32 %v1396, %v1540
      %v1542 = vpop.f32.mrf.mxu0
      %v1543 = vpop.f32.mrf.mxu0
      %v1544 = vadd.f32 %v1399, %v1543
      %v1545 = vpop.f32.mrf.mxu0
      %1546 = vmatprep.mubr.bf16.mxu0 0
      %1547 = vmatmul.mubr.bf16.gmra.mxu0 %v1318
      %v1548 = vpop.f32.mrf.mxu0
      %v1549 = vadd.f32 %v1404, %v1548
      %v1550 = vpop.f32.mrf.mxu0
      %v1551 = vpop.f32.mrf.mxu0
      %v1552 = vadd.f32 %v1407, %v1551
      %v1553 = vpop.f32.mrf.mxu0
      %1554 = vmatprep.mubr.bf16.mxu0 0
      %1555 = vmatmul.mubr.bf16.gmra.mxu0 %v1321
      %v1556 = vpop.f32.mrf.mxu0
      %v1557 = vadd.f32 %v1412, %v1556
      %v1558 = vpop.f32.mrf.mxu0
      %v1559 = vpop.f32.mrf.mxu0
      %v1560 = vadd.f32 %v1415, %v1559
      %v1561 = vpop.f32.mrf.mxu0
      %1562 = vmatprep.mubr.bf16.mxu0 0
      %1563 = vmatmul.mubr.bf16.gmra.mxu0 %v1324
      %v1564 = vpop.f32.mrf.mxu0
      %v1565 = vadd.f32 %v1420, %v1564
      %v1566 = vpop.f32.mrf.mxu0
      %v1567 = vpop.f32.mrf.mxu0
      %v1568 = vadd.f32 %v1423, %v1567
      %v1569 = vpop.f32.mrf.mxu0
      %1570 = vmatprep.mubr.bf16.mxu0 0
      %1571 = vmatmul.mubr.bf16.gmra.mxu0 %v1327
      %v1572 = vpop.f32.mrf.mxu0
      %v1573 = vadd.f32 %v1428, %v1572
      %v1574 = vpop.f32.mrf.mxu0
      %v1575 = vpop.f32.mrf.mxu0
      %v1576 = vadd.f32 %v1431, %v1575
      %v1577 = vpop.f32.mrf.mxu0
      %1578 = vmatprep.mubr.bf16.mxu0 0
      %1579 = vmatmul.mubr.bf16.gmra.mxu0 %v1330
      %v1580 = vpop.f32.mrf.mxu0
      %v1581 = vadd.f32 %v1436, %v1580
      %v1582 = vpop.f32.mrf.mxu0
      %v1583 = vpop.f32.mrf.mxu0
      %v1584 = vadd.f32 %v1439, %v1583
      %v1585 = vpop.f32.mrf.mxu0
      %1586 = vmatprep.mubr.bf16.mxu0 0
      %1587 = vmatmul.mubr.bf16.gmra.mxu0 %v1333
      %v1588 = vpop.f32.mrf.mxu0
      %v1589 = vadd.f32 %v1444, %v1588
      %v1590 = vpop.f32.mrf.mxu0
      %v1591 = vpop.f32.mrf.mxu0
      %v1592 = vadd.f32 %v1447, %v1591
      %v1593 = vpop.f32.mrf.mxu0
      %1594 = vmatprep.mubr.bf16.mxu0 0
      %1595 = vmatmul.mubr.bf16.gmra.mxu0 %v1336
      %v1596 = vpop.f32.mrf.mxu0
      %v1597 = vadd.f32 %v1452, %v1596
      %v1598 = vpop.f32.mrf.mxu0
      %v1599 = vpop.f32.mrf.mxu0
      %v1600 = vadd.f32 %v1455, %v1599
      %v1601 = vpop.f32.mrf.mxu0
      %1602 = vmatprep.mubr.bf16.mxu0 0
      %1603 = vmatmul.mubr.bf16.gmra.mxu0 %v1339
      %v1604 = vpop.f32.mrf.mxu0
      %v1605 = vadd.f32 %v1460, %v1604
      %v1606 = vpop.f32.mrf.mxu0
      %v1607 = vpop.f32.mrf.mxu0
      %v1608 = vadd.f32 %v1463, %v1607
      %v1609 = vpop.f32.mrf.mxu0
      %1610 = vmatprep.mubr.bf16.mxu0 0
      %1611 = vmatmul.mubr.bf16.gmra.mxu0 %v1342
      %v1612 = vpop.f32.mrf.mxu0
      %v1613 = vadd.f32 %v1468, %v1612
      %v1614 = vpop.f32.mrf.mxu0
      %v1615 = vpop.f32.mrf.mxu0
      %v1616 = vadd.f32 %v1471, %v1615
      %v1617 = vpop.f32.mrf.mxu0
      %1618 = vmatprep.mubr.bf16.mxu0 0
      %1619 = vmatmul.mubr.bf16.gmra.mxu0 %v1345
      %v1620 = vpop.f32.mrf.mxu0
      %v1621 = vadd.f32 %v1476, %v1620
      %v1622 = vpop.f32.mrf.mxu0
      %v1623 = vpop.f32.mrf.mxu0
      %v1624 = vadd.f32 %v1479, %v1623
      %v1625 = vpop.f32.mrf.mxu0
      %1626 = vmatprep.mubr.bf16.mxu0 0
      %1627 = vmatmul.mubr.bf16.gmra.mxu0 %v1348
      %v1628 = vpop.f32.mrf.mxu0
      %v1629 = vadd.f32 %v1484, %v1628
      %v1630 = vpop.f32.mrf.mxu0
      %v1631 = vpop.f32.mrf.mxu0
      %v1632 = vadd.f32 %v1487, %v1631
      %v1633 = vpop.f32.mrf.mxu0
      %1634 = vmatprep.mubr.bf16.mxu0 0
      %1635 = vmatmul.mubr.bf16.gmra.mxu0 %v1351
      %v1636 = vpop.f32.mrf.mxu0
      %v1637 = vadd.f32 %v1492, %v1636
      %v1638 = vpop.f32.mrf.mxu0
      %v1639 = vpop.f32.mrf.mxu0
      %v1640 = vadd.f32 %v1495, %v1639
      %v1641 = vpop.f32.mrf.mxu0
      %1642 = vdwg.mxu0
      %v1643 = vmax.f32 %v1533, 0.0
      %v1644 = vmax.f32 %v1536, 0.0
      %v1645 = vmax.f32 %v1541, 0.0
      %v1646 = vmax.f32 %v1544, 0.0
      %v1647 = vmax.f32 %v1549, 0.0
      %v1648 = vmax.f32 %v1552, 0.0
      %v1649 = vmax.f32 %v1557, 0.0
      %v1650 = vmax.f32 %v1560, 0.0
      %v1651 = vmax.f32 %v1565, 0.0
      %v1652 = vmax.f32 %v1568, 0.0
      %v1653 = vmax.f32 %v1573, 0.0
      %v1654 = vmax.f32 %v1576, 0.0
      %v1655 = vmax.f32 %v1581, 0.0
      %v1656 = vmax.f32 %v1584, 0.0
      %v1657 = vmax.f32 %v1589, 0.0
      %v1658 = vmax.f32 %v1592, 0.0
      %v1659 = vmax.f32 %v1597, 0.0
      %v1660 = vmax.f32 %v1600, 0.0
      %v1661 = vmax.f32 %v1605, 0.0
      %v1662 = vmax.f32 %v1608, 0.0
      %v1663 = vmax.f32 %v1613, 0.0
      %v1664 = vmax.f32 %v1616, 0.0
      %v1665 = vmax.f32 %v1621, 0.0
      %v1666 = vmax.f32 %v1624, 0.0
      %v1667 = vmax.f32 %v1629, 0.0
      %v1668 = vmax.f32 %v1632, 0.0
      %v1669 = vmax.f32 %v1637, 0.0
      %v1670 = vmax.f32 %v1640, 0.0
      %1671 = vst.msk [vmem:[%s170] sm:$0xff] %vm172, %v1643
      %1672 = vst.msk [vmem:[%s170 + $0x8] sm:$0xff] %vm172, %v1644
      %1673 = vst.msk [vmem:[%s170 + $0x10] sm:$0xff] %vm172, %v1645
      %1674 = vst.msk [vmem:[%s170 + $0x18] sm:$0xff] %vm172, %v1646
      %1675 = vst.msk [vmem:[%s170 + $0x20] sm:$0xff] %vm172, %v1647
      %1676 = vst.msk [vmem:[%s170 + $0x28] sm:$0xff] %vm172, %v1648
      %1677 = vst.msk [vmem:[%s170 + $0x30] sm:$0xff] %vm172, %v1649
      %1678 = vst.msk [vmem:[%s170 + $0x38] sm:$0xff] %vm172, %v1650
      %1679 = vst.msk [vmem:[%s170 + $0x40] sm:$0xff] %vm172, %v1651
      %1680 = vst.msk [vmem:[%s170 + $0x48] sm:$0xff] %vm172, %v1652
      %1681 = vst.msk [vmem:[%s170 + $0x50] sm:$0xff] %vm172, %v1653
      %1682 = vst.msk [vmem:[%s170 + $0x58] sm:$0xff] %vm172, %v1654
      %1683 = vst.msk [vmem:[%s170 + $0x60] sm:$0xff] %vm172, %v1655
      %1684 = vst.msk [vmem:[%s170 + $0x68] sm:$0xff] %vm172, %v1656
      %1685 = vst.msk [vmem:[%s170 + $0x70] sm:$0xff] %vm172, %v1657
      %1686 = vst.msk [vmem:[%s170 + $0x78] sm:$0xff] %vm172, %v1658
      %1687 = vst.msk [vmem:[%s170 + $0x80] sm:$0xff] %vm172, %v1659
      %1688 = vst.msk [vmem:[%s170 + $0x88] sm:$0xff] %vm172, %v1660
      %1689 = vst.msk [vmem:[%s170 + $0x90] sm:$0xff] %vm172, %v1661
      %1690 = vst.msk [vmem:[%s170 + $0x98] sm:$0xff] %vm172, %v1662
      %1691 = vst.msk [vmem:[%s170 + $0xa0] sm:$0xff] %vm172, %v1663
      %1692 = vst.msk [vmem:[%s170 + $0xa8] sm:$0xff] %vm172, %v1664
      %1693 = vst.msk [vmem:[%s170 + $0xb0] sm:$0xff] %vm172, %v1665
      %1694 = vst.msk [vmem:[%s170 + $0xb8] sm:$0xff] %vm172, %v1666
      %1695 = vst.msk [vmem:[%s170 + $0xc0] sm:$0xff] %vm172, %v1667
      %1696 = vst.msk [vmem:[%s170 + $0xc8] sm:$0xff] %vm172, %v1668
      %1697 = vst.msk [vmem:[%s170 + $0xd0] sm:$0xff] %vm172, %v1669
      %1698 = vst.msk [vmem:[%s170 + $0xd8] sm:$0xff] %vm172, %v1670
      %p1699 = scmp.lt.s32.totalorder %s14, 1
      %s1700 = scalar_select %p1699, %s14, 1
      %s1701 = smul.addr %s1700, 28
      %s1702 = smul.addr %s1701, 8
      %s1703 = scalar_lea.vmem %s3, %s1702
      // Predicated region
      $region33: #{pixel_decoder_forward.8} parent=31 // pred_check
        %p1704 = pneg %p100
      $region34: #{pixel_decoder_forward.8} parent=31 // pred_check_branch
        %1706 = sbr.rel (%p1704) target = $region36
      $region35: #{pixel_decoder_forward.8} parent=31 // pred_region
        _
      $region36: #{pixel_decoder_forward.8} parent=31 // pred_fallthru
        _
    $region32: #{pixel_decoder_forward.8} parent=5 // pred_fallthru
      _
    %p1707 = scmp.le.s32.totalorder 2, %s9
    // Predicated region
    $region37: #{pixel_decoder_forward.8} parent=5 // pred_check
      %p1708 = pneg %p1707
    $region38: #{pixel_decoder_forward.8} parent=5 // pred_check_branch
      %1710 = sbr.rel (%p1708) target = $region40
    $region39: #{pixel_decoder_forward.8} parent=5 // pred_region
      %s1711 = ssub.s32 %s9, 2
      // Predicated region
      $region41: #{pixel_decoder_forward.8} parent=39 // pred_check
        %p1712 = pneg %p106
      $region42: #{pixel_decoder_forward.8} parent=39 // pred_check_branch
        %1714 = sbr.rel (%p1712) target = $region44
      $region43: #{pixel_decoder_forward.8} parent=39 // pred_region
        %p1715 = scmp.lt.s32.totalorder %s15, 1
        %s1716 = scalar_select %p1715, %s15, 1
        %s1717 = smul.addr %s1716, 28
        %s1718 = smul.addr %s1717, 8
        %s1719 = scalar_lea.vmem %s3, %s1718
      $region44: #{pixel_decoder_forward.8} parent=39 // pred_fallthru
        _
    $region40: #{pixel_decoder_forward.8} parent=5 // pred_fallthru
      _
  $region6: #{pixel_decoder_forward.8} parent=0 // loop_footer
    %s13 = sadd.s32 1, %s9
  $region7: #{pixel_decoder_forward.8} parent=0 // loop_footer_branch
    %8 = sbr.rel target = $region3
  $region8: #{pixel_decoder_forward.8} parent=0 // loop_exit
    _

// kernel: pixel_decoder_forward.9
$region0: #{pixel_decoder_forward.9}
  #allocation0 [shape = 'u32[]', space=smem, size = 0x4, offset = 0x4, fixed_abs, tag = 'smem constant byte address 0x4 - core index']
  #allocation1 [shape = 'u32[144,128]{1,0:T(1,128)}', space=vmem, size = 0x12000, scoped, tag = 'internal scratch']
  #allocation2 [shape = 'f32[272,32]{1,0:T(8,128)}', space=vmem, size = 0x22000, scoped, tag = 'scratch operand']
  %s0 = inlined_call_operand.vmem [shape: f32[2,224,32], index: 0, kind: input, shape index: {}]
  %s1 = inlined_call_operand.vmem [shape: bf16[128,4], index: 1, kind: input, shape index: {}]
  %s2 = inlined_call_operand.vmem [shape: f32[1,4], index: 2, kind: input, shape index: {}]
  %s3 = inlined_call_operand.vmem [shape: f32[2,240,4], index: 3, kind: output, shape index: {}]
  %s4 = sld [smem:[#allocation0]]
  $region45: #{pixel_decoder_forward.9} parent=0
    _
  %s6 = ssub.s32 1, %s4
  %s7 = scalar_select 0, %s6, %s4
  loop: start=0, step=1, limit=4
  $region2: #{pixel_decoder_forward.9} parent=0 // loop_pre_header
    _
  $region3: #{pixel_decoder_forward.9} parent=0 // loop_header
    %s9 = sphi 0, %s13
    %p10 = scmp.ge.s32.totalorder %s9, 4
    %s19 = sphi 0, %s21
    %s22 = sphi 0, %s19
    %s23 = sphi 0, %s22
    %s39 = sphi 0, %s23
    %s43 = sphi 0, %s43
    %s45 = sphi 0, %s43
    %s46 = sphi 0, %s45
    %s60 = sphi 0, %s46
    %s64 = sphi 0, %s64
    %s66 = sphi 0, %s64
    %s67 = sphi 0, %s66
    %s81 = sphi 0, %s67
    %s87 = sphi 0, %s89
    %s90 = sphi 0, %s87
    %s91 = sphi 0, %s90
    %s107 = sphi 0, %s91
  $region4: #{pixel_decoder_forward.9} parent=0 // loop_header_branch
    %12 = sbr.rel (%p10) target = $region8
  $region5: #{pixel_decoder_forward.9} parent=0 // loop_body
    %s14 = ssub.s32 %s9, 1
    %s15 = ssub.s32 %s9, 2
    %s16 = sadd.s32 %s9, 1
    %s17 = ssub.s32 %s9, %s16
    %p18 = scmp.eq.s32.totalorder %s17, 0
    %s20 = sadd.s32 %s19, 1
    %s21 = scalar_select %p18, %s19, %s20
    %p24 = pneg %p18
    %p25 = scmp.eq.s32.totalorder %s9, 1
    %p26 = por %p24, %p25
    %p27 = scmp.ne.s32.totalorder %s19, %s22
    %p28 = scmp.eq.s32.totalorder %s9, 0
    %p29 = por %p27, %p28
    %p30 = scmp.ne.s32.totalorder %s19, %s22
    %p31 = scmp.eq.s32.totalorder %s14, 1
    %p32 = por %p30, %p31
    %p33 = scmp.ne.s32.totalorder %s22, %s23
    %p34 = scmp.eq.s32.totalorder %s14, 0
    %p35 = por %p33, %p34
    %p36 = scmp.ne.s32.totalorder %s22, %s23
    %p37 = scmp.eq.s32.totalorder %s15, 1
    %p38 = por %p36, %p37
    %p40 = scmp.ne.s32.totalorder %s23, %s39
    %p41 = scmp.eq.s32.totalorder %s15, 0
    %p42 = por %p40, %p41
    %s44 = sadd.s32 %s43, 1
    %p47 = scmp.eq.s32.totalorder %s9, 1
    %p48 = scmp.ne.s32.totalorder %s43, %s45
    %p49 = scmp.eq.s32.totalorder %s9, 0
    %p50 = por %p48, %p49
    %p51 = scmp.ne.s32.totalorder %s43, %s45
    %p52 = scmp.eq.s32.totalorder %s14, 1
    %p53 = por %p51, %p52
    %p54 = scmp.ne.s32.totalorder %s45, %s46
    %p55 = scmp.eq.s32.totalorder %s14, 0
    %p56 = por %p54, %p55
    %p57 = scmp.ne.s32.totalorder %s45, %s46
    %p58 = scmp.eq.s32.totalorder %s15, 1
    %p59 = por %p57, %p58
    %p61 = scmp.ne.s32.totalorder %s46, %s60
    %p62 = scmp.eq.s32.totalorder %s15, 0
    %p63 = por %p61, %p62
    %s65 = sadd.s32 %s64, 1
    %p68 = scmp.eq.s32.totalorder %s9, 1
    %p69 = scmp.ne.s32.totalorder %s64, %s66
    %p70 = scmp.eq.s32.totalorder %s9, 0
    %p71 = por %p69, %p70
    %p72 = scmp.ne.s32.totalorder %s64, %s66
    %p73 = scmp.eq.s32.totalorder %s14, 1
    %p74 = por %p72, %p73
    %p75 = scmp.ne.s32.totalorder %s66, %s67
    %p76 = scmp.eq.s32.totalorder %s14, 0
    %p77 = por %p75, %p76
    %p78 = scmp.ne.s32.totalorder %s66, %s67
    %p79 = scmp.eq.s32.totalorder %s15, 1
    %p80 = por %p78, %p79
    %p82 = scmp.ne.s32.totalorder %s67, %s81
    %p83 = scmp.eq.s32.totalorder %s15, 0
    %p84 = por %p82, %p83
    %s85 = ssub.s32 %s9, %s16
    %p86 = scmp.eq.s32.totalorder %s85, 0
    %s88 = sadd.s32 %s87, 1
    %s89 = scalar_select %p86, %s87, %s88
    %p92 = pneg %p86
    %p93 = scmp.eq.s32.totalorder %s9, 1
    %p94 = por %p92, %p93
    %p95 = scmp.ne.s32.totalorder %s87, %s90
    %p96 = scmp.eq.s32.totalorder %s9, 0
    %p97 = por %p95, %p96
    %p98 = scmp.ne.s32.totalorder %s87, %s90
    %p99 = scmp.eq.s32.totalorder %s14, 1
    %p100 = por %p98, %p99
    %p101 = scmp.ne.s32.totalorder %s90, %s91
    %p102 = scmp.eq.s32.totalorder %s14, 0
    %p103 = por %p101, %p102
    %p104 = scmp.ne.s32.totalorder %s90, %s91
    %p105 = scmp.eq.s32.totalorder %s15, 1
    %p106 = por %p104, %p105
    %p108 = scmp.ne.s32.totalorder %s91, %s107
    %p109 = scmp.eq.s32.totalorder %s15, 0
    %p110 = por %p108, %p109
    %p111 = scmp.le.s32.totalorder 1, %s9
    %p112 = scmp.lt.s32.totalorder %s9, 3
    %p113 = pnand %p111, %p112
    %p114 = pneg %p113
    // Predicated region
    $region9: #{pixel_decoder_forward.9} parent=5 // pred_check
      _
    $region10: #{pixel_decoder_forward.9} parent=5 // pred_check_branch
      %116 = sbr.rel (%p113) target = $region12
    $region11: #{pixel_decoder_forward.9} parent=5 // pred_region
      %s117 = ssub.s32 %s9, 1
      // Predicated region
      $region13: #{pixel_decoder_forward.9} parent=11 // pred_check
        %p118 = pneg %p56
      $region14: #{pixel_decoder_forward.9} parent=11 // pred_check_branch
        %120 = sbr.rel (%p118) target = $region16
      $region15: #{pixel_decoder_forward.9} parent=11 // pred_region
        _
      $region16: #{pixel_decoder_forward.9} parent=11 // pred_fallthru
        _
      // Predicated region
      $region17: #{pixel_decoder_forward.9} parent=11 // pred_check
        %p121 = pneg %p77
      $region18: #{pixel_decoder_forward.9} parent=11 // pred_check_branch
        %123 = sbr.rel (%p121) target = $region20
      $region19: #{pixel_decoder_forward.9} parent=11 // pred_region
        _
      $region20: #{pixel_decoder_forward.9} parent=11 // pred_fallthru
        _
    $region12: #{pixel_decoder_forward.9} parent=5 // pred_fallthru
      _
    %p124 = scmp.lt.s32.totalorder %s9, 2
    // Predicated region
    $region21: #{pixel_decoder_forward.9} parent=5 // pred_check
      %p125 = pneg %p124
    $region22: #{pixel_decoder_forward.9} parent=5 // pred_check_branch
      %127 = sbr.rel (%p125) target = $region24
    $region23: #{pixel_decoder_forward.9} parent=5 // pred_region
      // Predicated region
      $region25: #{pixel_decoder_forward.9} parent=23 // pred_check
        %p128 = pneg %p29
      $region26: #{pixel_decoder_forward.9} parent=23 // pred_check_branch
        %130 = sbr.rel (%p128) target = $region28
      $region27: #{pixel_decoder_forward.9} parent=23 // pred_region
        %p131 = scmp.lt.s32.totalorder %s9, 1
        %s132 = scalar_select %p131, %s9, 1
        %s133 = smul.addr %s132, 28
        %s134 = smul.addr %s133, 8
        %s135 = scalar_lea.vmem %s0, %s134
      $region28: #{pixel_decoder_forward.9} parent=23 // pred_fallthru
        _
    $region24: #{pixel_decoder_forward.9} parent=5 // pred_fallthru
      _
    %p136 = scmp.le.s32.totalorder 1, %s9
    %p137 = scmp.lt.s32.totalorder %s9, 3
    %p138 = pnand %p136, %p137
    %p139 = pneg %p138
    // Predicated region
    $region29: #{pixel_decoder_forward.9} parent=5 // pred_check
      _
    $region30: #{pixel_decoder_forward.9} parent=5 // pred_check_branch
      %141 = sbr.rel (%p138) target = $region32
    $region31: #{pixel_decoder_forward.9} parent=5 // pred_region
      %s142 = ssub.s32 %s9, 1
      %p143 = scmp.lt.s32.totalorder %s14, 1
      %s144 = scalar_select %p143, %s14, 1
      %s145 = smul.addr %s144, 28
      %s146 = smul.addr %s145, 8
      %s147 = scalar_lea.vmem %s0, %s146
      %p148 = pneg %p35
      %p149 = pneg %p32
      %p150 = pneg %p56
      %p151 = pneg %p53
      %p152 = pneg %p77
      %p153 = pneg %p74
      %p154 = pneg %p103
      %p155 = pneg %p100
      %p156 = scmp.lt.s32.totalorder %s14, 1
      %s157 = scalar_select %p156, %s14, 1
      %s158 = smul.addr %s157, 30
      %s159 = smul.addr %s158, 8
      %s160 = scalar_lea.vmem %s3, %s159
      %p161 = scmp.lt.s32.totalorder %s14, 1
      %s162 = scalar_select %p161, %s14, 1
      %s163 = smul.addr %s162, 28
      %s164 = smul.addr %s163, 8
      %s165 = scalar_lea.vmem %s0, %s164
      %p166 = scmp.lt.s32.totalorder %s14, 1
      %s167 = scalar_select %p166, %s14, 1
      %s168 = smul.addr %s167, 30
      %s169 = smul.addr %s168, 8
      %s170 = scalar_lea.vmem %s3, %s169
      %vm172 = vcmask 261120
      %173 = vst.msk [vmem:[#allocation2] sm:$0xff] %vm172, 0.0
      %174 = vst.msk [vmem:[#allocation2 + $0x8] sm:$0xff] %vm172, 0.0
      %175 = vst.msk [vmem:[#allocation2 + $0x10] sm:$0xff] %vm172, 0.0
      %176 = vst.msk [vmem:[#allocation2 + $0x18] sm:$0xff] %vm172, 0.0
      %177 = vst.msk [vmem:[#allocation2 + $0x20] sm:$0xff] %vm172, 0.0
      %178 = vst.msk [vmem:[#allocation2 + $0x28] sm:$0xff] %vm172, 0.0
      %179 = vst.msk [vmem:[#allocation2 + $0x30] sm:$0xff] %vm172, 0.0
      %180 = vst.msk [vmem:[#allocation2 + $0x38] sm:$0xff] %vm172, 0.0
      %181 = vst.msk [vmem:[#allocation2 + $0x40] sm:$0xff] %vm172, 0.0
      %182 = vst.msk [vmem:[#allocation2 + $0x48] sm:$0xff] %vm172, 0.0
      %183 = vst.msk [vmem:[#allocation2 + $0x50] sm:$0xff] %vm172, 0.0
      %184 = vst.msk [vmem:[#allocation2 + $0x58] sm:$0xff] %vm172, 0.0
      %185 = vst.msk [vmem:[#allocation2 + $0x60] sm:$0xff] %vm172, 0.0
      %186 = vst.msk [vmem:[#allocation2 + $0x68] sm:$0xff] %vm172, 0.0
      %187 = vst.msk [vmem:[#allocation2 + $0x70] sm:$0xff] %vm172, 0.0
      %188 = vst.msk [vmem:[#allocation2 + $0x78] sm:$0xff] %vm172, 0.0
      %189 = vst.msk [vmem:[#allocation2 + $0x80] sm:$0xff] %vm172, 0.0
      %190 = vst.msk [vmem:[#allocation2 + $0x88] sm:$0xff] %vm172, 0.0
      %191 = vst.msk [vmem:[#allocation2 + $0x90] sm:$0xff] %vm172, 0.0
      %192 = vst.msk [vmem:[#allocation2 + $0x98] sm:$0xff] %vm172, 0.0
      %193 = vst.msk [vmem:[#allocation2 + $0xa0] sm:$0xff] %vm172, 0.0
      %194 = vst.msk [vmem:[#allocation2 + $0xa8] sm:$0xff] %vm172, 0.0
      %195 = vst.msk [vmem:[#allocation2 + $0xb0] sm:$0xff] %vm172, 0.0
      %196 = vst.msk [vmem:[#allocation2 + $0xb8] sm:$0xff] %vm172, 0.0
      %197 = vst.msk [vmem:[#allocation2 + $0xc0] sm:$0xff] %vm172, 0.0
      %198 = vst.msk [vmem:[#allocation2 + $0xc8] sm:$0xff] %vm172, 0.0
      %199 = vst.msk [vmem:[#allocation2 + $0xd0] sm:$0xff] %vm172, 0.0
      %200 = vst.msk [vmem:[#allocation2 + $0xd8] sm:$0xff] %vm172, 0.0
      %201 = vst.msk [vmem:[#allocation2 + $0xe0] sm:$0xff] %vm172, 0.0
      %202 = vst.msk [vmem:[#allocation2 + $0xe8] sm:$0xff] %vm172, 0.0
      %203 = vst.msk [vmem:[#allocation2 + $0xf0] sm:$0xff] %vm172, 0.0
      %204 = vst.msk [vmem:[#allocation2 + $0xf8] sm:$0xff] %vm172, 0.0
      %205 = vst.msk [vmem:[#allocation2 + $0x100] sm:$0xff] %vm172, 0.0
      %206 = vst.msk [vmem:[#allocation2 + $0x108] sm:$0xff] %vm172, 0.0
      %v207 = vld [vmem:[%s165] sm:$0xff]
      %v208 = vld [vmem:[%s165 + $0x8] sm:$0x3f]
      %209 = vst.msk [vmem:[#allocation2 + $0x11] sm:$0xff] %vm172, %v207
      %vm210 = vcmask 259072
      %211 = vst.msk [vmem:[#allocation2 + $0x19] sm:$0x3f] %vm210, %v208
      %v212 = vld [vmem:[%s165 + $0x10] sm:$0xff]
      %v213 = vld [vmem:[%s165 + $0x18] sm:$0x3f]
      %214 = vst.msk [vmem:[#allocation2 + $0x21] sm:$0xff] %vm172, %v212
      %215 = vst.msk [vmem:[#allocation2 + $0x29] sm:$0x3f] %vm210, %v213
      %v216 = vld [vmem:[%s165 + $0x20] sm:$0xff]
      %v217 = vld [vmem:[%s165 + $0x28] sm:$0x3f]
      %218 = vst.msk [vmem:[#allocation2 + $0x31] sm:$0xff] %vm172, %v216
      %219 = vst.msk [vmem:[#allocation2 + $0x39] sm:$0x3f] %vm210, %v217
      %v220 = vld [vmem:[%s165 + $0x30] sm:$0xff]
      %v221 = vld [vmem:[%s165 + $0x38] sm:$0x3f]
      %222 = vst.msk [vmem:[#allocation2 + $0x41] sm:$0xff] %vm172, %v220
      %223 = vst.msk [vmem:[#allocation2 + $0x49] sm:$0x3f] %vm210, %v221
      %v224 = vld [vmem:[%s165 + $0x40] sm:$0xff]
      %v225 = vld [vmem:[%s165 + $0x48] sm:$0x3f]
      %226 = vst.msk [vmem:[#allocation2 + $0x51] sm:$0xff] %vm172, %v224
      %227 = vst.msk [vmem:[#allocation2 + $0x59] sm:$0x3f] %vm210, %v225
      %v228 = vld [vmem:[%s165 + $0x50] sm:$0xff]
      %v229 = vld [vmem:[%s165 + $0x58] sm:$0x3f]
      %230 = vst.msk [vmem:[#allocation2 + $0x61] sm:$0xff] %vm172, %v228
      %231 = vst.msk [vmem:[#allocation2 + $0x69] sm:$0x3f] %vm210, %v229
      %v232 = vld [vmem:[%s165 + $0x60] sm:$0xff]
      %v233 = vld [vmem:[%s165 + $0x68] sm:$0x3f]
      %234 = vst.msk [vmem:[#allocation2 + $0x71] sm:$0xff] %vm172, %v232
      %235 = vst.msk [vmem:[#allocation2 + $0x79] sm:$0x3f] %vm210, %v233
      %v236 = vld [vmem:[%s165 + $0x70] sm:$0xff]
      %v237 = vld [vmem:[%s165 + $0x78] sm:$0x3f]
      %238 = vst.msk [vmem:[#allocation2 + $0x81] sm:$0xff] %vm172, %v236
      %239 = vst.msk [vmem:[#allocation2 + $0x89] sm:$0x3f] %vm210, %v237
      %v240 = vld [vmem:[%s165 + $0x80] sm:$0xff]
      %v241 = vld [vmem:[%s165 + $0x88] sm:$0x3f]
      %242 = vst.msk [vmem:[#allocation2 + $0x91] sm:$0xff] %vm172, %v240
      %243 = vst.msk [vmem:[#allocation2 + $0x99] sm:$0x3f] %vm210, %v241
      %v244 = vld [vmem:[%s165 + $0x90] sm:$0xff]
      %v245 = vld [vmem:[%s165 + $0x98] sm:$0x3f]
      %246 = vst.msk [vmem:[#allocation2 + $0xa1] sm:$0xff] %vm172, %v244
      %247 = vst.msk [vmem:[#allocation2 + $0xa9] sm:$0x3f] %vm210, %v245
      %v248 = vld [vmem:[%s165 + $0xa0] sm:$0xff]
      %v249 = vld [vmem:[%s165 + $0xa8] sm:$0x3f]
      %250 = vst.msk [vmem:[#allocation2 + $0xb1] sm:$0xff] %vm172, %v248
      %251 = vst.msk [vmem:[#allocation2 + $0xb9] sm:$0x3f] %vm210, %v249
      %v252 = vld [vmem:[%s165 + $0xb0] sm:$0xff]
      %v253 = vld [vmem:[%s165 + $0xb8] sm:$0x3f]
      %254 = vst.msk [vmem:[#allocation2 + $0xc1] sm:$0xff] %vm172, %v252
      %255 = vst.msk [vmem:[#allocation2 + $0xc9] sm:$0x3f] %vm210, %v253
      %v256 = vld [vmem:[%s165 + $0xc0] sm:$0xff]
      %v257 = vld [vmem:[%s165 + $0xc8] sm:$0x3f]
      %258 = vst.msk [vmem:[#allocation2 + $0xd1] sm:$0xff] %vm172, %v256
      %259 = vst.msk [vmem:[#allocation2 + $0xd9] sm:$0x3f] %vm210, %v257
      %v260 = vld [vmem:[%s165 + $0xd0] sm:$0xff]
      %v261 = vld [vmem:[%s165 + $0xd8] sm:$0x3f]
      %262 = vst.msk [vmem:[#allocation2 + $0xe1] sm:$0xff] %vm172, %v260
      %263 = vst.msk [vmem:[#allocation2 + $0xe9] sm:$0x3f] %vm210, %v261
      %v264 = vld [vmem:[#allocation2] sm:$0xff]
      %v265 = vld [vmem:[#allocation2 + $0x8] sm:$0xff]
      %v266 = vld [vmem:[#allocation2 + $0x10] sm:$0xff]
      %v267 = vld [vmem:[#allocation2 + $0x18] sm:$0xff]
      %v268 = vld [vmem:[#allocation2 + $0x20] sm:$0xff]
      %v269 = vld [vmem:[#allocation2 + $0x28] sm:$0xff]
      %v270 = vld [vmem:[#allocation2 + $0x30] sm:$0xff]
      %v271 = vld [vmem:[#allocation2 + $0x38] sm:$0xff]
      %v272 = vld [vmem:[#allocation2 + $0x40] sm:$0xff]
      %v273 = vld [vmem:[#allocation2 + $0x48] sm:$0xff]
      %v274 = vld [vmem:[#allocation2 + $0x50] sm:$0xff]
      %v275 = vld [vmem:[#allocation2 + $0x58] sm:$0xff]
      %v276 = vld [vmem:[#allocation2 + $0x60] sm:$0xff]
      %v277 = vld [vmem:[#allocation2 + $0x68] sm:$0xff]
      %v278 = vld [vmem:[#allocation2 + $0x70] sm:$0xff]
      %v279 = vld [vmem:[#allocation2 + $0x78] sm:$0xff]
      %v280 = vld [vmem:[#allocation2 + $0x80] sm:$0xff]
      %v281 = vld [vmem:[#allocation2 + $0x88] sm:$0xff]
      %v282 = vld [vmem:[#allocation2 + $0x90] sm:$0xff]
      %v283 = vld [vmem:[#allocation2 + $0x98] sm:$0xff]
      %v284 = vld [vmem:[#allocation2 + $0xa0] sm:$0xff]
      %v285 = vld [vmem:[#allocation2 + $0xa8] sm:$0xff]
      %v286 = vld [vmem:[#allocation2 + $0xb0] sm:$0xff]
      %v287 = vld [vmem:[#allocation2 + $0xb8] sm:$0xff]
      %v288 = vld [vmem:[#allocation2 + $0xc0] sm:$0xff]
      %v289 = vld [vmem:[#allocation2 + $0xc8] sm:$0xff]
      %v290 = vld [vmem:[#allocation2 + $0xd0] sm:$0xff]
      %v291 = vld [vmem:[#allocation2 + $0xd8] sm:$0xff]
      %v292 = vld [vmem:[#allocation2 + $0xe0] sm:$0xff]
      %v293 = vld [vmem:[#allocation2 + $0xe8] sm:$0xff]
      %v294 = vld [vmem:[#allocation2 + $0x1] sm:$0xff]
      %v295 = vld [vmem:[#allocation2 + $0x9] sm:$0xff]
      %v296 = vld [vmem:[#allocation2 + $0x11] sm:$0xff]
      %v297 = vld [vmem:[#allocation2 + $0x19] sm:$0xff]
      %v298 = vld [vmem:[#allocation2 + $0x21] sm:$0xff]
      %v299 = vld [vmem:[#allocation2 + $0x29] sm:$0xff]
      %v300 = vld [vmem:[#allocation2 + $0x31] sm:$0xff]
      %v301 = vld [vmem:[#allocation2 + $0x39] sm:$0xff]
      %v302 = vld [vmem:[#allocation2 + $0x41] sm:$0xff]
      %v303 = vld [vmem:[#allocation2 + $0x49] sm:$0xff]
      %v304 = vld [vmem:[#allocation2 + $0x51] sm:$0xff]
      %v305 = vld [vmem:[#allocation2 + $0x59] sm:$0xff]
      %v306 = vld [vmem:[#allocation2 + $0x61] sm:$0xff]
      %v307 = vld [vmem:[#allocation2 + $0x69] sm:$0xff]
      %v308 = vld [vmem:[#allocation2 + $0x71] sm:$0xff]
      %v309 = vld [vmem:[#allocation2 + $0x79] sm:$0xff]
      %v310 = vld [vmem:[#allocation2 + $0x81] sm:$0xff]
      %v311 = vld [vmem:[#allocation2 + $0x89] sm:$0xff]
      %v312 = vld [vmem:[#allocation2 + $0x91] sm:$0xff]
      %v313 = vld [vmem:[#allocation2 + $0x99] sm:$0xff]
      %v314 = vld [vmem:[#allocation2 + $0xa1] sm:$0xff]
      %v315 = vld [vmem:[#allocation2 + $0xa9] sm:$0xff]
      %v316 = vld [vmem:[#allocation2 + $0xb1] sm:$0xff]
      %v317 = vld [vmem:[#allocation2 + $0xb9] sm:$0xff]
      %v318 = vld [vmem:[#allocation2 + $0xc1] sm:$0xff]
      %v319 = vld [vmem:[#allocation2 + $0xc9] sm:$0xff]
      %v320 = vld [vmem:[#allocation2 + $0xd1] sm:$0xff]
      %v321 = vld [vmem:[#allocation2 + $0xd9] sm:$0xff]
      %v322 = vld [vmem:[#allocation2 + $0xe1] sm:$0xff]
      %v323 = vld [vmem:[#allocation2 + $0xe9] sm:$0xff]
      %v324 = vld [vmem:[#allocation2 + $0xf0] sm:$0xff]
      %v325 = vld [vmem:[#allocation2 + $0xf8] sm:$0xff]
      %v326 = vld [vmem:[#allocation2 + $0xf1] sm:$0xff]
      %v327 = vld [vmem:[#allocation2 + $0xf9] sm:$0xff]
      %358 = vrot.lane.b32.xlu0 %v294, 32
      %v359 = vpop.permute.xlu0 %358
      %360 = vrot.lane.b32.xlu0 %v295, 32
      %v361 = vpop.permute.xlu0 %360
      %362 = vrot.lane.b32.xlu0 %v296, 32
      %v363 = vpop.permute.xlu0 %362
      %364 = vrot.lane.b32.xlu0 %v297, 32
      %v365 = vpop.permute.xlu0 %364
      %366 = vrot.lane.b32.xlu0 %v298, 32
      %v367 = vpop.permute.xlu0 %366
      %368 = vrot.lane.b32.xlu0 %v299, 32
      %v369 = vpop.permute.xlu0 %368
      %370 = vrot.lane.b32.xlu0 %v300, 32
      %v371 = vpop.permute.xlu0 %370
      %372 = vrot.lane.b32.xlu0 %v301, 32
      %v373 = vpop.permute.xlu0 %372
      %374 = vrot.lane.b32.xlu0 %v302, 32
      %v375 = vpop.permute.xlu0 %374
      %376 = vrot.lane.b32.xlu0 %v303, 32
      %v377 = vpop.permute.xlu0 %376
      %378 = vrot.lane.b32.xlu0 %v304, 32
      %v379 = vpop.permute.xlu0 %378
      %380 = vrot.lane.b32.xlu0 %v305, 32
      %v381 = vpop.permute.xlu0 %380
      %382 = vrot.lane.b32.xlu0 %v306, 32
      %v383 = vpop.permute.xlu0 %382
      %384 = vrot.lane.b32.xlu0 %v307, 32
      %v385 = vpop.permute.xlu0 %384
      %386 = vrot.lane.b32.xlu0 %v308, 32
      %v387 = vpop.permute.xlu0 %386
      %388 = vrot.lane.b32.xlu0 %v309, 32
      %v389 = vpop.permute.xlu0 %388
      %390 = vrot.lane.b32.xlu0 %v310, 32
      %v391 = vpop.permute.xlu0 %390
      %392 = vrot.lane.b32.xlu0 %v311, 32
      %v393 = vpop.permute.xlu0 %392
      %394 = vrot.lane.b32.xlu0 %v312, 32
      %v395 = vpop.permute.xlu0 %394
      %396 = vrot.lane.b32.xlu0 %v313, 32
      %v397 = vpop.permute.xlu0 %396
      %398 = vrot.lane.b32.xlu0 %v314, 32
      %v399 = vpop.permute.xlu0 %398
      %400 = vrot.lane.b32.xlu0 %v315, 32
      %v401 = vpop.permute.xlu0 %400
      %402 = vrot.lane.b32.xlu0 %v316, 32
      %v403 = vpop.permute.xlu0 %402
      %404 = vrot.lane.b32.xlu0 %v317, 32
      %v405 = vpop.permute.xlu0 %404
      %406 = vrot.lane.b32.xlu0 %v318, 32
      %v407 = vpop.permute.xlu0 %406
      %408 = vrot.lane.b32.xlu0 %v319, 32
      %v409 = vpop.permute.xlu0 %408
      %410 = vrot.lane.b32.xlu0 %v320, 32
      %v411 = vpop.permute.xlu0 %410
      %412 = vrot.lane.b32.xlu0 %v321, 32
      %v413 = vpop.permute.xlu0 %412
      %414 = vrot.lane.b32.xlu0 %v322, 32
      %v415 = vpop.permute.xlu0 %414
      %416 = vrot.lane.b32.xlu0 %v323, 32
      %v417 = vpop.permute.xlu0 %416
      %478 = vrot.lane.b32.xlu0 %v266, 64
      %v479 = vpop.permute.xlu0 %478
      %480 = vrot.lane.b32.xlu0 %v267, 64
      %v481 = vpop.permute.xlu0 %480
      %482 = vrot.lane.b32.xlu0 %v268, 64
      %v483 = vpop.permute.xlu0 %482
      %484 = vrot.lane.b32.xlu0 %v269, 64
      %v485 = vpop.permute.xlu0 %484
      %486 = vrot.lane.b32.xlu0 %v270, 64
      %v487 = vpop.permute.xlu0 %486
      %488 = vrot.lane.b32.xlu0 %v271, 64
      %v489 = vpop.permute.xlu0 %488
      %490 = vrot.lane.b32.xlu0 %v272, 64
      %v491 = vpop.permute.xlu0 %490
      %492 = vrot.lane.b32.xlu0 %v273, 64
      %v493 = vpop.permute.xlu0 %492
      %494 = vrot.lane.b32.xlu0 %v274, 64
      %v495 = vpop.permute.xlu0 %494
      %496 = vrot.lane.b32.xlu0 %v275, 64
      %v497 = vpop.permute.xlu0 %496
      %498 = vrot.lane.b32.xlu0 %v276, 64
      %v499 = vpop.permute.xlu0 %498
      %500 = vrot.lane.b32.xlu0 %v277, 64
      %v501 = vpop.permute.xlu0 %500
      %502 = vrot.lane.b32.xlu0 %v278, 64
      %v503 = vpop.permute.xlu0 %502
      %504 = vrot.lane.b32.xlu0 %v279, 64
      %v505 = vpop.permute.xlu0 %504
      %506 = vrot.lane.b32.xlu0 %v280, 64
      %v507 = vpop.permute.xlu0 %506
      %508 = vrot.lane.b32.xlu0 %v281, 64
      %v509 = vpop.permute.xlu0 %508
      %510 = vrot.lane.b32.xlu0 %v282, 64
      %v511 = vpop.permute.xlu0 %510
      %512 = vrot.lane.b32.xlu0 %v283, 64
      %v513 = vpop.permute.xlu0 %512
      %514 = vrot.lane.b32.xlu0 %v284, 64
      %v515 = vpop.permute.xlu0 %514
      %516 = vrot.lane.b32.xlu0 %v285, 64
      %v517 = vpop.permute.xlu0 %516
      %518 = vrot.lane.b32.xlu0 %v286, 64
      %v519 = vpop.permute.xlu0 %518
      %520 = vrot.lane.b32.xlu0 %v287, 64
      %v521 = vpop.permute.xlu0 %520
      %522 = vrot.lane.b32.xlu0 %v288, 64
      %v523 = vpop.permute.xlu0 %522
      %524 = vrot.lane.b32.xlu0 %v289, 64
      %v525 = vpop.permute.xlu0 %524
      %526 = vrot.lane.b32.xlu0 %v290, 64
      %v527 = vpop.permute.xlu0 %526
      %528 = vrot.lane.b32.xlu0 %v291, 64
      %v529 = vpop.permute.xlu0 %528
      %530 = vrot.lane.b32.xlu0 %v292, 64
      %v531 = vpop.permute.xlu0 %530
      %532 = vrot.lane.b32.xlu0 %v293, 64
      %v533 = vpop.permute.xlu0 %532
      %534 = vrot.lane.b32.xlu0 %v324, 64
      %v535 = vpop.permute.xlu0 %534
      %536 = vrot.lane.b32.xlu0 %v325, 64
      %v537 = vpop.permute.xlu0 %536
      %570 = vrot.lane.b32.xlu0 %v296, 96
      %v571 = vpop.permute.xlu0 %570
      %572 = vrot.lane.b32.xlu0 %v297, 96
      %v573 = vpop.permute.xlu0 %572
      %574 = vrot.lane.b32.xlu0 %v298, 96
      %v575 = vpop.permute.xlu0 %574
      %576 = vrot.lane.b32.xlu0 %v299, 96
      %v577 = vpop.permute.xlu0 %576
      %578 = vrot.lane.b32.xlu0 %v300, 96
      %v579 = vpop.permute.xlu0 %578
      %580 = vrot.lane.b32.xlu0 %v301, 96
      %v581 = vpop.permute.xlu0 %580
      %582 = vrot.lane.b32.xlu0 %v302, 96
      %v583 = vpop.permute.xlu0 %582
      %584 = vrot.lane.b32.xlu0 %v303, 96
      %v585 = vpop.permute.xlu0 %584
      %586 = vrot.lane.b32.xlu0 %v304, 96
      %v587 = vpop.permute.xlu0 %586
      %588 = vrot.lane.b32.xlu0 %v305, 96
      %v589 = vpop.permute.xlu0 %588
      %590 = vrot.lane.b32.xlu0 %v306, 96
      %v591 = vpop.permute.xlu0 %590
      %592 = vrot.lane.b32.xlu0 %v307, 96
      %v593 = vpop.permute.xlu0 %592
      %594 = vrot.lane.b32.xlu0 %v308, 96
      %v595 = vpop.permute.xlu0 %594
      %596 = vrot.lane.b32.xlu0 %v309, 96
      %v597 = vpop.permute.xlu0 %596
      %598 = vrot.lane.b32.xlu0 %v310, 96
      %v599 = vpop.permute.xlu0 %598
      %600 = vrot.lane.b32.xlu0 %v311, 96
      %v601 = vpop.permute.xlu0 %600
      %602 = vrot.lane.b32.xlu0 %v312, 96
      %v603 = vpop.permute.xlu0 %602
      %604 = vrot.lane.b32.xlu0 %v313, 96
      %v605 = vpop.permute.xlu0 %604
      %606 = vrot.lane.b32.xlu0 %v314, 96
      %v607 = vpop.permute.xlu0 %606
      %608 = vrot.lane.b32.xlu0 %v315, 96
      %v609 = vpop.permute.xlu0 %608
      %610 = vrot.lane.b32.xlu0 %v316, 96
      %v611 = vpop.permute.xlu0 %610
      %612 = vrot.lane.b32.xlu0 %v317, 96
      %v613 = vpop.permute.xlu0 %612
      %614 = vrot.lane.b32.xlu0 %v318, 96
      %v615 = vpop.permute.xlu0 %614
      %616 = vrot.lane.b32.xlu0 %v319, 96
      %v617 = vpop.permute.xlu0 %616
      %618 = vrot.lane.b32.xlu0 %v320, 96
      %v619 = vpop.permute.xlu0 %618
      %620 = vrot.lane.b32.xlu0 %v321, 96
      %v621 = vpop.permute.xlu0 %620
      %622 = vrot.lane.b32.xlu0 %v322, 96
      %v623 = vpop.permute.xlu0 %622
      %624 = vrot.lane.b32.xlu0 %v323, 96
      %v625 = vpop.permute.xlu0 %624
      %626 = vrot.lane.b32.xlu0 %v326, 96
      %v627 = vpop.permute.xlu0 %626
      %628 = vrot.lane.b32.xlu0 %v327, 96
      %v629 = vpop.permute.xlu0 %628
      %v660 = vsel %vm172, %v264, %v359
      %v661 = vsel %vm172, %v265, %v361
      %v662 = vsel %vm172, %v266, %v363
      %v663 = vsel %vm172, %v267, %v365
      %v664 = vsel %vm172, %v268, %v367
      %v665 = vsel %vm172, %v269, %v369
      %v666 = vsel %vm172, %v270, %v371
      %v667 = vsel %vm172, %v271, %v373
      %v668 = vsel %vm172, %v272, %v375
      %v669 = vsel %vm172, %v273, %v377
      %v670 = vsel %vm172, %v274, %v379
      %v671 = vsel %vm172, %v275, %v381
      %v672 = vsel %vm172, %v276, %v383
      %v673 = vsel %vm172, %v277, %v385
      %v674 = vsel %vm172, %v278, %v387
      %v675 = vsel %vm172, %v279, %v389
      %v676 = vsel %vm172, %v280, %v391
      %v677 = vsel %vm172, %v281, %v393
      %v678 = vsel %vm172, %v282, %v395
      %v679 = vsel %vm172, %v283, %v397
      %v680 = vsel %vm172, %v284, %v399
      %v681 = vsel %vm172, %v285, %v401
      %v682 = vsel %vm172, %v286, %v403
      %v683 = vsel %vm172, %v287, %v405
      %v684 = vsel %vm172, %v288, %v407
      %v685 = vsel %vm172, %v289, %v409
      %v686 = vsel %vm172, %v290, %v411
      %v687 = vsel %vm172, %v291, %v413
      %v688 = vsel %vm172, %v292, %v415
      %v689 = vsel %vm172, %v293, %v417
      %vm690 = vcmask 523264
      %v691 = vsel %vm690, %v660, %v479
      %v692 = vsel %vm690, %v661, %v481
      %v693 = vsel %vm690, %v662, %v483
      %v694 = vsel %vm690, %v663, %v485
      %v695 = vsel %vm690, %v664, %v487
      %v696 = vsel %vm690, %v665, %v489
      %v697 = vsel %vm690, %v666, %v491
      %v698 = vsel %vm690, %v667, %v493
      %v699 = vsel %vm690, %v668, %v495
      %v700 = vsel %vm690, %v669, %v497
      %v701 = vsel %vm690, %v670, %v499
      %v702 = vsel %vm690, %v671, %v501
      %v703 = vsel %vm690, %v672, %v503
      %v704 = vsel %vm690, %v673, %v505
      %v705 = vsel %vm690, %v674, %v507
      %v706 = vsel %vm690, %v675, %v509
      %v707 = vsel %vm690, %v676, %v511
      %v708 = vsel %vm690, %v677, %v513
      %v709 = vsel %vm690, %v678, %v515
      %v710 = vsel %vm690, %v679, %v517
      %v711 = vsel %vm690, %v680, %v519
      %v712 = vsel %vm690, %v681, %v521
      %v713 = vsel %vm690, %v682, %v523
      %v714 = vsel %vm690, %v683, %v525
      %v715 = vsel %vm690, %v684, %v527
      %v716 = vsel %vm690, %v685, %v529
      %v717 = vsel %vm690, %v686, %v531
      %v718 = vsel %vm690, %v687, %v533
      %v719 = vsel %vm690, %v688, %v535
      %v720 = vsel %vm690, %v689, %v537
      %vm721 = vcmask 785408
      %v722 = vsel %vm721, %v691, %v571
      %v723 = vsel %vm721, %v692, %v573
      %v724 = vsel %vm721, %v693, %v575
      %v725 = vsel %vm721, %v694, %v577
      %v726 = vsel %vm721, %v695, %v579
      %v727 = vsel %vm721, %v696, %v581
      %v728 = vsel %vm721, %v697, %v583
      %v729 = vsel %vm721, %v698, %v585
      %v730 = vsel %vm721, %v699, %v587
      %v731 = vsel %vm721, %v700, %v589
      %v732 = vsel %vm721, %v701, %v591
      %v733 = vsel %vm721, %v702, %v593
      %v734 = vsel %vm721, %v703, %v595
      %v735 = vsel %vm721, %v704, %v597
      %v736 = vsel %vm721, %v705, %v599
      %v737 = vsel %vm721, %v706, %v601
      %v738 = vsel %vm721, %v707, %v603
      %v739 = vsel %vm721, %v708, %v605
      %v740 = vsel %vm721, %v709, %v607
      %v741 = vsel %vm721, %v710, %v609
      %v742 = vsel %vm721, %v711, %v611
      %v743 = vsel %vm721, %v712, %v613
      %v744 = vsel %vm721, %v713, %v615
      %v745 = vsel %vm721, %v714, %v617
      %v746 = vsel %vm721, %v715, %v619
      %v747 = vsel %vm721, %v716, %v621
      %v748 = vsel %vm721, %v717, %v623
      %v749 = vsel %vm721, %v718, %v625
      %v750 = vsel %vm721, %v719, %v627
      %v751 = vsel %vm721, %v720, %v629
      %v752 = vpack.c.bf16 %v723, %v722
      %v753 = vpack.c.bf16 %v725, %v724
      %v754 = vpack.c.bf16 %v727, %v726
      %v755 = vpack.c.bf16 %v729, %v728
      %v756 = vpack.c.bf16 %v731, %v730
      %v757 = vpack.c.bf16 %v733, %v732
      %v758 = vpack.c.bf16 %v735, %v734
      %v759 = vpack.c.bf16 %v737, %v736
      %v760 = vpack.c.bf16 %v739, %v738
      %v761 = vpack.c.bf16 %v741, %v740
      %v762 = vpack.c.bf16 %v743, %v742
      %v763 = vpack.c.bf16 %v745, %v744
      %v764 = vpack.c.bf16 %v747, %v746
      %v765 = vpack.c.bf16 %v749, %v748
      %v766 = vpack.c.bf16 %v751, %v750
      %v767 = vld [vmem:[%s1] sm:$0xf]
      %v768 = vld [vmem:[%s1 + $0x4] sm:$0xf]
      %v769 = vld [vmem:[%s1 + $0x8] sm:$0xf]
      %v770 = vld [vmem:[%s1 + $0xc] sm:$0xf]
      %v771 = vld [vmem:[%s1 + $0x10] sm:$0xf]
      %v772 = vld [vmem:[%s1 + $0x14] sm:$0xf]
      %v773 = vld [vmem:[%s1 + $0x18] sm:$0xf]
      %v774 = vld [vmem:[%s1 + $0x1c] sm:$0xf]
      %v775 = vld [vmem:[%s1 + $0x20] sm:$0xf]
      %v776 = vld [vmem:[%s1 + $0x24] sm:$0xf]
      %v777 = vld [vmem:[%s1 + $0x28] sm:$0xf]
      %v778 = vld [vmem:[%s1 + $0x2c] sm:$0xf]
      %v779 = vld [vmem:[%s1 + $0x30] sm:$0xf]
      %v780 = vld [vmem:[%s1 + $0x34] sm:$0xf]
      %v781 = vld [vmem:[%s1 + $0x38] sm:$0xf]
      %v782 = vld [vmem:[%s1 + $0x3c] sm:$0xf]
      %v783 = vld [vmem:[%s2] sm:$0x1]
      %v785 = vlaneseq
      %v786 = vshrl.u32 %v785, 7
      %v787 = vsub.s32 0, %v786
      %v788 = vrot.slane %v783, %v787
      %v806 = vunpack.c.l.b16 %v767
      %v807 = vunpack.c.l.b16 %v768
      %v808 = vunpack.c.l.b16 %v769
      %v809 = vunpack.c.l.b16 %v770
      %v810 = vunpack.c.l.b16 %v771
      %v811 = vunpack.c.l.b16 %v772
      %v812 = vunpack.c.l.b16 %v773
      %v813 = vunpack.c.l.b16 %v774
      %v814 = vunpack.c.l.b16 %v775
      %v815 = vunpack.c.l.b16 %v776
      %v816 = vunpack.c.l.b16 %v777
      %v817 = vunpack.c.l.b16 %v778
      %v818 = vunpack.c.l.b16 %v779
      %v819 = vunpack.c.l.b16 %v780
      %v820 = vunpack.c.l.b16 %v781
      %v821 = vunpack.c.l.b16 %v782
      %v822 = vpack.c.b16 %v807, %v806
      %v823 = vpack.c.b16 %v809, %v808
      %v824 = vpack.c.b16 %v811, %v810
      %v825 = vpack.c.b16 %v813, %v812
      %v826 = vpack.c.b16 %v815, %v814
      %v827 = vpack.c.b16 %v817, %v816
      %v828 = vpack.c.b16 %v819, %v818
      %v829 = vpack.c.b16 %v821, %v820
      %838 = vmatprep.subr.bf16.mxu0 0
      %839 = vmatpush1.bf16.msra.mxu0 %v829
      %840 = vmatprep.subr.bf16.mxu0 0
      %841 = vmatpush1.bf16.msra.mxu0 %v828
      %842 = vmatprep.subr.bf16.mxu0 0
      %843 = vmatpush1.bf16.msra.mxu0 %v827
      %844 = vmatprep.subr.bf16.mxu0 0
      %845 = vmatpush1.bf16.msra.mxu0 %v826
      %846 = vmatprep.subr.bf16.mxu0 0
      %847 = vmatpush1.bf16.msra.mxu0 %v825
      %848 = vmatprep.subr.bf16.mxu0 0
      %849 = vmatpush1.bf16.msra.mxu0 %v824
      %850 = vmatprep.subr.bf16.mxu0 0
      %851 = vmatpush1.bf16.msra.mxu0 %v823
      %852 = vmatprep.subr.bf16.mxu0 0
      %853 = vmatpush1.bf16.msra.mxu0 %v822
      %854 = vmatprep.subr.bf16.mxu0 0
      %855 = vmatpush2.bf16.msra.mxu0 0
      %856 = vmatprep.subr.bf16.mxu0 0
      %857 = vmatpush2.bf16.msra.mxu0 0
      %858 = vmatprep.subr.bf16.mxu0 0
      %859 = vmatpush2.bf16.msra.mxu0 0
      %860 = vmatprep.subr.bf16.mxu0 0
      %861 = vmatpush2.bf16.msra.mxu0 0
      %862 = vmatprep.subr.bf16.mxu0 0
      %863 = vmatpush2.bf16.msra.mxu0 0
      %864 = vmatprep.subr.bf16.mxu0 0
      %865 = vmatpush2.bf16.msra.mxu0 0
      %866 = vmatprep.subr.bf16.mxu0 0
      %867 = vmatpush2.bf16.msra.mxu0 0
      %868 = vmatprep.subr.bf16.mxu0 0
      %869 = vmatpush2.bf16.msra.mxu0 0
      %870 = vmatprep.mubr.bf16.mxu0 0
      %871 = vmatmul.mubr.bf16.gmra.mxu0 %v752
      %v872 = vpop.f32.mrf.mxu0
      %v873 = vadd.f32 %v788, %v872
      %v874 = vpop.f32.mrf.mxu0
      %v875 = vpop.f32.mrf.mxu0
      %v876 = vadd.f32 %v788, %v875
      %v877 = vpop.f32.mrf.mxu0
      %878 = vmatprep.mubr.bf16.mxu0 0
      %879 = vmatmul.mubr.bf16.gmra.mxu0 %v753
      %v880 = vpop.f32.mrf.mxu0
      %v881 = vadd.f32 %v788, %v880
      %v882 = vpop.f32.mrf.mxu0
      %v883 = vpop.f32.mrf.mxu0
      %v884 = vadd.f32 %v788, %v883
      %v885 = vpop.f32.mrf.mxu0
      %886 = vmatprep.mubr.bf16.mxu0 0
      %887 = vmatmul.mubr.bf16.gmra.mxu0 %v754
      %v888 = vpop.f32.mrf.mxu0
      %v889 = vadd.f32 %v788, %v888
      %v890 = vpop.f32.mrf.mxu0
      %v891 = vpop.f32.mrf.mxu0
      %v892 = vadd.f32 %v788, %v891
      %v893 = vpop.f32.mrf.mxu0
      %894 = vmatprep.mubr.bf16.mxu0 0
      %895 = vmatmul.mubr.bf16.gmra.mxu0 %v755
      %v896 = vpop.f32.mrf.mxu0
      %v897 = vadd.f32 %v788, %v896
      %v898 = vpop.f32.mrf.mxu0
      %v899 = vpop.f32.mrf.mxu0
      %v900 = vadd.f32 %v788, %v899
      %v901 = vpop.f32.mrf.mxu0
      %902 = vmatprep.mubr.bf16.mxu0 0
      %903 = vmatmul.mubr.bf16.gmra.mxu0 %v756
      %v904 = vpop.f32.mrf.mxu0
      %v905 = vadd.f32 %v788, %v904
      %v906 = vpop.f32.mrf.mxu0
      %v907 = vpop.f32.mrf.mxu0
      %v908 = vadd.f32 %v788, %v907
      %v909 = vpop.f32.mrf.mxu0
      %910 = vmatprep.mubr.bf16.mxu0 0
      %911 = vmatmul.mubr.bf16.gmra.mxu0 %v757
      %v912 = vpop.f32.mrf.mxu0
      %v913 = vadd.f32 %v788, %v912
      %v914 = vpop.f32.mrf.mxu0
      %v915 = vpop.f32.mrf.mxu0
      %v916 = vadd.f32 %v788, %v915
      %v917 = vpop.f32.mrf.mxu0
      %918 = vmatprep.mubr.bf16.mxu0 0
      %919 = vmatmul.mubr.bf16.gmra.mxu0 %v758
      %v920 = vpop.f32.mrf.mxu0
      %v921 = vadd.f32 %v788, %v920
      %v922 = vpop.f32.mrf.mxu0
      %v923 = vpop.f32.mrf.mxu0
      %v924 = vadd.f32 %v788, %v923
      %v925 = vpop.f32.mrf.mxu0
      %926 = vmatprep.mubr.bf16.mxu0 0
      %927 = vmatmul.mubr.bf16.gmra.mxu0 %v759
      %v928 = vpop.f32.mrf.mxu0
      %v929 = vadd.f32 %v788, %v928
      %v930 = vpop.f32.mrf.mxu0
      %v931 = vpop.f32.mrf.mxu0
      %v932 = vadd.f32 %v788, %v931
      %v933 = vpop.f32.mrf.mxu0
      %934 = vmatprep.mubr.bf16.mxu0 0
      %935 = vmatmul.mubr.bf16.gmra.mxu0 %v760
      %v936 = vpop.f32.mrf.mxu0
      %v937 = vadd.f32 %v788, %v936
      %v938 = vpop.f32.mrf.mxu0
      %v939 = vpop.f32.mrf.mxu0
      %v940 = vadd.f32 %v788, %v939
      %v941 = vpop.f32.mrf.mxu0
      %942 = vmatprep.mubr.bf16.mxu0 0
      %943 = vmatmul.mubr.bf16.gmra.mxu0 %v761
      %v944 = vpop.f32.mrf.mxu0
      %v945 = vadd.f32 %v788, %v944
      %v946 = vpop.f32.mrf.mxu0
      %v947 = vpop.f32.mrf.mxu0
      %v948 = vadd.f32 %v788, %v947
      %v949 = vpop.f32.mrf.mxu0
      %950 = vmatprep.mubr.bf16.mxu0 0
      %951 = vmatmul.mubr.bf16.gmra.mxu0 %v762
      %v952 = vpop.f32.mrf.mxu0
      %v953 = vadd.f32 %v788, %v952
      %v954 = vpop.f32.mrf.mxu0
      %v955 = vpop.f32.mrf.mxu0
      %v956 = vadd.f32 %v788, %v955
      %v957 = vpop.f32.mrf.mxu0
      %958 = vmatprep.mubr.bf16.mxu0 0
      %959 = vmatmul.mubr.bf16.gmra.mxu0 %v763
      %v960 = vpop.f32.mrf.mxu0
      %v961 = vadd.f32 %v788, %v960
      %v962 = vpop.f32.mrf.mxu0
      %v963 = vpop.f32.mrf.mxu0
      %v964 = vadd.f32 %v788, %v963
      %v965 = vpop.f32.mrf.mxu0
      %966 = vmatprep.mubr.bf16.mxu0 0
      %967 = vmatmul.mubr.bf16.gmra.mxu0 %v764
      %v968 = vpop.f32.mrf.mxu0
      %v969 = vadd.f32 %v788, %v968
      %v970 = vpop.f32.mrf.mxu0
      %v971 = vpop.f32.mrf.mxu0
      %v972 = vadd.f32 %v788, %v971
      %v973 = vpop.f32.mrf.mxu0
      %974 = vmatprep.mubr.bf16.mxu0 0
      %975 = vmatmul.mubr.bf16.gmra.mxu0 %v765
      %v976 = vpop.f32.mrf.mxu0
      %v977 = vadd.f32 %v788, %v976
      %v978 = vpop.f32.mrf.mxu0
      %v979 = vpop.f32.mrf.mxu0
      %v980 = vadd.f32 %v788, %v979
      %v981 = vpop.f32.mrf.mxu0
      %982 = vmatprep.mubr.bf16.mxu0 0
      %983 = vmatmul.mubr.bf16.gmra.mxu0 %v766
      %v984 = vpop.f32.mrf.mxu0
      %v985 = vadd.f32 %v788, %v984
      %v986 = vpop.f32.mrf.mxu0
      %v987 = vpop.f32.mrf.mxu0
      %v988 = vadd.f32 %v788, %v987
      %v989 = vpop.f32.mrf.mxu0
      %990 = vdwg.mxu0
      %vm991 = vcmask 31744
      %992 = vst.msk [vmem:[%s170] sm:$0xff] %vm991, %v873
      %993 = vst.msk [vmem:[%s170 + $0x8] sm:$0xff] %vm991, %v876
      %994 = vst.msk [vmem:[%s170 + $0x10] sm:$0xff] %vm991, %v881
      %995 = vst.msk [vmem:[%s170 + $0x18] sm:$0xff] %vm991, %v884
      %996 = vst.msk [vmem:[%s170 + $0x20] sm:$0xff] %vm991, %v889
      %997 = vst.msk [vmem:[%s170 + $0x28] sm:$0xff] %vm991, %v892
      %998 = vst.msk [vmem:[%s170 + $0x30] sm:$0xff] %vm991, %v897
      %999 = vst.msk [vmem:[%s170 + $0x38] sm:$0xff] %vm991, %v900
      %1000 = vst.msk [vmem:[%s170 + $0x40] sm:$0xff] %vm991, %v905
      %1001 = vst.msk [vmem:[%s170 + $0x48] sm:$0xff] %vm991, %v908
      %1002 = vst.msk [vmem:[%s170 + $0x50] sm:$0xff] %vm991, %v913
      %1003 = vst.msk [vmem:[%s170 + $0x58] sm:$0xff] %vm991, %v916
      %1004 = vst.msk [vmem:[%s170 + $0x60] sm:$0xff] %vm991, %v921
      %1005 = vst.msk [vmem:[%s170 + $0x68] sm:$0xff] %vm991, %v924
      %1006 = vst.msk [vmem:[%s170 + $0x70] sm:$0xff] %vm991, %v929
      %1007 = vst.msk [vmem:[%s170 + $0x78] sm:$0xff] %vm991, %v932
      %1008 = vst.msk [vmem:[%s170 + $0x80] sm:$0xff] %vm991, %v937
      %1009 = vst.msk [vmem:[%s170 + $0x88] sm:$0xff] %vm991, %v940
      %1010 = vst.msk [vmem:[%s170 + $0x90] sm:$0xff] %vm991, %v945
      %1011 = vst.msk [vmem:[%s170 + $0x98] sm:$0xff] %vm991, %v948
      %1012 = vst.msk [vmem:[%s170 + $0xa0] sm:$0xff] %vm991, %v953
      %1013 = vst.msk [vmem:[%s170 + $0xa8] sm:$0xff] %vm991, %v956
      %1014 = vst.msk [vmem:[%s170 + $0xb0] sm:$0xff] %vm991, %v961
      %1015 = vst.msk [vmem:[%s170 + $0xb8] sm:$0xff] %vm991, %v964
      %1016 = vst.msk [vmem:[%s170 + $0xc0] sm:$0xff] %vm991, %v969
      %1017 = vst.msk [vmem:[%s170 + $0xc8] sm:$0xff] %vm991, %v972
      %1018 = vst.msk [vmem:[%s170 + $0xd0] sm:$0xff] %vm991, %v977
      %1019 = vst.msk [vmem:[%s170 + $0xd8] sm:$0xff] %vm991, %v980
      %1020 = vst.msk [vmem:[%s170 + $0xe0] sm:$0xff] %vm991, %v985
      %1021 = vst.msk [vmem:[%s170 + $0xe8] sm:$0xff] %vm991, %v988
      %p1022 = scmp.lt.s32.totalorder %s14, 1
      %s1023 = scalar_select %p1022, %s14, 1
      %s1024 = smul.addr %s1023, 30
      %s1025 = smul.addr %s1024, 8
      %s1026 = scalar_lea.vmem %s3, %s1025
      // Predicated region
      $region33: #{pixel_decoder_forward.9} parent=31 // pred_check
        %p1027 = pneg %p100
      $region34: #{pixel_decoder_forward.9} parent=31 // pred_check_branch
        %1029 = sbr.rel (%p1027) target = $region36
      $region35: #{pixel_decoder_forward.9} parent=31 // pred_region
        _
      $region36: #{pixel_decoder_forward.9} parent=31 // pred_fallthru
        _
    $region32: #{pixel_decoder_forward.9} parent=5 // pred_fallthru
      _
    %p1030 = scmp.le.s32.totalorder 2, %s9
    // Predicated region
    $region37: #{pixel_decoder_forward.9} parent=5 // pred_check
      %p1031 = pneg %p1030
    $region38: #{pixel_decoder_forward.9} parent=5 // pred_check_branch
      %1033 = sbr.rel (%p1031) target = $region40
    $region39: #{pixel_decoder_forward.9} parent=5 // pred_region
      %s1034 = ssub.s32 %s9, 2
      // Predicated region
      $region41: #{pixel_decoder_forward.9} parent=39 // pred_check
        %p1035 = pneg %p106
      $region42: #{pixel_decoder_forward.9} parent=39 // pred_check_branch
        %1037 = sbr.rel (%p1035) target = $region44
      $region43: #{pixel_decoder_forward.9} parent=39 // pred_region
        %p1038 = scmp.lt.s32.totalorder %s15, 1
        %s1039 = scalar_select %p1038, %s15, 1
        %s1040 = smul.addr %s1039, 30
        %s1041 = smul.addr %s1040, 8
        %s1042 = scalar_lea.vmem %s3, %s1041
      $region44: #{pixel_decoder_forward.9} parent=39 // pred_fallthru
        _
    $region40: #{pixel_decoder_forward.9} parent=5 // pred_fallthru
      _
  $region6: #{pixel_decoder_forward.9} parent=0 // loop_footer
    %s13 = sadd.s32 1, %s9
  $region7: #{pixel_decoder_forward.9} parent=0 // loop_footer_branch
    %8 = sbr.rel target = $region3
  $region8: #{pixel_decoder_forward.9} parent=0 // loop_exit
    _

</llo_original>
